<compile_context>
chip_gen: v5e
topology: v5e:2x2
jax: 0.10.0
libtpu: 0.0.40
codegen_flags: <defaults>
</compile_context>

<pallas_src>
import functools

import numpy as np

import jax
import jax.numpy as jnp
from jax import lax
from jax.experimental import pallas as pl
from jax.experimental.pallas import tpu as pltpu


# ----------------------------------------------------------------------------
# Static architecture config (Python constants, never traced)
# ----------------------------------------------------------------------------
_BASE_WIDTH = 16
_WIDTHS = (_BASE_WIDTH, _BASE_WIDTH * 2, _BASE_WIDTH * 4, _BASE_WIDTH * 8)
_STRIDES = (1, 2, 2, 2)
_STEM_CIN = 3
_STEM_CIN_PAD = 8        # pad stem Cin 3 -> 8 so K = 7*7*8 = 392 (multiple of 8)
_CPAD = 128              # lane-dense output channel padding
_ACT_DTYPE = jnp.bfloat16


# ----------------------------------------------------------------------------
# Pallas kernels
# ----------------------------------------------------------------------------
def _stem_kernel(p_ref, w_ref, b_ref, o_ref):
    """7x7 stem conv as GEMM + folded-BN bias + ReLU (one image per step)."""
    acc = jnp.dot(p_ref[...], w_ref[...], preferred_element_type=jnp.float32)
    o_ref[...] = jnp.maximum(acc + b_ref[...], 0.0).astype(o_ref.dtype)


def _block_kernel(p_ref, wcat_ref, bcat_ref, w2_ref, b2_ref, s_ref, o_ref, *,
                  hw, cout_pad):
    """Fully fused BasicBlock for one image.

    p_ref    : (hw, 9*Cin_real)  bf16   im2col of the block input (conv1 taps)
    wcat_ref : (9*Cin_real, 256) bf16   [ conv1 (BN folded) | downsample/identity
                                          scattered into centre-tap rows ]
    bcat_ref : (1, 256)          f32    [ bn1 bias | downsample bias / 0 ]
    w2_ref   : (9, 128, 128)     bf16   conv2 per-tap weights (BN folded)
    b2_ref   : (1, 128)          f32    bn2 bias
    s_ref    : (9, hw, hw)       bf16   static 0/1 tap-selection matrices
    o_ref    : (hw, 128)         bf16   block output (lane-dense, relu'd)
    """
    # conv1 + downsample/identity in ONE N=256 GEMM, f32 accumulation.
    z = jnp.dot(p_ref[...], wcat_ref[...],
                preferred_element_type=jnp.float32) + bcat_ref[...]
    y1 = jnp.maximum(z[:, :cout_pad], 0.0).astype(jnp.bfloat16)   # relu(bn1(conv1))
    acc = z[:, cout_pad:] + b2_ref[...]                           # residual + bn2 bias

    # conv2 (3x3, stride 1, pad 1) on the VMEM-resident y1: per tap, select the
    # shifted rows with a 0/1 matrix (exact on bf16 values), then matmul.
    if hw == 1:
        # 1x1 spatial output: only the centre tap is in-bounds.
        acc = acc + jnp.dot(y1, w2_ref[4], preferred_element_type=jnp.float32)
    else:
        for t in range(9):
            xt = jnp.dot(s_ref[t], y1,
                         preferred_element_type=jnp.float32).astype(jnp.bfloat16)
            acc = acc + jnp.dot(xt, w2_ref[t],
                                preferred_element_type=jnp.float32)

    o_ref[...] = jnp.maximum(acc, 0.0).astype(o_ref.dtype)


# ----------------------------------------------------------------------------
# Host-side helpers (XLA): im2col at real channel width, tap-selection masks
# ----------------------------------------------------------------------------
def _im2col_nhwc(x, kh, kw, stride, pad):
    """(N,H,W,C) -> (N, Ho*Wo, kh*kw*C), keeping the batch dim for the grid."""
    n, h, w, c = x.shape
    if pad:
        x = jnp.pad(x, ((0, 0), (pad, pad), (pad, pad), (0, 0)))
    ho = (h + 2 * pad - kh) // stride + 1
    wo = (w + 2 * pad - kw) // stride + 1
    cols = []
    for i in range(kh):
        for j in range(kw):
            cols.append(x[:, i:i + stride * (ho - 1) + 1:stride,
                          j:j + stride * (wo - 1) + 1:stride, :])
    patches = jnp.concatenate(cols, axis=-1)          # (N, Ho, Wo, kh*kw*C)
    return patches.reshape(n, ho * wo, kh * kw * c), ho, wo


@functools.lru_cache(maxsize=None)
def _conv2_select_mats(ho, wo):
    """Static 0/1 matrices S_t with (S_t @ y)[r] = y[neighbor_t(r)] (0 if OOB)."""
    hw = ho * wo
    s = np.zeros((9, hw, hw), np.float32)
    for di in range(3):
        for dj in range(3):
            t = di * 3 + dj
            for r in range(hw):
                i, j = divmod(r, wo)
                ii, jj = i + di - 1, j + dj - 1
                if 0 <= ii < ho and 0 <= jj < wo:
                    s[t, r, ii * wo + jj] = 1.0
    return jnp.asarray(s, dtype=_ACT_DTYPE)


# ----------------------------------------------------------------------------
# pallas_call wrappers
# ----------------------------------------------------------------------------
def _stem_conv(x_nhwc, wmat, bias):
    n = x_nhwc.shape[0]
    patches, ho, wo = _im2col_nhwc(x_nhwc, 7, 7, 2, 3)     # (n, 256, 392)
    hw = ho * wo
    k = patches.shape[-1]
    cout = wmat.shape[1]

    ce = pl.CostEstimate(
        flops=2 * n * hw * k * cout,
        transcendentals=0,
        bytes_accessed=int(patches.size * 2 + wmat.size * 2 + bias.size * 4
                           + n * hw * cout * 2))

    out = pl.pallas_call(
        _stem_kernel,
        out_shape=jax.ShapeDtypeStruct((n, hw, cout), _ACT_DTYPE),
        grid=(n,),
        in_specs=[
            pl.BlockSpec((None, hw, k), lambda b: (b, 0, 0)),
            pl.BlockSpec((k, cout), lambda b: (0, 0)),
            pl.BlockSpec((1, cout), lambda b: (0, 0)),
        ],
        out_specs=pl.BlockSpec((None, hw, cout), lambda b: (b, 0, 0)),
        compiler_params=pltpu.CompilerParams(
            dimension_semantics=("parallel",)),
        cost_estimate=ce,
    )(patches, wmat, bias)
    return out.reshape(n, ho, wo, cout)


def _basic_block(x_nhwc, p, *, cin_real, stride):
    """One fused BasicBlock pallas_call.  Input/output are NHWC, 128-wide."""
    n = x_nhwc.shape[0]
    xs = x_nhwc[..., :cin_real]                       # real channels only -> small K
    patches, ho, wo = _im2col_nhwc(xs, 3, 3, stride, 1)
    hw = ho * wo
    k1 = patches.shape[-1]                            # 9 * cin_real
    sel = _conv2_select_mats(ho, wo)                  # (9, hw, hw) static 0/1

    kernel = functools.partial(_block_kernel, hw=hw, cout_pad=_CPAD)

    flops = (2 * n * hw * k1 * (2 * _CPAD)
             + 2 * n * hw * _CPAD * _CPAD * (9 if hw > 1 else 1)
             + (2 * n * hw * hw * _CPAD * 9 if hw > 1 else 0))
    ce = pl.CostEstimate(
        flops=int(flops),
        transcendentals=0,
        bytes_accessed=int(patches.size * 2 + p["wcat"].size * 2
                           + p["bcat"].size * 4 + p["w2"].size * 2
                           + p["b2"].size * 4 + sel.size * 2
                           + n * hw * _CPAD * 2))

    out = pl.pallas_call(
        kernel,
        out_shape=jax.ShapeDtypeStruct((n, hw, _CPAD), _ACT_DTYPE),
        grid=(n,),
        in_specs=[
            pl.BlockSpec((None, hw, k1), lambda b: (b, 0, 0)),
            pl.BlockSpec((k1, 2 * _CPAD), lambda b: (0, 0)),
            pl.BlockSpec((1, 2 * _CPAD), lambda b: (0, 0)),
            pl.BlockSpec((9, _CPAD, _CPAD), lambda b: (0, 0, 0)),
            pl.BlockSpec((1, _CPAD), lambda b: (0, 0)),
            pl.BlockSpec((9, hw, hw), lambda b: (0, 0, 0)),
        ],
        out_specs=pl.BlockSpec((None, hw, _CPAD), lambda b: (b, 0, 0)),
        compiler_params=pltpu.CompilerParams(
            dimension_semantics=("parallel",)),
        cost_estimate=ce,
    )(patches, p["wcat"], p["bcat"], p["w2"], p["b2"], sel)
    return out.reshape(n, ho, wo, _CPAD)


# ----------------------------------------------------------------------------
# Deterministic parameter construction (eval-mode BN folded into weights/bias)
# ----------------------------------------------------------------------------
def _make_conv(key, cout, cin, kh, kw):
    fan_in = cin * kh * kw
    std = (2.0 / fan_in) ** 0.5
    return jax.random.normal(key, (cout, cin, kh, kw), jnp.float32) * std


def _make_bn_scale_bias(key, c, eps=1e-5):
    k1, k2, k3, k4 = jax.random.split(key, 4)
    gamma = jax.random.uniform(k1, (c,), jnp.float32, 0.5, 1.5)
    beta = jax.random.normal(k2, (c,), jnp.float32) * 0.1
    mean = jax.random.normal(k3, (c,), jnp.float32) * 0.1
    var = jax.random.uniform(k4, (c,), jnp.float32, 0.5, 1.5)
    scale = gamma / jnp.sqrt(var + eps)
    bias = beta - mean * scale
    return scale, bias


def _make_block_params(key, cin, cout, stride):
    keys = jax.random.split(key, 6)

    # conv1 (3x3) with BN folded, Cout padded to 128, K = 9*cin (no K padding).
    w1 = _make_conv(keys[0], cout, cin, 3, 3)
    s1, b1 = _make_bn_scale_bias(keys[1], cout)
    w1m = jnp.transpose(w1, (2, 3, 1, 0)) * s1[None, None, None, :]   # (3,3,cin,cout)
    w1m = jnp.pad(w1m, ((0, 0), (0, 0), (0, 0), (0, _CPAD - cout)))
    w1m = w1m.reshape(9 * cin, _CPAD)
    b1p = jnp.pad(b1, (0, _CPAD - cout))

    # Residual group: 1x1 downsample (BN folded) or identity, placed on the
    # centre-tap rows of the K axis so it shares the conv1 LHS tile.
    if stride != 1 or cin != cout:
        wd = _make_conv(keys[2], cout, cin, 1, 1)
        sd, bd = _make_bn_scale_bias(keys[3], cout)
        wdm = wd[:, :, 0, 0].T * sd[None, :]                          # (cin, cout)
        wdm = jnp.pad(wdm, ((0, 0), (0, _CPAD - cout)))
        bdp = jnp.pad(bd, (0, _CPAD - cout))
    else:
        wdm = jnp.pad(jnp.eye(cin, dtype=jnp.float32), ((0, 0), (0, _CPAD - cin)))
        bdp = jnp.zeros((_CPAD,), jnp.float32)
    wres = jnp.zeros((9 * cin, _CPAD), jnp.float32)
    wres = wres.at[4 * cin:5 * cin, :].set(wdm)                       # centre tap

    wcat = jnp.concatenate([w1m, wres], axis=1).astype(_ACT_DTYPE)    # (9*cin, 256)
    bcat = jnp.concatenate([b1p, bdp]).reshape(1, 2 * _CPAD).astype(jnp.float32)

    # conv2 (3x3) with BN folded; input/output padded to 128 (VMEM-only K pad).
    w2 = _make_conv(keys[4], cout, cout, 3, 3)
    s2, b2 = _make_bn_scale_bias(keys[5], cout)
    w2m = jnp.transpose(w2, (2, 3, 1, 0)) * s2[None, None, None, :]   # (3,3,cout,cout)
    w2m = jnp.pad(w2m, ((0, 0), (0, 0), (0, _CPAD - cout), (0, _CPAD - cout)))
    w2m = w2m.reshape(9, _CPAD, _CPAD).astype(_ACT_DTYPE)
    b2p = jnp.pad(b2, (0, _CPAD - cout)).reshape(1, _CPAD).astype(jnp.float32)

    return {"wcat": wcat, "bcat": bcat, "w2": w2m, "b2": b2p}


def make_backbone_params(key):
    ks = jax.random.split(key, 6)
    params = {}

    wstem = _make_conv(ks[0], _BASE_WIDTH, _STEM_CIN, 7, 7)
    sstem, bstem = _make_bn_scale_bias(ks[1], _BASE_WIDTH)
    wm = jnp.transpose(wstem, (2, 3, 1, 0)) * sstem[None, None, None, :]
    wm = jnp.pad(wm, ((0, 0), (0, 0), (0, _STEM_CIN_PAD - _STEM_CIN),
                      (0, _CPAD - _BASE_WIDTH)))
    params["stem_w"] = wm.reshape(7 * 7 * _STEM_CIN_PAD, _CPAD).astype(_ACT_DTYPE)
    params["stem_b"] = jnp.pad(bstem, (0, _CPAD - _BASE_WIDTH)
                               ).reshape(1, _CPAD).astype(jnp.float32)

    cin = _BASE_WIDTH
    for li in range(4):
        params[f"layer{li + 1}"] = _make_block_params(
            ks[2 + li], cin, _WIDTHS[li], _STRIDES[li])
        cin = _WIDTHS[li]
    return params


# ----------------------------------------------------------------------------
# Backbone forward (BackboneBase.forward equivalent)
# ----------------------------------------------------------------------------
def backbone_base_forward(params, x_nchw, return_interm_indices=(1, 2, 3)):
    """Equivalent of BackboneBase.forward: returns xs.values() as a tuple.

    With return_interm_indices=[1,2,3], IntermediateLayerGetter maps
    layer2->'1', layer3->'2', layer4->'3', so the returned values are the
    outputs of layer2, layer3 and layer4 (in that order), in NCHW / f32.
    """
    c_in = x_nchw.shape[1]
    # Single NCHW -> NHWC transpose at the module boundary; everything stays
    # NHWC / bf16 with 128-wide (lane-dense) stored activations internally.
    x = jnp.transpose(x_nchw, (0, 2, 3, 1)).astype(_ACT_DTYPE)
    x = jnp.pad(x, ((0, 0), (0, 0), (0, 0), (0, _STEM_CIN_PAD - c_in)))

    # Stem: 7x7/2 conv + folded BN + ReLU (Pallas), then 3x3/2 max-pool (XLA).
    x = _stem_conv(x, params["stem_w"], params["stem_b"])
    x = lax.reduce_window(x, jnp.array(-jnp.inf, x.dtype), lax.max,
                          window_dimensions=(1, 3, 3, 1),
                          window_strides=(1, 2, 2, 1),
                          padding=((0, 0), (1, 1), (1, 1), (0, 0)))

    feats = {}
    cin = _BASE_WIDTH
    for li in range(1, 5):
        x = _basic_block(x, params[f"layer{li}"],
                         cin_real=cin, stride=_STRIDES[li - 1])
        feats[li] = x
        cin = _WIDTHS[li - 1]

    n_ret = len(return_interm_indices)
    outs = []
    for idx, _layer_index in enumerate(return_interm_indices):
        lnum = 5 - n_ret + idx
        f = feats[lnum][..., : _WIDTHS[lnum - 1]]          # drop pad channels
        outs.append(jnp.transpose(f, (0, 3, 1, 2)).astype(jnp.float32))
    return tuple(outs)


# ----------------------------------------------------------------------------
# main
# ----------------------------------------------------------------------------
if __name__ == "__main__":
    key = jax.random.PRNGKey(0)
    k_params, k_input = jax.random.split(key)

    params = make_backbone_params(k_params)

    # Small NCHW input, matching the PyTorch module's expected image tensor.
    x = jax.random.normal(k_input, (2, 3, 32, 32), jnp.float32)

    fwd = jax.jit(functools.partial(backbone_base_forward,
                                    return_interm_indices=(1, 2, 3)))
    outs = fwd(params, x)
    outs = jax.block_until_ready(outs)

    for o in outs:
        assert o.dtype == jnp.float32
        assert bool(jnp.all(jnp.isfinite(o)))
    # Expected: layer2 (2,32,4,4), layer3 (2,64,2,2), layer4 (2,128,1,1)
    assert outs[0].shape == (2, _WIDTHS[1], 4, 4)
    assert outs[1].shape == (2, _WIDTHS[2], 2, 2)
    assert outs[2].shape == (2, _WIDTHS[3], 1, 1)

    print("KERNEL_OK")
</pallas_src>

<mosaic_0001>
module attributes {stable_mosaic.version = 11 : i64} {
  func.func @_stem_kernel(%arg0: i32, %arg1: memref<1x256x392xbf16, #tpu.memory_space<vmem>>, %arg2: memref<392x128xbf16, #tpu.memory_space<vmem>>, %arg3: memref<1x128xf32, #tpu.memory_space<vmem>>, %arg4: memref<1x256x128xbf16, #tpu.memory_space<vmem>>) attributes {dimension_semantics = [#tpu.dimension_semantics<parallel>], iteration_bounds = array<i64: 2>, scalar_prefetch = 0 : i64, scratch_operands = 0 : i64, tpu.core_type = #tpu.core_type<tc>, window_params = [{transform_indices = @transform_0, window_bounds = array<i64: 1, 256, 392>}, {pipeline_mode = #tpu.pipeline_mode<synchronous>, transform_indices = @transform_1, window_bounds = array<i64: 392, 128>}, {pipeline_mode = #tpu.pipeline_mode<synchronous>, transform_indices = @transform_2, window_bounds = array<i64: 1, 128>}, {transform_indices = @transform_3, window_bounds = array<i64: 1, 256, 128>}]} {
    %c0 = arith.constant 0 : index
    %c0_0 = arith.constant 0 : index
    %c0_1 = arith.constant 0 : index
    %0 = vector.load %arg1[%c0, %c0_0, %c0_1] : memref<1x256x392xbf16, #tpu.memory_space<vmem>>, vector<1x256x392xbf16>
    %1 = vector.shape_cast %0 : vector<1x256x392xbf16> to vector<256x392xbf16>
    %c0_2 = arith.constant 0 : index
    %c0_3 = arith.constant 0 : index
    %2 = vector.load %arg2[%c0_2, %c0_3] : memref<392x128xbf16, #tpu.memory_space<vmem>>, vector<392x128xbf16>
    %cst = arith.constant dense<0.000000e+00> : vector<256x128xf32>
    %3 = tpu.matmul %1, %2, %cst {dimension_numbers = #tpu.dot_dimension_numbers<[1], [0], [0], [1], [0, 0, 1, 1], [], []>} : vector<256x392xbf16>, vector<392x128xbf16>, vector<256x128xf32> -> vector<256x128xf32>
    %c0_4 = arith.constant 0 : index
    %c0_5 = arith.constant 0 : index
    %4 = vector.load %arg3[%c0_4, %c0_5] : memref<1x128xf32, #tpu.memory_space<vmem>>, vector<1x128xf32>
    %5 = vector.broadcast %4 : vector<1x128xf32> to vector<256x128xf32>
    %6 = arith.addf %3, %5 : vector<256x128xf32>
    %cst_6 = arith.constant 0.000000e+00 : f32
    %7 = vector.broadcast %cst_6 : f32 to vector<256x128xf32>
    %8 = arith.maximumf %6, %7 : vector<256x128xf32>
    %9 = arith.truncf %8 : vector<256x128xf32> to vector<256x128xbf16>
    %c0_7 = arith.constant 0 : index
    %c0_8 = arith.constant 0 : index
    %c0_9 = arith.constant 0 : index
    %10 = vector.load %arg4[%c0_7, %c0_8, %c0_9] : memref<1x256x128xbf16, #tpu.memory_space<vmem>>, vector<1x256x128xbf16>
    %11 = vector.shape_cast %10 : vector<1x256x128xbf16> to vector<256x128xbf16>
    %12 = vector.shape_cast %9 : vector<256x128xbf16> to vector<1x256x128xbf16>
    tpu.vector_store %arg4[%c0_7, %c0_8, %c0_9], %12 {strides = array<i32>} : memref<1x256x128xbf16, #tpu.memory_space<vmem>>, vector<1x256x128xbf16>,
    return
  }
  func.func @transform_0(%arg0: i32) -> (i32, i32, i32) {
    %c0_i32 = arith.constant 0 : i32
    %c0_i32_0 = arith.constant 0 : i32
    %c0_i32_1 = arith.constant 0 : i32
    return %arg0, %c0_i32, %c0_i32_0 : i32, i32, i32
  }
  func.func @transform_1(%arg0: i32) -> (i32, i32) {
    %c0_i32 = arith.constant 0 : i32
    %c0_i32_0 = arith.constant 0 : i32
    %c0_i32_1 = arith.constant 0 : i32
    return %c0_i32, %c0_i32_0 : i32, i32
  }
  func.func @transform_2(%arg0: i32) -> (i32, i32) {
    %c0_i32 = arith.constant 0 : i32
    %c0_i32_0 = arith.constant 0 : i32
    %c0_i32_1 = arith.constant 0 : i32
    return %c0_i32, %c0_i32_0 : i32, i32
  }
  func.func @transform_3(%arg0: i32) -> (i32, i32, i32) {
    %c0_i32 = arith.constant 0 : i32
    %c0_i32_0 = arith.constant 0 : i32
    %c0_i32_1 = arith.constant 0 : i32
    return %arg0, %c0_i32, %c0_i32_0 : i32, i32, i32
  }
}

module attributes {stable_mosaic.version = 11 : i64} {
  func.func @_block_kernel(%arg0: i32, %arg1: memref<1x64x144xbf16, #tpu.memory_space<vmem>>, %arg2: memref<144x256xbf16, #tpu.memory_space<vmem>>, %arg3: memref<1x256xf32, #tpu.memory_space<vmem>>, %arg4: memref<9x128x128xbf16, #tpu.memory_space<vmem>>, %arg5: memref<1x128xf32, #tpu.memory_space<vmem>>, %arg6: memref<9x64x64xbf16, #tpu.memory_space<vmem>>, %arg7: memref<1x64x128xbf16, #tpu.memory_space<vmem>>) attributes {dimension_semantics = [#tpu.dimension_semantics<parallel>], iteration_bounds = array<i64: 2>, scalar_prefetch = 0 : i64, scratch_operands = 0 : i64, tpu.core_type = #tpu.core_type<tc>, window_params = [{transform_indices = @transform_0, window_bounds = array<i64: 1, 64, 144>}, {pipeline_mode = #tpu.pipeline_mode<synchronous>, transform_indices = @transform_1, window_bounds = array<i64: 144, 256>}, {pipeline_mode = #tpu.pipeline_mode<synchronous>, transform_indices = @transform_2, window_bounds = array<i64: 1, 256>}, {pipeline_mode = #tpu.pipeline_mode<synchronous>, transform_indices = @transform_3, window_bounds = array<i64: 9, 128, 128>}, {pipeline_mode = #tpu.pipeline_mode<synchronous>, transform_indices = @transform_4, window_bounds = array<i64: 1, 128>}, {pipeline_mode = #tpu.pipeline_mode<synchronous>, transform_indices = @transform_5, window_bounds = array<i64: 9, 64, 64>}, {transform_indices = @transform_6, window_bounds = array<i64: 1, 64, 128>}]} {
    %c0 = arith.constant 0 : index
    %c0_0 = arith.constant 0 : index
    %c0_1 = arith.constant 0 : index
    %0 = vector.load %arg1[%c0, %c0_0, %c0_1] : memref<1x64x144xbf16, #tpu.memory_space<vmem>>, vector<1x64x144xbf16>
    %1 = vector.shape_cast %0 : vector<1x64x144xbf16> to vector<64x144xbf16>
    %c0_2 = arith.constant 0 : index
    %c0_3 = arith.constant 0 : index
    %2 = vector.load %arg2[%c0_2, %c0_3] : memref<144x256xbf16, #tpu.memory_space<vmem>>, vector<144x256xbf16>
    %cst = arith.constant dense<0.000000e+00> : vector<64x256xf32>
    %3 = tpu.matmul %1, %2, %cst {dimension_numbers = #tpu.dot_dimension_numbers<[1], [0], [0], [1], [0, 0, 1, 1], [], []>} : vector<64x144xbf16>, vector<144x256xbf16>, vector<64x256xf32> -> vector<64x256xf32>
    %c0_4 = arith.constant 0 : index
    %c0_5 = arith.constant 0 : index
    %4 = vector.load %arg3[%c0_4, %c0_5] : memref<1x256xf32, #tpu.memory_space<vmem>>, vector<1x256xf32>
    %5 = vector.broadcast %4 : vector<1x256xf32> to vector<64x256xf32>
    %6 = arith.addf %3, %5 : vector<64x256xf32>
    %7 = vector.extract_strided_slice %6 {offsets = [0, 0], sizes = [64, 128], strides = [1, 1]} : vector<64x256xf32> to vector<64x128xf32>
    %cst_6 = arith.constant 0.000000e+00 : f32
    %8 = vector.broadcast %cst_6 : f32 to vector<64x128xf32>
    %9 = arith.maximumf %7, %8 : vector<64x128xf32>
    %10 = arith.truncf %9 : vector<64x128xf32> to vector<64x128xbf16>
    %11 = vector.extract_strided_slice %6 {offsets = [0, 128], sizes = [64, 128], strides = [1, 1]} : vector<64x256xf32> to vector<64x128xf32>
    %c0_7 = arith.constant 0 : index
    %c0_8 = arith.constant 0 : index
    %12 = vector.load %arg5[%c0_7, %c0_8] : memref<1x128xf32, #tpu.memory_space<vmem>>, vector<1x128xf32>
    %13 = vector.broadcast %12 : vector<1x128xf32> to vector<64x128xf32>
    %14 = arith.addf %11, %13 : vector<64x128xf32>
    %c0_9 = arith.constant 0 : index
    %c0_10 = arith.constant 0 : index
    %c0_11 = arith.constant 0 : index
    %15 = vector.load %arg6[%c0_9, %c0_10, %c0_11] : memref<9x64x64xbf16, #tpu.memory_space<vmem>>, vector<1x64x64xbf16>
    %16 = vector.shape_cast %15 : vector<1x64x64xbf16> to vector<64x64xbf16>
    %cst_12 = arith.constant dense<0.000000e+00> : vector<64x128xf32>
    %17 = tpu.matmul %16, %10, %cst_12 {dimension_numbers = #tpu.dot_dimension_numbers<[1], [0], [0], [1], [0, 0, 1, 1], [], []>} : vector<64x64xbf16>, vector<64x128xbf16>, vector<64x128xf32> -> vector<64x128xf32>
    %18 = arith.truncf %17 : vector<64x128xf32> to vector<64x128xbf16>
    %c0_13 = arith.constant 0 : index
    %c0_14 = arith.constant 0 : index
    %c0_15 = arith.constant 0 : index
    %19 = vector.load %arg4[%c0_13, %c0_14, %c0_15] : memref<9x128x128xbf16, #tpu.memory_space<vmem>>, vector<1x128x128xbf16>
    %20 = vector.shape_cast %19 : vector<1x128x128xbf16> to vector<128x128xbf16>
    %cst_16 = arith.constant dense<0.000000e+00> : vector<64x128xf32>
    %21 = tpu.matmul %18, %20, %cst_16 {dimension_numbers = #tpu.dot_dimension_numbers<[1], [0], [0], [1], [0, 0, 1, 1], [], []>} : vector<64x128xbf16>, vector<128x128xbf16>, vector<64x128xf32> -> vector<64x128xf32>
    %22 = arith.addf %14, %21 : vector<64x128xf32>
    %c1 = arith.constant 1 : index
    %c0_17 = arith.constant 0 : index
    %c0_18 = arith.constant 0 : index
    %23 = vector.load %arg6[%c1, %c0_17, %c0_18] : memref<9x64x64xbf16, #tpu.memory_space<vmem>>, vector<1x64x64xbf16>
    %24 = vector.shape_cast %23 : vector<1x64x64xbf16> to vector<64x64xbf16>
    %cst_19 = arith.constant dense<0.000000e+00> : vector<64x128xf32>
    %25 = tpu.matmul %24, %10, %cst_19 {dimension_numbers = #tpu.dot_dimension_numbers<[1], [0], [0], [1], [0, 0, 1, 1], [], []>} : vector<64x64xbf16>, vector<64x128xbf16>, vector<64x128xf32> -> vector<64x128xf32>
    %26 = arith.truncf %25 : vector<64x128xf32> to vector<64x128xbf16>
    %c1_20 = arith.constant 1 : index
    %c0_21 = arith.constant 0 : index
    %c0_22 = arith.constant 0 : index
    %27 = vector.load %arg4[%c1_20, %c0_21, %c0_22] : memref<9x128x128xbf16, #tpu.memory_space<vmem>>, vector<1x128x128xbf16>
    %28 = vector.shape_cast %27 : vector<1x128x128xbf16> to vector<128x128xbf16>
    %cst_23 = arith.constant dense<0.000000e+00> : vector<64x128xf32>
    %29 = tpu.matmul %26, %28, %cst_23 {dimension_numbers = #tpu.dot_dimension_numbers<[1], [0], [0], [1], [0, 0, 1, 1], [], []>} : vector<64x128xbf16>, vector<128x128xbf16>, vector<64x128xf32> -> vector<64x128xf32>
    %30 = arith.addf %22, %29 : vector<64x128xf32>
    %c2 = arith.constant 2 : index
    %c0_24 = arith.constant 0 : index
    %c0_25 = arith.constant 0 : index
    %31 = vector.load %arg6[%c2, %c0_24, %c0_25] : memref<9x64x64xbf16, #tpu.memory_space<vmem>>, vector<1x64x64xbf16>
    %32 = vector.shape_cast %31 : vector<1x64x64xbf16> to vector<64x64xbf16>
    %cst_26 = arith.constant dense<0.000000e+00> : vector<64x128xf32>
    %33 = tpu.matmul %32, %10, %cst_26 {dimension_numbers = #tpu.dot_dimension_numbers<[1], [0], [0], [1], [0, 0, 1, 1], [], []>} : vector<64x64xbf16>, vector<64x128xbf16>, vector<64x128xf32> -> vector<64x128xf32>
    %34 = arith.truncf %33 : vector<64x128xf32> to vector<64x128xbf16>
    %c2_27 = arith.constant 2 : index
    %c0_28 = arith.constant 0 : index
    %c0_29 = arith.constant 0 : index
    %35 = vector.load %arg4[%c2_27, %c0_28, %c0_29] : memref<9x128x128xbf16, #tpu.memory_space<vmem>>, vector<1x128x128xbf16>
    %36 = vector.shape_cast %35 : vector<1x128x128xbf16> to vector<128x128xbf16>
    %cst_30 = arith.constant dense<0.000000e+00> : vector<64x128xf32>
    %37 = tpu.matmul %34, %36, %cst_30 {dimension_numbers = #tpu.dot_dimension_numbers<[1], [0], [0], [1], [0, 0, 1, 1], [], []>} : vector<64x128xbf16>, vector<128x128xbf16>, vector<64x128xf32> -> vector<64x128xf32>
    %38 = arith.addf %30, %37 : vector<64x128xf32>
    %c3 = arith.constant 3 : index
    %c0_31 = arith.constant 0 : index
    %c0_32 = arith.constant 0 : index
    %39 = vector.load %arg6[%c3, %c0_31, %c0_32] : memref<9x64x64xbf16, #tpu.memory_space<vmem>>, vector<1x64x64xbf16>
    %40 = vector.shape_cast %39 : vector<1x64x64xbf16> to vector<64x64xbf16>
    %cst_33 = arith.constant dense<0.000000e+00> : vector<64x128xf32>
    %41 = tpu.matmul %40, %10, %cst_33 {dimension_numbers = #tpu.dot_dimension_numbers<[1], [0], [0], [1], [0, 0, 1, 1], [], []>} : vector<64x64xbf16>, vector<64x128xbf16>, vector<64x128xf32> -> vector<64x128xf32>
    %42 = arith.truncf %41 : vector<64x128xf32> to vector<64x128xbf16>
    %c3_34 = arith.constant 3 : index
    %c0_35 = arith.constant 0 : index
    %c0_36 = arith.constant 0 : index
    %43 = vector.load %arg4[%c3_34, %c0_35, %c0_36] : memref<9x128x128xbf16, #tpu.memory_space<vmem>>, vector<1x128x128xbf16>
    %44 = vector.shape_cast %43 : vector<1x128x128xbf16> to vector<128x128xbf16>
    %cst_37 = arith.constant dense<0.000000e+00> : vector<64x128xf32>
    %45 = tpu.matmul %42, %44, %cst_37 {dimension_numbers = #tpu.dot_dimension_numbers<[1], [0], [0], [1], [0, 0, 1, 1], [], []>} : vector<64x128xbf16>, vector<128x128xbf16>, vector<64x128xf32> -> vector<64x128xf32>
    %46 = arith.addf %38, %45 : vector<64x128xf32>
    %c4 = arith.constant 4 : index
    %c0_38 = arith.constant 0 : index
    %c0_39 = arith.constant 0 : index
    %47 = vector.load %arg6[%c4, %c0_38, %c0_39] : memref<9x64x64xbf16, #tpu.memory_space<vmem>>, vector<1x64x64xbf16>
    %48 = vector.shape_cast %47 : vector<1x64x64xbf16> to vector<64x64xbf16>
    %cst_40 = arith.constant dense<0.000000e+00> : vector<64x128xf32>
    %49 = tpu.matmul %48, %10, %cst_40 {dimension_numbers = #tpu.dot_dimension_numbers<[1], [0], [0], [1], [0, 0, 1, 1], [], []>} : vector<64x64xbf16>, vector<64x128xbf16>, vector<64x128xf32> -> vector<64x128xf32>
    %50 = arith.truncf %49 : vector<64x128xf32> to vector<64x128xbf16>
    %c4_41 = arith.constant 4 : index
    %c0_42 = arith.constant 0 : index
    %c0_43 = arith.constant 0 : index
    %51 = vector.load %arg4[%c4_41, %c0_42, %c0_43] : memref<9x128x128xbf16, #tpu.memory_space<vmem>>, vector<1x128x128xbf16>
    %52 = vector.shape_cast %51 : vector<1x128x128xbf16> to vector<128x128xbf16>
    %cst_44 = arith.constant dense<0.000000e+00> : vector<64x128xf32>
    %53 = tpu.matmul %50, %52, %cst_44 {dimension_numbers = #tpu.dot_dimension_numbers<[1], [0], [0], [1], [0, 0, 1, 1], [], []>} : vector<64x128xbf16>, vector<128x128xbf16>, vector<64x128xf32> -> vector<64x128xf32>
    %54 = arith.addf %46, %53 : vector<64x128xf32>
    %c5 = arith.constant 5 : index
    %c0_45 = arith.constant 0 : index
    %c0_46 = arith.constant 0 : index
    %55 = vector.load %arg6[%c5, %c0_45, %c0_46] : memref<9x64x64xbf16, #tpu.memory_space<vmem>>, vector<1x64x64xbf16>
    %56 = vector.shape_cast %55 : vector<1x64x64xbf16> to vector<64x64xbf16>
    %cst_47 = arith.constant dense<0.000000e+00> : vector<64x128xf32>
    %57 = tpu.matmul %56, %10, %cst_47 {dimension_numbers = #tpu.dot_dimension_numbers<[1], [0], [0], [1], [0, 0, 1, 1], [], []>} : vector<64x64xbf16>, vector<64x128xbf16>, vector<64x128xf32> -> vector<64x128xf32>
    %58 = arith.truncf %57 : vector<64x128xf32> to vector<64x128xbf16>
    %c5_48 = arith.constant 5 : index
    %c0_49 = arith.constant 0 : index
    %c0_50 = arith.constant 0 : index
    %59 = vector.load %arg4[%c5_48, %c0_49, %c0_50] : memref<9x128x128xbf16, #tpu.memory_space<vmem>>, vector<1x128x128xbf16>
    %60 = vector.shape_cast %59 : vector<1x128x128xbf16> to vector<128x128xbf16>
    %cst_51 = arith.constant dense<0.000000e+00> : vector<64x128xf32>
    %61 = tpu.matmul %58, %60, %cst_51 {dimension_numbers = #tpu.dot_dimension_numbers<[1], [0], [0], [1], [0, 0, 1, 1], [], []>} : vector<64x128xbf16>, vector<128x128xbf16>, vector<64x128xf32> -> vector<64x128xf32>
    %62 = arith.addf %54, %61 : vector<64x128xf32>
    %c6 = arith.constant 6 : index
    %c0_52 = arith.constant 0 : index
    %c0_53 = arith.constant 0 : index
    %63 = vector.load %arg6[%c6, %c0_52, %c0_53] : memref<9x64x64xbf16, #tpu.memory_space<vmem>>, vector<1x64x64xbf16>
    %64 = vector.shape_cast %63 : vector<1x64x64xbf16> to vector<64x64xbf16>
    %cst_54 = arith.constant dense<0.000000e+00> : vector<64x128xf32>
    %65 = tpu.matmul %64, %10, %cst_54 {dimension_numbers = #tpu.dot_dimension_numbers<[1], [0], [0], [1], [0, 0, 1, 1], [], []>} : vector<64x64xbf16>, vector<64x128xbf16>, vector<64x128xf32> -> vector<64x128xf32>
    %66 = arith.truncf %65 : vector<64x128xf32> to vector<64x128xbf16>
    %c6_55 = arith.constant 6 : index
    %c0_56 = arith.constant 0 : index
    %c0_57 = arith.constant 0 : index
    %67 = vector.load %arg4[%c6_55, %c0_56, %c0_57] : memref<9x128x128xbf16, #tpu.memory_space<vmem>>, vector<1x128x128xbf16>
    %68 = vector.shape_cast %67 : vector<1x128x128xbf16> to vector<128x128xbf16>
    %cst_58 = arith.constant dense<0.000000e+00> : vector<64x128xf32>
    %69 = tpu.matmul %66, %68, %cst_58 {dimension_numbers = #tpu.dot_dimension_numbers<[1], [0], [0], [1], [0, 0, 1, 1], [], []>} : vector<64x128xbf16>, vector<128x128xbf16>, vector<64x128xf32> -> vector<64x128xf32>
    %70 = arith.addf %62, %69 : vector<64x128xf32>
    %c7 = arith.constant 7 : index
    %c0_59 = arith.constant 0 : index
    %c0_60 = arith.constant 0 : index
    %71 = vector.load %arg6[%c7, %c0_59, %c0_60] : memref<9x64x64xbf16, #tpu.memory_space<vmem>>, vector<1x64x64xbf16>
    %72 = vector.shape_cast %71 : vector<1x64x64xbf16> to vector<64x64xbf16>
    %cst_61 = arith.constant dense<0.000000e+00> : vector<64x128xf32>
    %73 = tpu.matmul %72, %10, %cst_61 {dimension_numbers = #tpu.dot_dimension_numbers<[1], [0], [0], [1], [0, 0, 1, 1], [], []>} : vector<64x64xbf16>, vector<64x128xbf16>, vector<64x128xf32> -> vector<64x128xf32>
    %74 = arith.truncf %73 : vector<64x128xf32> to vector<64x128xbf16>
    %c7_62 = arith.constant 7 : index
    %c0_63 = arith.constant 0 : index
    %c0_64 = arith.constant 0 : index
    %75 = vector.load %arg4[%c7_62, %c0_63, %c0_64] : memref<9x128x128xbf16, #tpu.memory_space<vmem>>, vector<1x128x128xbf16>
    %76 = vector.shape_cast %75 : vector<1x128x128xbf16> to vector<128x128xbf16>
    %cst_65 = arith.constant dense<0.000000e+00> : vector<64x128xf32>
    %77 = tpu.matmul %74, %76, %cst_65 {dimension_numbers = #tpu.dot_dimension_numbers<[1], [0], [0], [1], [0, 0, 1, 1], [], []>} : vector<64x128xbf16>, vector<128x128xbf16>, vector<64x128xf32> -> vector<64x128xf32>
    %78 = arith.addf %70, %77 : vector<64x128xf32>
    %c8 = arith.constant 8 : index
    %c0_66 = arith.constant 0 : index
    %c0_67 = arith.constant 0 : index
    %79 = vector.load %arg6[%c8, %c0_66, %c0_67] : memref<9x64x64xbf16, #tpu.memory_space<vmem>>, vector<1x64x64xbf16>
    %80 = vector.shape_cast %79 : vector<1x64x64xbf16> to vector<64x64xbf16>
    %cst_68 = arith.constant dense<0.000000e+00> : vector<64x128xf32>
    %81 = tpu.matmul %80, %10, %cst_68 {dimension_numbers = #tpu.dot_dimension_numbers<[1], [0], [0], [1], [0, 0, 1, 1], [], []>} : vector<64x64xbf16>, vector<64x128xbf16>, vector<64x128xf32> -> vector<64x128xf32>
    %82 = arith.truncf %81 : vector<64x128xf32> to vector<64x128xbf16>
    %c8_69 = arith.constant 8 : index
    %c0_70 = arith.constant 0 : index
    %c0_71 = arith.constant 0 : index
    %83 = vector.load %arg4[%c8_69, %c0_70, %c0_71] : memref<9x128x128xbf16, #tpu.memory_space<vmem>>, vector<1x128x128xbf16>
    %84 = vector.shape_cast %83 : vector<1x128x128xbf16> to vector<128x128xbf16>
    %cst_72 = arith.constant dense<0.000000e+00> : vector<64x128xf32>
    %85 = tpu.matmul %82, %84, %cst_72 {dimension_numbers = #tpu.dot_dimension_numbers<[1], [0], [0], [1], [0, 0, 1, 1], [], []>} : vector<64x128xbf16>, vector<128x128xbf16>, vector<64x128xf32> -> vector<64x128xf32>
    %86 = arith.addf %78, %85 : vector<64x128xf32>
    %cst_73 = arith.constant 0.000000e+00 : f32
    %87 = vector.broadcast %cst_73 : f32 to vector<64x128xf32>
    %88 = arith.maximumf %86, %87 : vector<64x128xf32>
    %89 = arith.truncf %88 : vector<64x128xf32> to vector<64x128xbf16>
    %c0_74 = arith.constant 0 : index
    %c0_75 = arith.constant 0 : index
    %c0_76 = arith.constant 0 : index
    %90 = vector.load %arg7[%c0_74, %c0_75, %c0_76] : memref<1x64x128xbf16, #tpu.memory_space<vmem>>, vector<1x64x128xbf16>
    %91 = vector.shape_cast %90 : vector<1x64x128xbf16> to vector<64x128xbf16>
    %92 = vector.shape_cast %89 : vector<64x128xbf16> to vector<1x64x128xbf16>
    tpu.vector_store %arg7[%c0_74, %c0_75, %c0_76], %92 {strides = array<i32>} : memref<1x64x128xbf16, #tpu.memory_space<vmem>>, vector<1x64x128xbf16>,
    return
  }
  func.func @transform_0(%arg0: i32) -> (i32, i32, i32) {
    %c0_i32 = arith.constant 0 : i32
    %c0_i32_0 = arith.constant 0 : i32
    %c0_i32_1 = arith.constant 0 : i32
    return %arg0, %c0_i32, %c0_i32_0 : i32, i32, i32
  }
  func.func @transform_1(%arg0: i32) -> (i32, i32) {
    %c0_i32 = arith.constant 0 : i32
    %c0_i32_0 = arith.constant 0 : i32
    %c0_i32_1 = arith.constant 0 : i32
    return %c0_i32, %c0_i32_0 : i32, i32
  }
  func.func @transform_2(%arg0: i32) -> (i32, i32) {
    %c0_i32 = arith.constant 0 : i32
    %c0_i32_0 = arith.constant 0 : i32
    %c0_i32_1 = arith.constant 0 : i32
    return %c0_i32, %c0_i32_0 : i32, i32
  }
  func.func @transform_3(%arg0: i32) -> (i32, i32, i32) {
    %c0_i32 = arith.constant 0 : i32
    %c0_i32_0 = arith.constant 0 : i32
    %c0_i32_1 = arith.constant 0 : i32
    %c0_i32_2 = arith.constant 0 : i32
    return %c0_i32, %c0_i32_0, %c0_i32_1 : i32, i32, i32
  }
  func.func @transform_4(%arg0: i32) -> (i32, i32) {
    %c0_i32 = arith.constant 0 : i32
    %c0_i32_0 = arith.constant 0 : i32
    %c0_i32_1 = arith.constant 0 : i32
    return %c0_i32, %c0_i32_0 : i32, i32
  }
  func.func @transform_5(%arg0: i32) -> (i32, i32, i32) {
    %c0_i32 = arith.constant 0 : i32
    %c0_i32_0 = arith.constant 0 : i32
    %c0_i32_1 = arith.constant 0 : i32
    %c0_i32_2 = arith.constant 0 : i32
    return %c0_i32, %c0_i32_0, %c0_i32_1 : i32, i32, i32
  }
  func.func @transform_6(%arg0: i32) -> (i32, i32, i32) {
    %c0_i32 = arith.constant 0 : i32
    %c0_i32_0 = arith.constant 0 : i32
    %c0_i32_1 = arith.constant 0 : i32
    return %arg0, %c0_i32, %c0_i32_0 : i32, i32, i32
  }
}

module attributes {stable_mosaic.version = 11 : i64} {
  func.func @_block_kernel(%arg0: i32, %arg1: memref<1x16x144xbf16, #tpu.memory_space<vmem>>, %arg2: memref<144x256xbf16, #tpu.memory_space<vmem>>, %arg3: memref<1x256xf32, #tpu.memory_space<vmem>>, %arg4: memref<9x128x128xbf16, #tpu.memory_space<vmem>>, %arg5: memref<1x128xf32, #tpu.memory_space<vmem>>, %arg6: memref<9x16x16xbf16, #tpu.memory_space<vmem>>, %arg7: memref<1x16x128xbf16, #tpu.memory_space<vmem>>) attributes {dimension_semantics = [#tpu.dimension_semantics<parallel>], iteration_bounds = array<i64: 2>, scalar_prefetch = 0 : i64, scratch_operands = 0 : i64, tpu.core_type = #tpu.core_type<tc>, window_params = [{transform_indices = @transform_0, window_bounds = array<i64: 1, 16, 144>}, {pipeline_mode = #tpu.pipeline_mode<synchronous>, transform_indices = @transform_1, window_bounds = array<i64: 144, 256>}, {pipeline_mode = #tpu.pipeline_mode<synchronous>, transform_indices = @transform_2, window_bounds = array<i64: 1, 256>}, {pipeline_mode = #tpu.pipeline_mode<synchronous>, transform_indices = @transform_3, window_bounds = array<i64: 9, 128, 128>}, {pipeline_mode = #tpu.pipeline_mode<synchronous>, transform_indices = @transform_4, window_bounds = array<i64: 1, 128>}, {pipeline_mode = #tpu.pipeline_mode<synchronous>, transform_indices = @transform_5, window_bounds = array<i64: 9, 16, 16>}, {transform_indices = @transform_6, window_bounds = array<i64: 1, 16, 128>}]} {
    %c0 = arith.constant 0 : index
    %c0_0 = arith.constant 0 : index
    %c0_1 = arith.constant 0 : index
    %0 = vector.load %arg1[%c0, %c0_0, %c0_1] : memref<1x16x144xbf16, #tpu.memory_space<vmem>>, vector<1x16x144xbf16>
    %1 = vector.shape_cast %0 : vector<1x16x144xbf16> to vector<16x144xbf16>
    %c0_2 = arith.constant 0 : index
    %c0_3 = arith.constant 0 : index
    %2 = vector.load %arg2[%c0_2, %c0_3] : memref<144x256xbf16, #tpu.memory_space<vmem>>, vector<144x256xbf16>
    %cst = arith.constant dense<0.000000e+00> : vector<16x256xf32>
    %3 = tpu.matmul %1, %2, %cst {dimension_numbers = #tpu.dot_dimension_numbers<[1], [0], [0], [1], [0, 0, 1, 1], [], []>} : vector<16x144xbf16>, vector<144x256xbf16>, vector<16x256xf32> -> vector<16x256xf32>
    %c0_4 = arith.constant 0 : index
    %c0_5 = arith.constant 0 : index
    %4 = vector.load %arg3[%c0_4, %c0_5] : memref<1x256xf32, #tpu.memory_space<vmem>>, vector<1x256xf32>
    %5 = vector.broadcast %4 : vector<1x256xf32> to vector<16x256xf32>
    %6 = arith.addf %3, %5 : vector<16x256xf32>
    %7 = vector.extract_strided_slice %6 {offsets = [0, 0], sizes = [16, 128], strides = [1, 1]} : vector<16x256xf32> to vector<16x128xf32>
    %cst_6 = arith.constant 0.000000e+00 : f32
    %8 = vector.broadcast %cst_6 : f32 to vector<16x128xf32>
    %9 = arith.maximumf %7, %8 : vector<16x128xf32>
    %10 = arith.truncf %9 : vector<16x128xf32> to vector<16x128xbf16>
    %11 = vector.extract_strided_slice %6 {offsets = [0, 128], sizes = [16, 128], strides = [1, 1]} : vector<16x256xf32> to vector<16x128xf32>
    %c0_7 = arith.constant 0 : index
    %c0_8 = arith.constant 0 : index
    %12 = vector.load %arg5[%c0_7, %c0_8] : memref<1x128xf32, #tpu.memory_space<vmem>>, vector<1x128xf32>
    %13 = vector.broadcast %12 : vector<1x128xf32> to vector<16x128xf32>
    %14 = arith.addf %11, %13 : vector<16x128xf32>
    %c0_9 = arith.constant 0 : index
    %c0_10 = arith.constant 0 : index
    %c0_11 = arith.constant 0 : index
    %15 = vector.load %arg6[%c0_9, %c0_10, %c0_11] : memref<9x16x16xbf16, #tpu.memory_space<vmem>>, vector<1x16x16xbf16>
    %16 = vector.shape_cast %15 : vector<1x16x16xbf16> to vector<16x16xbf16>
    %cst_12 = arith.constant dense<0.000000e+00> : vector<16x128xf32>
    %17 = tpu.matmul %16, %10, %cst_12 {dimension_numbers = #tpu.dot_dimension_numbers<[1], [0], [0], [1], [0, 0, 1, 1], [], []>} : vector<16x16xbf16>, vector<16x128xbf16>, vector<16x128xf32> -> vector<16x128xf32>
    %18 = arith.truncf %17 : vector<16x128xf32> to vector<16x128xbf16>
    %c0_13 = arith.constant 0 : index
    %c0_14 = arith.constant 0 : index
    %c0_15 = arith.constant 0 : index
    %19 = vector.load %arg4[%c0_13, %c0_14, %c0_15] : memref<9x128x128xbf16, #tpu.memory_space<vmem>>, vector<1x128x128xbf16>
    %20 = vector.shape_cast %19 : vector<1x128x128xbf16> to vector<128x128xbf16>
    %cst_16 = arith.constant dense<0.000000e+00> : vector<16x128xf32>
    %21 = tpu.matmul %18, %20, %cst_16 {dimension_numbers = #tpu.dot_dimension_numbers<[1], [0], [0], [1], [0, 0, 1, 1], [], []>} : vector<16x128xbf16>, vector<128x128xbf16>, vector<16x128xf32> -> vector<16x128xf32>
    %22 = arith.addf %14, %21 : vector<16x128xf32>
    %c1 = arith.constant 1 : index
    %c0_17 = arith.constant 0 : index
    %c0_18 = arith.constant 0 : index
    %23 = vector.load %arg6[%c1, %c0_17, %c0_18] : memref<9x16x16xbf16, #tpu.memory_space<vmem>>, vector<1x16x16xbf16>
    %24 = vector.shape_cast %23 : vector<1x16x16xbf16> to vector<16x16xbf16>
    %cst_19 = arith.constant dense<0.000000e+00> : vector<16x128xf32>
    %25 = tpu.matmul %24, %10, %cst_19 {dimension_numbers = #tpu.dot_dimension_numbers<[1], [0], [0], [1], [0, 0, 1, 1], [], []>} : vector<16x16xbf16>, vector<16x128xbf16>, vector<16x128xf32> -> vector<16x128xf32>
    %26 = arith.truncf %25 : vector<16x128xf32> to vector<16x128xbf16>
    %c1_20 = arith.constant 1 : index
    %c0_21 = arith.constant 0 : index
    %c0_22 = arith.constant 0 : index
    %27 = vector.load %arg4[%c1_20, %c0_21, %c0_22] : memref<9x128x128xbf16, #tpu.memory_space<vmem>>, vector<1x128x128xbf16>
    %28 = vector.shape_cast %27 : vector<1x128x128xbf16> to vector<128x128xbf16>
    %cst_23 = arith.constant dense<0.000000e+00> : vector<16x128xf32>
    %29 = tpu.matmul %26, %28, %cst_23 {dimension_numbers = #tpu.dot_dimension_numbers<[1], [0], [0], [1], [0, 0, 1, 1], [], []>} : vector<16x128xbf16>, vector<128x128xbf16>, vector<16x128xf32> -> vector<16x128xf32>
    %30 = arith.addf %22, %29 : vector<16x128xf32>
    %c2 = arith.constant 2 : index
    %c0_24 = arith.constant 0 : index
    %c0_25 = arith.constant 0 : index
    %31 = vector.load %arg6[%c2, %c0_24, %c0_25] : memref<9x16x16xbf16, #tpu.memory_space<vmem>>, vector<1x16x16xbf16>
    %32 = vector.shape_cast %31 : vector<1x16x16xbf16> to vector<16x16xbf16>
    %cst_26 = arith.constant dense<0.000000e+00> : vector<16x128xf32>
    %33 = tpu.matmul %32, %10, %cst_26 {dimension_numbers = #tpu.dot_dimension_numbers<[1], [0], [0], [1], [0, 0, 1, 1], [], []>} : vector<16x16xbf16>, vector<16x128xbf16>, vector<16x128xf32> -> vector<16x128xf32>
    %34 = arith.truncf %33 : vector<16x128xf32> to vector<16x128xbf16>
    %c2_27 = arith.constant 2 : index
    %c0_28 = arith.constant 0 : index
    %c0_29 = arith.constant 0 : index
    %35 = vector.load %arg4[%c2_27, %c0_28, %c0_29] : memref<9x128x128xbf16, #tpu.memory_space<vmem>>, vector<1x128x128xbf16>
    %36 = vector.shape_cast %35 : vector<1x128x128xbf16> to vector<128x128xbf16>
    %cst_30 = arith.constant dense<0.000000e+00> : vector<16x128xf32>
    %37 = tpu.matmul %34, %36, %cst_30 {dimension_numbers = #tpu.dot_dimension_numbers<[1], [0], [0], [1], [0, 0, 1, 1], [], []>} : vector<16x128xbf16>, vector<128x128xbf16>, vector<16x128xf32> -> vector<16x128xf32>
    %38 = arith.addf %30, %37 : vector<16x128xf32>
    %c3 = arith.constant 3 : index
    %c0_31 = arith.constant 0 : index
    %c0_32 = arith.constant 0 : index
    %39 = vector.load %arg6[%c3, %c0_31, %c0_32] : memref<9x16x16xbf16, #tpu.memory_space<vmem>>, vector<1x16x16xbf16>
    %40 = vector.shape_cast %39 : vector<1x16x16xbf16> to vector<16x16xbf16>
    %cst_33 = arith.constant dense<0.000000e+00> : vector<16x128xf32>
    %41 = tpu.matmul %40, %10, %cst_33 {dimension_numbers = #tpu.dot_dimension_numbers<[1], [0], [0], [1], [0, 0, 1, 1], [], []>} : vector<16x16xbf16>, vector<16x128xbf16>, vector<16x128xf32> -> vector<16x128xf32>
    %42 = arith.truncf %41 : vector<16x128xf32> to vector<16x128xbf16>
    %c3_34 = arith.constant 3 : index
    %c0_35 = arith.constant 0 : index
    %c0_36 = arith.constant 0 : index
    %43 = vector.load %arg4[%c3_34, %c0_35, %c0_36] : memref<9x128x128xbf16, #tpu.memory_space<vmem>>, vector<1x128x128xbf16>
    %44 = vector.shape_cast %43 : vector<1x128x128xbf16> to vector<128x128xbf16>
    %cst_37 = arith.constant dense<0.000000e+00> : vector<16x128xf32>
    %45 = tpu.matmul %42, %44, %cst_37 {dimension_numbers = #tpu.dot_dimension_numbers<[1], [0], [0], [1], [0, 0, 1, 1], [], []>} : vector<16x128xbf16>, vector<128x128xbf16>, vector<16x128xf32> -> vector<16x128xf32>
    %46 = arith.addf %38, %45 : vector<16x128xf32>
    %c4 = arith.constant 4 : index
    %c0_38 = arith.constant 0 : index
    %c0_39 = arith.constant 0 : index
    %47 = vector.load %arg6[%c4, %c0_38, %c0_39] : memref<9x16x16xbf16, #tpu.memory_space<vmem>>, vector<1x16x16xbf16>
    %48 = vector.shape_cast %47 : vector<1x16x16xbf16> to vector<16x16xbf16>
    %cst_40 = arith.constant dense<0.000000e+00> : vector<16x128xf32>
    %49 = tpu.matmul %48, %10, %cst_40 {dimension_numbers = #tpu.dot_dimension_numbers<[1], [0], [0], [1], [0, 0, 1, 1], [], []>} : vector<16x16xbf16>, vector<16x128xbf16>, vector<16x128xf32> -> vector<16x128xf32>
    %50 = arith.truncf %49 : vector<16x128xf32> to vector<16x128xbf16>
    %c4_41 = arith.constant 4 : index
    %c0_42 = arith.constant 0 : index
    %c0_43 = arith.constant 0 : index
    %51 = vector.load %arg4[%c4_41, %c0_42, %c0_43] : memref<9x128x128xbf16, #tpu.memory_space<vmem>>, vector<1x128x128xbf16>
    %52 = vector.shape_cast %51 : vector<1x128x128xbf16> to vector<128x128xbf16>
    %cst_44 = arith.constant dense<0.000000e+00> : vector<16x128xf32>
    %53 = tpu.matmul %50, %52, %cst_44 {dimension_numbers = #tpu.dot_dimension_numbers<[1], [0], [0], [1], [0, 0, 1, 1], [], []>} : vector<16x128xbf16>, vector<128x128xbf16>, vector<16x128xf32> -> vector<16x128xf32>
    %54 = arith.addf %46, %53 : vector<16x128xf32>
    %c5 = arith.constant 5 : index
    %c0_45 = arith.constant 0 : index
    %c0_46 = arith.constant 0 : index
    %55 = vector.load %arg6[%c5, %c0_45, %c0_46] : memref<9x16x16xbf16, #tpu.memory_space<vmem>>, vector<1x16x16xbf16>
    %56 = vector.shape_cast %55 : vector<1x16x16xbf16> to vector<16x16xbf16>
    %cst_47 = arith.constant dense<0.000000e+00> : vector<16x128xf32>
    %57 = tpu.matmul %56, %10, %cst_47 {dimension_numbers = #tpu.dot_dimension_numbers<[1], [0], [0], [1], [0, 0, 1, 1], [], []>} : vector<16x16xbf16>, vector<16x128xbf16>, vector<16x128xf32> -> vector<16x128xf32>
    %58 = arith.truncf %57 : vector<16x128xf32> to vector<16x128xbf16>
    %c5_48 = arith.constant 5 : index
    %c0_49 = arith.constant 0 : index
    %c0_50 = arith.constant 0 : index
    %59 = vector.load %arg4[%c5_48, %c0_49, %c0_50] : memref<9x128x128xbf16, #tpu.memory_space<vmem>>, vector<1x128x128xbf16>
    %60 = vector.shape_cast %59 : vector<1x128x128xbf16> to vector<128x128xbf16>
    %cst_51 = arith.constant dense<0.000000e+00> : vector<16x128xf32>
    %61 = tpu.matmul %58, %60, %cst_51 {dimension_numbers = #tpu.dot_dimension_numbers<[1], [0], [0], [1], [0, 0, 1, 1], [], []>} : vector<16x128xbf16>, vector<128x128xbf16>, vector<16x128xf32> -> vector<16x128xf32>
    %62 = arith.addf %54, %61 : vector<16x128xf32>
    %c6 = arith.constant 6 : index
    %c0_52 = arith.constant 0 : index
    %c0_53 = arith.constant 0 : index
    %63 = vector.load %arg6[%c6, %c0_52, %c0_53] : memref<9x16x16xbf16, #tpu.memory_space<vmem>>, vector<1x16x16xbf16>
    %64 = vector.shape_cast %63 : vector<1x16x16xbf16> to vector<16x16xbf16>
    %cst_54 = arith.constant dense<0.000000e+00> : vector<16x128xf32>
    %65 = tpu.matmul %64, %10, %cst_54 {dimension_numbers = #tpu.dot_dimension_numbers<[1], [0], [0], [1], [0, 0, 1, 1], [], []>} : vector<16x16xbf16>, vector<16x128xbf16>, vector<16x128xf32> -> vector<16x128xf32>
    %66 = arith.truncf %65 : vector<16x128xf32> to vector<16x128xbf16>
    %c6_55 = arith.constant 6 : index
    %c0_56 = arith.constant 0 : index
    %c0_57 = arith.constant 0 : index
    %67 = vector.load %arg4[%c6_55, %c0_56, %c0_57] : memref<9x128x128xbf16, #tpu.memory_space<vmem>>, vector<1x128x128xbf16>
    %68 = vector.shape_cast %67 : vector<1x128x128xbf16> to vector<128x128xbf16>
    %cst_58 = arith.constant dense<0.000000e+00> : vector<16x128xf32>
    %69 = tpu.matmul %66, %68, %cst_58 {dimension_numbers = #tpu.dot_dimension_numbers<[1], [0], [0], [1], [0, 0, 1, 1], [], []>} : vector<16x128xbf16>, vector<128x128xbf16>, vector<16x128xf32> -> vector<16x128xf32>
    %70 = arith.addf %62, %69 : vector<16x128xf32>
    %c7 = arith.constant 7 : index
    %c0_59 = arith.constant 0 : index
    %c0_60 = arith.constant 0 : index
    %71 = vector.load %arg6[%c7, %c0_59, %c0_60] : memref<9x16x16xbf16, #tpu.memory_space<vmem>>, vector<1x16x16xbf16>
    %72 = vector.shape_cast %71 : vector<1x16x16xbf16> to vector<16x16xbf16>
    %cst_61 = arith.constant dense<0.000000e+00> : vector<16x128xf32>
    %73 = tpu.matmul %72, %10, %cst_61 {dimension_numbers = #tpu.dot_dimension_numbers<[1], [0], [0], [1], [0, 0, 1, 1], [], []>} : vector<16x16xbf16>, vector<16x128xbf16>, vector<16x128xf32> -> vector<16x128xf32>
    %74 = arith.truncf %73 : vector<16x128xf32> to vector<16x128xbf16>
    %c7_62 = arith.constant 7 : index
    %c0_63 = arith.constant 0 : index
    %c0_64 = arith.constant 0 : index
    %75 = vector.load %arg4[%c7_62, %c0_63, %c0_64] : memref<9x128x128xbf16, #tpu.memory_space<vmem>>, vector<1x128x128xbf16>
    %76 = vector.shape_cast %75 : vector<1x128x128xbf16> to vector<128x128xbf16>
    %cst_65 = arith.constant dense<0.000000e+00> : vector<16x128xf32>
    %77 = tpu.matmul %74, %76, %cst_65 {dimension_numbers = #tpu.dot_dimension_numbers<[1], [0], [0], [1], [0, 0, 1, 1], [], []>} : vector<16x128xbf16>, vector<128x128xbf16>, vector<16x128xf32> -> vector<16x128xf32>
    %78 = arith.addf %70, %77 : vector<16x128xf32>
    %c8 = arith.constant 8 : index
    %c0_66 = arith.constant 0 : index
    %c0_67 = arith.constant 0 : index
    %79 = vector.load %arg6[%c8, %c0_66, %c0_67] : memref<9x16x16xbf16, #tpu.memory_space<vmem>>, vector<1x16x16xbf16>
    %80 = vector.shape_cast %79 : vector<1x16x16xbf16> to vector<16x16xbf16>
    %cst_68 = arith.constant dense<0.000000e+00> : vector<16x128xf32>
    %81 = tpu.matmul %80, %10, %cst_68 {dimension_numbers = #tpu.dot_dimension_numbers<[1], [0], [0], [1], [0, 0, 1, 1], [], []>} : vector<16x16xbf16>, vector<16x128xbf16>, vector<16x128xf32> -> vector<16x128xf32>
    %82 = arith.truncf %81 : vector<16x128xf32> to vector<16x128xbf16>
    %c8_69 = arith.constant 8 : index
    %c0_70 = arith.constant 0 : index
    %c0_71 = arith.constant 0 : index
    %83 = vector.load %arg4[%c8_69, %c0_70, %c0_71] : memref<9x128x128xbf16, #tpu.memory_space<vmem>>, vector<1x128x128xbf16>
    %84 = vector.shape_cast %83 : vector<1x128x128xbf16> to vector<128x128xbf16>
    %cst_72 = arith.constant dense<0.000000e+00> : vector<16x128xf32>
    %85 = tpu.matmul %82, %84, %cst_72 {dimension_numbers = #tpu.dot_dimension_numbers<[1], [0], [0], [1], [0, 0, 1, 1], [], []>} : vector<16x128xbf16>, vector<128x128xbf16>, vector<16x128xf32> -> vector<16x128xf32>
    %86 = arith.addf %78, %85 : vector<16x128xf32>
    %cst_73 = arith.constant 0.000000e+00 : f32
    %87 = vector.broadcast %cst_73 : f32 to vector<16x128xf32>
    %88 = arith.maximumf %86, %87 : vector<16x128xf32>
    %89 = arith.truncf %88 : vector<16x128xf32> to vector<16x128xbf16>
    %c0_74 = arith.constant 0 : index
    %c0_75 = arith.constant 0 : index
    %c0_76 = arith.constant 0 : index
    %90 = vector.load %arg7[%c0_74, %c0_75, %c0_76] : memref<1x16x128xbf16, #tpu.memory_space<vmem>>, vector<1x16x128xbf16>
    %91 = vector.shape_cast %90 : vector<1x16x128xbf16> to vector<16x128xbf16>
    %92 = vector.shape_cast %89 : vector<16x128xbf16> to vector<1x16x128xbf16>
    tpu.vector_store %arg7[%c0_74, %c0_75, %c0_76], %92 {strides = array<i32>} : memref<1x16x128xbf16, #tpu.memory_space<vmem>>, vector<1x16x128xbf16>,
    return
  }
  func.func @transform_0(%arg0: i32) -> (i32, i32, i32) {
    %c0_i32 = arith.constant 0 : i32
    %c0_i32_0 = arith.constant 0 : i32
    %c0_i32_1 = arith.constant 0 : i32
    return %arg0, %c0_i32, %c0_i32_0 : i32, i32, i32
  }
  func.func @transform_1(%arg0: i32) -> (i32, i32) {
    %c0_i32 = arith.constant 0 : i32
    %c0_i32_0 = arith.constant 0 : i32
    %c0_i32_1 = arith.constant 0 : i32
    return %c0_i32, %c0_i32_0 : i32, i32
  }
  func.func @transform_2(%arg0: i32) -> (i32, i32) {
    %c0_i32 = arith.constant 0 : i32
    %c0_i32_0 = arith.constant 0 : i32
    %c0_i32_1 = arith.constant 0 : i32
    return %c0_i32, %c0_i32_0 : i32, i32
  }
  func.func @transform_3(%arg0: i32) -> (i32, i32, i32) {
    %c0_i32 = arith.constant 0 : i32
    %c0_i32_0 = arith.constant 0 : i32
    %c0_i32_1 = arith.constant 0 : i32
    %c0_i32_2 = arith.constant 0 : i32
    return %c0_i32, %c0_i32_0, %c0_i32_1 : i32, i32, i32
  }
  func.func @transform_4(%arg0: i32) -> (i32, i32) {
    %c0_i32 = arith.constant 0 : i32
    %c0_i32_0 = arith.constant 0 : i32
    %c0_i32_1 = arith.constant 0 : i32
    return %c0_i32, %c0_i32_0 : i32, i32
  }
  func.func @transform_5(%arg0: i32) -> (i32, i32, i32) {
    %c0_i32 = arith.constant 0 : i32
    %c0_i32_0 = arith.constant 0 : i32
    %c0_i32_1 = arith.constant 0 : i32
    %c0_i32_2 = arith.constant 0 : i32
    return %c0_i32, %c0_i32_0, %c0_i32_1 : i32, i32, i32
  }
  func.func @transform_6(%arg0: i32) -> (i32, i32, i32) {
    %c0_i32 = arith.constant 0 : i32
    %c0_i32_0 = arith.constant 0 : i32
    %c0_i32_1 = arith.constant 0 : i32
    return %arg0, %c0_i32, %c0_i32_0 : i32, i32, i32
  }
}

module attributes {stable_mosaic.version = 11 : i64} {
  func.func @_block_kernel(%arg0: i32, %arg1: memref<1x4x288xbf16, #tpu.memory_space<vmem>>, %arg2: memref<288x256xbf16, #tpu.memory_space<vmem>>, %arg3: memref<1x256xf32, #tpu.memory_space<vmem>>, %arg4: memref<9x128x128xbf16, #tpu.memory_space<vmem>>, %arg5: memref<1x128xf32, #tpu.memory_space<vmem>>, %arg6: memref<9x4x4xbf16, #tpu.memory_space<vmem>>, %arg7: memref<1x4x128xbf16, #tpu.memory_space<vmem>>) attributes {dimension_semantics = [#tpu.dimension_semantics<parallel>], iteration_bounds = array<i64: 2>, scalar_prefetch = 0 : i64, scratch_operands = 0 : i64, tpu.core_type = #tpu.core_type<tc>, window_params = [{transform_indices = @transform_0, window_bounds = array<i64: 1, 4, 288>}, {pipeline_mode = #tpu.pipeline_mode<synchronous>, transform_indices = @transform_1, window_bounds = array<i64: 288, 256>}, {pipeline_mode = #tpu.pipeline_mode<synchronous>, transform_indices = @transform_2, window_bounds = array<i64: 1, 256>}, {pipeline_mode = #tpu.pipeline_mode<synchronous>, transform_indices = @transform_3, window_bounds = array<i64: 9, 128, 128>}, {pipeline_mode = #tpu.pipeline_mode<synchronous>, transform_indices = @transform_4, window_bounds = array<i64: 1, 128>}, {pipeline_mode = #tpu.pipeline_mode<synchronous>, transform_indices = @transform_5, window_bounds = array<i64: 9, 4, 4>}, {transform_indices = @transform_6, window_bounds = array<i64: 1, 4, 128>}]} {
    %c0 = arith.constant 0 : index
    %c0_0 = arith.constant 0 : index
    %c0_1 = arith.constant 0 : index
    %0 = vector.load %arg1[%c0, %c0_0, %c0_1] : memref<1x4x288xbf16, #tpu.memory_space<vmem>>, vector<1x4x288xbf16>
    %1 = vector.shape_cast %0 : vector<1x4x288xbf16> to vector<4x288xbf16>
    %c0_2 = arith.constant 0 : index
    %c0_3 = arith.constant 0 : index
    %2 = vector.load %arg2[%c0_2, %c0_3] : memref<288x256xbf16, #tpu.memory_space<vmem>>, vector<288x256xbf16>
    %cst = arith.constant dense<0.000000e+00> : vector<4x256xf32>
    %3 = tpu.matmul %1, %2, %cst {dimension_numbers = #tpu.dot_dimension_numbers<[1], [0], [0], [1], [0, 0, 1, 1], [], []>} : vector<4x288xbf16>, vector<288x256xbf16>, vector<4x256xf32> -> vector<4x256xf32>
    %c0_4 = arith.constant 0 : index
    %c0_5 = arith.constant 0 : index
    %4 = vector.load %arg3[%c0_4, %c0_5] : memref<1x256xf32, #tpu.memory_space<vmem>>, vector<1x256xf32>
    %5 = vector.broadcast %4 : vector<1x256xf32> to vector<4x256xf32>
    %6 = arith.addf %3, %5 : vector<4x256xf32>
    %7 = vector.extract_strided_slice %6 {offsets = [0, 0], sizes = [4, 128], strides = [1, 1]} : vector<4x256xf32> to vector<4x128xf32>
    %cst_6 = arith.constant 0.000000e+00 : f32
    %8 = vector.broadcast %cst_6 : f32 to vector<4x128xf32>
    %9 = arith.maximumf %7, %8 : vector<4x128xf32>
    %10 = arith.truncf %9 : vector<4x128xf32> to vector<4x128xbf16>
    %11 = vector.extract_strided_slice %6 {offsets = [0, 128], sizes = [4, 128], strides = [1, 1]} : vector<4x256xf32> to vector<4x128xf32>
    %c0_7 = arith.constant 0 : index
    %c0_8 = arith.constant 0 : index
    %12 = vector.load %arg5[%c0_7, %c0_8] : memref<1x128xf32, #tpu.memory_space<vmem>>, vector<1x128xf32>
    %13 = vector.broadcast %12 : vector<1x128xf32> to vector<4x128xf32>
    %14 = arith.addf %11, %13 : vector<4x128xf32>
    %c0_9 = arith.constant 0 : index
    %c0_10 = arith.constant 0 : index
    %c0_11 = arith.constant 0 : index
    %15 = vector.load %arg6[%c0_9, %c0_10, %c0_11] : memref<9x4x4xbf16, #tpu.memory_space<vmem>>, vector<1x4x4xbf16>
    %16 = vector.shape_cast %15 : vector<1x4x4xbf16> to vector<4x4xbf16>
    %cst_12 = arith.constant dense<0.000000e+00> : vector<4x128xf32>
    %17 = tpu.matmul %16, %10, %cst_12 {dimension_numbers = #tpu.dot_dimension_numbers<[1], [0], [0], [1], [0, 0, 1, 1], [], []>} : vector<4x4xbf16>, vector<4x128xbf16>, vector<4x128xf32> -> vector<4x128xf32>
    %18 = arith.truncf %17 : vector<4x128xf32> to vector<4x128xbf16>
    %c0_13 = arith.constant 0 : index
    %c0_14 = arith.constant 0 : index
    %c0_15 = arith.constant 0 : index
    %19 = vector.load %arg4[%c0_13, %c0_14, %c0_15] : memref<9x128x128xbf16, #tpu.memory_space<vmem>>, vector<1x128x128xbf16>
    %20 = vector.shape_cast %19 : vector<1x128x128xbf16> to vector<128x128xbf16>
    %cst_16 = arith.constant dense<0.000000e+00> : vector<4x128xf32>
    %21 = tpu.matmul %18, %20, %cst_16 {dimension_numbers = #tpu.dot_dimension_numbers<[1], [0], [0], [1], [0, 0, 1, 1], [], []>} : vector<4x128xbf16>, vector<128x128xbf16>, vector<4x128xf32> -> vector<4x128xf32>
    %22 = arith.addf %14, %21 : vector<4x128xf32>
    %c1 = arith.constant 1 : index
    %c0_17 = arith.constant 0 : index
    %c0_18 = arith.constant 0 : index
    %23 = vector.load %arg6[%c1, %c0_17, %c0_18] : memref<9x4x4xbf16, #tpu.memory_space<vmem>>, vector<1x4x4xbf16>
    %24 = vector.shape_cast %23 : vector<1x4x4xbf16> to vector<4x4xbf16>
    %cst_19 = arith.constant dense<0.000000e+00> : vector<4x128xf32>
    %25 = tpu.matmul %24, %10, %cst_19 {dimension_numbers = #tpu.dot_dimension_numbers<[1], [0], [0], [1], [0, 0, 1, 1], [], []>} : vector<4x4xbf16>, vector<4x128xbf16>, vector<4x128xf32> -> vector<4x128xf32>
    %26 = arith.truncf %25 : vector<4x128xf32> to vector<4x128xbf16>
    %c1_20 = arith.constant 1 : index
    %c0_21 = arith.constant 0 : index
    %c0_22 = arith.constant 0 : index
    %27 = vector.load %arg4[%c1_20, %c0_21, %c0_22] : memref<9x128x128xbf16, #tpu.memory_space<vmem>>, vector<1x128x128xbf16>
    %28 = vector.shape_cast %27 : vector<1x128x128xbf16> to vector<128x128xbf16>
    %cst_23 = arith.constant dense<0.000000e+00> : vector<4x128xf32>
    %29 = tpu.matmul %26, %28, %cst_23 {dimension_numbers = #tpu.dot_dimension_numbers<[1], [0], [0], [1], [0, 0, 1, 1], [], []>} : vector<4x128xbf16>, vector<128x128xbf16>, vector<4x128xf32> -> vector<4x128xf32>
    %30 = arith.addf %22, %29 : vector<4x128xf32>
    %c2 = arith.constant 2 : index
    %c0_24 = arith.constant 0 : index
    %c0_25 = arith.constant 0 : index
    %31 = vector.load %arg6[%c2, %c0_24, %c0_25] : memref<9x4x4xbf16, #tpu.memory_space<vmem>>, vector<1x4x4xbf16>
    %32 = vector.shape_cast %31 : vector<1x4x4xbf16> to vector<4x4xbf16>
    %cst_26 = arith.constant dense<0.000000e+00> : vector<4x128xf32>
    %33 = tpu.matmul %32, %10, %cst_26 {dimension_numbers = #tpu.dot_dimension_numbers<[1], [0], [0], [1], [0, 0, 1, 1], [], []>} : vector<4x4xbf16>, vector<4x128xbf16>, vector<4x128xf32> -> vector<4x128xf32>
    %34 = arith.truncf %33 : vector<4x128xf32> to vector<4x128xbf16>
    %c2_27 = arith.constant 2 : index
    %c0_28 = arith.constant 0 : index
    %c0_29 = arith.constant 0 : index
    %35 = vector.load %arg4[%c2_27, %c0_28, %c0_29] : memref<9x128x128xbf16, #tpu.memory_space<vmem>>, vector<1x128x128xbf16>
    %36 = vector.shape_cast %35 : vector<1x128x128xbf16> to vector<128x128xbf16>
    %cst_30 = arith.constant dense<0.000000e+00> : vector<4x128xf32>
    %37 = tpu.matmul %34, %36, %cst_30 {dimension_numbers = #tpu.dot_dimension_numbers<[1], [0], [0], [1], [0, 0, 1, 1], [], []>} : vector<4x128xbf16>, vector<128x128xbf16>, vector<4x128xf32> -> vector<4x128xf32>
    %38 = arith.addf %30, %37 : vector<4x128xf32>
    %c3 = arith.constant 3 : index
    %c0_31 = arith.constant 0 : index
    %c0_32 = arith.constant 0 : index
    %39 = vector.load %arg6[%c3, %c0_31, %c0_32] : memref<9x4x4xbf16, #tpu.memory_space<vmem>>, vector<1x4x4xbf16>
    %40 = vector.shape_cast %39 : vector<1x4x4xbf16> to vector<4x4xbf16>
    %cst_33 = arith.constant dense<0.000000e+00> : vector<4x128xf32>
    %41 = tpu.matmul %40, %10, %cst_33 {dimension_numbers = #tpu.dot_dimension_numbers<[1], [0], [0], [1], [0, 0, 1, 1], [], []>} : vector<4x4xbf16>, vector<4x128xbf16>, vector<4x128xf32> -> vector<4x128xf32>
    %42 = arith.truncf %41 : vector<4x128xf32> to vector<4x128xbf16>
    %c3_34 = arith.constant 3 : index
    %c0_35 = arith.constant 0 : index
    %c0_36 = arith.constant 0 : index
    %43 = vector.load %arg4[%c3_34, %c0_35, %c0_36] : memref<9x128x128xbf16, #tpu.memory_space<vmem>>, vector<1x128x128xbf16>
    %44 = vector.shape_cast %43 : vector<1x128x128xbf16> to vector<128x128xbf16>
    %cst_37 = arith.constant dense<0.000000e+00> : vector<4x128xf32>
    %45 = tpu.matmul %42, %44, %cst_37 {dimension_numbers = #tpu.dot_dimension_numbers<[1], [0], [0], [1], [0, 0, 1, 1], [], []>} : vector<4x128xbf16>, vector<128x128xbf16>, vector<4x128xf32> -> vector<4x128xf32>
    %46 = arith.addf %38, %45 : vector<4x128xf32>
    %c4 = arith.constant 4 : index
    %c0_38 = arith.constant 0 : index
    %c0_39 = arith.constant 0 : index
    %47 = vector.load %arg6[%c4, %c0_38, %c0_39] : memref<9x4x4xbf16, #tpu.memory_space<vmem>>, vector<1x4x4xbf16>
    %48 = vector.shape_cast %47 : vector<1x4x4xbf16> to vector<4x4xbf16>
    %cst_40 = arith.constant dense<0.000000e+00> : vector<4x128xf32>
    %49 = tpu.matmul %48, %10, %cst_40 {dimension_numbers = #tpu.dot_dimension_numbers<[1], [0], [0], [1], [0, 0, 1, 1], [], []>} : vector<4x4xbf16>, vector<4x128xbf16>, vector<4x128xf32> -> vector<4x128xf32>
    %50 = arith.truncf %49 : vector<4x128xf32> to vector<4x128xbf16>
    %c4_41 = arith.constant 4 : index
    %c0_42 = arith.constant 0 : index
    %c0_43 = arith.constant 0 : index
    %51 = vector.load %arg4[%c4_41, %c0_42, %c0_43] : memref<9x128x128xbf16, #tpu.memory_space<vmem>>, vector<1x128x128xbf16>
    %52 = vector.shape_cast %51 : vector<1x128x128xbf16> to vector<128x128xbf16>
    %cst_44 = arith.constant dense<0.000000e+00> : vector<4x128xf32>
    %53 = tpu.matmul %50, %52, %cst_44 {dimension_numbers = #tpu.dot_dimension_numbers<[1], [0], [0], [1], [0, 0, 1, 1], [], []>} : vector<4x128xbf16>, vector<128x128xbf16>, vector<4x128xf32> -> vector<4x128xf32>
    %54 = arith.addf %46, %53 : vector<4x128xf32>
    %c5 = arith.constant 5 : index
    %c0_45 = arith.constant 0 : index
    %c0_46 = arith.constant 0 : index
    %55 = vector.load %arg6[%c5, %c0_45, %c0_46] : memref<9x4x4xbf16, #tpu.memory_space<vmem>>, vector<1x4x4xbf16>
    %56 = vector.shape_cast %55 : vector<1x4x4xbf16> to vector<4x4xbf16>
    %cst_47 = arith.constant dense<0.000000e+00> : vector<4x128xf32>
    %57 = tpu.matmul %56, %10, %cst_47 {dimension_numbers = #tpu.dot_dimension_numbers<[1], [0], [0], [1], [0, 0, 1, 1], [], []>} : vector<4x4xbf16>, vector<4x128xbf16>, vector<4x128xf32> -> vector<4x128xf32>
    %58 = arith.truncf %57 : vector<4x128xf32> to vector<4x128xbf16>
    %c5_48 = arith.constant 5 : index
    %c0_49 = arith.constant 0 : index
    %c0_50 = arith.constant 0 : index
    %59 = vector.load %arg4[%c5_48, %c0_49, %c0_50] : memref<9x128x128xbf16, #tpu.memory_space<vmem>>, vector<1x128x128xbf16>
    %60 = vector.shape_cast %59 : vector<1x128x128xbf16> to vector<128x128xbf16>
    %cst_51 = arith.constant dense<0.000000e+00> : vector<4x128xf32>
    %61 = tpu.matmul %58, %60, %cst_51 {dimension_numbers = #tpu.dot_dimension_numbers<[1], [0], [0], [1], [0, 0, 1, 1], [], []>} : vector<4x128xbf16>, vector<128x128xbf16>, vector<4x128xf32> -> vector<4x128xf32>
    %62 = arith.addf %54, %61 : vector<4x128xf32>
    %c6 = arith.constant 6 : index
    %c0_52 = arith.constant 0 : index
    %c0_53 = arith.constant 0 : index
    %63 = vector.load %arg6[%c6, %c0_52, %c0_53] : memref<9x4x4xbf16, #tpu.memory_space<vmem>>, vector<1x4x4xbf16>
    %64 = vector.shape_cast %63 : vector<1x4x4xbf16> to vector<4x4xbf16>
    %cst_54 = arith.constant dense<0.000000e+00> : vector<4x128xf32>
    %65 = tpu.matmul %64, %10, %cst_54 {dimension_numbers = #tpu.dot_dimension_numbers<[1], [0], [0], [1], [0, 0, 1, 1], [], []>} : vector<4x4xbf16>, vector<4x128xbf16>, vector<4x128xf32> -> vector<4x128xf32>
    %66 = arith.truncf %65 : vector<4x128xf32> to vector<4x128xbf16>
    %c6_55 = arith.constant 6 : index
    %c0_56 = arith.constant 0 : index
    %c0_57 = arith.constant 0 : index
    %67 = vector.load %arg4[%c6_55, %c0_56, %c0_57] : memref<9x128x128xbf16, #tpu.memory_space<vmem>>, vector<1x128x128xbf16>
    %68 = vector.shape_cast %67 : vector<1x128x128xbf16> to vector<128x128xbf16>
    %cst_58 = arith.constant dense<0.000000e+00> : vector<4x128xf32>
    %69 = tpu.matmul %66, %68, %cst_58 {dimension_numbers = #tpu.dot_dimension_numbers<[1], [0], [0], [1], [0, 0, 1, 1], [], []>} : vector<4x128xbf16>, vector<128x128xbf16>, vector<4x128xf32> -> vector<4x128xf32>
    %70 = arith.addf %62, %69 : vector<4x128xf32>
    %c7 = arith.constant 7 : index
    %c0_59 = arith.constant 0 : index
    %c0_60 = arith.constant 0 : index
    %71 = vector.load %arg6[%c7, %c0_59, %c0_60] : memref<9x4x4xbf16, #tpu.memory_space<vmem>>, vector<1x4x4xbf16>
    %72 = vector.shape_cast %71 : vector<1x4x4xbf16> to vector<4x4xbf16>
    %cst_61 = arith.constant dense<0.000000e+00> : vector<4x128xf32>
    %73 = tpu.matmul %72, %10, %cst_61 {dimension_numbers = #tpu.dot_dimension_numbers<[1], [0], [0], [1], [0, 0, 1, 1], [], []>} : vector<4x4xbf16>, vector<4x128xbf16>, vector<4x128xf32> -> vector<4x128xf32>
    %74 = arith.truncf %73 : vector<4x128xf32> to vector<4x128xbf16>
    %c7_62 = arith.constant 7 : index
    %c0_63 = arith.constant 0 : index
    %c0_64 = arith.constant 0 : index
    %75 = vector.load %arg4[%c7_62, %c0_63, %c0_64] : memref<9x128x128xbf16, #tpu.memory_space<vmem>>, vector<1x128x128xbf16>
    %76 = vector.shape_cast %75 : vector<1x128x128xbf16> to vector<128x128xbf16>
    %cst_65 = arith.constant dense<0.000000e+00> : vector<4x128xf32>
    %77 = tpu.matmul %74, %76, %cst_65 {dimension_numbers = #tpu.dot_dimension_numbers<[1], [0], [0], [1], [0, 0, 1, 1], [], []>} : vector<4x128xbf16>, vector<128x128xbf16>, vector<4x128xf32> -> vector<4x128xf32>
    %78 = arith.addf %70, %77 : vector<4x128xf32>
    %c8 = arith.constant 8 : index
    %c0_66 = arith.constant 0 : index
    %c0_67 = arith.constant 0 : index
    %79 = vector.load %arg6[%c8, %c0_66, %c0_67] : memref<9x4x4xbf16, #tpu.memory_space<vmem>>, vector<1x4x4xbf16>
    %80 = vector.shape_cast %79 : vector<1x4x4xbf16> to vector<4x4xbf16>
    %cst_68 = arith.constant dense<0.000000e+00> : vector<4x128xf32>
    %81 = tpu.matmul %80, %10, %cst_68 {dimension_numbers = #tpu.dot_dimension_numbers<[1], [0], [0], [1], [0, 0, 1, 1], [], []>} : vector<4x4xbf16>, vector<4x128xbf16>, vector<4x128xf32> -> vector<4x128xf32>
    %82 = arith.truncf %81 : vector<4x128xf32> to vector<4x128xbf16>
    %c8_69 = arith.constant 8 : index
    %c0_70 = arith.constant 0 : index
    %c0_71 = arith.constant 0 : index
    %83 = vector.load %arg4[%c8_69, %c0_70, %c0_71] : memref<9x128x128xbf16, #tpu.memory_space<vmem>>, vector<1x128x128xbf16>
    %84 = vector.shape_cast %83 : vector<1x128x128xbf16> to vector<128x128xbf16>
    %cst_72 = arith.constant dense<0.000000e+00> : vector<4x128xf32>
    %85 = tpu.matmul %82, %84, %cst_72 {dimension_numbers = #tpu.dot_dimension_numbers<[1], [0], [0], [1], [0, 0, 1, 1], [], []>} : vector<4x128xbf16>, vector<128x128xbf16>, vector<4x128xf32> -> vector<4x128xf32>
    %86 = arith.addf %78, %85 : vector<4x128xf32>
    %cst_73 = arith.constant 0.000000e+00 : f32
    %87 = vector.broadcast %cst_73 : f32 to vector<4x128xf32>
    %88 = arith.maximumf %86, %87 : vector<4x128xf32>
    %89 = arith.truncf %88 : vector<4x128xf32> to vector<4x128xbf16>
    %c0_74 = arith.constant 0 : index
    %c0_75 = arith.constant 0 : index
    %c0_76 = arith.constant 0 : index
    %90 = vector.load %arg7[%c0_74, %c0_75, %c0_76] : memref<1x4x128xbf16, #tpu.memory_space<vmem>>, vector<1x4x128xbf16>
    %91 = vector.shape_cast %90 : vector<1x4x128xbf16> to vector<4x128xbf16>
    %92 = vector.shape_cast %89 : vector<4x128xbf16> to vector<1x4x128xbf16>
    tpu.vector_store %arg7[%c0_74, %c0_75, %c0_76], %92 {strides = array<i32>} : memref<1x4x128xbf16, #tpu.memory_space<vmem>>, vector<1x4x128xbf16>,
    return
  }
  func.func @transform_0(%arg0: i32) -> (i32, i32, i32) {
    %c0_i32 = arith.constant 0 : i32
    %c0_i32_0 = arith.constant 0 : i32
    %c0_i32_1 = arith.constant 0 : i32
    return %arg0, %c0_i32, %c0_i32_0 : i32, i32, i32
  }
  func.func @transform_1(%arg0: i32) -> (i32, i32) {
    %c0_i32 = arith.constant 0 : i32
    %c0_i32_0 = arith.constant 0 : i32
    %c0_i32_1 = arith.constant 0 : i32
    return %c0_i32, %c0_i32_0 : i32, i32
  }
  func.func @transform_2(%arg0: i32) -> (i32, i32) {
    %c0_i32 = arith.constant 0 : i32
    %c0_i32_0 = arith.constant 0 : i32
    %c0_i32_1 = arith.constant 0 : i32
    return %c0_i32, %c0_i32_0 : i32, i32
  }
  func.func @transform_3(%arg0: i32) -> (i32, i32, i32) {
    %c0_i32 = arith.constant 0 : i32
    %c0_i32_0 = arith.constant 0 : i32
    %c0_i32_1 = arith.constant 0 : i32
    %c0_i32_2 = arith.constant 0 : i32
    return %c0_i32, %c0_i32_0, %c0_i32_1 : i32, i32, i32
  }
  func.func @transform_4(%arg0: i32) -> (i32, i32) {
    %c0_i32 = arith.constant 0 : i32
    %c0_i32_0 = arith.constant 0 : i32
    %c0_i32_1 = arith.constant 0 : i32
    return %c0_i32, %c0_i32_0 : i32, i32
  }
  func.func @transform_5(%arg0: i32) -> (i32, i32, i32) {
    %c0_i32 = arith.constant 0 : i32
    %c0_i32_0 = arith.constant 0 : i32
    %c0_i32_1 = arith.constant 0 : i32
    %c0_i32_2 = arith.constant 0 : i32
    return %c0_i32, %c0_i32_0, %c0_i32_1 : i32, i32, i32
  }
  func.func @transform_6(%arg0: i32) -> (i32, i32, i32) {
    %c0_i32 = arith.constant 0 : i32
    %c0_i32_0 = arith.constant 0 : i32
    %c0_i32_1 = arith.constant 0 : i32
    return %arg0, %c0_i32, %c0_i32_0 : i32, i32, i32
  }
}

module attributes {stable_mosaic.version = 11 : i64} {
  func.func @_block_kernel(%arg0: i32, %arg1: memref<1x1x576xbf16, #tpu.memory_space<vmem>>, %arg2: memref<576x256xbf16, #tpu.memory_space<vmem>>, %arg3: memref<1x256xf32, #tpu.memory_space<vmem>>, %arg4: memref<9x128x128xbf16, #tpu.memory_space<vmem>>, %arg5: memref<1x128xf32, #tpu.memory_space<vmem>>, %arg6: memref<9x1x1xbf16, #tpu.memory_space<vmem>>, %arg7: memref<1x1x128xbf16, #tpu.memory_space<vmem>>) attributes {dimension_semantics = [#tpu.dimension_semantics<parallel>], iteration_bounds = array<i64: 2>, scalar_prefetch = 0 : i64, scratch_operands = 0 : i64, tpu.core_type = #tpu.core_type<tc>, window_params = [{transform_indices = @transform_0, window_bounds = array<i64: 1, 1, 576>}, {pipeline_mode = #tpu.pipeline_mode<synchronous>, transform_indices = @transform_1, window_bounds = array<i64: 576, 256>}, {pipeline_mode = #tpu.pipeline_mode<synchronous>, transform_indices = @transform_2, window_bounds = array<i64: 1, 256>}, {pipeline_mode = #tpu.pipeline_mode<synchronous>, transform_indices = @transform_3, window_bounds = array<i64: 9, 128, 128>}, {pipeline_mode = #tpu.pipeline_mode<synchronous>, transform_indices = @transform_4, window_bounds = array<i64: 1, 128>}, {pipeline_mode = #tpu.pipeline_mode<synchronous>, transform_indices = @transform_5, window_bounds = array<i64: 9, 1, 1>}, {transform_indices = @transform_6, window_bounds = array<i64: 1, 1, 128>}]} {
    %c0 = arith.constant 0 : index
    %c0_0 = arith.constant 0 : index
    %c0_1 = arith.constant 0 : index
    %0 = vector.load %arg1[%c0, %c0_0, %c0_1] : memref<1x1x576xbf16, #tpu.memory_space<vmem>>, vector<1x1x576xbf16>
    %1 = vector.shape_cast %0 : vector<1x1x576xbf16> to vector<1x576xbf16>
    %c0_2 = arith.constant 0 : index
    %c0_3 = arith.constant 0 : index
    %2 = vector.load %arg2[%c0_2, %c0_3] : memref<576x256xbf16, #tpu.memory_space<vmem>>, vector<576x256xbf16>
    %cst = arith.constant dense<0.000000e+00> : vector<1x256xf32>
    %3 = tpu.matmul %1, %2, %cst {dimension_numbers = #tpu.dot_dimension_numbers<[1], [0], [0], [1], [0, 0, 1, 1], [], []>} : vector<1x576xbf16>, vector<576x256xbf16>, vector<1x256xf32> -> vector<1x256xf32>
    %c0_4 = arith.constant 0 : index
    %c0_5 = arith.constant 0 : index
    %4 = vector.load %arg3[%c0_4, %c0_5] : memref<1x256xf32, #tpu.memory_space<vmem>>, vector<1x256xf32>
    %5 = arith.addf %3, %4 : vector<1x256xf32>
    %6 = vector.extract_strided_slice %5 {offsets = [0, 0], sizes = [1, 128], strides = [1, 1]} : vector<1x256xf32> to vector<1x128xf32>
    %cst_6 = arith.constant 0.000000e+00 : f32
    %7 = vector.broadcast %cst_6 : f32 to vector<1x128xf32>
    %8 = arith.maximumf %6, %7 : vector<1x128xf32>
    %9 = arith.truncf %8 : vector<1x128xf32> to vector<1x128xbf16>
    %10 = vector.extract_strided_slice %5 {offsets = [0, 128], sizes = [1, 128], strides = [1, 1]} : vector<1x256xf32> to vector<1x128xf32>
    %c0_7 = arith.constant 0 : index
    %c0_8 = arith.constant 0 : index
    %11 = vector.load %arg5[%c0_7, %c0_8] : memref<1x128xf32, #tpu.memory_space<vmem>>, vector<1x128xf32>
    %12 = arith.addf %10, %11 : vector<1x128xf32>
    %c4 = arith.constant 4 : index
    %c0_9 = arith.constant 0 : index
    %c0_10 = arith.constant 0 : index
    %13 = vector.load %arg4[%c4, %c0_9, %c0_10] : memref<9x128x128xbf16, #tpu.memory_space<vmem>>, vector<1x128x128xbf16>
    %14 = vector.shape_cast %13 : vector<1x128x128xbf16> to vector<128x128xbf16>
    %cst_11 = arith.constant dense<0.000000e+00> : vector<1x128xf32>
    %15 = tpu.matmul %9, %14, %cst_11 {dimension_numbers = #tpu.dot_dimension_numbers<[1], [0], [0], [1], [0, 0, 1, 1], [], []>} : vector<1x128xbf16>, vector<128x128xbf16>, vector<1x128xf32> -> vector<1x128xf32>
    %16 = arith.addf %12, %15 : vector<1x128xf32>
    %cst_12 = arith.constant 0.000000e+00 : f32
    %17 = vector.broadcast %cst_12 : f32 to vector<1x128xf32>
    %18 = arith.maximumf %16, %17 : vector<1x128xf32>
    %19 = arith.truncf %18 : vector<1x128xf32> to vector<1x128xbf16>
    %c0_13 = arith.constant 0 : index
    %c0_14 = arith.constant 0 : index
    %c0_15 = arith.constant 0 : index
    %20 = vector.load %arg7[%c0_13, %c0_14, %c0_15] : memref<1x1x128xbf16, #tpu.memory_space<vmem>>, vector<1x1x128xbf16>
    %21 = vector.shape_cast %20 : vector<1x1x128xbf16> to vector<1x128xbf16>
    %22 = vector.shape_cast %19 : vector<1x128xbf16> to vector<1x1x128xbf16>
    tpu.vector_store %arg7[%c0_13, %c0_14, %c0_15], %22 {strides = array<i32>} : memref<1x1x128xbf16, #tpu.memory_space<vmem>>, vector<1x1x128xbf16>,
    return
  }
  func.func @transform_0(%arg0: i32) -> (i32, i32, i32) {
    %c0_i32 = arith.constant 0 : i32
    %c0_i32_0 = arith.constant 0 : i32
    %c0_i32_1 = arith.constant 0 : i32
    return %arg0, %c0_i32, %c0_i32_0 : i32, i32, i32
  }
  func.func @transform_1(%arg0: i32) -> (i32, i32) {
    %c0_i32 = arith.constant 0 : i32
    %c0_i32_0 = arith.constant 0 : i32
    %c0_i32_1 = arith.constant 0 : i32
    return %c0_i32, %c0_i32_0 : i32, i32
  }
  func.func @transform_2(%arg0: i32) -> (i32, i32) {
    %c0_i32 = arith.constant 0 : i32
    %c0_i32_0 = arith.constant 0 : i32
    %c0_i32_1 = arith.constant 0 : i32
    return %c0_i32, %c0_i32_0 : i32, i32
  }
  func.func @transform_3(%arg0: i32) -> (i32, i32, i32) {
    %c0_i32 = arith.constant 0 : i32
    %c0_i32_0 = arith.constant 0 : i32
    %c0_i32_1 = arith.constant 0 : i32
    %c0_i32_2 = arith.constant 0 : i32
    return %c0_i32, %c0_i32_0, %c0_i32_1 : i32, i32, i32
  }
  func.func @transform_4(%arg0: i32) -> (i32, i32) {
    %c0_i32 = arith.constant 0 : i32
    %c0_i32_0 = arith.constant 0 : i32
    %c0_i32_1 = arith.constant 0 : i32
    return %c0_i32, %c0_i32_0 : i32, i32
  }
  func.func @transform_5(%arg0: i32) -> (i32, i32, i32) {
    %c0_i32 = arith.constant 0 : i32
    %c0_i32_0 = arith.constant 0 : i32
    %c0_i32_1 = arith.constant 0 : i32
    %c0_i32_2 = arith.constant 0 : i32
    return %c0_i32, %c0_i32_0, %c0_i32_1 : i32, i32, i32
  }
  func.func @transform_6(%arg0: i32) -> (i32, i32, i32) {
    %c0_i32 = arith.constant 0 : i32
    %c0_i32_0 = arith.constant 0 : i32
    %c0_i32_1 = arith.constant 0 : i32
    return %arg0, %c0_i32, %c0_i32_0 : i32, i32, i32
  }
}

</mosaic_0001>

<llo_original>
// kernel: backbone_base_forward.5
$region0: #{backbone_base_forward.5}
  #allocation0 [shape = 'u32[]', space=smem, size = 0x4, offset = 0x4, fixed_abs, tag = 'smem constant byte address 0x4 - core index']
  #allocation1 [shape = 'u32[72,128]{1,0:T(1,128)}', space=vmem, size = 0x9000, scoped, tag = 'internal scratch']
  %s0 = inlined_call_operand.vmem [shape: bf16[2,256,392], index: 0, kind: input, shape index: {}]
  %s1 = inlined_call_operand.vmem [shape: bf16[392,128], index: 1, kind: input, shape index: {}]
  %s2 = inlined_call_operand.vmem [shape: f32[1,128], index: 2, kind: input, shape index: {}]
  %s3 = inlined_call_operand.vmem [shape: bf16[2,256,128], index: 3, kind: output, shape index: {}]
  %s4 = sld [smem:[#allocation0]]
  $region45: #{backbone_base_forward.5} parent=0
    _
  %s6 = ssub.s32 1, %s4
  %s7 = scalar_select 0, %s6, %s4
  loop: start=0, step=1, limit=4
  $region2: #{backbone_base_forward.5} parent=0 // loop_pre_header
    _
  $region3: #{backbone_base_forward.5} parent=0 // loop_header
    %s9 = sphi 0, %s13
    %p10 = scmp.ge.s32.totalorder %s9, 4
    %s19 = sphi 0, %s21
    %s22 = sphi 0, %s19
    %s23 = sphi 0, %s22
    %s39 = sphi 0, %s23
    %s43 = sphi 0, %s43
    %s45 = sphi 0, %s43
    %s46 = sphi 0, %s45
    %s60 = sphi 0, %s46
    %s64 = sphi 0, %s64
    %s66 = sphi 0, %s64
    %s67 = sphi 0, %s66
    %s81 = sphi 0, %s67
    %s87 = sphi 0, %s89
    %s90 = sphi 0, %s87
    %s91 = sphi 0, %s90
    %s107 = sphi 0, %s91
  $region4: #{backbone_base_forward.5} parent=0 // loop_header_branch
    %12 = sbr.rel (%p10) target = $region8
  $region5: #{backbone_base_forward.5} parent=0 // loop_body
    %s14 = ssub.s32 %s9, 1
    %s15 = ssub.s32 %s9, 2
    %s16 = sadd.s32 %s9, 1
    %s17 = ssub.s32 %s9, %s16
    %p18 = scmp.eq.s32.totalorder %s17, 0
    %s20 = sadd.s32 %s19, 1
    %s21 = scalar_select %p18, %s19, %s20
    %p24 = pneg %p18
    %p25 = scmp.eq.s32.totalorder %s9, 1
    %p26 = por %p24, %p25
    %p27 = scmp.ne.s32.totalorder %s19, %s22
    %p28 = scmp.eq.s32.totalorder %s9, 0
    %p29 = por %p27, %p28
    %p30 = scmp.ne.s32.totalorder %s19, %s22
    %p31 = scmp.eq.s32.totalorder %s14, 1
    %p32 = por %p30, %p31
    %p33 = scmp.ne.s32.totalorder %s22, %s23
    %p34 = scmp.eq.s32.totalorder %s14, 0
    %p35 = por %p33, %p34
    %p36 = scmp.ne.s32.totalorder %s22, %s23
    %p37 = scmp.eq.s32.totalorder %s15, 1
    %p38 = por %p36, %p37
    %p40 = scmp.ne.s32.totalorder %s23, %s39
    %p41 = scmp.eq.s32.totalorder %s15, 0
    %p42 = por %p40, %p41
    %s44 = sadd.s32 %s43, 1
    %p47 = scmp.eq.s32.totalorder %s9, 1
    %p48 = scmp.ne.s32.totalorder %s43, %s45
    %p49 = scmp.eq.s32.totalorder %s9, 0
    %p50 = por %p48, %p49
    %p51 = scmp.ne.s32.totalorder %s43, %s45
    %p52 = scmp.eq.s32.totalorder %s14, 1
    %p53 = por %p51, %p52
    %p54 = scmp.ne.s32.totalorder %s45, %s46
    %p55 = scmp.eq.s32.totalorder %s14, 0
    %p56 = por %p54, %p55
    %p57 = scmp.ne.s32.totalorder %s45, %s46
    %p58 = scmp.eq.s32.totalorder %s15, 1
    %p59 = por %p57, %p58
    %p61 = scmp.ne.s32.totalorder %s46, %s60
    %p62 = scmp.eq.s32.totalorder %s15, 0
    %p63 = por %p61, %p62
    %s65 = sadd.s32 %s64, 1
    %p68 = scmp.eq.s32.totalorder %s9, 1
    %p69 = scmp.ne.s32.totalorder %s64, %s66
    %p70 = scmp.eq.s32.totalorder %s9, 0
    %p71 = por %p69, %p70
    %p72 = scmp.ne.s32.totalorder %s64, %s66
    %p73 = scmp.eq.s32.totalorder %s14, 1
    %p74 = por %p72, %p73
    %p75 = scmp.ne.s32.totalorder %s66, %s67
    %p76 = scmp.eq.s32.totalorder %s14, 0
    %p77 = por %p75, %p76
    %p78 = scmp.ne.s32.totalorder %s66, %s67
    %p79 = scmp.eq.s32.totalorder %s15, 1
    %p80 = por %p78, %p79
    %p82 = scmp.ne.s32.totalorder %s67, %s81
    %p83 = scmp.eq.s32.totalorder %s15, 0
    %p84 = por %p82, %p83
    %s85 = ssub.s32 %s9, %s16
    %p86 = scmp.eq.s32.totalorder %s85, 0
    %s88 = sadd.s32 %s87, 1
    %s89 = scalar_select %p86, %s87, %s88
    %p92 = pneg %p86
    %p93 = scmp.eq.s32.totalorder %s9, 1
    %p94 = por %p92, %p93
    %p95 = scmp.ne.s32.totalorder %s87, %s90
    %p96 = scmp.eq.s32.totalorder %s9, 0
    %p97 = por %p95, %p96
    %p98 = scmp.ne.s32.totalorder %s87, %s90
    %p99 = scmp.eq.s32.totalorder %s14, 1
    %p100 = por %p98, %p99
    %p101 = scmp.ne.s32.totalorder %s90, %s91
    %p102 = scmp.eq.s32.totalorder %s14, 0
    %p103 = por %p101, %p102
    %p104 = scmp.ne.s32.totalorder %s90, %s91
    %p105 = scmp.eq.s32.totalorder %s15, 1
    %p106 = por %p104, %p105
    %p108 = scmp.ne.s32.totalorder %s91, %s107
    %p109 = scmp.eq.s32.totalorder %s15, 0
    %p110 = por %p108, %p109
    %p111 = scmp.le.s32.totalorder 1, %s9
    %p112 = scmp.lt.s32.totalorder %s9, 3
    %p113 = pnand %p111, %p112
    %p114 = pneg %p113
    // Predicated region
    $region9: #{backbone_base_forward.5} parent=5 // pred_check
      _
    $region10: #{backbone_base_forward.5} parent=5 // pred_check_branch
      %116 = sbr.rel (%p113) target = $region12
    $region11: #{backbone_base_forward.5} parent=5 // pred_region
      %s117 = ssub.s32 %s9, 1
      // Predicated region
      $region13: #{backbone_base_forward.5} parent=11 // pred_check
        %p118 = pneg %p56
      $region14: #{backbone_base_forward.5} parent=11 // pred_check_branch
        %120 = sbr.rel (%p118) target = $region16
      $region15: #{backbone_base_forward.5} parent=11 // pred_region
        _
      $region16: #{backbone_base_forward.5} parent=11 // pred_fallthru
        _
      // Predicated region
      $region17: #{backbone_base_forward.5} parent=11 // pred_check
        %p121 = pneg %p77
      $region18: #{backbone_base_forward.5} parent=11 // pred_check_branch
        %123 = sbr.rel (%p121) target = $region20
      $region19: #{backbone_base_forward.5} parent=11 // pred_region
        _
      $region20: #{backbone_base_forward.5} parent=11 // pred_fallthru
        _
    $region12: #{backbone_base_forward.5} parent=5 // pred_fallthru
      _
    %p124 = scmp.lt.s32.totalorder %s9, 2
    // Predicated region
    $region21: #{backbone_base_forward.5} parent=5 // pred_check
      %p125 = pneg %p124
    $region22: #{backbone_base_forward.5} parent=5 // pred_check_branch
      %127 = sbr.rel (%p125) target = $region24
    $region23: #{backbone_base_forward.5} parent=5 // pred_region
      // Predicated region
      $region25: #{backbone_base_forward.5} parent=23 // pred_check
        %p128 = pneg %p29
      $region26: #{backbone_base_forward.5} parent=23 // pred_check_branch
        %130 = sbr.rel (%p128) target = $region28
      $region27: #{backbone_base_forward.5} parent=23 // pred_region
        %p131 = scmp.lt.s32.totalorder %s9, 1
        %s132 = scalar_select %p131, %s9, 1
        %s133 = smul.addr %s132, 128
        %s134 = smul.addr %s133, 4
        %s135 = scalar_lea.vmem %s0, %s134
      $region28: #{backbone_base_forward.5} parent=23 // pred_fallthru
        _
    $region24: #{backbone_base_forward.5} parent=5 // pred_fallthru
      _
    %p136 = scmp.le.s32.totalorder 1, %s9
    %p137 = scmp.lt.s32.totalorder %s9, 3
    %p138 = pnand %p136, %p137
    %p139 = pneg %p138
    // Predicated region
    $region29: #{backbone_base_forward.5} parent=5 // pred_check
      _
    $region30: #{backbone_base_forward.5} parent=5 // pred_check_branch
      %141 = sbr.rel (%p138) target = $region32
    $region31: #{backbone_base_forward.5} parent=5 // pred_region
      %s142 = ssub.s32 %s9, 1
      %p143 = scmp.lt.s32.totalorder %s14, 1
      %s144 = scalar_select %p143, %s14, 1
      %s145 = smul.addr %s144, 128
      %s146 = smul.addr %s145, 4
      %s147 = scalar_lea.vmem %s0, %s146
      %p148 = pneg %p35
      %p149 = pneg %p32
      %p150 = pneg %p56
      %p151 = pneg %p53
      %p152 = pneg %p77
      %p153 = pneg %p74
      %p154 = pneg %p103
      %p155 = pneg %p100
      %p156 = scmp.lt.s32.totalorder %s14, 1
      %s157 = scalar_select %p156, %s14, 1
      %s158 = smul.addr %s157, 32
      %s159 = smul.addr %s158, 4
      %s160 = scalar_lea.vmem %s3, %s159
      %p161 = scmp.lt.s32.totalorder %s14, 1
      %s162 = scalar_select %p161, %s14, 1
      %s163 = smul.addr %s162, 128
      %s164 = smul.addr %s163, 4
      %s165 = scalar_lea.vmem %s0, %s164
      %p166 = scmp.lt.s32.totalorder %s14, 1
      %s167 = scalar_select %p166, %s14, 1
      %s168 = smul.addr %s167, 32
      %s169 = smul.addr %s168, 4
      %s170 = scalar_lea.vmem %s3, %s169
      %v172 = vld [vmem:[%s165] sm:$0xff]
      %v173 = vld [vmem:[%s165 + $0x8] sm:$0xff]
      %v174 = vld [vmem:[%s165 + $0x10] sm:$0xff]
      %v175 = vld [vmem:[%s165 + $0x18] sm:$0xff]
      %v176 = vld [vmem:[%s165 + $0x20] sm:$0xff]
      %v177 = vld [vmem:[%s165 + $0x28] sm:$0xff]
      %v178 = vld [vmem:[%s165 + $0x30] sm:$0xff]
      %v179 = vld [vmem:[%s165 + $0x38] sm:$0xff]
      %v180 = vld [vmem:[%s165 + $0x40] sm:$0xff]
      %v181 = vld [vmem:[%s165 + $0x48] sm:$0xff]
      %v182 = vld [vmem:[%s165 + $0x50] sm:$0xff]
      %v183 = vld [vmem:[%s165 + $0x58] sm:$0xff]
      %v184 = vld [vmem:[%s165 + $0x60] sm:$0xff]
      %v185 = vld [vmem:[%s165 + $0x68] sm:$0xff]
      %v186 = vld [vmem:[%s165 + $0x70] sm:$0xff]
      %v187 = vld [vmem:[%s165 + $0x78] sm:$0xff]
      %v188 = vld [vmem:[%s165 + $0x80] sm:$0xff]
      %v189 = vld [vmem:[%s165 + $0x88] sm:$0xff]
      %v190 = vld [vmem:[%s165 + $0x90] sm:$0xff]
      %v191 = vld [vmem:[%s165 + $0x98] sm:$0xff]
      %v192 = vld [vmem:[%s165 + $0xa0] sm:$0xff]
      %v193 = vld [vmem:[%s165 + $0xa8] sm:$0xff]
      %v194 = vld [vmem:[%s165 + $0xb0] sm:$0xff]
      %v195 = vld [vmem:[%s165 + $0xb8] sm:$0xff]
      %v196 = vld [vmem:[%s165 + $0xc0] sm:$0xff]
      %v197 = vld [vmem:[%s165 + $0xc8] sm:$0xff]
      %v198 = vld [vmem:[%s165 + $0xd0] sm:$0xff]
      %v199 = vld [vmem:[%s165 + $0xd8] sm:$0xff]
      %v200 = vld [vmem:[%s165 + $0xe0] sm:$0xff]
      %v201 = vld [vmem:[%s165 + $0xe8] sm:$0xff]
      %v202 = vld [vmem:[%s165 + $0xf0] sm:$0xff]
      %v203 = vld [vmem:[%s165 + $0xf8] sm:$0xff]
      %v204 = vld [vmem:[%s165 + $0x100] sm:$0xff]
      %v205 = vld [vmem:[%s165 + $0x108] sm:$0xff]
      %v206 = vld [vmem:[%s165 + $0x110] sm:$0xff]
      %v207 = vld [vmem:[%s165 + $0x118] sm:$0xff]
      %v208 = vld [vmem:[%s165 + $0x120] sm:$0xff]
      %v209 = vld [vmem:[%s165 + $0x128] sm:$0xff]
      %v210 = vld [vmem:[%s165 + $0x130] sm:$0xff]
      %v211 = vld [vmem:[%s165 + $0x138] sm:$0xff]
      %v212 = vld [vmem:[%s165 + $0x140] sm:$0xff]
      %v213 = vld [vmem:[%s165 + $0x148] sm:$0xff]
      %v214 = vld [vmem:[%s165 + $0x150] sm:$0xff]
      %v215 = vld [vmem:[%s165 + $0x158] sm:$0xff]
      %v216 = vld [vmem:[%s165 + $0x160] sm:$0xff]
      %v217 = vld [vmem:[%s165 + $0x168] sm:$0xff]
      %v218 = vld [vmem:[%s165 + $0x170] sm:$0xff]
      %v219 = vld [vmem:[%s165 + $0x178] sm:$0xff]
      %v220 = vld [vmem:[%s165 + $0x180] sm:$0xff]
      %v221 = vld [vmem:[%s165 + $0x188] sm:$0xff]
      %v222 = vld [vmem:[%s165 + $0x190] sm:$0xff]
      %v223 = vld [vmem:[%s165 + $0x198] sm:$0xff]
      %v224 = vld [vmem:[%s165 + $0x1a0] sm:$0xff]
      %v225 = vld [vmem:[%s165 + $0x1a8] sm:$0xff]
      %v226 = vld [vmem:[%s165 + $0x1b0] sm:$0xff]
      %v227 = vld [vmem:[%s165 + $0x1b8] sm:$0xff]
      %v228 = vld [vmem:[%s165 + $0x1c0] sm:$0xff]
      %v229 = vld [vmem:[%s165 + $0x1c8] sm:$0xff]
      %v230 = vld [vmem:[%s165 + $0x1d0] sm:$0xff]
      %v231 = vld [vmem:[%s165 + $0x1d8] sm:$0xff]
      %v232 = vld [vmem:[%s165 + $0x1e0] sm:$0xff]
      %v233 = vld [vmem:[%s165 + $0x1e8] sm:$0xff]
      %v234 = vld [vmem:[%s165 + $0x1f0] sm:$0xff]
      %v235 = vld [vmem:[%s165 + $0x1f8] sm:$0xff]
      %v236 = vld [vmem:[%s1] sm:$0xf]
      %v237 = vld [vmem:[%s1 + $0x4] sm:$0xf]
      %v238 = vld [vmem:[%s1 + $0x8] sm:$0xf]
      %v239 = vld [vmem:[%s1 + $0xc] sm:$0xf]
      %v240 = vld [vmem:[%s1 + $0x10] sm:$0xf]
      %v241 = vld [vmem:[%s1 + $0x14] sm:$0xf]
      %v242 = vld [vmem:[%s1 + $0x18] sm:$0xf]
      %v243 = vld [vmem:[%s1 + $0x1c] sm:$0xf]
      %v244 = vld [vmem:[%s1 + $0x20] sm:$0xf]
      %v245 = vld [vmem:[%s1 + $0x24] sm:$0xf]
      %v246 = vld [vmem:[%s1 + $0x28] sm:$0xf]
      %v247 = vld [vmem:[%s1 + $0x2c] sm:$0xf]
      %v248 = vld [vmem:[%s1 + $0x30] sm:$0xf]
      %v249 = vld [vmem:[%s1 + $0x34] sm:$0xf]
      %v250 = vld [vmem:[%s1 + $0x38] sm:$0xf]
      %v251 = vld [vmem:[%s1 + $0x3c] sm:$0xf]
      %v252 = vld [vmem:[%s1 + $0x40] sm:$0xf]
      %v253 = vld [vmem:[%s1 + $0x44] sm:$0xf]
      %v254 = vld [vmem:[%s1 + $0x48] sm:$0xf]
      %v255 = vld [vmem:[%s1 + $0x4c] sm:$0xf]
      %v256 = vld [vmem:[%s1 + $0x50] sm:$0xf]
      %v257 = vld [vmem:[%s1 + $0x54] sm:$0xf]
      %v258 = vld [vmem:[%s1 + $0x58] sm:$0xf]
      %v259 = vld [vmem:[%s1 + $0x5c] sm:$0xf]
      %v260 = vld [vmem:[%s1 + $0x60] sm:$0xf]
      %v261 = vld [vmem:[%s1 + $0x64] sm:$0xf]
      %v262 = vld [vmem:[%s1 + $0x68] sm:$0xf]
      %v263 = vld [vmem:[%s1 + $0x6c] sm:$0xf]
      %v264 = vld [vmem:[%s1 + $0x70] sm:$0xf]
      %v265 = vld [vmem:[%s1 + $0x74] sm:$0xf]
      %v266 = vld [vmem:[%s1 + $0x78] sm:$0xf]
      %v267 = vld [vmem:[%s1 + $0x7c] sm:$0xf]
      %v268 = vld [vmem:[%s1 + $0x80] sm:$0xf]
      %v269 = vld [vmem:[%s1 + $0x84] sm:$0xf]
      %v270 = vld [vmem:[%s1 + $0x88] sm:$0xf]
      %v271 = vld [vmem:[%s1 + $0x8c] sm:$0xf]
      %v272 = vld [vmem:[%s1 + $0x90] sm:$0xf]
      %v273 = vld [vmem:[%s1 + $0x94] sm:$0xf]
      %v274 = vld [vmem:[%s1 + $0x98] sm:$0xf]
      %v275 = vld [vmem:[%s1 + $0x9c] sm:$0xf]
      %v276 = vld [vmem:[%s1 + $0xa0] sm:$0xf]
      %v277 = vld [vmem:[%s1 + $0xa4] sm:$0xf]
      %v278 = vld [vmem:[%s1 + $0xa8] sm:$0xf]
      %v279 = vld [vmem:[%s1 + $0xac] sm:$0xf]
      %v280 = vld [vmem:[%s1 + $0xb0] sm:$0xf]
      %v281 = vld [vmem:[%s1 + $0xb4] sm:$0xf]
      %v282 = vld [vmem:[%s1 + $0xb8] sm:$0xf]
      %v283 = vld [vmem:[%s1 + $0xbc] sm:$0xf]
      %v284 = vld [vmem:[%s1 + $0xc0] sm:$0xf]
      %v285 = vld [vmem:[%s2] sm:$0x1]
      %v287 = vperm.slane %v285, 0
      %v353 = vunpack.c.l.b16 %v172
      %v354 = vunpack.c.h.b16 %v172
      %v355 = vunpack.c.l.b16 %v173
      %v356 = vunpack.c.h.b16 %v173
      %v357 = vunpack.c.l.b16 %v174
      %v358 = vunpack.c.h.b16 %v174
      %v359 = vunpack.c.l.b16 %v175
      %v360 = vunpack.c.h.b16 %v175
      %v361 = vunpack.c.l.b16 %v176
      %v362 = vunpack.c.h.b16 %v176
      %v363 = vunpack.c.l.b16 %v177
      %v364 = vunpack.c.h.b16 %v177
      %v365 = vunpack.c.l.b16 %v178
      %v366 = vunpack.c.h.b16 %v178
      %v367 = vunpack.c.l.b16 %v179
      %v368 = vunpack.c.h.b16 %v179
      %v369 = vunpack.c.l.b16 %v180
      %v370 = vunpack.c.h.b16 %v180
      %v371 = vunpack.c.l.b16 %v181
      %v372 = vunpack.c.h.b16 %v181
      %v373 = vunpack.c.l.b16 %v182
      %v374 = vunpack.c.h.b16 %v182
      %v375 = vunpack.c.l.b16 %v183
      %v376 = vunpack.c.h.b16 %v183
      %v377 = vunpack.c.l.b16 %v184
      %v378 = vunpack.c.h.b16 %v184
      %v379 = vunpack.c.l.b16 %v185
      %v380 = vunpack.c.h.b16 %v185
      %v381 = vunpack.c.l.b16 %v186
      %v382 = vunpack.c.h.b16 %v186
      %v383 = vunpack.c.l.b16 %v187
      %v384 = vunpack.c.h.b16 %v187
      %v385 = vunpack.c.l.b16 %v188
      %v386 = vunpack.c.h.b16 %v188
      %v387 = vunpack.c.l.b16 %v189
      %v388 = vunpack.c.h.b16 %v189
      %v389 = vunpack.c.l.b16 %v190
      %v390 = vunpack.c.h.b16 %v190
      %v391 = vunpack.c.l.b16 %v191
      %v392 = vunpack.c.h.b16 %v191
      %v393 = vunpack.c.l.b16 %v192
      %v394 = vunpack.c.h.b16 %v192
      %v395 = vunpack.c.l.b16 %v193
      %v396 = vunpack.c.h.b16 %v193
      %v397 = vunpack.c.l.b16 %v194
      %v398 = vunpack.c.h.b16 %v194
      %v399 = vunpack.c.l.b16 %v195
      %v400 = vunpack.c.h.b16 %v195
      %v401 = vunpack.c.l.b16 %v196
      %v402 = vunpack.c.h.b16 %v196
      %v403 = vunpack.c.l.b16 %v197
      %v404 = vunpack.c.h.b16 %v197
      %v405 = vunpack.c.l.b16 %v198
      %v406 = vunpack.c.h.b16 %v198
      %v407 = vunpack.c.l.b16 %v199
      %v408 = vunpack.c.h.b16 %v199
      %v409 = vunpack.c.l.b16 %v200
      %v410 = vunpack.c.h.b16 %v200
      %v411 = vunpack.c.l.b16 %v201
      %v412 = vunpack.c.h.b16 %v201
      %v413 = vunpack.c.l.b16 %v202
      %v414 = vunpack.c.h.b16 %v202
      %v415 = vunpack.c.l.b16 %v203
      %v416 = vunpack.c.h.b16 %v203
      %v417 = vunpack.c.l.b16 %v204
      %v418 = vunpack.c.h.b16 %v204
      %v419 = vunpack.c.l.b16 %v205
      %v420 = vunpack.c.h.b16 %v205
      %v421 = vunpack.c.l.b16 %v206
      %v422 = vunpack.c.h.b16 %v206
      %v423 = vunpack.c.l.b16 %v207
      %v424 = vunpack.c.h.b16 %v207
      %v425 = vunpack.c.l.b16 %v208
      %v426 = vunpack.c.h.b16 %v208
      %v427 = vunpack.c.l.b16 %v209
      %v428 = vunpack.c.h.b16 %v209
      %v429 = vunpack.c.l.b16 %v210
      %v430 = vunpack.c.h.b16 %v210
      %v431 = vunpack.c.l.b16 %v211
      %v432 = vunpack.c.h.b16 %v211
      %v433 = vunpack.c.l.b16 %v212
      %v434 = vunpack.c.h.b16 %v212
      %v435 = vunpack.c.l.b16 %v213
      %v436 = vunpack.c.h.b16 %v213
      %v437 = vunpack.c.l.b16 %v214
      %v438 = vunpack.c.h.b16 %v214
      %v439 = vunpack.c.l.b16 %v215
      %v440 = vunpack.c.h.b16 %v215
      %v441 = vunpack.c.l.b16 %v216
      %v442 = vunpack.c.h.b16 %v216
      %v443 = vunpack.c.l.b16 %v217
      %v444 = vunpack.c.h.b16 %v217
      %v445 = vunpack.c.l.b16 %v218
      %v446 = vunpack.c.h.b16 %v218
      %v447 = vunpack.c.l.b16 %v219
      %v448 = vunpack.c.h.b16 %v219
      %v449 = vunpack.c.l.b16 %v220
      %v450 = vunpack.c.h.b16 %v220
      %v451 = vunpack.c.l.b16 %v221
      %v452 = vunpack.c.h.b16 %v221
      %v453 = vunpack.c.l.b16 %v222
      %v454 = vunpack.c.h.b16 %v222
      %v455 = vunpack.c.l.b16 %v223
      %v456 = vunpack.c.h.b16 %v223
      %v457 = vunpack.c.l.b16 %v224
      %v458 = vunpack.c.h.b16 %v224
      %v459 = vunpack.c.l.b16 %v225
      %v460 = vunpack.c.h.b16 %v225
      %v461 = vunpack.c.l.b16 %v226
      %v462 = vunpack.c.h.b16 %v226
      %v463 = vunpack.c.l.b16 %v227
      %v464 = vunpack.c.h.b16 %v227
      %v465 = vunpack.c.l.b16 %v228
      %v466 = vunpack.c.h.b16 %v228
      %v467 = vunpack.c.l.b16 %v229
      %v468 = vunpack.c.h.b16 %v229
      %v469 = vunpack.c.l.b16 %v230
      %v470 = vunpack.c.h.b16 %v230
      %v471 = vunpack.c.l.b16 %v231
      %v472 = vunpack.c.h.b16 %v231
      %v473 = vunpack.c.l.b16 %v232
      %v474 = vunpack.c.h.b16 %v232
      %v475 = vunpack.c.l.b16 %v233
      %v476 = vunpack.c.h.b16 %v233
      %v477 = vunpack.c.l.b16 %v234
      %v478 = vunpack.c.h.b16 %v234
      %v479 = vunpack.c.l.b16 %v235
      %v480 = vunpack.c.h.b16 %v235
      %v481 = vpack.c.b16 %v357, %v353
      %v482 = vpack.c.b16 %v358, %v354
      %v483 = vpack.c.b16 %v359, %v355
      %v484 = vpack.c.b16 %v360, %v356
      %v485 = vpack.c.b16 %v365, %v361
      %v486 = vpack.c.b16 %v366, %v362
      %v487 = vpack.c.b16 %v367, %v363
      %v488 = vpack.c.b16 %v368, %v364
      %v489 = vpack.c.b16 %v373, %v369
      %v490 = vpack.c.b16 %v374, %v370
      %v491 = vpack.c.b16 %v375, %v371
      %v492 = vpack.c.b16 %v376, %v372
      %v493 = vpack.c.b16 %v381, %v377
      %v494 = vpack.c.b16 %v382, %v378
      %v495 = vpack.c.b16 %v383, %v379
      %v496 = vpack.c.b16 %v384, %v380
      %v497 = vpack.c.b16 %v389, %v385
      %v498 = vpack.c.b16 %v390, %v386
      %v499 = vpack.c.b16 %v391, %v387
      %v500 = vpack.c.b16 %v392, %v388
      %v501 = vpack.c.b16 %v397, %v393
      %v502 = vpack.c.b16 %v398, %v394
      %v503 = vpack.c.b16 %v399, %v395
      %v504 = vpack.c.b16 %v400, %v396
      %v505 = vpack.c.b16 %v405, %v401
      %v506 = vpack.c.b16 %v406, %v402
      %v507 = vpack.c.b16 %v407, %v403
      %v508 = vpack.c.b16 %v408, %v404
      %v509 = vpack.c.b16 %v413, %v409
      %v510 = vpack.c.b16 %v414, %v410
      %v511 = vpack.c.b16 %v415, %v411
      %v512 = vpack.c.b16 %v416, %v412
      %v513 = vpack.c.b16 %v421, %v417
      %v514 = vpack.c.b16 %v422, %v418
      %v515 = vpack.c.b16 %v423, %v419
      %v516 = vpack.c.b16 %v424, %v420
      %v517 = vpack.c.b16 %v429, %v425
      %v518 = vpack.c.b16 %v430, %v426
      %v519 = vpack.c.b16 %v431, %v427
      %v520 = vpack.c.b16 %v432, %v428
      %v521 = vpack.c.b16 %v437, %v433
      %v522 = vpack.c.b16 %v438, %v434
      %v523 = vpack.c.b16 %v439, %v435
      %v524 = vpack.c.b16 %v440, %v436
      %v525 = vpack.c.b16 %v445, %v441
      %v526 = vpack.c.b16 %v446, %v442
      %v527 = vpack.c.b16 %v447, %v443
      %v528 = vpack.c.b16 %v448, %v444
      %v529 = vpack.c.b16 %v453, %v449
      %v530 = vpack.c.b16 %v454, %v450
      %v531 = vpack.c.b16 %v455, %v451
      %v532 = vpack.c.b16 %v456, %v452
      %v533 = vpack.c.b16 %v461, %v457
      %v534 = vpack.c.b16 %v462, %v458
      %v535 = vpack.c.b16 %v463, %v459
      %v536 = vpack.c.b16 %v464, %v460
      %v537 = vpack.c.b16 %v469, %v465
      %v538 = vpack.c.b16 %v470, %v466
      %v539 = vpack.c.b16 %v471, %v467
      %v540 = vpack.c.b16 %v472, %v468
      %v541 = vpack.c.b16 %v477, %v473
      %v542 = vpack.c.b16 %v478, %v474
      %v543 = vpack.c.b16 %v479, %v475
      %v544 = vpack.c.b16 %v480, %v476
      %v642 = vunpack.c.l.b16 %v236
      %v643 = vunpack.c.l.b16 %v237
      %v644 = vunpack.c.l.b16 %v238
      %v645 = vunpack.c.l.b16 %v239
      %v646 = vunpack.c.l.b16 %v240
      %v647 = vunpack.c.l.b16 %v241
      %v648 = vunpack.c.l.b16 %v242
      %v649 = vunpack.c.l.b16 %v243
      %v650 = vunpack.c.l.b16 %v244
      %v651 = vunpack.c.l.b16 %v245
      %v652 = vunpack.c.l.b16 %v246
      %v653 = vunpack.c.l.b16 %v247
      %v654 = vunpack.c.l.b16 %v248
      %v655 = vunpack.c.l.b16 %v249
      %v656 = vunpack.c.l.b16 %v250
      %v657 = vunpack.c.l.b16 %v251
      %v658 = vunpack.c.l.b16 %v252
      %v659 = vunpack.c.l.b16 %v253
      %v660 = vunpack.c.l.b16 %v254
      %v661 = vunpack.c.l.b16 %v255
      %v662 = vunpack.c.l.b16 %v256
      %v663 = vunpack.c.l.b16 %v257
      %v664 = vunpack.c.l.b16 %v258
      %v665 = vunpack.c.l.b16 %v259
      %v666 = vunpack.c.l.b16 %v260
      %v667 = vunpack.c.l.b16 %v261
      %v668 = vunpack.c.l.b16 %v262
      %v669 = vunpack.c.l.b16 %v263
      %v670 = vunpack.c.l.b16 %v264
      %v671 = vunpack.c.l.b16 %v265
      %v672 = vunpack.c.l.b16 %v266
      %v673 = vunpack.c.l.b16 %v267
      %v674 = vunpack.c.l.b16 %v268
      %v675 = vunpack.c.l.b16 %v269
      %v676 = vunpack.c.l.b16 %v270
      %v677 = vunpack.c.l.b16 %v271
      %v678 = vunpack.c.l.b16 %v272
      %v679 = vunpack.c.l.b16 %v273
      %v680 = vunpack.c.l.b16 %v274
      %v681 = vunpack.c.l.b16 %v275
      %v682 = vunpack.c.l.b16 %v276
      %v683 = vunpack.c.l.b16 %v277
      %v684 = vunpack.c.l.b16 %v278
      %v685 = vunpack.c.l.b16 %v279
      %v686 = vunpack.c.l.b16 %v280
      %v687 = vunpack.c.l.b16 %v281
      %v688 = vunpack.c.l.b16 %v282
      %v689 = vunpack.c.l.b16 %v283
      %v690 = vunpack.c.l.b16 %v284
      %v691 = vpack.c.b16 %v643, %v642
      %v692 = vpack.c.b16 %v645, %v644
      %v693 = vpack.c.b16 %v647, %v646
      %v694 = vpack.c.b16 %v649, %v648
      %v695 = vpack.c.b16 %v651, %v650
      %v696 = vpack.c.b16 %v653, %v652
      %v697 = vpack.c.b16 %v655, %v654
      %v698 = vpack.c.b16 %v657, %v656
      %v699 = vpack.c.b16 %v659, %v658
      %v700 = vpack.c.b16 %v661, %v660
      %v701 = vpack.c.b16 %v663, %v662
      %v702 = vpack.c.b16 %v665, %v664
      %v703 = vpack.c.b16 %v667, %v666
      %v704 = vpack.c.b16 %v669, %v668
      %v705 = vpack.c.b16 %v671, %v670
      %v706 = vpack.c.b16 %v673, %v672
      %v707 = vpack.c.b16 %v675, %v674
      %v708 = vpack.c.b16 %v677, %v676
      %v709 = vpack.c.b16 %v679, %v678
      %v710 = vpack.c.b16 %v681, %v680
      %v711 = vpack.c.b16 %v683, %v682
      %v712 = vpack.c.b16 %v685, %v684
      %v713 = vpack.c.b16 %v687, %v686
      %v714 = vpack.c.b16 %v689, %v688
      %v715 = vpack.c.b16 %v690, %v690
      %vm740 = vcmask 64512
      %v742 = vsel %vm740, %v484, 0
      %v745 = vsel %vm740, %v488, 0
      %v748 = vsel %vm740, %v492, 0
      %v751 = vsel %vm740, %v496, 0
      %v754 = vsel %vm740, %v500, 0
      %v757 = vsel %vm740, %v504, 0
      %v760 = vsel %vm740, %v508, 0
      %v763 = vsel %vm740, %v512, 0
      %v766 = vsel %vm740, %v516, 0
      %v769 = vsel %vm740, %v520, 0
      %v772 = vsel %vm740, %v524, 0
      %v775 = vsel %vm740, %v528, 0
      %v778 = vsel %vm740, %v532, 0
      %v781 = vsel %vm740, %v536, 0
      %v784 = vsel %vm740, %v540, 0
      %v787 = vsel %vm740, %v544, 0
      %vm789 = vcmask 1043456
      %v791 = vsel %vm789, %v715, 0
      %793 = vmatpush.bf16.msra.mxu0 %v698
      %794 = vmatpush.bf16.msra.mxu0 %v697
      %795 = vmatpush.bf16.msra.mxu0 %v696
      %796 = vmatpush.bf16.msra.mxu0 %v695
      %797 = vmatpush.bf16.msra.mxu0 %v694
      %798 = vmatpush.bf16.msra.mxu0 %v693
      %799 = vmatpush.bf16.msra.mxu0 %v692
      %800 = vmatpush.bf16.msra.mxu0 %v691
      %801 = vmatmul.bf16.gmra.mxu0 %v481
      %v802 = vpop.f32.mrf.mxu0
      %v803 = vadd.f32 %v287, %v802
      %v804 = vpop.f32.mrf.mxu0
      %v805 = vadd.f32 %v287, %v804
      %806 = vmatmul.bf16.gmra.mxu0 %v485
      %v807 = vpop.f32.mrf.mxu0
      %v808 = vadd.f32 %v287, %v807
      %v809 = vpop.f32.mrf.mxu0
      %v810 = vadd.f32 %v287, %v809
      %811 = vmatmul.bf16.gmra.mxu0 %v489
      %v812 = vpop.f32.mrf.mxu0
      %v813 = vadd.f32 %v287, %v812
      %v814 = vpop.f32.mrf.mxu0
      %v815 = vadd.f32 %v287, %v814
      %816 = vmatmul.bf16.gmra.mxu0 %v493
      %v817 = vpop.f32.mrf.mxu0
      %v818 = vadd.f32 %v287, %v817
      %v819 = vpop.f32.mrf.mxu0
      %v820 = vadd.f32 %v287, %v819
      %821 = vmatmul.bf16.gmra.mxu0 %v497
      %v822 = vpop.f32.mrf.mxu0
      %v823 = vadd.f32 %v287, %v822
      %v824 = vpop.f32.mrf.mxu0
      %v825 = vadd.f32 %v287, %v824
      %826 = vmatmul.bf16.gmra.mxu0 %v501
      %v827 = vpop.f32.mrf.mxu0
      %v828 = vadd.f32 %v287, %v827
      %v829 = vpop.f32.mrf.mxu0
      %v830 = vadd.f32 %v287, %v829
      %831 = vmatmul.bf16.gmra.mxu0 %v505
      %v832 = vpop.f32.mrf.mxu0
      %v833 = vadd.f32 %v287, %v832
      %v834 = vpop.f32.mrf.mxu0
      %v835 = vadd.f32 %v287, %v834
      %836 = vmatmul.bf16.gmra.mxu0 %v509
      %v837 = vpop.f32.mrf.mxu0
      %v838 = vadd.f32 %v287, %v837
      %v839 = vpop.f32.mrf.mxu0
      %v840 = vadd.f32 %v287, %v839
      %841 = vmatmul.bf16.gmra.mxu0 %v513
      %v842 = vpop.f32.mrf.mxu0
      %v843 = vadd.f32 %v287, %v842
      %v844 = vpop.f32.mrf.mxu0
      %v845 = vadd.f32 %v287, %v844
      %846 = vmatmul.bf16.gmra.mxu0 %v517
      %v847 = vpop.f32.mrf.mxu0
      %v848 = vadd.f32 %v287, %v847
      %v849 = vpop.f32.mrf.mxu0
      %v850 = vadd.f32 %v287, %v849
      %851 = vmatmul.bf16.gmra.mxu0 %v521
      %v852 = vpop.f32.mrf.mxu0
      %v853 = vadd.f32 %v287, %v852
      %v854 = vpop.f32.mrf.mxu0
      %v855 = vadd.f32 %v287, %v854
      %856 = vmatmul.bf16.gmra.mxu0 %v525
      %v857 = vpop.f32.mrf.mxu0
      %v858 = vadd.f32 %v287, %v857
      %v859 = vpop.f32.mrf.mxu0
      %v860 = vadd.f32 %v287, %v859
      %861 = vmatmul.bf16.gmra.mxu0 %v529
      %v862 = vpop.f32.mrf.mxu0
      %v863 = vadd.f32 %v287, %v862
      %v864 = vpop.f32.mrf.mxu0
      %v865 = vadd.f32 %v287, %v864
      %866 = vmatmul.bf16.gmra.mxu0 %v533
      %v867 = vpop.f32.mrf.mxu0
      %v868 = vadd.f32 %v287, %v867
      %v869 = vpop.f32.mrf.mxu0
      %v870 = vadd.f32 %v287, %v869
      %871 = vmatmul.bf16.gmra.mxu0 %v537
      %v872 = vpop.f32.mrf.mxu0
      %v873 = vadd.f32 %v287, %v872
      %v874 = vpop.f32.mrf.mxu0
      %v875 = vadd.f32 %v287, %v874
      %876 = vmatmul.bf16.gmra.mxu0 %v541
      %v877 = vpop.f32.mrf.mxu0
      %v878 = vadd.f32 %v287, %v877
      %v879 = vpop.f32.mrf.mxu0
      %v880 = vadd.f32 %v287, %v879
      %881 = vdwg.mxu0
      %882 = vmatpush.bf16.msra.mxu0 %v706
      %883 = vmatpush.bf16.msra.mxu0 %v705
      %884 = vmatpush.bf16.msra.mxu0 %v704
      %885 = vmatpush.bf16.msra.mxu0 %v703
      %886 = vmatpush.bf16.msra.mxu0 %v702
      %887 = vmatpush.bf16.msra.mxu0 %v701
      %888 = vmatpush.bf16.msra.mxu0 %v700
      %889 = vmatpush.bf16.msra.mxu0 %v699
      %890 = vmatmul.bf16.gmra.mxu0 %v482
      %v891 = vpop.f32.mrf.mxu0
      %v892 = vadd.f32 %v803, %v891
      %v893 = vpop.f32.mrf.mxu0
      %v894 = vadd.f32 %v805, %v893
      %895 = vmatmul.bf16.gmra.mxu0 %v486
      %v896 = vpop.f32.mrf.mxu0
      %v897 = vadd.f32 %v808, %v896
      %v898 = vpop.f32.mrf.mxu0
      %v899 = vadd.f32 %v810, %v898
      %900 = vmatmul.bf16.gmra.mxu0 %v490
      %v901 = vpop.f32.mrf.mxu0
      %v902 = vadd.f32 %v813, %v901
      %v903 = vpop.f32.mrf.mxu0
      %v904 = vadd.f32 %v815, %v903
      %905 = vmatmul.bf16.gmra.mxu0 %v494
      %v906 = vpop.f32.mrf.mxu0
      %v907 = vadd.f32 %v818, %v906
      %v908 = vpop.f32.mrf.mxu0
      %v909 = vadd.f32 %v820, %v908
      %910 = vmatmul.bf16.gmra.mxu0 %v498
      %v911 = vpop.f32.mrf.mxu0
      %v912 = vadd.f32 %v823, %v911
      %v913 = vpop.f32.mrf.mxu0
      %v914 = vadd.f32 %v825, %v913
      %915 = vmatmul.bf16.gmra.mxu0 %v502
      %v916 = vpop.f32.mrf.mxu0
      %v917 = vadd.f32 %v828, %v916
      %v918 = vpop.f32.mrf.mxu0
      %v919 = vadd.f32 %v830, %v918
      %920 = vmatmul.bf16.gmra.mxu0 %v506
      %v921 = vpop.f32.mrf.mxu0
      %v922 = vadd.f32 %v833, %v921
      %v923 = vpop.f32.mrf.mxu0
      %v924 = vadd.f32 %v835, %v923
      %925 = vmatmul.bf16.gmra.mxu0 %v510
      %v926 = vpop.f32.mrf.mxu0
      %v927 = vadd.f32 %v838, %v926
      %v928 = vpop.f32.mrf.mxu0
      %v929 = vadd.f32 %v840, %v928
      %930 = vmatmul.bf16.gmra.mxu0 %v514
      %v931 = vpop.f32.mrf.mxu0
      %v932 = vadd.f32 %v843, %v931
      %v933 = vpop.f32.mrf.mxu0
      %v934 = vadd.f32 %v845, %v933
      %935 = vmatmul.bf16.gmra.mxu0 %v518
      %v936 = vpop.f32.mrf.mxu0
      %v937 = vadd.f32 %v848, %v936
      %v938 = vpop.f32.mrf.mxu0
      %v939 = vadd.f32 %v850, %v938
      %940 = vmatmul.bf16.gmra.mxu0 %v522
      %v941 = vpop.f32.mrf.mxu0
      %v942 = vadd.f32 %v853, %v941
      %v943 = vpop.f32.mrf.mxu0
      %v944 = vadd.f32 %v855, %v943
      %945 = vmatmul.bf16.gmra.mxu0 %v526
      %v946 = vpop.f32.mrf.mxu0
      %v947 = vadd.f32 %v858, %v946
      %v948 = vpop.f32.mrf.mxu0
      %v949 = vadd.f32 %v860, %v948
      %950 = vmatmul.bf16.gmra.mxu0 %v530
      %v951 = vpop.f32.mrf.mxu0
      %v952 = vadd.f32 %v863, %v951
      %v953 = vpop.f32.mrf.mxu0
      %v954 = vadd.f32 %v865, %v953
      %955 = vmatmul.bf16.gmra.mxu0 %v534
      %v956 = vpop.f32.mrf.mxu0
      %v957 = vadd.f32 %v868, %v956
      %v958 = vpop.f32.mrf.mxu0
      %v959 = vadd.f32 %v870, %v958
      %960 = vmatmul.bf16.gmra.mxu0 %v538
      %v961 = vpop.f32.mrf.mxu0
      %v962 = vadd.f32 %v873, %v961
      %v963 = vpop.f32.mrf.mxu0
      %v964 = vadd.f32 %v875, %v963
      %965 = vmatmul.bf16.gmra.mxu0 %v542
      %v966 = vpop.f32.mrf.mxu0
      %v967 = vadd.f32 %v878, %v966
      %v968 = vpop.f32.mrf.mxu0
      %v969 = vadd.f32 %v880, %v968
      %970 = vdwg.mxu0
      %971 = vmatpush.bf16.msra.mxu0 %v714
      %972 = vmatpush.bf16.msra.mxu0 %v713
      %973 = vmatpush.bf16.msra.mxu0 %v712
      %974 = vmatpush.bf16.msra.mxu0 %v711
      %975 = vmatpush.bf16.msra.mxu0 %v710
      %976 = vmatpush.bf16.msra.mxu0 %v709
      %977 = vmatpush.bf16.msra.mxu0 %v708
      %978 = vmatpush.bf16.msra.mxu0 %v707
      %979 = vmatmul.bf16.gmra.mxu0 %v483
      %v980 = vpop.f32.mrf.mxu0
      %v981 = vadd.f32 %v892, %v980
      %v982 = vpop.f32.mrf.mxu0
      %v983 = vadd.f32 %v894, %v982
      %984 = vmatmul.bf16.gmra.mxu0 %v487
      %v985 = vpop.f32.mrf.mxu0
      %v986 = vadd.f32 %v897, %v985
      %v987 = vpop.f32.mrf.mxu0
      %v988 = vadd.f32 %v899, %v987
      %989 = vmatmul.bf16.gmra.mxu0 %v491
      %v990 = vpop.f32.mrf.mxu0
      %v991 = vadd.f32 %v902, %v990
      %v992 = vpop.f32.mrf.mxu0
      %v993 = vadd.f32 %v904, %v992
      %994 = vmatmul.bf16.gmra.mxu0 %v495
      %v995 = vpop.f32.mrf.mxu0
      %v996 = vadd.f32 %v907, %v995
      %v997 = vpop.f32.mrf.mxu0
      %v998 = vadd.f32 %v909, %v997
      %999 = vmatmul.bf16.gmra.mxu0 %v499
      %v1000 = vpop.f32.mrf.mxu0
      %v1001 = vadd.f32 %v912, %v1000
      %v1002 = vpop.f32.mrf.mxu0
      %v1003 = vadd.f32 %v914, %v1002
      %1004 = vmatmul.bf16.gmra.mxu0 %v503
      %v1005 = vpop.f32.mrf.mxu0
      %v1006 = vadd.f32 %v917, %v1005
      %v1007 = vpop.f32.mrf.mxu0
      %v1008 = vadd.f32 %v919, %v1007
      %1009 = vmatmul.bf16.gmra.mxu0 %v507
      %v1010 = vpop.f32.mrf.mxu0
      %v1011 = vadd.f32 %v922, %v1010
      %v1012 = vpop.f32.mrf.mxu0
      %v1013 = vadd.f32 %v924, %v1012
      %1014 = vmatmul.bf16.gmra.mxu0 %v511
      %v1015 = vpop.f32.mrf.mxu0
      %v1016 = vadd.f32 %v927, %v1015
      %v1017 = vpop.f32.mrf.mxu0
      %v1018 = vadd.f32 %v929, %v1017
      %1019 = vmatmul.bf16.gmra.mxu0 %v515
      %v1020 = vpop.f32.mrf.mxu0
      %v1021 = vadd.f32 %v932, %v1020
      %v1022 = vpop.f32.mrf.mxu0
      %v1023 = vadd.f32 %v934, %v1022
      %1024 = vmatmul.bf16.gmra.mxu0 %v519
      %v1025 = vpop.f32.mrf.mxu0
      %v1026 = vadd.f32 %v937, %v1025
      %v1027 = vpop.f32.mrf.mxu0
      %v1028 = vadd.f32 %v939, %v1027
      %1029 = vmatmul.bf16.gmra.mxu0 %v523
      %v1030 = vpop.f32.mrf.mxu0
      %v1031 = vadd.f32 %v942, %v1030
      %v1032 = vpop.f32.mrf.mxu0
      %v1033 = vadd.f32 %v944, %v1032
      %1034 = vmatmul.bf16.gmra.mxu0 %v527
      %v1035 = vpop.f32.mrf.mxu0
      %v1036 = vadd.f32 %v947, %v1035
      %v1037 = vpop.f32.mrf.mxu0
      %v1038 = vadd.f32 %v949, %v1037
      %1039 = vmatmul.bf16.gmra.mxu0 %v531
      %v1040 = vpop.f32.mrf.mxu0
      %v1041 = vadd.f32 %v952, %v1040
      %v1042 = vpop.f32.mrf.mxu0
      %v1043 = vadd.f32 %v954, %v1042
      %1044 = vmatmul.bf16.gmra.mxu0 %v535
      %v1045 = vpop.f32.mrf.mxu0
      %v1046 = vadd.f32 %v957, %v1045
      %v1047 = vpop.f32.mrf.mxu0
      %v1048 = vadd.f32 %v959, %v1047
      %1049 = vmatmul.bf16.gmra.mxu0 %v539
      %v1050 = vpop.f32.mrf.mxu0
      %v1051 = vadd.f32 %v962, %v1050
      %v1052 = vpop.f32.mrf.mxu0
      %v1053 = vadd.f32 %v964, %v1052
      %1054 = vmatmul.bf16.gmra.mxu0 %v543
      %v1055 = vpop.f32.mrf.mxu0
      %v1056 = vadd.f32 %v967, %v1055
      %v1057 = vpop.f32.mrf.mxu0
      %v1058 = vadd.f32 %v969, %v1057
      %1059 = vdwg.mxu0
      %1060 = vmatpush.bf16.msra.mxu0 0
      %1061 = vmatpush.bf16.msra.mxu0 0
      %1062 = vmatpush.bf16.msra.mxu0 0
      %1063 = vmatpush.bf16.msra.mxu0 0
      %1064 = vmatpush.bf16.msra.mxu0 0
      %1065 = vmatpush.bf16.msra.mxu0 0
      %1066 = vmatpush.bf16.msra.mxu0 0
      %1067 = vmatpush.bf16.msra.mxu0 %v791
      %1068 = vmatmul.bf16.gmra.mxu0 %v742
      %v1069 = vpop.f32.mrf.mxu0
      %v1070 = vadd.f32 %v981, %v1069
      %v1071 = vpop.f32.mrf.mxu0
      %v1072 = vadd.f32 %v983, %v1071
      %1073 = vmatmul.bf16.gmra.mxu0 %v745
      %v1074 = vpop.f32.mrf.mxu0
      %v1075 = vadd.f32 %v986, %v1074
      %v1076 = vpop.f32.mrf.mxu0
      %v1077 = vadd.f32 %v988, %v1076
      %1078 = vmatmul.bf16.gmra.mxu0 %v748
      %v1079 = vpop.f32.mrf.mxu0
      %v1080 = vadd.f32 %v991, %v1079
      %v1081 = vpop.f32.mrf.mxu0
      %v1082 = vadd.f32 %v993, %v1081
      %1083 = vmatmul.bf16.gmra.mxu0 %v751
      %v1084 = vpop.f32.mrf.mxu0
      %v1085 = vadd.f32 %v996, %v1084
      %v1086 = vpop.f32.mrf.mxu0
      %v1087 = vadd.f32 %v998, %v1086
      %1088 = vmatmul.bf16.gmra.mxu0 %v754
      %v1089 = vpop.f32.mrf.mxu0
      %v1090 = vadd.f32 %v1001, %v1089
      %v1091 = vpop.f32.mrf.mxu0
      %v1092 = vadd.f32 %v1003, %v1091
      %1093 = vmatmul.bf16.gmra.mxu0 %v757
      %v1094 = vpop.f32.mrf.mxu0
      %v1095 = vadd.f32 %v1006, %v1094
      %v1096 = vpop.f32.mrf.mxu0
      %v1097 = vadd.f32 %v1008, %v1096
      %1098 = vmatmul.bf16.gmra.mxu0 %v760
      %v1099 = vpop.f32.mrf.mxu0
      %v1100 = vadd.f32 %v1011, %v1099
      %v1101 = vpop.f32.mrf.mxu0
      %v1102 = vadd.f32 %v1013, %v1101
      %1103 = vmatmul.bf16.gmra.mxu0 %v763
      %v1104 = vpop.f32.mrf.mxu0
      %v1105 = vadd.f32 %v1016, %v1104
      %v1106 = vpop.f32.mrf.mxu0
      %v1107 = vadd.f32 %v1018, %v1106
      %1108 = vmatmul.bf16.gmra.mxu0 %v766
      %v1109 = vpop.f32.mrf.mxu0
      %v1110 = vadd.f32 %v1021, %v1109
      %v1111 = vpop.f32.mrf.mxu0
      %v1112 = vadd.f32 %v1023, %v1111
      %1113 = vmatmul.bf16.gmra.mxu0 %v769
      %v1114 = vpop.f32.mrf.mxu0
      %v1115 = vadd.f32 %v1026, %v1114
      %v1116 = vpop.f32.mrf.mxu0
      %v1117 = vadd.f32 %v1028, %v1116
      %1118 = vmatmul.bf16.gmra.mxu0 %v772
      %v1119 = vpop.f32.mrf.mxu0
      %v1120 = vadd.f32 %v1031, %v1119
      %v1121 = vpop.f32.mrf.mxu0
      %v1122 = vadd.f32 %v1033, %v1121
      %1123 = vmatmul.bf16.gmra.mxu0 %v775
      %v1124 = vpop.f32.mrf.mxu0
      %v1125 = vadd.f32 %v1036, %v1124
      %v1126 = vpop.f32.mrf.mxu0
      %v1127 = vadd.f32 %v1038, %v1126
      %1128 = vmatmul.bf16.gmra.mxu0 %v778
      %v1129 = vpop.f32.mrf.mxu0
      %v1130 = vadd.f32 %v1041, %v1129
      %v1131 = vpop.f32.mrf.mxu0
      %v1132 = vadd.f32 %v1043, %v1131
      %1133 = vmatmul.bf16.gmra.mxu0 %v781
      %v1134 = vpop.f32.mrf.mxu0
      %v1135 = vadd.f32 %v1046, %v1134
      %v1136 = vpop.f32.mrf.mxu0
      %v1137 = vadd.f32 %v1048, %v1136
      %1138 = vmatmul.bf16.gmra.mxu0 %v784
      %v1139 = vpop.f32.mrf.mxu0
      %v1140 = vadd.f32 %v1051, %v1139
      %v1141 = vpop.f32.mrf.mxu0
      %v1142 = vadd.f32 %v1053, %v1141
      %1143 = vmatmul.bf16.gmra.mxu0 %v787
      %v1144 = vpop.f32.mrf.mxu0
      %v1145 = vadd.f32 %v1056, %v1144
      %v1146 = vpop.f32.mrf.mxu0
      %v1147 = vadd.f32 %v1058, %v1146
      %1148 = vdwg.mxu0
      %v1149 = vmax.f32 %v1070, 0.0
      %v1150 = vmax.f32 %v1072, 0.0
      %v1151 = vmax.f32 %v1075, 0.0
      %v1152 = vmax.f32 %v1077, 0.0
      %v1153 = vmax.f32 %v1080, 0.0
      %v1154 = vmax.f32 %v1082, 0.0
      %v1155 = vmax.f32 %v1085, 0.0
      %v1156 = vmax.f32 %v1087, 0.0
      %v1157 = vmax.f32 %v1090, 0.0
      %v1158 = vmax.f32 %v1092, 0.0
      %v1159 = vmax.f32 %v1095, 0.0
      %v1160 = vmax.f32 %v1097, 0.0
      %v1161 = vmax.f32 %v1100, 0.0
      %v1162 = vmax.f32 %v1102, 0.0
      %v1163 = vmax.f32 %v1105, 0.0
      %v1164 = vmax.f32 %v1107, 0.0
      %v1165 = vmax.f32 %v1110, 0.0
      %v1166 = vmax.f32 %v1112, 0.0
      %v1167 = vmax.f32 %v1115, 0.0
      %v1168 = vmax.f32 %v1117, 0.0
      %v1169 = vmax.f32 %v1120, 0.0
      %v1170 = vmax.f32 %v1122, 0.0
      %v1171 = vmax.f32 %v1125, 0.0
      %v1172 = vmax.f32 %v1127, 0.0
      %v1173 = vmax.f32 %v1130, 0.0
      %v1174 = vmax.f32 %v1132, 0.0
      %v1175 = vmax.f32 %v1135, 0.0
      %v1176 = vmax.f32 %v1137, 0.0
      %v1177 = vmax.f32 %v1140, 0.0
      %v1178 = vmax.f32 %v1142, 0.0
      %v1179 = vmax.f32 %v1145, 0.0
      %v1180 = vmax.f32 %v1147, 0.0
      %v1181 = vpack.c.bf16 %v1149, %v1149
      %v1182 = vpack.c.bf16 %v1150, %v1150
      %v1183 = vpack.c.bf16 %v1151, %v1151
      %v1184 = vpack.c.bf16 %v1152, %v1152
      %v1185 = vpack.c.bf16 %v1153, %v1153
      %v1186 = vpack.c.bf16 %v1154, %v1154
      %v1187 = vpack.c.bf16 %v1155, %v1155
      %v1188 = vpack.c.bf16 %v1156, %v1156
      %v1189 = vpack.c.bf16 %v1157, %v1157
      %v1190 = vpack.c.bf16 %v1158, %v1158
      %v1191 = vpack.c.bf16 %v1159, %v1159
      %v1192 = vpack.c.bf16 %v1160, %v1160
      %v1193 = vpack.c.bf16 %v1161, %v1161
      %v1194 = vpack.c.bf16 %v1162, %v1162
      %v1195 = vpack.c.bf16 %v1163, %v1163
      %v1196 = vpack.c.bf16 %v1164, %v1164
      %v1197 = vpack.c.bf16 %v1165, %v1165
      %v1198 = vpack.c.bf16 %v1166, %v1166
      %v1199 = vpack.c.bf16 %v1167, %v1167
      %v1200 = vpack.c.bf16 %v1168, %v1168
      %v1201 = vpack.c.bf16 %v1169, %v1169
      %v1202 = vpack.c.bf16 %v1170, %v1170
      %v1203 = vpack.c.bf16 %v1171, %v1171
      %v1204 = vpack.c.bf16 %v1172, %v1172
      %v1205 = vpack.c.bf16 %v1173, %v1173
      %v1206 = vpack.c.bf16 %v1174, %v1174
      %v1207 = vpack.c.bf16 %v1175, %v1175
      %v1208 = vpack.c.bf16 %v1176, %v1176
      %v1209 = vpack.c.bf16 %v1177, %v1177
      %v1210 = vpack.c.bf16 %v1178, %v1178
      %v1211 = vpack.c.bf16 %v1179, %v1179
      %v1212 = vpack.c.bf16 %v1180, %v1180
      %1213 = vst [vmem:[%s170] sm:$0xf] %v1181
      %1214 = vst [vmem:[%s170 + $0x4] sm:$0xf] %v1182
      %1215 = vst [vmem:[%s170 + $0x8] sm:$0xf] %v1183
      %1216 = vst [vmem:[%s170 + $0xc] sm:$0xf] %v1184
      %1217 = vst [vmem:[%s170 + $0x10] sm:$0xf] %v1185
      %1218 = vst [vmem:[%s170 + $0x14] sm:$0xf] %v1186
      %1219 = vst [vmem:[%s170 + $0x18] sm:$0xf] %v1187
      %1220 = vst [vmem:[%s170 + $0x1c] sm:$0xf] %v1188
      %1221 = vst [vmem:[%s170 + $0x20] sm:$0xf] %v1189
      %1222 = vst [vmem:[%s170 + $0x24] sm:$0xf] %v1190
      %1223 = vst [vmem:[%s170 + $0x28] sm:$0xf] %v1191
      %1224 = vst [vmem:[%s170 + $0x2c] sm:$0xf] %v1192
      %1225 = vst [vmem:[%s170 + $0x30] sm:$0xf] %v1193
      %1226 = vst [vmem:[%s170 + $0x34] sm:$0xf] %v1194
      %1227 = vst [vmem:[%s170 + $0x38] sm:$0xf] %v1195
      %1228 = vst [vmem:[%s170 + $0x3c] sm:$0xf] %v1196
      %1229 = vst [vmem:[%s170 + $0x40] sm:$0xf] %v1197
      %1230 = vst [vmem:[%s170 + $0x44] sm:$0xf] %v1198
      %1231 = vst [vmem:[%s170 + $0x48] sm:$0xf] %v1199
      %1232 = vst [vmem:[%s170 + $0x4c] sm:$0xf] %v1200
      %1233 = vst [vmem:[%s170 + $0x50] sm:$0xf] %v1201
      %1234 = vst [vmem:[%s170 + $0x54] sm:$0xf] %v1202
      %1235 = vst [vmem:[%s170 + $0x58] sm:$0xf] %v1203
      %1236 = vst [vmem:[%s170 + $0x5c] sm:$0xf] %v1204
      %1237 = vst [vmem:[%s170 + $0x60] sm:$0xf] %v1205
      %1238 = vst [vmem:[%s170 + $0x64] sm:$0xf] %v1206
      %1239 = vst [vmem:[%s170 + $0x68] sm:$0xf] %v1207
      %1240 = vst [vmem:[%s170 + $0x6c] sm:$0xf] %v1208
      %1241 = vst [vmem:[%s170 + $0x70] sm:$0xf] %v1209
      %1242 = vst [vmem:[%s170 + $0x74] sm:$0xf] %v1210
      %1243 = vst [vmem:[%s170 + $0x78] sm:$0xf] %v1211
      %1244 = vst [vmem:[%s170 + $0x7c] sm:$0xf] %v1212
      %p1245 = scmp.lt.s32.totalorder %s14, 1
      %s1246 = scalar_select %p1245, %s14, 1
      %s1247 = smul.addr %s1246, 32
      %s1248 = smul.addr %s1247, 4
      %s1249 = scalar_lea.vmem %s3, %s1248
      // Predicated region
      $region33: #{backbone_base_forward.5} parent=31 // pred_check
        %p1250 = pneg %p100
      $region34: #{backbone_base_forward.5} parent=31 // pred_check_branch
        %1252 = sbr.rel (%p1250) target = $region36
      $region35: #{backbone_base_forward.5} parent=31 // pred_region
        _
      $region36: #{backbone_base_forward.5} parent=31 // pred_fallthru
        _
    $region32: #{backbone_base_forward.5} parent=5 // pred_fallthru
      _
    %p1253 = scmp.le.s32.totalorder 2, %s9
    // Predicated region
    $region37: #{backbone_base_forward.5} parent=5 // pred_check
      %p1254 = pneg %p1253
    $region38: #{backbone_base_forward.5} parent=5 // pred_check_branch
      %1256 = sbr.rel (%p1254) target = $region40
    $region39: #{backbone_base_forward.5} parent=5 // pred_region
      %s1257 = ssub.s32 %s9, 2
      // Predicated region
      $region41: #{backbone_base_forward.5} parent=39 // pred_check
        %p1258 = pneg %p106
      $region42: #{backbone_base_forward.5} parent=39 // pred_check_branch
        %1260 = sbr.rel (%p1258) target = $region44
      $region43: #{backbone_base_forward.5} parent=39 // pred_region
        %p1261 = scmp.lt.s32.totalorder %s15, 1
        %s1262 = scalar_select %p1261, %s15, 1
        %s1263 = smul.addr %s1262, 32
        %s1264 = smul.addr %s1263, 4
        %s1265 = scalar_lea.vmem %s3, %s1264
      $region44: #{backbone_base_forward.5} parent=39 // pred_fallthru
        _
    $region40: #{backbone_base_forward.5} parent=5 // pred_fallthru
      _
  $region6: #{backbone_base_forward.5} parent=0 // loop_footer
    %s13 = sadd.s32 1, %s9
  $region7: #{backbone_base_forward.5} parent=0 // loop_footer_branch
    %8 = sbr.rel target = $region3
  $region8: #{backbone_base_forward.5} parent=0 // loop_exit
    _

// kernel: backbone_base_forward.6
$region0: #{backbone_base_forward.6}
  #allocation0 [shape = 'u32[]', space=smem, size = 0x4, offset = 0x4, fixed_abs, tag = 'smem constant byte address 0x4 - core index']
  #allocation1 [shape = 'u32[72,128]{1,0:T(1,128)}', space=vmem, size = 0x9000, scoped, tag = 'internal scratch']
  %s0 = inlined_call_operand.vmem [shape: bf16[2,64,144], index: 0, kind: input, shape index: {}]
  %s1 = inlined_call_operand.vmem [shape: bf16[144,256], index: 1, kind: input, shape index: {}]
  %s2 = inlined_call_operand.vmem [shape: f32[1,256], index: 2, kind: input, shape index: {}]
  %s3 = inlined_call_operand.vmem [shape: bf16[9,128,128], index: 3, kind: input, shape index: {}]
  %s4 = inlined_call_operand.vmem [shape: f32[1,128], index: 4, kind: input, shape index: {}]
  %s5 = inlined_call_operand.vmem [shape: bf16[9,64,64], index: 5, kind: input, shape index: {}]
  %s6 = inlined_call_operand.vmem [shape: bf16[2,64,128], index: 6, kind: output, shape index: {}]
  %s7 = sld [smem:[#allocation0]]
  $region57: #{backbone_base_forward.6} parent=0
    _
  %s9 = ssub.s32 1, %s7
  %s10 = scalar_select 0, %s9, %s7
  loop: start=0, step=1, limit=4
  $region2: #{backbone_base_forward.6} parent=0 // loop_pre_header
    _
  $region3: #{backbone_base_forward.6} parent=0 // loop_header
    %s12 = sphi 0, %s16
    %p13 = scmp.ge.s32.totalorder %s12, 4
    %s22 = sphi 0, %s24
    %s25 = sphi 0, %s22
    %s26 = sphi 0, %s25
    %s42 = sphi 0, %s26
    %s46 = sphi 0, %s46
    %s48 = sphi 0, %s46
    %s49 = sphi 0, %s48
    %s63 = sphi 0, %s49
    %s67 = sphi 0, %s67
    %s69 = sphi 0, %s67
    %s70 = sphi 0, %s69
    %s84 = sphi 0, %s70
    %s88 = sphi 0, %s88
    %s90 = sphi 0, %s88
    %s91 = sphi 0, %s90
    %s105 = sphi 0, %s91
    %s109 = sphi 0, %s109
    %s111 = sphi 0, %s109
    %s112 = sphi 0, %s111
    %s126 = sphi 0, %s112
    %s130 = sphi 0, %s130
    %s132 = sphi 0, %s130
    %s133 = sphi 0, %s132
    %s147 = sphi 0, %s133
    %s153 = sphi 0, %s155
    %s156 = sphi 0, %s153
    %s157 = sphi 0, %s156
    %s173 = sphi 0, %s157
  $region4: #{backbone_base_forward.6} parent=0 // loop_header_branch
    %15 = sbr.rel (%p13) target = $region8
  $region5: #{backbone_base_forward.6} parent=0 // loop_body
    %s17 = ssub.s32 %s12, 1
    %s18 = ssub.s32 %s12, 2
    %s19 = sadd.s32 %s12, 1
    %s20 = ssub.s32 %s12, %s19
    %p21 = scmp.eq.s32.totalorder %s20, 0
    %s23 = sadd.s32 %s22, 1
    %s24 = scalar_select %p21, %s22, %s23
    %p27 = pneg %p21
    %p28 = scmp.eq.s32.totalorder %s12, 1
    %p29 = por %p27, %p28
    %p30 = scmp.ne.s32.totalorder %s22, %s25
    %p31 = scmp.eq.s32.totalorder %s12, 0
    %p32 = por %p30, %p31
    %p33 = scmp.ne.s32.totalorder %s22, %s25
    %p34 = scmp.eq.s32.totalorder %s17, 1
    %p35 = por %p33, %p34
    %p36 = scmp.ne.s32.totalorder %s25, %s26
    %p37 = scmp.eq.s32.totalorder %s17, 0
    %p38 = por %p36, %p37
    %p39 = scmp.ne.s32.totalorder %s25, %s26
    %p40 = scmp.eq.s32.totalorder %s18, 1
    %p41 = por %p39, %p40
    %p43 = scmp.ne.s32.totalorder %s26, %s42
    %p44 = scmp.eq.s32.totalorder %s18, 0
    %p45 = por %p43, %p44
    %s47 = sadd.s32 %s46, 1
    %p50 = scmp.eq.s32.totalorder %s12, 1
    %p51 = scmp.ne.s32.totalorder %s46, %s48
    %p52 = scmp.eq.s32.totalorder %s12, 0
    %p53 = por %p51, %p52
    %p54 = scmp.ne.s32.totalorder %s46, %s48
    %p55 = scmp.eq.s32.totalorder %s17, 1
    %p56 = por %p54, %p55
    %p57 = scmp.ne.s32.totalorder %s48, %s49
    %p58 = scmp.eq.s32.totalorder %s17, 0
    %p59 = por %p57, %p58
    %p60 = scmp.ne.s32.totalorder %s48, %s49
    %p61 = scmp.eq.s32.totalorder %s18, 1
    %p62 = por %p60, %p61
    %p64 = scmp.ne.s32.totalorder %s49, %s63
    %p65 = scmp.eq.s32.totalorder %s18, 0
    %p66 = por %p64, %p65
    %s68 = sadd.s32 %s67, 1
    %p71 = scmp.eq.s32.totalorder %s12, 1
    %p72 = scmp.ne.s32.totalorder %s67, %s69
    %p73 = scmp.eq.s32.totalorder %s12, 0
    %p74 = por %p72, %p73
    %p75 = scmp.ne.s32.totalorder %s67, %s69
    %p76 = scmp.eq.s32.totalorder %s17, 1
    %p77 = por %p75, %p76
    %p78 = scmp.ne.s32.totalorder %s69, %s70
    %p79 = scmp.eq.s32.totalorder %s17, 0
    %p80 = por %p78, %p79
    %p81 = scmp.ne.s32.totalorder %s69, %s70
    %p82 = scmp.eq.s32.totalorder %s18, 1
    %p83 = por %p81, %p82
    %p85 = scmp.ne.s32.totalorder %s70, %s84
    %p86 = scmp.eq.s32.totalorder %s18, 0
    %p87 = por %p85, %p86
    %s89 = sadd.s32 %s88, 1
    %p92 = scmp.eq.s32.totalorder %s12, 1
    %p93 = scmp.ne.s32.totalorder %s88, %s90
    %p94 = scmp.eq.s32.totalorder %s12, 0
    %p95 = por %p93, %p94
    %p96 = scmp.ne.s32.totalorder %s88, %s90
    %p97 = scmp.eq.s32.totalorder %s17, 1
    %p98 = por %p96, %p97
    %p99 = scmp.ne.s32.totalorder %s90, %s91
    %p100 = scmp.eq.s32.totalorder %s17, 0
    %p101 = por %p99, %p100
    %p102 = scmp.ne.s32.totalorder %s90, %s91
    %p103 = scmp.eq.s32.totalorder %s18, 1
    %p104 = por %p102, %p103
    %p106 = scmp.ne.s32.totalorder %s91, %s105
    %p107 = scmp.eq.s32.totalorder %s18, 0
    %p108 = por %p106, %p107
    %s110 = sadd.s32 %s109, 1
    %p113 = scmp.eq.s32.totalorder %s12, 1
    %p114 = scmp.ne.s32.totalorder %s109, %s111
    %p115 = scmp.eq.s32.totalorder %s12, 0
    %p116 = por %p114, %p115
    %p117 = scmp.ne.s32.totalorder %s109, %s111
    %p118 = scmp.eq.s32.totalorder %s17, 1
    %p119 = por %p117, %p118
    %p120 = scmp.ne.s32.totalorder %s111, %s112
    %p121 = scmp.eq.s32.totalorder %s17, 0
    %p122 = por %p120, %p121
    %p123 = scmp.ne.s32.totalorder %s111, %s112
    %p124 = scmp.eq.s32.totalorder %s18, 1
    %p125 = por %p123, %p124
    %p127 = scmp.ne.s32.totalorder %s112, %s126
    %p128 = scmp.eq.s32.totalorder %s18, 0
    %p129 = por %p127, %p128
    %s131 = sadd.s32 %s130, 1
    %p134 = scmp.eq.s32.totalorder %s12, 1
    %p135 = scmp.ne.s32.totalorder %s130, %s132
    %p136 = scmp.eq.s32.totalorder %s12, 0
    %p137 = por %p135, %p136
    %p138 = scmp.ne.s32.totalorder %s130, %s132
    %p139 = scmp.eq.s32.totalorder %s17, 1
    %p140 = por %p138, %p139
    %p141 = scmp.ne.s32.totalorder %s132, %s133
    %p142 = scmp.eq.s32.totalorder %s17, 0
    %p143 = por %p141, %p142
    %p144 = scmp.ne.s32.totalorder %s132, %s133
    %p145 = scmp.eq.s32.totalorder %s18, 1
    %p146 = por %p144, %p145
    %p148 = scmp.ne.s32.totalorder %s133, %s147
    %p149 = scmp.eq.s32.totalorder %s18, 0
    %p150 = por %p148, %p149
    %s151 = ssub.s32 %s12, %s19
    %p152 = scmp.eq.s32.totalorder %s151, 0
    %s154 = sadd.s32 %s153, 1
    %s155 = scalar_select %p152, %s153, %s154
    %p158 = pneg %p152
    %p159 = scmp.eq.s32.totalorder %s12, 1
    %p160 = por %p158, %p159
    %p161 = scmp.ne.s32.totalorder %s153, %s156
    %p162 = scmp.eq.s32.totalorder %s12, 0
    %p163 = por %p161, %p162
    %p164 = scmp.ne.s32.totalorder %s153, %s156
    %p165 = scmp.eq.s32.totalorder %s17, 1
    %p166 = por %p164, %p165
    %p167 = scmp.ne.s32.totalorder %s156, %s157
    %p168 = scmp.eq.s32.totalorder %s17, 0
    %p169 = por %p167, %p168
    %p170 = scmp.ne.s32.totalorder %s156, %s157
    %p171 = scmp.eq.s32.totalorder %s18, 1
    %p172 = por %p170, %p171
    %p174 = scmp.ne.s32.totalorder %s157, %s173
    %p175 = scmp.eq.s32.totalorder %s18, 0
    %p176 = por %p174, %p175
    %p177 = scmp.le.s32.totalorder 1, %s12
    %p178 = scmp.lt.s32.totalorder %s12, 3
    %p179 = pnand %p177, %p178
    %p180 = pneg %p179
    // Predicated region
    $region9: #{backbone_base_forward.6} parent=5 // pred_check
      _
    $region10: #{backbone_base_forward.6} parent=5 // pred_check_branch
      %182 = sbr.rel (%p179) target = $region12
    $region11: #{backbone_base_forward.6} parent=5 // pred_region
      %s183 = ssub.s32 %s12, 1
      // Predicated region
      $region13: #{backbone_base_forward.6} parent=11 // pred_check
        %p184 = pneg %p59
      $region14: #{backbone_base_forward.6} parent=11 // pred_check_branch
        %186 = sbr.rel (%p184) target = $region16
      $region15: #{backbone_base_forward.6} parent=11 // pred_region
        _
      $region16: #{backbone_base_forward.6} parent=11 // pred_fallthru
        _
      // Predicated region
      $region17: #{backbone_base_forward.6} parent=11 // pred_check
        %p187 = pneg %p80
      $region18: #{backbone_base_forward.6} parent=11 // pred_check_branch
        %189 = sbr.rel (%p187) target = $region20
      $region19: #{backbone_base_forward.6} parent=11 // pred_region
        _
      $region20: #{backbone_base_forward.6} parent=11 // pred_fallthru
        _
      // Predicated region
      $region21: #{backbone_base_forward.6} parent=11 // pred_check
        %p190 = pneg %p101
      $region22: #{backbone_base_forward.6} parent=11 // pred_check_branch
        %192 = sbr.rel (%p190) target = $region24
      $region23: #{backbone_base_forward.6} parent=11 // pred_region
        _
      $region24: #{backbone_base_forward.6} parent=11 // pred_fallthru
        _
      // Predicated region
      $region25: #{backbone_base_forward.6} parent=11 // pred_check
        %p193 = pneg %p122
      $region26: #{backbone_base_forward.6} parent=11 // pred_check_branch
        %195 = sbr.rel (%p193) target = $region28
      $region27: #{backbone_base_forward.6} parent=11 // pred_region
        _
      $region28: #{backbone_base_forward.6} parent=11 // pred_fallthru
        _
      // Predicated region
      $region29: #{backbone_base_forward.6} parent=11 // pred_check
        %p196 = pneg %p143
      $region30: #{backbone_base_forward.6} parent=11 // pred_check_branch
        %198 = sbr.rel (%p196) target = $region32
      $region31: #{backbone_base_forward.6} parent=11 // pred_region
        _
      $region32: #{backbone_base_forward.6} parent=11 // pred_fallthru
        _
    $region12: #{backbone_base_forward.6} parent=5 // pred_fallthru
      _
    %p199 = scmp.lt.s32.totalorder %s12, 2
    // Predicated region
    $region33: #{backbone_base_forward.6} parent=5 // pred_check
      %p200 = pneg %p199
    $region34: #{backbone_base_forward.6} parent=5 // pred_check_branch
      %202 = sbr.rel (%p200) target = $region36
    $region35: #{backbone_base_forward.6} parent=5 // pred_region
      // Predicated region
      $region37: #{backbone_base_forward.6} parent=35 // pred_check
        %p203 = pneg %p32
      $region38: #{backbone_base_forward.6} parent=35 // pred_check_branch
        %205 = sbr.rel (%p203) target = $region40
      $region39: #{backbone_base_forward.6} parent=35 // pred_region
        %p206 = scmp.lt.s32.totalorder %s12, 1
        %s207 = scalar_select %p206, %s12, 1
        %s208 = smul.addr %s207, 16
        %s209 = smul.addr %s208, 4
        %s210 = scalar_lea.vmem %s0, %s209
      $region40: #{backbone_base_forward.6} parent=35 // pred_fallthru
        _
    $region36: #{backbone_base_forward.6} parent=5 // pred_fallthru
      _
    %p211 = scmp.le.s32.totalorder 1, %s12
    %p212 = scmp.lt.s32.totalorder %s12, 3
    %p213 = pnand %p211, %p212
    %p214 = pneg %p213
    // Predicated region
    $region41: #{backbone_base_forward.6} parent=5 // pred_check
      _
    $region42: #{backbone_base_forward.6} parent=5 // pred_check_branch
      %216 = sbr.rel (%p213) target = $region44
    $region43: #{backbone_base_forward.6} parent=5 // pred_region
      %s217 = ssub.s32 %s12, 1
      %p218 = scmp.lt.s32.totalorder %s17, 1
      %s219 = scalar_select %p218, %s17, 1
      %s220 = smul.addr %s219, 16
      %s221 = smul.addr %s220, 4
      %s222 = scalar_lea.vmem %s0, %s221
      %p223 = pneg %p38
      %p224 = pneg %p35
      %p225 = pneg %p59
      %p226 = pneg %p56
      %p227 = pneg %p80
      %p228 = pneg %p77
      %p229 = pneg %p101
      %p230 = pneg %p98
      %p231 = pneg %p122
      %p232 = pneg %p119
      %p233 = pneg %p143
      %p234 = pneg %p140
      %p235 = pneg %p169
      %p236 = pneg %p166
      %p237 = scmp.lt.s32.totalorder %s17, 1
      %s238 = scalar_select %p237, %s17, 1
      %s239 = smul.addr %s238, 8
      %s240 = smul.addr %s239, 4
      %s241 = scalar_lea.vmem %s6, %s240
      %p242 = scmp.lt.s32.totalorder %s17, 1
      %s243 = scalar_select %p242, %s17, 1
      %s244 = smul.addr %s243, 16
      %s245 = smul.addr %s244, 4
      %s246 = scalar_lea.vmem %s0, %s245
      %p247 = scmp.lt.s32.totalorder %s17, 1
      %s248 = scalar_select %p247, %s17, 1
      %s249 = smul.addr %s248, 8
      %s250 = smul.addr %s249, 4
      %s251 = scalar_lea.vmem %s6, %s250
      %v253 = vld [vmem:[%s246] sm:$0xff]
      %v254 = vld [vmem:[%s246 + $0x8] sm:$0xff]
      %v255 = vld [vmem:[%s246 + $0x10] sm:$0xff]
      %v256 = vld [vmem:[%s246 + $0x18] sm:$0xff]
      %v257 = vld [vmem:[%s246 + $0x20] sm:$0xff]
      %v258 = vld [vmem:[%s246 + $0x28] sm:$0xff]
      %v259 = vld [vmem:[%s246 + $0x30] sm:$0xff]
      %v260 = vld [vmem:[%s246 + $0x38] sm:$0xff]
      %v261 = vld [vmem:[%s1] sm:$0xff]
      %v262 = vld [vmem:[%s1 + $0x8] sm:$0xff]
      %v263 = vld [vmem:[%s1 + $0x10] sm:$0xff]
      %v264 = vld [vmem:[%s1 + $0x18] sm:$0xff]
      %v265 = vld [vmem:[%s1 + $0x20] sm:$0xff]
      %v266 = vld [vmem:[%s1 + $0x28] sm:$0xff]
      %v267 = vld [vmem:[%s1 + $0x30] sm:$0xff]
      %v268 = vld [vmem:[%s1 + $0x38] sm:$0xff]
      %v269 = vld [vmem:[%s1 + $0x40] sm:$0xff]
      %v270 = vld [vmem:[%s1 + $0x48] sm:$0xff]
      %v271 = vld [vmem:[%s1 + $0x50] sm:$0xff]
      %v272 = vld [vmem:[%s1 + $0x58] sm:$0xff]
      %v273 = vld [vmem:[%s1 + $0x60] sm:$0xff]
      %v274 = vld [vmem:[%s1 + $0x68] sm:$0xff]
      %v275 = vld [vmem:[%s1 + $0x70] sm:$0xff]
      %v276 = vld [vmem:[%s1 + $0x78] sm:$0xff]
      %v277 = vld [vmem:[%s1 + $0x80] sm:$0xff]
      %v278 = vld [vmem:[%s1 + $0x88] sm:$0xff]
      %v279 = vld [vmem:[%s2] sm:$0x3]
      %v281 = vperm.slane %v279, 0
      %v282 = vperm.slane %v279, 1
      %v293 = vunpack.c.l.b16 %v253
      %v294 = vunpack.c.h.b16 %v253
      %v295 = vunpack.c.l.b16 %v254
      %v296 = vunpack.c.h.b16 %v254
      %v297 = vunpack.c.l.b16 %v255
      %v298 = vunpack.c.h.b16 %v255
      %v299 = vunpack.c.l.b16 %v256
      %v300 = vunpack.c.h.b16 %v256
      %v301 = vunpack.c.l.b16 %v257
      %v302 = vunpack.c.h.b16 %v257
      %v303 = vunpack.c.l.b16 %v258
      %v304 = vunpack.c.h.b16 %v258
      %v305 = vunpack.c.l.b16 %v259
      %v306 = vunpack.c.h.b16 %v259
      %v307 = vunpack.c.l.b16 %v260
      %v308 = vunpack.c.h.b16 %v260
      %v309 = vpack.c.b16 %v295, %v293
      %v310 = vpack.c.b16 %v296, %v294
      %v311 = vpack.c.b16 %v299, %v297
      %v312 = vpack.c.b16 %v300, %v298
      %v313 = vpack.c.b16 %v303, %v301
      %v314 = vpack.c.b16 %v304, %v302
      %v315 = vpack.c.b16 %v307, %v305
      %v316 = vpack.c.b16 %v308, %v306
      %v339 = vunpack.c.l.b16 %v261
      %v340 = vunpack.c.h.b16 %v261
      %v341 = vunpack.c.l.b16 %v262
      %v342 = vunpack.c.h.b16 %v262
      %v343 = vunpack.c.l.b16 %v263
      %v344 = vunpack.c.h.b16 %v263
      %v345 = vunpack.c.l.b16 %v264
      %v346 = vunpack.c.h.b16 %v264
      %v347 = vunpack.c.l.b16 %v265
      %v348 = vunpack.c.h.b16 %v265
      %v349 = vunpack.c.l.b16 %v266
      %v350 = vunpack.c.h.b16 %v266
      %v351 = vunpack.c.l.b16 %v267
      %v352 = vunpack.c.h.b16 %v267
      %v353 = vunpack.c.l.b16 %v268
      %v354 = vunpack.c.h.b16 %v268
      %v355 = vunpack.c.l.b16 %v269
      %v356 = vunpack.c.h.b16 %v269
      %v357 = vunpack.c.l.b16 %v270
      %v358 = vunpack.c.h.b16 %v270
      %v359 = vunpack.c.l.b16 %v271
      %v360 = vunpack.c.h.b16 %v271
      %v361 = vunpack.c.l.b16 %v272
      %v362 = vunpack.c.h.b16 %v272
      %v363 = vunpack.c.l.b16 %v273
      %v364 = vunpack.c.h.b16 %v273
      %v365 = vunpack.c.l.b16 %v274
      %v366 = vunpack.c.h.b16 %v274
      %v367 = vunpack.c.l.b16 %v275
      %v368 = vunpack.c.h.b16 %v275
      %v369 = vunpack.c.l.b16 %v276
      %v370 = vunpack.c.h.b16 %v276
      %v371 = vunpack.c.l.b16 %v277
      %v372 = vunpack.c.h.b16 %v277
      %v373 = vunpack.c.l.b16 %v278
      %v374 = vunpack.c.h.b16 %v278
      %v375 = vpack.c.b16 %v341, %v339
      %v376 = vpack.c.b16 %v342, %v340
      %v377 = vpack.c.b16 %v345, %v343
      %v378 = vpack.c.b16 %v346, %v344
      %v379 = vpack.c.b16 %v349, %v347
      %v380 = vpack.c.b16 %v350, %v348
      %v381 = vpack.c.b16 %v353, %v351
      %v382 = vpack.c.b16 %v354, %v352
      %v383 = vpack.c.b16 %v357, %v355
      %v384 = vpack.c.b16 %v358, %v356
      %v385 = vpack.c.b16 %v361, %v359
      %v386 = vpack.c.b16 %v362, %v360
      %v387 = vpack.c.b16 %v365, %v363
      %v388 = vpack.c.b16 %v366, %v364
      %v389 = vpack.c.b16 %v369, %v367
      %v390 = vpack.c.b16 %v370, %v368
      %v391 = vpack.c.b16 %v373, %v371
      %v392 = vpack.c.b16 %v374, %v372
      %vm411 = vcmask 130048
      %v413 = vsel %vm411, %v310, 0
      %v416 = vsel %vm411, %v312, 0
      %v419 = vsel %vm411, %v314, 0
      %v422 = vsel %vm411, %v316, 0
      %424 = vmatpush.bf16.msra.mxu0 %v389
      %425 = vmatpush.bf16.msra.mxu0 %v387
      %426 = vmatpush.bf16.msra.mxu0 %v385
      %427 = vmatpush.bf16.msra.mxu0 %v383
      %428 = vmatpush.bf16.msra.mxu0 %v381
      %429 = vmatpush.bf16.msra.mxu0 %v379
      %430 = vmatpush.bf16.msra.mxu0 %v377
      %431 = vmatpush.bf16.msra.mxu0 %v375
      %432 = vmatmul.bf16.gmra.mxu0 %v309
      %v433 = vpop.f32.mrf.mxu0
      %v434 = vadd.f32 %v281, %v433
      %v435 = vpop.f32.mrf.mxu0
      %v436 = vadd.f32 %v281, %v435
      %437 = vmatmul.bf16.gmra.mxu0 %v311
      %v438 = vpop.f32.mrf.mxu0
      %v439 = vadd.f32 %v281, %v438
      %v440 = vpop.f32.mrf.mxu0
      %v441 = vadd.f32 %v281, %v440
      %442 = vmatmul.bf16.gmra.mxu0 %v313
      %v443 = vpop.f32.mrf.mxu0
      %v444 = vadd.f32 %v281, %v443
      %v445 = vpop.f32.mrf.mxu0
      %v446 = vadd.f32 %v281, %v445
      %447 = vmatmul.bf16.gmra.mxu0 %v315
      %v448 = vpop.f32.mrf.mxu0
      %v449 = vadd.f32 %v281, %v448
      %v450 = vpop.f32.mrf.mxu0
      %v451 = vadd.f32 %v281, %v450
      %452 = vdwg.mxu0
      %453 = vmatpush.bf16.msra.mxu0 0
      %454 = vmatpush.bf16.msra.mxu0 0
      %455 = vmatpush.bf16.msra.mxu0 0
      %456 = vmatpush.bf16.msra.mxu0 0
      %457 = vmatpush.bf16.msra.mxu0 0
      %458 = vmatpush.bf16.msra.mxu0 0
      %459 = vmatpush.bf16.msra.mxu0 0
      %460 = vmatpush.bf16.msra.mxu0 %v391
      %461 = vmatmul.bf16.gmra.mxu0 %v413
      %v462 = vpop.f32.mrf.mxu0
      %v463 = vadd.f32 %v434, %v462
      %v464 = vpop.f32.mrf.mxu0
      %v465 = vadd.f32 %v436, %v464
      %466 = vmatmul.bf16.gmra.mxu0 %v416
      %v467 = vpop.f32.mrf.mxu0
      %v468 = vadd.f32 %v439, %v467
      %v469 = vpop.f32.mrf.mxu0
      %v470 = vadd.f32 %v441, %v469
      %471 = vmatmul.bf16.gmra.mxu0 %v419
      %v472 = vpop.f32.mrf.mxu0
      %v473 = vadd.f32 %v444, %v472
      %v474 = vpop.f32.mrf.mxu0
      %v475 = vadd.f32 %v446, %v474
      %476 = vmatmul.bf16.gmra.mxu0 %v422
      %v477 = vpop.f32.mrf.mxu0
      %v478 = vadd.f32 %v449, %v477
      %v479 = vpop.f32.mrf.mxu0
      %v480 = vadd.f32 %v451, %v479
      %481 = vdwg.mxu0
      %482 = vmatpush.bf16.msra.mxu0 %v390
      %483 = vmatpush.bf16.msra.mxu0 %v388
      %484 = vmatpush.bf16.msra.mxu0 %v386
      %485 = vmatpush.bf16.msra.mxu0 %v384
      %486 = vmatpush.bf16.msra.mxu0 %v382
      %487 = vmatpush.bf16.msra.mxu0 %v380
      %488 = vmatpush.bf16.msra.mxu0 %v378
      %489 = vmatpush.bf16.msra.mxu0 %v376
      %490 = vmatmul.bf16.gmra.mxu0 %v309
      %v491 = vpop.f32.mrf.mxu0
      %v492 = vadd.f32 %v282, %v491
      %v493 = vpop.f32.mrf.mxu0
      %v494 = vadd.f32 %v282, %v493
      %495 = vmatmul.bf16.gmra.mxu0 %v311
      %v496 = vpop.f32.mrf.mxu0
      %v497 = vadd.f32 %v282, %v496
      %v498 = vpop.f32.mrf.mxu0
      %v499 = vadd.f32 %v282, %v498
      %500 = vmatmul.bf16.gmra.mxu0 %v313
      %v501 = vpop.f32.mrf.mxu0
      %v502 = vadd.f32 %v282, %v501
      %v503 = vpop.f32.mrf.mxu0
      %v504 = vadd.f32 %v282, %v503
      %505 = vmatmul.bf16.gmra.mxu0 %v315
      %v506 = vpop.f32.mrf.mxu0
      %v507 = vadd.f32 %v282, %v506
      %v508 = vpop.f32.mrf.mxu0
      %v509 = vadd.f32 %v282, %v508
      %510 = vdwg.mxu0
      %511 = vmatpush.bf16.msra.mxu0 0
      %512 = vmatpush.bf16.msra.mxu0 0
      %513 = vmatpush.bf16.msra.mxu0 0
      %514 = vmatpush.bf16.msra.mxu0 0
      %515 = vmatpush.bf16.msra.mxu0 0
      %516 = vmatpush.bf16.msra.mxu0 0
      %517 = vmatpush.bf16.msra.mxu0 0
      %518 = vmatpush.bf16.msra.mxu0 %v392
      %519 = vmatmul.bf16.gmra.mxu0 %v413
      %v520 = vpop.f32.mrf.mxu0
      %v521 = vadd.f32 %v492, %v520
      %v522 = vpop.f32.mrf.mxu0
      %v523 = vadd.f32 %v494, %v522
      %524 = vmatmul.bf16.gmra.mxu0 %v416
      %v525 = vpop.f32.mrf.mxu0
      %v526 = vadd.f32 %v497, %v525
      %v527 = vpop.f32.mrf.mxu0
      %v528 = vadd.f32 %v499, %v527
      %529 = vmatmul.bf16.gmra.mxu0 %v419
      %v530 = vpop.f32.mrf.mxu0
      %v531 = vadd.f32 %v502, %v530
      %v532 = vpop.f32.mrf.mxu0
      %v533 = vadd.f32 %v504, %v532
      %534 = vmatmul.bf16.gmra.mxu0 %v422
      %v535 = vpop.f32.mrf.mxu0
      %v536 = vadd.f32 %v507, %v535
      %v537 = vpop.f32.mrf.mxu0
      %v538 = vadd.f32 %v509, %v537
      %539 = vdwg.mxu0
      %v540 = vmax.f32 %v463, 0.0
      %v541 = vmax.f32 %v465, 0.0
      %v542 = vmax.f32 %v468, 0.0
      %v543 = vmax.f32 %v470, 0.0
      %v544 = vmax.f32 %v473, 0.0
      %v545 = vmax.f32 %v475, 0.0
      %v546 = vmax.f32 %v478, 0.0
      %v547 = vmax.f32 %v480, 0.0
      %v548 = vpack.c.bf16 %v541, %v540
      %v549 = vpack.c.bf16 %v543, %v542
      %v550 = vpack.c.bf16 %v545, %v544
      %v551 = vpack.c.bf16 %v547, %v546
      %v552 = vld [vmem:[%s4] sm:$0x1]
      %v554 = vperm.slane %v552, 0
      %v556 = vadd.f32 %v521, %v554
      %v557 = vadd.f32 %v523, %v554
      %v558 = vadd.f32 %v526, %v554
      %v559 = vadd.f32 %v528, %v554
      %v560 = vadd.f32 %v531, %v554
      %v561 = vadd.f32 %v533, %v554
      %v562 = vadd.f32 %v536, %v554
      %v563 = vadd.f32 %v538, %v554
      %v564 = vld [vmem:[%s5] sm:$0xf]
      %v565 = vld [vmem:[%s5 + $0x4] sm:$0xf]
      %v566 = vld [vmem:[%s5 + $0x8] sm:$0xf]
      %v567 = vld [vmem:[%s5 + $0xc] sm:$0xf]
      %v568 = vld [vmem:[%s5 + $0x10] sm:$0xf]
      %v569 = vld [vmem:[%s5 + $0x14] sm:$0xf]
      %v570 = vld [vmem:[%s5 + $0x18] sm:$0xf]
      %v571 = vld [vmem:[%s5 + $0x1c] sm:$0xf]
      %v580 = vunpack.c.l.b16 %v564
      %v581 = vunpack.c.l.b16 %v565
      %v582 = vunpack.c.l.b16 %v566
      %v583 = vunpack.c.l.b16 %v567
      %v584 = vunpack.c.l.b16 %v568
      %v585 = vunpack.c.l.b16 %v569
      %v586 = vunpack.c.l.b16 %v570
      %v587 = vunpack.c.l.b16 %v571
      %v588 = vpack.c.b16 %v581, %v580
      %v589 = vpack.c.b16 %v583, %v582
      %v590 = vpack.c.b16 %v585, %v584
      %v591 = vpack.c.b16 %v587, %v586
      %vm592 = vcmask 523264
      %v594 = vsel %vm592, %v588, 0
      %v597 = vsel %vm592, %v589, 0
      %v600 = vsel %vm592, %v590, 0
      %v603 = vsel %vm592, %v591, 0
      %605 = vmatpush.bf16.msra.mxu0 0
      %606 = vmatpush.bf16.msra.mxu0 0
      %607 = vmatpush.bf16.msra.mxu0 0
      %608 = vmatpush.bf16.msra.mxu0 0
      %609 = vmatpush.bf16.msra.mxu0 %v551
      %610 = vmatpush.bf16.msra.mxu0 %v550
      %611 = vmatpush.bf16.msra.mxu0 %v549
      %612 = vmatpush.bf16.msra.mxu0 %v548
      %613 = vmatmul.bf16.gmra.mxu0 %v594
      %v614 = vpop.f32.mrf.mxu0
      %v615 = vadd.f32 0.0, %v614
      %v616 = vpop.f32.mrf.mxu0
      %v617 = vadd.f32 0.0, %v616
      %618 = vmatmul.bf16.gmra.mxu0 %v597
      %v619 = vpop.f32.mrf.mxu0
      %v620 = vadd.f32 0.0, %v619
      %v621 = vpop.f32.mrf.mxu0
      %v622 = vadd.f32 0.0, %v621
      %623 = vmatmul.bf16.gmra.mxu0 %v600
      %v624 = vpop.f32.mrf.mxu0
      %v625 = vadd.f32 0.0, %v624
      %v626 = vpop.f32.mrf.mxu0
      %v627 = vadd.f32 0.0, %v626
      %628 = vmatmul.bf16.gmra.mxu0 %v603
      %v629 = vpop.f32.mrf.mxu0
      %v630 = vadd.f32 0.0, %v629
      %v631 = vpop.f32.mrf.mxu0
      %v632 = vadd.f32 0.0, %v631
      %633 = vdwg.mxu0
      %v634 = vpack.c.bf16 %v617, %v615
      %v635 = vpack.c.bf16 %v622, %v620
      %v636 = vpack.c.bf16 %v627, %v625
      %v637 = vpack.c.bf16 %v632, %v630
      %v638 = vld [vmem:[%s3] sm:$0xf]
      %v639 = vld [vmem:[%s3 + $0x4] sm:$0xf]
      %v640 = vld [vmem:[%s3 + $0x8] sm:$0xf]
      %v641 = vld [vmem:[%s3 + $0xc] sm:$0xf]
      %v642 = vld [vmem:[%s3 + $0x10] sm:$0xf]
      %v643 = vld [vmem:[%s3 + $0x14] sm:$0xf]
      %v644 = vld [vmem:[%s3 + $0x18] sm:$0xf]
      %v645 = vld [vmem:[%s3 + $0x1c] sm:$0xf]
      %v646 = vld [vmem:[%s3 + $0x20] sm:$0xf]
      %v647 = vld [vmem:[%s3 + $0x24] sm:$0xf]
      %v648 = vld [vmem:[%s3 + $0x28] sm:$0xf]
      %v649 = vld [vmem:[%s3 + $0x2c] sm:$0xf]
      %v650 = vld [vmem:[%s3 + $0x30] sm:$0xf]
      %v651 = vld [vmem:[%s3 + $0x34] sm:$0xf]
      %v652 = vld [vmem:[%s3 + $0x38] sm:$0xf]
      %v653 = vld [vmem:[%s3 + $0x3c] sm:$0xf]
      %v670 = vunpack.c.l.b16 %v638
      %v671 = vunpack.c.l.b16 %v639
      %v672 = vunpack.c.l.b16 %v640
      %v673 = vunpack.c.l.b16 %v641
      %v674 = vunpack.c.l.b16 %v642
      %v675 = vunpack.c.l.b16 %v643
      %v676 = vunpack.c.l.b16 %v644
      %v677 = vunpack.c.l.b16 %v645
      %v678 = vunpack.c.l.b16 %v646
      %v679 = vunpack.c.l.b16 %v647
      %v680 = vunpack.c.l.b16 %v648
      %v681 = vunpack.c.l.b16 %v649
      %v682 = vunpack.c.l.b16 %v650
      %v683 = vunpack.c.l.b16 %v651
      %v684 = vunpack.c.l.b16 %v652
      %v685 = vunpack.c.l.b16 %v653
      %v686 = vpack.c.b16 %v671, %v670
      %v687 = vpack.c.b16 %v673, %v672
      %v688 = vpack.c.b16 %v675, %v674
      %v689 = vpack.c.b16 %v677, %v676
      %v690 = vpack.c.b16 %v679, %v678
      %v691 = vpack.c.b16 %v681, %v680
      %v692 = vpack.c.b16 %v683, %v682
      %v693 = vpack.c.b16 %v685, %v684
      %702 = vmatpush.bf16.msra.mxu0 %v693
      %703 = vmatpush.bf16.msra.mxu0 %v692
      %704 = vmatpush.bf16.msra.mxu0 %v691
      %705 = vmatpush.bf16.msra.mxu0 %v690
      %706 = vmatpush.bf16.msra.mxu0 %v689
      %707 = vmatpush.bf16.msra.mxu0 %v688
      %708 = vmatpush.bf16.msra.mxu0 %v687
      %709 = vmatpush.bf16.msra.mxu0 %v686
      %710 = vmatmul.bf16.gmra.mxu0 %v634
      %v711 = vpop.f32.mrf.mxu0
      %v712 = vadd.f32 0.0, %v711
      %v713 = vpop.f32.mrf.mxu0
      %v714 = vadd.f32 0.0, %v713
      %715 = vmatmul.bf16.gmra.mxu0 %v635
      %v716 = vpop.f32.mrf.mxu0
      %v717 = vadd.f32 0.0, %v716
      %v718 = vpop.f32.mrf.mxu0
      %v719 = vadd.f32 0.0, %v718
      %720 = vmatmul.bf16.gmra.mxu0 %v636
      %v721 = vpop.f32.mrf.mxu0
      %v722 = vadd.f32 0.0, %v721
      %v723 = vpop.f32.mrf.mxu0
      %v724 = vadd.f32 0.0, %v723
      %725 = vmatmul.bf16.gmra.mxu0 %v637
      %v726 = vpop.f32.mrf.mxu0
      %v727 = vadd.f32 0.0, %v726
      %v728 = vpop.f32.mrf.mxu0
      %v729 = vadd.f32 0.0, %v728
      %730 = vdwg.mxu0
      %v731 = vadd.f32 %v556, %v712
      %v732 = vadd.f32 %v557, %v714
      %v733 = vadd.f32 %v558, %v717
      %v734 = vadd.f32 %v559, %v719
      %v735 = vadd.f32 %v560, %v722
      %v736 = vadd.f32 %v561, %v724
      %v737 = vadd.f32 %v562, %v727
      %v738 = vadd.f32 %v563, %v729
      %s739 = scalar_lea.vmem %s5, 32
      %v740 = vld [vmem:[%s739] sm:$0xf]
      %v741 = vld [vmem:[%s739 + $0x4] sm:$0xf]
      %v742 = vld [vmem:[%s739 + $0x8] sm:$0xf]
      %v743 = vld [vmem:[%s739 + $0xc] sm:$0xf]
      %v744 = vld [vmem:[%s739 + $0x10] sm:$0xf]
      %v745 = vld [vmem:[%s739 + $0x14] sm:$0xf]
      %v746 = vld [vmem:[%s739 + $0x18] sm:$0xf]
      %v747 = vld [vmem:[%s739 + $0x1c] sm:$0xf]
      %v756 = vunpack.c.l.b16 %v740
      %v757 = vunpack.c.l.b16 %v741
      %v758 = vunpack.c.l.b16 %v742
      %v759 = vunpack.c.l.b16 %v743
      %v760 = vunpack.c.l.b16 %v744
      %v761 = vunpack.c.l.b16 %v745
      %v762 = vunpack.c.l.b16 %v746
      %v763 = vunpack.c.l.b16 %v747
      %v764 = vpack.c.b16 %v757, %v756
      %v765 = vpack.c.b16 %v759, %v758
      %v766 = vpack.c.b16 %v761, %v760
      %v767 = vpack.c.b16 %v763, %v762
      %v769 = vsel %vm592, %v764, 0
      %v772 = vsel %vm592, %v765, 0
      %v775 = vsel %vm592, %v766, 0
      %v778 = vsel %vm592, %v767, 0
      %780 = vmatpush.bf16.msra.mxu0 0
      %781 = vmatpush.bf16.msra.mxu0 0
      %782 = vmatpush.bf16.msra.mxu0 0
      %783 = vmatpush.bf16.msra.mxu0 0
      %784 = vmatpush.bf16.msra.mxu0 %v551
      %785 = vmatpush.bf16.msra.mxu0 %v550
      %786 = vmatpush.bf16.msra.mxu0 %v549
      %787 = vmatpush.bf16.msra.mxu0 %v548
      %788 = vmatmul.bf16.gmra.mxu0 %v769
      %v789 = vpop.f32.mrf.mxu0
      %v790 = vadd.f32 0.0, %v789
      %v791 = vpop.f32.mrf.mxu0
      %v792 = vadd.f32 0.0, %v791
      %793 = vmatmul.bf16.gmra.mxu0 %v772
      %v794 = vpop.f32.mrf.mxu0
      %v795 = vadd.f32 0.0, %v794
      %v796 = vpop.f32.mrf.mxu0
      %v797 = vadd.f32 0.0, %v796
      %798 = vmatmul.bf16.gmra.mxu0 %v775
      %v799 = vpop.f32.mrf.mxu0
      %v800 = vadd.f32 0.0, %v799
      %v801 = vpop.f32.mrf.mxu0
      %v802 = vadd.f32 0.0, %v801
      %803 = vmatmul.bf16.gmra.mxu0 %v778
      %v804 = vpop.f32.mrf.mxu0
      %v805 = vadd.f32 0.0, %v804
      %v806 = vpop.f32.mrf.mxu0
      %v807 = vadd.f32 0.0, %v806
      %808 = vdwg.mxu0
      %v809 = vpack.c.bf16 %v792, %v790
      %v810 = vpack.c.bf16 %v797, %v795
      %v811 = vpack.c.bf16 %v802, %v800
      %v812 = vpack.c.bf16 %v807, %v805
      %s813 = scalar_lea.vmem %s3, 64
      %v814 = vld [vmem:[%s813] sm:$0xf]
      %v815 = vld [vmem:[%s813 + $0x4] sm:$0xf]
      %v816 = vld [vmem:[%s813 + $0x8] sm:$0xf]
      %v817 = vld [vmem:[%s813 + $0xc] sm:$0xf]
      %v818 = vld [vmem:[%s813 + $0x10] sm:$0xf]
      %v819 = vld [vmem:[%s813 + $0x14] sm:$0xf]
      %v820 = vld [vmem:[%s813 + $0x18] sm:$0xf]
      %v821 = vld [vmem:[%s813 + $0x1c] sm:$0xf]
      %v822 = vld [vmem:[%s813 + $0x20] sm:$0xf]
      %v823 = vld [vmem:[%s813 + $0x24] sm:$0xf]
      %v824 = vld [vmem:[%s813 + $0x28] sm:$0xf]
      %v825 = vld [vmem:[%s813 + $0x2c] sm:$0xf]
      %v826 = vld [vmem:[%s813 + $0x30] sm:$0xf]
      %v827 = vld [vmem:[%s813 + $0x34] sm:$0xf]
      %v828 = vld [vmem:[%s813 + $0x38] sm:$0xf]
      %v829 = vld [vmem:[%s813 + $0x3c] sm:$0xf]
      %v846 = vunpack.c.l.b16 %v814
      %v847 = vunpack.c.l.b16 %v815
      %v848 = vunpack.c.l.b16 %v816
      %v849 = vunpack.c.l.b16 %v817
      %v850 = vunpack.c.l.b16 %v818
      %v851 = vunpack.c.l.b16 %v819
      %v852 = vunpack.c.l.b16 %v820
      %v853 = vunpack.c.l.b16 %v821
      %v854 = vunpack.c.l.b16 %v822
      %v855 = vunpack.c.l.b16 %v823
      %v856 = vunpack.c.l.b16 %v824
      %v857 = vunpack.c.l.b16 %v825
      %v858 = vunpack.c.l.b16 %v826
      %v859 = vunpack.c.l.b16 %v827
      %v860 = vunpack.c.l.b16 %v828
      %v861 = vunpack.c.l.b16 %v829
      %v862 = vpack.c.b16 %v847, %v846
      %v863 = vpack.c.b16 %v849, %v848
      %v864 = vpack.c.b16 %v851, %v850
      %v865 = vpack.c.b16 %v853, %v852
      %v866 = vpack.c.b16 %v855, %v854
      %v867 = vpack.c.b16 %v857, %v856
      %v868 = vpack.c.b16 %v859, %v858
      %v869 = vpack.c.b16 %v861, %v860
      %878 = vmatpush.bf16.msra.mxu0 %v869
      %879 = vmatpush.bf16.msra.mxu0 %v868
      %880 = vmatpush.bf16.msra.mxu0 %v867
      %881 = vmatpush.bf16.msra.mxu0 %v866
      %882 = vmatpush.bf16.msra.mxu0 %v865
      %883 = vmatpush.bf16.msra.mxu0 %v864
      %884 = vmatpush.bf16.msra.mxu0 %v863
      %885 = vmatpush.bf16.msra.mxu0 %v862
      %886 = vmatmul.bf16.gmra.mxu0 %v809
      %v887 = vpop.f32.mrf.mxu0
      %v888 = vadd.f32 0.0, %v887
      %v889 = vpop.f32.mrf.mxu0
      %v890 = vadd.f32 0.0, %v889
      %891 = vmatmul.bf16.gmra.mxu0 %v810
      %v892 = vpop.f32.mrf.mxu0
      %v893 = vadd.f32 0.0, %v892
      %v894 = vpop.f32.mrf.mxu0
      %v895 = vadd.f32 0.0, %v894
      %896 = vmatmul.bf16.gmra.mxu0 %v811
      %v897 = vpop.f32.mrf.mxu0
      %v898 = vadd.f32 0.0, %v897
      %v899 = vpop.f32.mrf.mxu0
      %v900 = vadd.f32 0.0, %v899
      %901 = vmatmul.bf16.gmra.mxu0 %v812
      %v902 = vpop.f32.mrf.mxu0
      %v903 = vadd.f32 0.0, %v902
      %v904 = vpop.f32.mrf.mxu0
      %v905 = vadd.f32 0.0, %v904
      %906 = vdwg.mxu0
      %v907 = vadd.f32 %v731, %v888
      %v908 = vadd.f32 %v732, %v890
      %v909 = vadd.f32 %v733, %v893
      %v910 = vadd.f32 %v734, %v895
      %v911 = vadd.f32 %v735, %v898
      %v912 = vadd.f32 %v736, %v900
      %v913 = vadd.f32 %v737, %v903
      %v914 = vadd.f32 %v738, %v905
      %s915 = scalar_lea.vmem %s5, 64
      %v916 = vld [vmem:[%s915] sm:$0xf]
      %v917 = vld [vmem:[%s915 + $0x4] sm:$0xf]
      %v918 = vld [vmem:[%s915 + $0x8] sm:$0xf]
      %v919 = vld [vmem:[%s915 + $0xc] sm:$0xf]
      %v920 = vld [vmem:[%s915 + $0x10] sm:$0xf]
      %v921 = vld [vmem:[%s915 + $0x14] sm:$0xf]
      %v922 = vld [vmem:[%s915 + $0x18] sm:$0xf]
      %v923 = vld [vmem:[%s915 + $0x1c] sm:$0xf]
      %v932 = vunpack.c.l.b16 %v916
      %v933 = vunpack.c.l.b16 %v917
      %v934 = vunpack.c.l.b16 %v918
      %v935 = vunpack.c.l.b16 %v919
      %v936 = vunpack.c.l.b16 %v920
      %v937 = vunpack.c.l.b16 %v921
      %v938 = vunpack.c.l.b16 %v922
      %v939 = vunpack.c.l.b16 %v923
      %v940 = vpack.c.b16 %v933, %v932
      %v941 = vpack.c.b16 %v935, %v934
      %v942 = vpack.c.b16 %v937, %v936
      %v943 = vpack.c.b16 %v939, %v938
      %v945 = vsel %vm592, %v940, 0
      %v948 = vsel %vm592, %v941, 0
      %v951 = vsel %vm592, %v942, 0
      %v954 = vsel %vm592, %v943, 0
      %956 = vmatpush.bf16.msra.mxu0 0
      %957 = vmatpush.bf16.msra.mxu0 0
      %958 = vmatpush.bf16.msra.mxu0 0
      %959 = vmatpush.bf16.msra.mxu0 0
      %960 = vmatpush.bf16.msra.mxu0 %v551
      %961 = vmatpush.bf16.msra.mxu0 %v550
      %962 = vmatpush.bf16.msra.mxu0 %v549
      %963 = vmatpush.bf16.msra.mxu0 %v548
      %964 = vmatmul.bf16.gmra.mxu0 %v945
      %v965 = vpop.f32.mrf.mxu0
      %v966 = vadd.f32 0.0, %v965
      %v967 = vpop.f32.mrf.mxu0
      %v968 = vadd.f32 0.0, %v967
      %969 = vmatmul.bf16.gmra.mxu0 %v948
      %v970 = vpop.f32.mrf.mxu0
      %v971 = vadd.f32 0.0, %v970
      %v972 = vpop.f32.mrf.mxu0
      %v973 = vadd.f32 0.0, %v972
      %974 = vmatmul.bf16.gmra.mxu0 %v951
      %v975 = vpop.f32.mrf.mxu0
      %v976 = vadd.f32 0.0, %v975
      %v977 = vpop.f32.mrf.mxu0
      %v978 = vadd.f32 0.0, %v977
      %979 = vmatmul.bf16.gmra.mxu0 %v954
      %v980 = vpop.f32.mrf.mxu0
      %v981 = vadd.f32 0.0, %v980
      %v982 = vpop.f32.mrf.mxu0
      %v983 = vadd.f32 0.0, %v982
      %984 = vdwg.mxu0
      %v985 = vpack.c.bf16 %v968, %v966
      %v986 = vpack.c.bf16 %v973, %v971
      %v987 = vpack.c.bf16 %v978, %v976
      %v988 = vpack.c.bf16 %v983, %v981
      %s989 = scalar_lea.vmem %s3, 128
      %v990 = vld [vmem:[%s989] sm:$0xf]
      %v991 = vld [vmem:[%s989 + $0x4] sm:$0xf]
      %v992 = vld [vmem:[%s989 + $0x8] sm:$0xf]
      %v993 = vld [vmem:[%s989 + $0xc] sm:$0xf]
      %v994 = vld [vmem:[%s989 + $0x10] sm:$0xf]
      %v995 = vld [vmem:[%s989 + $0x14] sm:$0xf]
      %v996 = vld [vmem:[%s989 + $0x18] sm:$0xf]
      %v997 = vld [vmem:[%s989 + $0x1c] sm:$0xf]
      %v998 = vld [vmem:[%s989 + $0x20] sm:$0xf]
      %v999 = vld [vmem:[%s989 + $0x24] sm:$0xf]
      %v1000 = vld [vmem:[%s989 + $0x28] sm:$0xf]
      %v1001 = vld [vmem:[%s989 + $0x2c] sm:$0xf]
      %v1002 = vld [vmem:[%s989 + $0x30] sm:$0xf]
      %v1003 = vld [vmem:[%s989 + $0x34] sm:$0xf]
      %v1004 = vld [vmem:[%s989 + $0x38] sm:$0xf]
      %v1005 = vld [vmem:[%s989 + $0x3c] sm:$0xf]
      %v1022 = vunpack.c.l.b16 %v990
      %v1023 = vunpack.c.l.b16 %v991
      %v1024 = vunpack.c.l.b16 %v992
      %v1025 = vunpack.c.l.b16 %v993
      %v1026 = vunpack.c.l.b16 %v994
      %v1027 = vunpack.c.l.b16 %v995
      %v1028 = vunpack.c.l.b16 %v996
      %v1029 = vunpack.c.l.b16 %v997
      %v1030 = vunpack.c.l.b16 %v998
      %v1031 = vunpack.c.l.b16 %v999
      %v1032 = vunpack.c.l.b16 %v1000
      %v1033 = vunpack.c.l.b16 %v1001
      %v1034 = vunpack.c.l.b16 %v1002
      %v1035 = vunpack.c.l.b16 %v1003
      %v1036 = vunpack.c.l.b16 %v1004
      %v1037 = vunpack.c.l.b16 %v1005
      %v1038 = vpack.c.b16 %v1023, %v1022
      %v1039 = vpack.c.b16 %v1025, %v1024
      %v1040 = vpack.c.b16 %v1027, %v1026
      %v1041 = vpack.c.b16 %v1029, %v1028
      %v1042 = vpack.c.b16 %v1031, %v1030
      %v1043 = vpack.c.b16 %v1033, %v1032
      %v1044 = vpack.c.b16 %v1035, %v1034
      %v1045 = vpack.c.b16 %v1037, %v1036
      %1054 = vmatpush.bf16.msra.mxu0 %v1045
      %1055 = vmatpush.bf16.msra.mxu0 %v1044
      %1056 = vmatpush.bf16.msra.mxu0 %v1043
      %1057 = vmatpush.bf16.msra.mxu0 %v1042
      %1058 = vmatpush.bf16.msra.mxu0 %v1041
      %1059 = vmatpush.bf16.msra.mxu0 %v1040
      %1060 = vmatpush.bf16.msra.mxu0 %v1039
      %1061 = vmatpush.bf16.msra.mxu0 %v1038
      %1062 = vmatmul.bf16.gmra.mxu0 %v985
      %v1063 = vpop.f32.mrf.mxu0
      %v1064 = vadd.f32 0.0, %v1063
      %v1065 = vpop.f32.mrf.mxu0
      %v1066 = vadd.f32 0.0, %v1065
      %1067 = vmatmul.bf16.gmra.mxu0 %v986
      %v1068 = vpop.f32.mrf.mxu0
      %v1069 = vadd.f32 0.0, %v1068
      %v1070 = vpop.f32.mrf.mxu0
      %v1071 = vadd.f32 0.0, %v1070
      %1072 = vmatmul.bf16.gmra.mxu0 %v987
      %v1073 = vpop.f32.mrf.mxu0
      %v1074 = vadd.f32 0.0, %v1073
      %v1075 = vpop.f32.mrf.mxu0
      %v1076 = vadd.f32 0.0, %v1075
      %1077 = vmatmul.bf16.gmra.mxu0 %v988
      %v1078 = vpop.f32.mrf.mxu0
      %v1079 = vadd.f32 0.0, %v1078
      %v1080 = vpop.f32.mrf.mxu0
      %v1081 = vadd.f32 0.0, %v1080
      %1082 = vdwg.mxu0
      %v1083 = vadd.f32 %v907, %v1064
      %v1084 = vadd.f32 %v908, %v1066
      %v1085 = vadd.f32 %v909, %v1069
      %v1086 = vadd.f32 %v910, %v1071
      %v1087 = vadd.f32 %v911, %v1074
      %v1088 = vadd.f32 %v912, %v1076
      %v1089 = vadd.f32 %v913, %v1079
      %v1090 = vadd.f32 %v914, %v1081
      %s1091 = scalar_lea.vmem %s5, 96
      %v1092 = vld [vmem:[%s1091] sm:$0xf]
      %v1093 = vld [vmem:[%s1091 + $0x4] sm:$0xf]
      %v1094 = vld [vmem:[%s1091 + $0x8] sm:$0xf]
      %v1095 = vld [vmem:[%s1091 + $0xc] sm:$0xf]
      %v1096 = vld [vmem:[%s1091 + $0x10] sm:$0xf]
      %v1097 = vld [vmem:[%s1091 + $0x14] sm:$0xf]
      %v1098 = vld [vmem:[%s1091 + $0x18] sm:$0xf]
      %v1099 = vld [vmem:[%s1091 + $0x1c] sm:$0xf]
      %v1108 = vunpack.c.l.b16 %v1092
      %v1109 = vunpack.c.l.b16 %v1093
      %v1110 = vunpack.c.l.b16 %v1094
      %v1111 = vunpack.c.l.b16 %v1095
      %v1112 = vunpack.c.l.b16 %v1096
      %v1113 = vunpack.c.l.b16 %v1097
      %v1114 = vunpack.c.l.b16 %v1098
      %v1115 = vunpack.c.l.b16 %v1099
      %v1116 = vpack.c.b16 %v1109, %v1108
      %v1117 = vpack.c.b16 %v1111, %v1110
      %v1118 = vpack.c.b16 %v1113, %v1112
      %v1119 = vpack.c.b16 %v1115, %v1114
      %v1121 = vsel %vm592, %v1116, 0
      %v1124 = vsel %vm592, %v1117, 0
      %v1127 = vsel %vm592, %v1118, 0
      %v1130 = vsel %vm592, %v1119, 0
      %1132 = vmatpush.bf16.msra.mxu0 0
      %1133 = vmatpush.bf16.msra.mxu0 0
      %1134 = vmatpush.bf16.msra.mxu0 0
      %1135 = vmatpush.bf16.msra.mxu0 0
      %1136 = vmatpush.bf16.msra.mxu0 %v551
      %1137 = vmatpush.bf16.msra.mxu0 %v550
      %1138 = vmatpush.bf16.msra.mxu0 %v549
      %1139 = vmatpush.bf16.msra.mxu0 %v548
      %1140 = vmatmul.bf16.gmra.mxu0 %v1121
      %v1141 = vpop.f32.mrf.mxu0
      %v1142 = vadd.f32 0.0, %v1141
      %v1143 = vpop.f32.mrf.mxu0
      %v1144 = vadd.f32 0.0, %v1143
      %1145 = vmatmul.bf16.gmra.mxu0 %v1124
      %v1146 = vpop.f32.mrf.mxu0
      %v1147 = vadd.f32 0.0, %v1146
      %v1148 = vpop.f32.mrf.mxu0
      %v1149 = vadd.f32 0.0, %v1148
      %1150 = vmatmul.bf16.gmra.mxu0 %v1127
      %v1151 = vpop.f32.mrf.mxu0
      %v1152 = vadd.f32 0.0, %v1151
      %v1153 = vpop.f32.mrf.mxu0
      %v1154 = vadd.f32 0.0, %v1153
      %1155 = vmatmul.bf16.gmra.mxu0 %v1130
      %v1156 = vpop.f32.mrf.mxu0
      %v1157 = vadd.f32 0.0, %v1156
      %v1158 = vpop.f32.mrf.mxu0
      %v1159 = vadd.f32 0.0, %v1158
      %1160 = vdwg.mxu0
      %v1161 = vpack.c.bf16 %v1144, %v1142
      %v1162 = vpack.c.bf16 %v1149, %v1147
      %v1163 = vpack.c.bf16 %v1154, %v1152
      %v1164 = vpack.c.bf16 %v1159, %v1157
      %s1165 = scalar_lea.vmem %s3, 192
      %v1166 = vld [vmem:[%s1165] sm:$0xf]
      %v1167 = vld [vmem:[%s1165 + $0x4] sm:$0xf]
      %v1168 = vld [vmem:[%s1165 + $0x8] sm:$0xf]
      %v1169 = vld [vmem:[%s1165 + $0xc] sm:$0xf]
      %v1170 = vld [vmem:[%s1165 + $0x10] sm:$0xf]
      %v1171 = vld [vmem:[%s1165 + $0x14] sm:$0xf]
      %v1172 = vld [vmem:[%s1165 + $0x18] sm:$0xf]
      %v1173 = vld [vmem:[%s1165 + $0x1c] sm:$0xf]
      %v1174 = vld [vmem:[%s1165 + $0x20] sm:$0xf]
      %v1175 = vld [vmem:[%s1165 + $0x24] sm:$0xf]
      %v1176 = vld [vmem:[%s1165 + $0x28] sm:$0xf]
      %v1177 = vld [vmem:[%s1165 + $0x2c] sm:$0xf]
      %v1178 = vld [vmem:[%s1165 + $0x30] sm:$0xf]
      %v1179 = vld [vmem:[%s1165 + $0x34] sm:$0xf]
      %v1180 = vld [vmem:[%s1165 + $0x38] sm:$0xf]
      %v1181 = vld [vmem:[%s1165 + $0x3c] sm:$0xf]
      %v1198 = vunpack.c.l.b16 %v1166
      %v1199 = vunpack.c.l.b16 %v1167
      %v1200 = vunpack.c.l.b16 %v1168
      %v1201 = vunpack.c.l.b16 %v1169
      %v1202 = vunpack.c.l.b16 %v1170
      %v1203 = vunpack.c.l.b16 %v1171
      %v1204 = vunpack.c.l.b16 %v1172
      %v1205 = vunpack.c.l.b16 %v1173
      %v1206 = vunpack.c.l.b16 %v1174
      %v1207 = vunpack.c.l.b16 %v1175
      %v1208 = vunpack.c.l.b16 %v1176
      %v1209 = vunpack.c.l.b16 %v1177
      %v1210 = vunpack.c.l.b16 %v1178
      %v1211 = vunpack.c.l.b16 %v1179
      %v1212 = vunpack.c.l.b16 %v1180
      %v1213 = vunpack.c.l.b16 %v1181
      %v1214 = vpack.c.b16 %v1199, %v1198
      %v1215 = vpack.c.b16 %v1201, %v1200
      %v1216 = vpack.c.b16 %v1203, %v1202
      %v1217 = vpack.c.b16 %v1205, %v1204
      %v1218 = vpack.c.b16 %v1207, %v1206
      %v1219 = vpack.c.b16 %v1209, %v1208
      %v1220 = vpack.c.b16 %v1211, %v1210
      %v1221 = vpack.c.b16 %v1213, %v1212
      %1230 = vmatpush.bf16.msra.mxu0 %v1221
      %1231 = vmatpush.bf16.msra.mxu0 %v1220
      %1232 = vmatpush.bf16.msra.mxu0 %v1219
      %1233 = vmatpush.bf16.msra.mxu0 %v1218
      %1234 = vmatpush.bf16.msra.mxu0 %v1217
      %1235 = vmatpush.bf16.msra.mxu0 %v1216
      %1236 = vmatpush.bf16.msra.mxu0 %v1215
      %1237 = vmatpush.bf16.msra.mxu0 %v1214
      %1238 = vmatmul.bf16.gmra.mxu0 %v1161
      %v1239 = vpop.f32.mrf.mxu0
      %v1240 = vadd.f32 0.0, %v1239
      %v1241 = vpop.f32.mrf.mxu0
      %v1242 = vadd.f32 0.0, %v1241
      %1243 = vmatmul.bf16.gmra.mxu0 %v1162
      %v1244 = vpop.f32.mrf.mxu0
      %v1245 = vadd.f32 0.0, %v1244
      %v1246 = vpop.f32.mrf.mxu0
      %v1247 = vadd.f32 0.0, %v1246
      %1248 = vmatmul.bf16.gmra.mxu0 %v1163
      %v1249 = vpop.f32.mrf.mxu0
      %v1250 = vadd.f32 0.0, %v1249
      %v1251 = vpop.f32.mrf.mxu0
      %v1252 = vadd.f32 0.0, %v1251
      %1253 = vmatmul.bf16.gmra.mxu0 %v1164
      %v1254 = vpop.f32.mrf.mxu0
      %v1255 = vadd.f32 0.0, %v1254
      %v1256 = vpop.f32.mrf.mxu0
      %v1257 = vadd.f32 0.0, %v1256
      %1258 = vdwg.mxu0
      %v1259 = vadd.f32 %v1083, %v1240
      %v1260 = vadd.f32 %v1084, %v1242
      %v1261 = vadd.f32 %v1085, %v1245
      %v1262 = vadd.f32 %v1086, %v1247
      %v1263 = vadd.f32 %v1087, %v1250
      %v1264 = vadd.f32 %v1088, %v1252
      %v1265 = vadd.f32 %v1089, %v1255
      %v1266 = vadd.f32 %v1090, %v1257
      %s1267 = scalar_lea.vmem %s5, 128
      %v1268 = vld [vmem:[%s1267] sm:$0xf]
      %v1269 = vld [vmem:[%s1267 + $0x4] sm:$0xf]
      %v1270 = vld [vmem:[%s1267 + $0x8] sm:$0xf]
      %v1271 = vld [vmem:[%s1267 + $0xc] sm:$0xf]
      %v1272 = vld [vmem:[%s1267 + $0x10] sm:$0xf]
      %v1273 = vld [vmem:[%s1267 + $0x14] sm:$0xf]
      %v1274 = vld [vmem:[%s1267 + $0x18] sm:$0xf]
      %v1275 = vld [vmem:[%s1267 + $0x1c] sm:$0xf]
      %v1284 = vunpack.c.l.b16 %v1268
      %v1285 = vunpack.c.l.b16 %v1269
      %v1286 = vunpack.c.l.b16 %v1270
      %v1287 = vunpack.c.l.b16 %v1271
      %v1288 = vunpack.c.l.b16 %v1272
      %v1289 = vunpack.c.l.b16 %v1273
      %v1290 = vunpack.c.l.b16 %v1274
      %v1291 = vunpack.c.l.b16 %v1275
      %v1292 = vpack.c.b16 %v1285, %v1284
      %v1293 = vpack.c.b16 %v1287, %v1286
      %v1294 = vpack.c.b16 %v1289, %v1288
      %v1295 = vpack.c.b16 %v1291, %v1290
      %v1297 = vsel %vm592, %v1292, 0
      %v1300 = vsel %vm592, %v1293, 0
      %v1303 = vsel %vm592, %v1294, 0
      %v1306 = vsel %vm592, %v1295, 0
      %1308 = vmatpush.bf16.msra.mxu0 0
      %1309 = vmatpush.bf16.msra.mxu0 0
      %1310 = vmatpush.bf16.msra.mxu0 0
      %1311 = vmatpush.bf16.msra.mxu0 0
      %1312 = vmatpush.bf16.msra.mxu0 %v551
      %1313 = vmatpush.bf16.msra.mxu0 %v550
      %1314 = vmatpush.bf16.msra.mxu0 %v549
      %1315 = vmatpush.bf16.msra.mxu0 %v548
      %1316 = vmatmul.bf16.gmra.mxu0 %v1297
      %v1317 = vpop.f32.mrf.mxu0
      %v1318 = vadd.f32 0.0, %v1317
      %v1319 = vpop.f32.mrf.mxu0
      %v1320 = vadd.f32 0.0, %v1319
      %1321 = vmatmul.bf16.gmra.mxu0 %v1300
      %v1322 = vpop.f32.mrf.mxu0
      %v1323 = vadd.f32 0.0, %v1322
      %v1324 = vpop.f32.mrf.mxu0
      %v1325 = vadd.f32 0.0, %v1324
      %1326 = vmatmul.bf16.gmra.mxu0 %v1303
      %v1327 = vpop.f32.mrf.mxu0
      %v1328 = vadd.f32 0.0, %v1327
      %v1329 = vpop.f32.mrf.mxu0
      %v1330 = vadd.f32 0.0, %v1329
      %1331 = vmatmul.bf16.gmra.mxu0 %v1306
      %v1332 = vpop.f32.mrf.mxu0
      %v1333 = vadd.f32 0.0, %v1332
      %v1334 = vpop.f32.mrf.mxu0
      %v1335 = vadd.f32 0.0, %v1334
      %1336 = vdwg.mxu0
      %v1337 = vpack.c.bf16 %v1320, %v1318
      %v1338 = vpack.c.bf16 %v1325, %v1323
      %v1339 = vpack.c.bf16 %v1330, %v1328
      %v1340 = vpack.c.bf16 %v1335, %v1333
      %s1341 = scalar_lea.vmem %s3, 256
      %v1342 = vld [vmem:[%s1341] sm:$0xf]
      %v1343 = vld [vmem:[%s1341 + $0x4] sm:$0xf]
      %v1344 = vld [vmem:[%s1341 + $0x8] sm:$0xf]
      %v1345 = vld [vmem:[%s1341 + $0xc] sm:$0xf]
      %v1346 = vld [vmem:[%s1341 + $0x10] sm:$0xf]
      %v1347 = vld [vmem:[%s1341 + $0x14] sm:$0xf]
      %v1348 = vld [vmem:[%s1341 + $0x18] sm:$0xf]
      %v1349 = vld [vmem:[%s1341 + $0x1c] sm:$0xf]
      %v1350 = vld [vmem:[%s1341 + $0x20] sm:$0xf]
      %v1351 = vld [vmem:[%s1341 + $0x24] sm:$0xf]
      %v1352 = vld [vmem:[%s1341 + $0x28] sm:$0xf]
      %v1353 = vld [vmem:[%s1341 + $0x2c] sm:$0xf]
      %v1354 = vld [vmem:[%s1341 + $0x30] sm:$0xf]
      %v1355 = vld [vmem:[%s1341 + $0x34] sm:$0xf]
      %v1356 = vld [vmem:[%s1341 + $0x38] sm:$0xf]
      %v1357 = vld [vmem:[%s1341 + $0x3c] sm:$0xf]
      %v1374 = vunpack.c.l.b16 %v1342
      %v1375 = vunpack.c.l.b16 %v1343
      %v1376 = vunpack.c.l.b16 %v1344
      %v1377 = vunpack.c.l.b16 %v1345
      %v1378 = vunpack.c.l.b16 %v1346
      %v1379 = vunpack.c.l.b16 %v1347
      %v1380 = vunpack.c.l.b16 %v1348
      %v1381 = vunpack.c.l.b16 %v1349
      %v1382 = vunpack.c.l.b16 %v1350
      %v1383 = vunpack.c.l.b16 %v1351
      %v1384 = vunpack.c.l.b16 %v1352
      %v1385 = vunpack.c.l.b16 %v1353
      %v1386 = vunpack.c.l.b16 %v1354
      %v1387 = vunpack.c.l.b16 %v1355
      %v1388 = vunpack.c.l.b16 %v1356
      %v1389 = vunpack.c.l.b16 %v1357
      %v1390 = vpack.c.b16 %v1375, %v1374
      %v1391 = vpack.c.b16 %v1377, %v1376
      %v1392 = vpack.c.b16 %v1379, %v1378
      %v1393 = vpack.c.b16 %v1381, %v1380
      %v1394 = vpack.c.b16 %v1383, %v1382
      %v1395 = vpack.c.b16 %v1385, %v1384
      %v1396 = vpack.c.b16 %v1387, %v1386
      %v1397 = vpack.c.b16 %v1389, %v1388
      %1406 = vmatpush.bf16.msra.mxu0 %v1397
      %1407 = vmatpush.bf16.msra.mxu0 %v1396
      %1408 = vmatpush.bf16.msra.mxu0 %v1395
      %1409 = vmatpush.bf16.msra.mxu0 %v1394
      %1410 = vmatpush.bf16.msra.mxu0 %v1393
      %1411 = vmatpush.bf16.msra.mxu0 %v1392
      %1412 = vmatpush.bf16.msra.mxu0 %v1391
      %1413 = vmatpush.bf16.msra.mxu0 %v1390
      %1414 = vmatmul.bf16.gmra.mxu0 %v1337
      %v1415 = vpop.f32.mrf.mxu0
      %v1416 = vadd.f32 0.0, %v1415
      %v1417 = vpop.f32.mrf.mxu0
      %v1418 = vadd.f32 0.0, %v1417
      %1419 = vmatmul.bf16.gmra.mxu0 %v1338
      %v1420 = vpop.f32.mrf.mxu0
      %v1421 = vadd.f32 0.0, %v1420
      %v1422 = vpop.f32.mrf.mxu0
      %v1423 = vadd.f32 0.0, %v1422
      %1424 = vmatmul.bf16.gmra.mxu0 %v1339
      %v1425 = vpop.f32.mrf.mxu0
      %v1426 = vadd.f32 0.0, %v1425
      %v1427 = vpop.f32.mrf.mxu0
      %v1428 = vadd.f32 0.0, %v1427
      %1429 = vmatmul.bf16.gmra.mxu0 %v1340
      %v1430 = vpop.f32.mrf.mxu0
      %v1431 = vadd.f32 0.0, %v1430
      %v1432 = vpop.f32.mrf.mxu0
      %v1433 = vadd.f32 0.0, %v1432
      %1434 = vdwg.mxu0
      %v1435 = vadd.f32 %v1259, %v1416
      %v1436 = vadd.f32 %v1260, %v1418
      %v1437 = vadd.f32 %v1261, %v1421
      %v1438 = vadd.f32 %v1262, %v1423
      %v1439 = vadd.f32 %v1263, %v1426
      %v1440 = vadd.f32 %v1264, %v1428
      %v1441 = vadd.f32 %v1265, %v1431
      %v1442 = vadd.f32 %v1266, %v1433
      %s1443 = scalar_lea.vmem %s5, 160
      %v1444 = vld [vmem:[%s1443] sm:$0xf]
      %v1445 = vld [vmem:[%s1443 + $0x4] sm:$0xf]
      %v1446 = vld [vmem:[%s1443 + $0x8] sm:$0xf]
      %v1447 = vld [vmem:[%s1443 + $0xc] sm:$0xf]
      %v1448 = vld [vmem:[%s1443 + $0x10] sm:$0xf]
      %v1449 = vld [vmem:[%s1443 + $0x14] sm:$0xf]
      %v1450 = vld [vmem:[%s1443 + $0x18] sm:$0xf]
      %v1451 = vld [vmem:[%s1443 + $0x1c] sm:$0xf]
      %v1460 = vunpack.c.l.b16 %v1444
      %v1461 = vunpack.c.l.b16 %v1445
      %v1462 = vunpack.c.l.b16 %v1446
      %v1463 = vunpack.c.l.b16 %v1447
      %v1464 = vunpack.c.l.b16 %v1448
      %v1465 = vunpack.c.l.b16 %v1449
      %v1466 = vunpack.c.l.b16 %v1450
      %v1467 = vunpack.c.l.b16 %v1451
      %v1468 = vpack.c.b16 %v1461, %v1460
      %v1469 = vpack.c.b16 %v1463, %v1462
      %v1470 = vpack.c.b16 %v1465, %v1464
      %v1471 = vpack.c.b16 %v1467, %v1466
      %v1473 = vsel %vm592, %v1468, 0
      %v1476 = vsel %vm592, %v1469, 0
      %v1479 = vsel %vm592, %v1470, 0
      %v1482 = vsel %vm592, %v1471, 0
      %1484 = vmatpush.bf16.msra.mxu0 0
      %1485 = vmatpush.bf16.msra.mxu0 0
      %1486 = vmatpush.bf16.msra.mxu0 0
      %1487 = vmatpush.bf16.msra.mxu0 0
      %1488 = vmatpush.bf16.msra.mxu0 %v551
      %1489 = vmatpush.bf16.msra.mxu0 %v550
      %1490 = vmatpush.bf16.msra.mxu0 %v549
      %1491 = vmatpush.bf16.msra.mxu0 %v548
      %1492 = vmatmul.bf16.gmra.mxu0 %v1473
      %v1493 = vpop.f32.mrf.mxu0
      %v1494 = vadd.f32 0.0, %v1493
      %v1495 = vpop.f32.mrf.mxu0
      %v1496 = vadd.f32 0.0, %v1495
      %1497 = vmatmul.bf16.gmra.mxu0 %v1476
      %v1498 = vpop.f32.mrf.mxu0
      %v1499 = vadd.f32 0.0, %v1498
      %v1500 = vpop.f32.mrf.mxu0
      %v1501 = vadd.f32 0.0, %v1500
      %1502 = vmatmul.bf16.gmra.mxu0 %v1479
      %v1503 = vpop.f32.mrf.mxu0
      %v1504 = vadd.f32 0.0, %v1503
      %v1505 = vpop.f32.mrf.mxu0
      %v1506 = vadd.f32 0.0, %v1505
      %1507 = vmatmul.bf16.gmra.mxu0 %v1482
      %v1508 = vpop.f32.mrf.mxu0
      %v1509 = vadd.f32 0.0, %v1508
      %v1510 = vpop.f32.mrf.mxu0
      %v1511 = vadd.f32 0.0, %v1510
      %1512 = vdwg.mxu0
      %v1513 = vpack.c.bf16 %v1496, %v1494
      %v1514 = vpack.c.bf16 %v1501, %v1499
      %v1515 = vpack.c.bf16 %v1506, %v1504
      %v1516 = vpack.c.bf16 %v1511, %v1509
      %s1517 = scalar_lea.vmem %s3, 320
      %v1518 = vld [vmem:[%s1517] sm:$0xf]
      %v1519 = vld [vmem:[%s1517 + $0x4] sm:$0xf]
      %v1520 = vld [vmem:[%s1517 + $0x8] sm:$0xf]
      %v1521 = vld [vmem:[%s1517 + $0xc] sm:$0xf]
      %v1522 = vld [vmem:[%s1517 + $0x10] sm:$0xf]
      %v1523 = vld [vmem:[%s1517 + $0x14] sm:$0xf]
      %v1524 = vld [vmem:[%s1517 + $0x18] sm:$0xf]
      %v1525 = vld [vmem:[%s1517 + $0x1c] sm:$0xf]
      %v1526 = vld [vmem:[%s1517 + $0x20] sm:$0xf]
      %v1527 = vld [vmem:[%s1517 + $0x24] sm:$0xf]
      %v1528 = vld [vmem:[%s1517 + $0x28] sm:$0xf]
      %v1529 = vld [vmem:[%s1517 + $0x2c] sm:$0xf]
      %v1530 = vld [vmem:[%s1517 + $0x30] sm:$0xf]
      %v1531 = vld [vmem:[%s1517 + $0x34] sm:$0xf]
      %v1532 = vld [vmem:[%s1517 + $0x38] sm:$0xf]
      %v1533 = vld [vmem:[%s1517 + $0x3c] sm:$0xf]
      %v1550 = vunpack.c.l.b16 %v1518
      %v1551 = vunpack.c.l.b16 %v1519
      %v1552 = vunpack.c.l.b16 %v1520
      %v1553 = vunpack.c.l.b16 %v1521
      %v1554 = vunpack.c.l.b16 %v1522
      %v1555 = vunpack.c.l.b16 %v1523
      %v1556 = vunpack.c.l.b16 %v1524
      %v1557 = vunpack.c.l.b16 %v1525
      %v1558 = vunpack.c.l.b16 %v1526
      %v1559 = vunpack.c.l.b16 %v1527
      %v1560 = vunpack.c.l.b16 %v1528
      %v1561 = vunpack.c.l.b16 %v1529
      %v1562 = vunpack.c.l.b16 %v1530
      %v1563 = vunpack.c.l.b16 %v1531
      %v1564 = vunpack.c.l.b16 %v1532
      %v1565 = vunpack.c.l.b16 %v1533
      %v1566 = vpack.c.b16 %v1551, %v1550
      %v1567 = vpack.c.b16 %v1553, %v1552
      %v1568 = vpack.c.b16 %v1555, %v1554
      %v1569 = vpack.c.b16 %v1557, %v1556
      %v1570 = vpack.c.b16 %v1559, %v1558
      %v1571 = vpack.c.b16 %v1561, %v1560
      %v1572 = vpack.c.b16 %v1563, %v1562
      %v1573 = vpack.c.b16 %v1565, %v1564
      %1582 = vmatpush.bf16.msra.mxu0 %v1573
      %1583 = vmatpush.bf16.msra.mxu0 %v1572
      %1584 = vmatpush.bf16.msra.mxu0 %v1571
      %1585 = vmatpush.bf16.msra.mxu0 %v1570
      %1586 = vmatpush.bf16.msra.mxu0 %v1569
      %1587 = vmatpush.bf16.msra.mxu0 %v1568
      %1588 = vmatpush.bf16.msra.mxu0 %v1567
      %1589 = vmatpush.bf16.msra.mxu0 %v1566
      %1590 = vmatmul.bf16.gmra.mxu0 %v1513
      %v1591 = vpop.f32.mrf.mxu0
      %v1592 = vadd.f32 0.0, %v1591
      %v1593 = vpop.f32.mrf.mxu0
      %v1594 = vadd.f32 0.0, %v1593
      %1595 = vmatmul.bf16.gmra.mxu0 %v1514
      %v1596 = vpop.f32.mrf.mxu0
      %v1597 = vadd.f32 0.0, %v1596
      %v1598 = vpop.f32.mrf.mxu0
      %v1599 = vadd.f32 0.0, %v1598
      %1600 = vmatmul.bf16.gmra.mxu0 %v1515
      %v1601 = vpop.f32.mrf.mxu0
      %v1602 = vadd.f32 0.0, %v1601
      %v1603 = vpop.f32.mrf.mxu0
      %v1604 = vadd.f32 0.0, %v1603
      %1605 = vmatmul.bf16.gmra.mxu0 %v1516
      %v1606 = vpop.f32.mrf.mxu0
      %v1607 = vadd.f32 0.0, %v1606
      %v1608 = vpop.f32.mrf.mxu0
      %v1609 = vadd.f32 0.0, %v1608
      %1610 = vdwg.mxu0
      %v1611 = vadd.f32 %v1435, %v1592
      %v1612 = vadd.f32 %v1436, %v1594
      %v1613 = vadd.f32 %v1437, %v1597
      %v1614 = vadd.f32 %v1438, %v1599
      %v1615 = vadd.f32 %v1439, %v1602
      %v1616 = vadd.f32 %v1440, %v1604
      %v1617 = vadd.f32 %v1441, %v1607
      %v1618 = vadd.f32 %v1442, %v1609
      %s1619 = scalar_lea.vmem %s5, 192
      %v1620 = vld [vmem:[%s1619] sm:$0xf]
      %v1621 = vld [vmem:[%s1619 + $0x4] sm:$0xf]
      %v1622 = vld [vmem:[%s1619 + $0x8] sm:$0xf]
      %v1623 = vld [vmem:[%s1619 + $0xc] sm:$0xf]
      %v1624 = vld [vmem:[%s1619 + $0x10] sm:$0xf]
      %v1625 = vld [vmem:[%s1619 + $0x14] sm:$0xf]
      %v1626 = vld [vmem:[%s1619 + $0x18] sm:$0xf]
      %v1627 = vld [vmem:[%s1619 + $0x1c] sm:$0xf]
      %v1636 = vunpack.c.l.b16 %v1620
      %v1637 = vunpack.c.l.b16 %v1621
      %v1638 = vunpack.c.l.b16 %v1622
      %v1639 = vunpack.c.l.b16 %v1623
      %v1640 = vunpack.c.l.b16 %v1624
      %v1641 = vunpack.c.l.b16 %v1625
      %v1642 = vunpack.c.l.b16 %v1626
      %v1643 = vunpack.c.l.b16 %v1627
      %v1644 = vpack.c.b16 %v1637, %v1636
      %v1645 = vpack.c.b16 %v1639, %v1638
      %v1646 = vpack.c.b16 %v1641, %v1640
      %v1647 = vpack.c.b16 %v1643, %v1642
      %v1649 = vsel %vm592, %v1644, 0
      %v1652 = vsel %vm592, %v1645, 0
      %v1655 = vsel %vm592, %v1646, 0
      %v1658 = vsel %vm592, %v1647, 0
      %1660 = vmatpush.bf16.msra.mxu0 0
      %1661 = vmatpush.bf16.msra.mxu0 0
      %1662 = vmatpush.bf16.msra.mxu0 0
      %1663 = vmatpush.bf16.msra.mxu0 0
      %1664 = vmatpush.bf16.msra.mxu0 %v551
      %1665 = vmatpush.bf16.msra.mxu0 %v550
      %1666 = vmatpush.bf16.msra.mxu0 %v549
      %1667 = vmatpush.bf16.msra.mxu0 %v548
      %1668 = vmatmul.bf16.gmra.mxu0 %v1649
      %v1669 = vpop.f32.mrf.mxu0
      %v1670 = vadd.f32 0.0, %v1669
      %v1671 = vpop.f32.mrf.mxu0
      %v1672 = vadd.f32 0.0, %v1671
      %1673 = vmatmul.bf16.gmra.mxu0 %v1652
      %v1674 = vpop.f32.mrf.mxu0
      %v1675 = vadd.f32 0.0, %v1674
      %v1676 = vpop.f32.mrf.mxu0
      %v1677 = vadd.f32 0.0, %v1676
      %1678 = vmatmul.bf16.gmra.mxu0 %v1655
      %v1679 = vpop.f32.mrf.mxu0
      %v1680 = vadd.f32 0.0, %v1679
      %v1681 = vpop.f32.mrf.mxu0
      %v1682 = vadd.f32 0.0, %v1681
      %1683 = vmatmul.bf16.gmra.mxu0 %v1658
      %v1684 = vpop.f32.mrf.mxu0
      %v1685 = vadd.f32 0.0, %v1684
      %v1686 = vpop.f32.mrf.mxu0
      %v1687 = vadd.f32 0.0, %v1686
      %1688 = vdwg.mxu0
      %v1689 = vpack.c.bf16 %v1672, %v1670
      %v1690 = vpack.c.bf16 %v1677, %v1675
      %v1691 = vpack.c.bf16 %v1682, %v1680
      %v1692 = vpack.c.bf16 %v1687, %v1685
      %s1693 = scalar_lea.vmem %s3, 384
      %v1694 = vld [vmem:[%s1693] sm:$0xf]
      %v1695 = vld [vmem:[%s1693 + $0x4] sm:$0xf]
      %v1696 = vld [vmem:[%s1693 + $0x8] sm:$0xf]
      %v1697 = vld [vmem:[%s1693 + $0xc] sm:$0xf]
      %v1698 = vld [vmem:[%s1693 + $0x10] sm:$0xf]
      %v1699 = vld [vmem:[%s1693 + $0x14] sm:$0xf]
      %v1700 = vld [vmem:[%s1693 + $0x18] sm:$0xf]
      %v1701 = vld [vmem:[%s1693 + $0x1c] sm:$0xf]
      %v1702 = vld [vmem:[%s1693 + $0x20] sm:$0xf]
      %v1703 = vld [vmem:[%s1693 + $0x24] sm:$0xf]
      %v1704 = vld [vmem:[%s1693 + $0x28] sm:$0xf]
      %v1705 = vld [vmem:[%s1693 + $0x2c] sm:$0xf]
      %v1706 = vld [vmem:[%s1693 + $0x30] sm:$0xf]
      %v1707 = vld [vmem:[%s1693 + $0x34] sm:$0xf]
      %v1708 = vld [vmem:[%s1693 + $0x38] sm:$0xf]
      %v1709 = vld [vmem:[%s1693 + $0x3c] sm:$0xf]
      %v1726 = vunpack.c.l.b16 %v1694
      %v1727 = vunpack.c.l.b16 %v1695
      %v1728 = vunpack.c.l.b16 %v1696
      %v1729 = vunpack.c.l.b16 %v1697
      %v1730 = vunpack.c.l.b16 %v1698
      %v1731 = vunpack.c.l.b16 %v1699
      %v1732 = vunpack.c.l.b16 %v1700
      %v1733 = vunpack.c.l.b16 %v1701
      %v1734 = vunpack.c.l.b16 %v1702
      %v1735 = vunpack.c.l.b16 %v1703
      %v1736 = vunpack.c.l.b16 %v1704
      %v1737 = vunpack.c.l.b16 %v1705
      %v1738 = vunpack.c.l.b16 %v1706
      %v1739 = vunpack.c.l.b16 %v1707
      %v1740 = vunpack.c.l.b16 %v1708
      %v1741 = vunpack.c.l.b16 %v1709
      %v1742 = vpack.c.b16 %v1727, %v1726
      %v1743 = vpack.c.b16 %v1729, %v1728
      %v1744 = vpack.c.b16 %v1731, %v1730
      %v1745 = vpack.c.b16 %v1733, %v1732
      %v1746 = vpack.c.b16 %v1735, %v1734
      %v1747 = vpack.c.b16 %v1737, %v1736
      %v1748 = vpack.c.b16 %v1739, %v1738
      %v1749 = vpack.c.b16 %v1741, %v1740
      %1758 = vmatpush.bf16.msra.mxu0 %v1749
      %1759 = vmatpush.bf16.msra.mxu0 %v1748
      %1760 = vmatpush.bf16.msra.mxu0 %v1747
      %1761 = vmatpush.bf16.msra.mxu0 %v1746
      %1762 = vmatpush.bf16.msra.mxu0 %v1745
      %1763 = vmatpush.bf16.msra.mxu0 %v1744
      %1764 = vmatpush.bf16.msra.mxu0 %v1743
      %1765 = vmatpush.bf16.msra.mxu0 %v1742
      %1766 = vmatmul.bf16.gmra.mxu0 %v1689
      %v1767 = vpop.f32.mrf.mxu0
      %v1768 = vadd.f32 0.0, %v1767
      %v1769 = vpop.f32.mrf.mxu0
      %v1770 = vadd.f32 0.0, %v1769
      %1771 = vmatmul.bf16.gmra.mxu0 %v1690
      %v1772 = vpop.f32.mrf.mxu0
      %v1773 = vadd.f32 0.0, %v1772
      %v1774 = vpop.f32.mrf.mxu0
      %v1775 = vadd.f32 0.0, %v1774
      %1776 = vmatmul.bf16.gmra.mxu0 %v1691
      %v1777 = vpop.f32.mrf.mxu0
      %v1778 = vadd.f32 0.0, %v1777
      %v1779 = vpop.f32.mrf.mxu0
      %v1780 = vadd.f32 0.0, %v1779
      %1781 = vmatmul.bf16.gmra.mxu0 %v1692
      %v1782 = vpop.f32.mrf.mxu0
      %v1783 = vadd.f32 0.0, %v1782
      %v1784 = vpop.f32.mrf.mxu0
      %v1785 = vadd.f32 0.0, %v1784
      %1786 = vdwg.mxu0
      %v1787 = vadd.f32 %v1611, %v1768
      %v1788 = vadd.f32 %v1612, %v1770
      %v1789 = vadd.f32 %v1613, %v1773
      %v1790 = vadd.f32 %v1614, %v1775
      %v1791 = vadd.f32 %v1615, %v1778
      %v1792 = vadd.f32 %v1616, %v1780
      %v1793 = vadd.f32 %v1617, %v1783
      %v1794 = vadd.f32 %v1618, %v1785
      %s1795 = scalar_lea.vmem %s5, 224
      %v1796 = vld [vmem:[%s1795] sm:$0xf]
      %v1797 = vld [vmem:[%s1795 + $0x4] sm:$0xf]
      %v1798 = vld [vmem:[%s1795 + $0x8] sm:$0xf]
      %v1799 = vld [vmem:[%s1795 + $0xc] sm:$0xf]
      %v1800 = vld [vmem:[%s1795 + $0x10] sm:$0xf]
      %v1801 = vld [vmem:[%s1795 + $0x14] sm:$0xf]
      %v1802 = vld [vmem:[%s1795 + $0x18] sm:$0xf]
      %v1803 = vld [vmem:[%s1795 + $0x1c] sm:$0xf]
      %v1812 = vunpack.c.l.b16 %v1796
      %v1813 = vunpack.c.l.b16 %v1797
      %v1814 = vunpack.c.l.b16 %v1798
      %v1815 = vunpack.c.l.b16 %v1799
      %v1816 = vunpack.c.l.b16 %v1800
      %v1817 = vunpack.c.l.b16 %v1801
      %v1818 = vunpack.c.l.b16 %v1802
      %v1819 = vunpack.c.l.b16 %v1803
      %v1820 = vpack.c.b16 %v1813, %v1812
      %v1821 = vpack.c.b16 %v1815, %v1814
      %v1822 = vpack.c.b16 %v1817, %v1816
      %v1823 = vpack.c.b16 %v1819, %v1818
      %v1825 = vsel %vm592, %v1820, 0
      %v1828 = vsel %vm592, %v1821, 0
      %v1831 = vsel %vm592, %v1822, 0
      %v1834 = vsel %vm592, %v1823, 0
      %1836 = vmatpush.bf16.msra.mxu0 0
      %1837 = vmatpush.bf16.msra.mxu0 0
      %1838 = vmatpush.bf16.msra.mxu0 0
      %1839 = vmatpush.bf16.msra.mxu0 0
      %1840 = vmatpush.bf16.msra.mxu0 %v551
      %1841 = vmatpush.bf16.msra.mxu0 %v550
      %1842 = vmatpush.bf16.msra.mxu0 %v549
      %1843 = vmatpush.bf16.msra.mxu0 %v548
      %1844 = vmatmul.bf16.gmra.mxu0 %v1825
      %v1845 = vpop.f32.mrf.mxu0
      %v1846 = vadd.f32 0.0, %v1845
      %v1847 = vpop.f32.mrf.mxu0
      %v1848 = vadd.f32 0.0, %v1847
      %1849 = vmatmul.bf16.gmra.mxu0 %v1828
      %v1850 = vpop.f32.mrf.mxu0
      %v1851 = vadd.f32 0.0, %v1850
      %v1852 = vpop.f32.mrf.mxu0
      %v1853 = vadd.f32 0.0, %v1852
      %1854 = vmatmul.bf16.gmra.mxu0 %v1831
      %v1855 = vpop.f32.mrf.mxu0
      %v1856 = vadd.f32 0.0, %v1855
      %v1857 = vpop.f32.mrf.mxu0
      %v1858 = vadd.f32 0.0, %v1857
      %1859 = vmatmul.bf16.gmra.mxu0 %v1834
      %v1860 = vpop.f32.mrf.mxu0
      %v1861 = vadd.f32 0.0, %v1860
      %v1862 = vpop.f32.mrf.mxu0
      %v1863 = vadd.f32 0.0, %v1862
      %1864 = vdwg.mxu0
      %v1865 = vpack.c.bf16 %v1848, %v1846
      %v1866 = vpack.c.bf16 %v1853, %v1851
      %v1867 = vpack.c.bf16 %v1858, %v1856
      %v1868 = vpack.c.bf16 %v1863, %v1861
      %s1869 = scalar_lea.vmem %s3, 448
      %v1870 = vld [vmem:[%s1869] sm:$0xf]
      %v1871 = vld [vmem:[%s1869 + $0x4] sm:$0xf]
      %v1872 = vld [vmem:[%s1869 + $0x8] sm:$0xf]
      %v1873 = vld [vmem:[%s1869 + $0xc] sm:$0xf]
      %v1874 = vld [vmem:[%s1869 + $0x10] sm:$0xf]
      %v1875 = vld [vmem:[%s1869 + $0x14] sm:$0xf]
      %v1876 = vld [vmem:[%s1869 + $0x18] sm:$0xf]
      %v1877 = vld [vmem:[%s1869 + $0x1c] sm:$0xf]
      %v1878 = vld [vmem:[%s1869 + $0x20] sm:$0xf]
      %v1879 = vld [vmem:[%s1869 + $0x24] sm:$0xf]
      %v1880 = vld [vmem:[%s1869 + $0x28] sm:$0xf]
      %v1881 = vld [vmem:[%s1869 + $0x2c] sm:$0xf]
      %v1882 = vld [vmem:[%s1869 + $0x30] sm:$0xf]
      %v1883 = vld [vmem:[%s1869 + $0x34] sm:$0xf]
      %v1884 = vld [vmem:[%s1869 + $0x38] sm:$0xf]
      %v1885 = vld [vmem:[%s1869 + $0x3c] sm:$0xf]
      %v1902 = vunpack.c.l.b16 %v1870
      %v1903 = vunpack.c.l.b16 %v1871
      %v1904 = vunpack.c.l.b16 %v1872
      %v1905 = vunpack.c.l.b16 %v1873
      %v1906 = vunpack.c.l.b16 %v1874
      %v1907 = vunpack.c.l.b16 %v1875
      %v1908 = vunpack.c.l.b16 %v1876
      %v1909 = vunpack.c.l.b16 %v1877
      %v1910 = vunpack.c.l.b16 %v1878
      %v1911 = vunpack.c.l.b16 %v1879
      %v1912 = vunpack.c.l.b16 %v1880
      %v1913 = vunpack.c.l.b16 %v1881
      %v1914 = vunpack.c.l.b16 %v1882
      %v1915 = vunpack.c.l.b16 %v1883
      %v1916 = vunpack.c.l.b16 %v1884
      %v1917 = vunpack.c.l.b16 %v1885
      %v1918 = vpack.c.b16 %v1903, %v1902
      %v1919 = vpack.c.b16 %v1905, %v1904
      %v1920 = vpack.c.b16 %v1907, %v1906
      %v1921 = vpack.c.b16 %v1909, %v1908
      %v1922 = vpack.c.b16 %v1911, %v1910
      %v1923 = vpack.c.b16 %v1913, %v1912
      %v1924 = vpack.c.b16 %v1915, %v1914
      %v1925 = vpack.c.b16 %v1917, %v1916
      %1934 = vmatpush.bf16.msra.mxu0 %v1925
      %1935 = vmatpush.bf16.msra.mxu0 %v1924
      %1936 = vmatpush.bf16.msra.mxu0 %v1923
      %1937 = vmatpush.bf16.msra.mxu0 %v1922
      %1938 = vmatpush.bf16.msra.mxu0 %v1921
      %1939 = vmatpush.bf16.msra.mxu0 %v1920
      %1940 = vmatpush.bf16.msra.mxu0 %v1919
      %1941 = vmatpush.bf16.msra.mxu0 %v1918
      %1942 = vmatmul.bf16.gmra.mxu0 %v1865
      %v1943 = vpop.f32.mrf.mxu0
      %v1944 = vadd.f32 0.0, %v1943
      %v1945 = vpop.f32.mrf.mxu0
      %v1946 = vadd.f32 0.0, %v1945
      %1947 = vmatmul.bf16.gmra.mxu0 %v1866
      %v1948 = vpop.f32.mrf.mxu0
      %v1949 = vadd.f32 0.0, %v1948
      %v1950 = vpop.f32.mrf.mxu0
      %v1951 = vadd.f32 0.0, %v1950
      %1952 = vmatmul.bf16.gmra.mxu0 %v1867
      %v1953 = vpop.f32.mrf.mxu0
      %v1954 = vadd.f32 0.0, %v1953
      %v1955 = vpop.f32.mrf.mxu0
      %v1956 = vadd.f32 0.0, %v1955
      %1957 = vmatmul.bf16.gmra.mxu0 %v1868
      %v1958 = vpop.f32.mrf.mxu0
      %v1959 = vadd.f32 0.0, %v1958
      %v1960 = vpop.f32.mrf.mxu0
      %v1961 = vadd.f32 0.0, %v1960
      %1962 = vdwg.mxu0
      %v1963 = vadd.f32 %v1787, %v1944
      %v1964 = vadd.f32 %v1788, %v1946
      %v1965 = vadd.f32 %v1789, %v1949
      %v1966 = vadd.f32 %v1790, %v1951
      %v1967 = vadd.f32 %v1791, %v1954
      %v1968 = vadd.f32 %v1792, %v1956
      %v1969 = vadd.f32 %v1793, %v1959
      %v1970 = vadd.f32 %v1794, %v1961
      %s1971 = scalar_lea.vmem %s5, 256
      %v1972 = vld [vmem:[%s1971] sm:$0xf]
      %v1973 = vld [vmem:[%s1971 + $0x4] sm:$0xf]
      %v1974 = vld [vmem:[%s1971 + $0x8] sm:$0xf]
      %v1975 = vld [vmem:[%s1971 + $0xc] sm:$0xf]
      %v1976 = vld [vmem:[%s1971 + $0x10] sm:$0xf]
      %v1977 = vld [vmem:[%s1971 + $0x14] sm:$0xf]
      %v1978 = vld [vmem:[%s1971 + $0x18] sm:$0xf]
      %v1979 = vld [vmem:[%s1971 + $0x1c] sm:$0xf]
      %v1988 = vunpack.c.l.b16 %v1972
      %v1989 = vunpack.c.l.b16 %v1973
      %v1990 = vunpack.c.l.b16 %v1974
      %v1991 = vunpack.c.l.b16 %v1975
      %v1992 = vunpack.c.l.b16 %v1976
      %v1993 = vunpack.c.l.b16 %v1977
      %v1994 = vunpack.c.l.b16 %v1978
      %v1995 = vunpack.c.l.b16 %v1979
      %v1996 = vpack.c.b16 %v1989, %v1988
      %v1997 = vpack.c.b16 %v1991, %v1990
      %v1998 = vpack.c.b16 %v1993, %v1992
      %v1999 = vpack.c.b16 %v1995, %v1994
      %v2001 = vsel %vm592, %v1996, 0
      %v2004 = vsel %vm592, %v1997, 0
      %v2007 = vsel %vm592, %v1998, 0
      %v2010 = vsel %vm592, %v1999, 0
      %2012 = vmatpush.bf16.msra.mxu0 0
      %2013 = vmatpush.bf16.msra.mxu0 0
      %2014 = vmatpush.bf16.msra.mxu0 0
      %2015 = vmatpush.bf16.msra.mxu0 0
      %2016 = vmatpush.bf16.msra.mxu0 %v551
      %2017 = vmatpush.bf16.msra.mxu0 %v550
      %2018 = vmatpush.bf16.msra.mxu0 %v549
      %2019 = vmatpush.bf16.msra.mxu0 %v548
      %2020 = vmatmul.bf16.gmra.mxu0 %v2001
      %v2021 = vpop.f32.mrf.mxu0
      %v2022 = vadd.f32 0.0, %v2021
      %v2023 = vpop.f32.mrf.mxu0
      %v2024 = vadd.f32 0.0, %v2023
      %2025 = vmatmul.bf16.gmra.mxu0 %v2004
      %v2026 = vpop.f32.mrf.mxu0
      %v2027 = vadd.f32 0.0, %v2026
      %v2028 = vpop.f32.mrf.mxu0
      %v2029 = vadd.f32 0.0, %v2028
      %2030 = vmatmul.bf16.gmra.mxu0 %v2007
      %v2031 = vpop.f32.mrf.mxu0
      %v2032 = vadd.f32 0.0, %v2031
      %v2033 = vpop.f32.mrf.mxu0
      %v2034 = vadd.f32 0.0, %v2033
      %2035 = vmatmul.bf16.gmra.mxu0 %v2010
      %v2036 = vpop.f32.mrf.mxu0
      %v2037 = vadd.f32 0.0, %v2036
      %v2038 = vpop.f32.mrf.mxu0
      %v2039 = vadd.f32 0.0, %v2038
      %2040 = vdwg.mxu0
      %v2041 = vpack.c.bf16 %v2024, %v2022
      %v2042 = vpack.c.bf16 %v2029, %v2027
      %v2043 = vpack.c.bf16 %v2034, %v2032
      %v2044 = vpack.c.bf16 %v2039, %v2037
      %s2045 = scalar_lea.vmem %s3, 512
      %v2046 = vld [vmem:[%s2045] sm:$0xf]
      %v2047 = vld [vmem:[%s2045 + $0x4] sm:$0xf]
      %v2048 = vld [vmem:[%s2045 + $0x8] sm:$0xf]
      %v2049 = vld [vmem:[%s2045 + $0xc] sm:$0xf]
      %v2050 = vld [vmem:[%s2045 + $0x10] sm:$0xf]
      %v2051 = vld [vmem:[%s2045 + $0x14] sm:$0xf]
      %v2052 = vld [vmem:[%s2045 + $0x18] sm:$0xf]
      %v2053 = vld [vmem:[%s2045 + $0x1c] sm:$0xf]
      %v2054 = vld [vmem:[%s2045 + $0x20] sm:$0xf]
      %v2055 = vld [vmem:[%s2045 + $0x24] sm:$0xf]
      %v2056 = vld [vmem:[%s2045 + $0x28] sm:$0xf]
      %v2057 = vld [vmem:[%s2045 + $0x2c] sm:$0xf]
      %v2058 = vld [vmem:[%s2045 + $0x30] sm:$0xf]
      %v2059 = vld [vmem:[%s2045 + $0x34] sm:$0xf]
      %v2060 = vld [vmem:[%s2045 + $0x38] sm:$0xf]
      %v2061 = vld [vmem:[%s2045 + $0x3c] sm:$0xf]
      %v2078 = vunpack.c.l.b16 %v2046
      %v2079 = vunpack.c.l.b16 %v2047
      %v2080 = vunpack.c.l.b16 %v2048
      %v2081 = vunpack.c.l.b16 %v2049
      %v2082 = vunpack.c.l.b16 %v2050
      %v2083 = vunpack.c.l.b16 %v2051
      %v2084 = vunpack.c.l.b16 %v2052
      %v2085 = vunpack.c.l.b16 %v2053
      %v2086 = vunpack.c.l.b16 %v2054
      %v2087 = vunpack.c.l.b16 %v2055
      %v2088 = vunpack.c.l.b16 %v2056
      %v2089 = vunpack.c.l.b16 %v2057
      %v2090 = vunpack.c.l.b16 %v2058
      %v2091 = vunpack.c.l.b16 %v2059
      %v2092 = vunpack.c.l.b16 %v2060
      %v2093 = vunpack.c.l.b16 %v2061
      %v2094 = vpack.c.b16 %v2079, %v2078
      %v2095 = vpack.c.b16 %v2081, %v2080
      %v2096 = vpack.c.b16 %v2083, %v2082
      %v2097 = vpack.c.b16 %v2085, %v2084
      %v2098 = vpack.c.b16 %v2087, %v2086
      %v2099 = vpack.c.b16 %v2089, %v2088
      %v2100 = vpack.c.b16 %v2091, %v2090
      %v2101 = vpack.c.b16 %v2093, %v2092
      %2110 = vmatpush.bf16.msra.mxu0 %v2101
      %2111 = vmatpush.bf16.msra.mxu0 %v2100
      %2112 = vmatpush.bf16.msra.mxu0 %v2099
      %2113 = vmatpush.bf16.msra.mxu0 %v2098
      %2114 = vmatpush.bf16.msra.mxu0 %v2097
      %2115 = vmatpush.bf16.msra.mxu0 %v2096
      %2116 = vmatpush.bf16.msra.mxu0 %v2095
      %2117 = vmatpush.bf16.msra.mxu0 %v2094
      %2118 = vmatmul.bf16.gmra.mxu0 %v2041
      %v2119 = vpop.f32.mrf.mxu0
      %v2120 = vadd.f32 0.0, %v2119
      %v2121 = vpop.f32.mrf.mxu0
      %v2122 = vadd.f32 0.0, %v2121
      %2123 = vmatmul.bf16.gmra.mxu0 %v2042
      %v2124 = vpop.f32.mrf.mxu0
      %v2125 = vadd.f32 0.0, %v2124
      %v2126 = vpop.f32.mrf.mxu0
      %v2127 = vadd.f32 0.0, %v2126
      %2128 = vmatmul.bf16.gmra.mxu0 %v2043
      %v2129 = vpop.f32.mrf.mxu0
      %v2130 = vadd.f32 0.0, %v2129
      %v2131 = vpop.f32.mrf.mxu0
      %v2132 = vadd.f32 0.0, %v2131
      %2133 = vmatmul.bf16.gmra.mxu0 %v2044
      %v2134 = vpop.f32.mrf.mxu0
      %v2135 = vadd.f32 0.0, %v2134
      %v2136 = vpop.f32.mrf.mxu0
      %v2137 = vadd.f32 0.0, %v2136
      %2138 = vdwg.mxu0
      %v2139 = vadd.f32 %v1963, %v2120
      %v2140 = vadd.f32 %v1964, %v2122
      %v2141 = vadd.f32 %v1965, %v2125
      %v2142 = vadd.f32 %v1966, %v2127
      %v2143 = vadd.f32 %v1967, %v2130
      %v2144 = vadd.f32 %v1968, %v2132
      %v2145 = vadd.f32 %v1969, %v2135
      %v2146 = vadd.f32 %v1970, %v2137
      %v2147 = vmax.f32 %v2139, 0.0
      %v2148 = vmax.f32 %v2140, 0.0
      %v2149 = vmax.f32 %v2141, 0.0
      %v2150 = vmax.f32 %v2142, 0.0
      %v2151 = vmax.f32 %v2143, 0.0
      %v2152 = vmax.f32 %v2144, 0.0
      %v2153 = vmax.f32 %v2145, 0.0
      %v2154 = vmax.f32 %v2146, 0.0
      %v2155 = vpack.c.bf16 %v2147, %v2147
      %v2156 = vpack.c.bf16 %v2148, %v2148
      %v2157 = vpack.c.bf16 %v2149, %v2149
      %v2158 = vpack.c.bf16 %v2150, %v2150
      %v2159 = vpack.c.bf16 %v2151, %v2151
      %v2160 = vpack.c.bf16 %v2152, %v2152
      %v2161 = vpack.c.bf16 %v2153, %v2153
      %v2162 = vpack.c.bf16 %v2154, %v2154
      %2163 = vst [vmem:[%s251] sm:$0xf] %v2155
      %2164 = vst [vmem:[%s251 + $0x4] sm:$0xf] %v2156
      %2165 = vst [vmem:[%s251 + $0x8] sm:$0xf] %v2157
      %2166 = vst [vmem:[%s251 + $0xc] sm:$0xf] %v2158
      %2167 = vst [vmem:[%s251 + $0x10] sm:$0xf] %v2159
      %2168 = vst [vmem:[%s251 + $0x14] sm:$0xf] %v2160
      %2169 = vst [vmem:[%s251 + $0x18] sm:$0xf] %v2161
      %2170 = vst [vmem:[%s251 + $0x1c] sm:$0xf] %v2162
      %p2171 = scmp.lt.s32.totalorder %s17, 1
      %s2172 = scalar_select %p2171, %s17, 1
      %s2173 = smul.addr %s2172, 8
      %s2174 = smul.addr %s2173, 4
      %s2175 = scalar_lea.vmem %s6, %s2174
      // Predicated region
      $region45: #{backbone_base_forward.6} parent=43 // pred_check
        %p2176 = pneg %p166
      $region46: #{backbone_base_forward.6} parent=43 // pred_check_branch
        %2178 = sbr.rel (%p2176) target = $region48
      $region47: #{backbone_base_forward.6} parent=43 // pred_region
        _
      $region48: #{backbone_base_forward.6} parent=43 // pred_fallthru
        _
    $region44: #{backbone_base_forward.6} parent=5 // pred_fallthru
      _
    %p2179 = scmp.le.s32.totalorder 2, %s12
    // Predicated region
    $region49: #{backbone_base_forward.6} parent=5 // pred_check
      %p2180 = pneg %p2179
    $region50: #{backbone_base_forward.6} parent=5 // pred_check_branch
      %2182 = sbr.rel (%p2180) target = $region52
    $region51: #{backbone_base_forward.6} parent=5 // pred_region
      %s2183 = ssub.s32 %s12, 2
      // Predicated region
      $region53: #{backbone_base_forward.6} parent=51 // pred_check
        %p2184 = pneg %p172
      $region54: #{backbone_base_forward.6} parent=51 // pred_check_branch
        %2186 = sbr.rel (%p2184) target = $region56
      $region55: #{backbone_base_forward.6} parent=51 // pred_region
        %p2187 = scmp.lt.s32.totalorder %s18, 1
        %s2188 = scalar_select %p2187, %s18, 1
        %s2189 = smul.addr %s2188, 8
        %s2190 = smul.addr %s2189, 4
        %s2191 = scalar_lea.vmem %s6, %s2190
      $region56: #{backbone_base_forward.6} parent=51 // pred_fallthru
        _
    $region52: #{backbone_base_forward.6} parent=5 // pred_fallthru
      _
  $region6: #{backbone_base_forward.6} parent=0 // loop_footer
    %s16 = sadd.s32 1, %s12
  $region7: #{backbone_base_forward.6} parent=0 // loop_footer_branch
    %11 = sbr.rel target = $region3
  $region8: #{backbone_base_forward.6} parent=0 // loop_exit
    _

// kernel: backbone_base_forward.7
$region0: #{backbone_base_forward.7}
  #allocation0 [shape = 'u32[]', space=smem, size = 0x4, offset = 0x4, fixed_abs, tag = 'smem constant byte address 0x4 - core index']
  #allocation1 [shape = 'u32[72,128]{1,0:T(1,128)}', space=vmem, size = 0x9000, scoped, tag = 'internal scratch']
  %s0 = inlined_call_operand.vmem [shape: bf16[2,16,144], index: 0, kind: input, shape index: {}]
  %s1 = inlined_call_operand.vmem [shape: bf16[144,256], index: 1, kind: input, shape index: {}]
  %s2 = inlined_call_operand.vmem [shape: f32[1,256], index: 2, kind: input, shape index: {}]
  %s3 = inlined_call_operand.vmem [shape: bf16[9,128,128], index: 3, kind: input, shape index: {}]
  %s4 = inlined_call_operand.vmem [shape: f32[1,128], index: 4, kind: input, shape index: {}]
  %s5 = inlined_call_operand.vmem [shape: bf16[9,16,16], index: 5, kind: input, shape index: {}]
  %s6 = inlined_call_operand.vmem [shape: bf16[2,16,128], index: 6, kind: output, shape index: {}]
  %s7 = sld [smem:[#allocation0]]
  $region57: #{backbone_base_forward.7} parent=0
    _
  %s9 = ssub.s32 1, %s7
  %s10 = scalar_select 0, %s9, %s7
  loop: start=0, step=1, limit=4
  $region2: #{backbone_base_forward.7} parent=0 // loop_pre_header
    _
  $region3: #{backbone_base_forward.7} parent=0 // loop_header
    %s12 = sphi 0, %s16
    %p13 = scmp.ge.s32.totalorder %s12, 4
    %s22 = sphi 0, %s24
    %s25 = sphi 0, %s22
    %s26 = sphi 0, %s25
    %s42 = sphi 0, %s26
    %s46 = sphi 0, %s46
    %s48 = sphi 0, %s46
    %s49 = sphi 0, %s48
    %s63 = sphi 0, %s49
    %s67 = sphi 0, %s67
    %s69 = sphi 0, %s67
    %s70 = sphi 0, %s69
    %s84 = sphi 0, %s70
    %s88 = sphi 0, %s88
    %s90 = sphi 0, %s88
    %s91 = sphi 0, %s90
    %s105 = sphi 0, %s91
    %s109 = sphi 0, %s109
    %s111 = sphi 0, %s109
    %s112 = sphi 0, %s111
    %s126 = sphi 0, %s112
    %s130 = sphi 0, %s130
    %s132 = sphi 0, %s130
    %s133 = sphi 0, %s132
    %s147 = sphi 0, %s133
    %s153 = sphi 0, %s155
    %s156 = sphi 0, %s153
    %s157 = sphi 0, %s156
    %s173 = sphi 0, %s157
  $region4: #{backbone_base_forward.7} parent=0 // loop_header_branch
    %15 = sbr.rel (%p13) target = $region8
  $region5: #{backbone_base_forward.7} parent=0 // loop_body
    %s17 = ssub.s32 %s12, 1
    %s18 = ssub.s32 %s12, 2
    %s19 = sadd.s32 %s12, 1
    %s20 = ssub.s32 %s12, %s19
    %p21 = scmp.eq.s32.totalorder %s20, 0
    %s23 = sadd.s32 %s22, 1
    %s24 = scalar_select %p21, %s22, %s23
    %p27 = pneg %p21
    %p28 = scmp.eq.s32.totalorder %s12, 1
    %p29 = por %p27, %p28
    %p30 = scmp.ne.s32.totalorder %s22, %s25
    %p31 = scmp.eq.s32.totalorder %s12, 0
    %p32 = por %p30, %p31
    %p33 = scmp.ne.s32.totalorder %s22, %s25
    %p34 = scmp.eq.s32.totalorder %s17, 1
    %p35 = por %p33, %p34
    %p36 = scmp.ne.s32.totalorder %s25, %s26
    %p37 = scmp.eq.s32.totalorder %s17, 0
    %p38 = por %p36, %p37
    %p39 = scmp.ne.s32.totalorder %s25, %s26
    %p40 = scmp.eq.s32.totalorder %s18, 1
    %p41 = por %p39, %p40
    %p43 = scmp.ne.s32.totalorder %s26, %s42
    %p44 = scmp.eq.s32.totalorder %s18, 0
    %p45 = por %p43, %p44
    %s47 = sadd.s32 %s46, 1
    %p50 = scmp.eq.s32.totalorder %s12, 1
    %p51 = scmp.ne.s32.totalorder %s46, %s48
    %p52 = scmp.eq.s32.totalorder %s12, 0
    %p53 = por %p51, %p52
    %p54 = scmp.ne.s32.totalorder %s46, %s48
    %p55 = scmp.eq.s32.totalorder %s17, 1
    %p56 = por %p54, %p55
    %p57 = scmp.ne.s32.totalorder %s48, %s49
    %p58 = scmp.eq.s32.totalorder %s17, 0
    %p59 = por %p57, %p58
    %p60 = scmp.ne.s32.totalorder %s48, %s49
    %p61 = scmp.eq.s32.totalorder %s18, 1
    %p62 = por %p60, %p61
    %p64 = scmp.ne.s32.totalorder %s49, %s63
    %p65 = scmp.eq.s32.totalorder %s18, 0
    %p66 = por %p64, %p65
    %s68 = sadd.s32 %s67, 1
    %p71 = scmp.eq.s32.totalorder %s12, 1
    %p72 = scmp.ne.s32.totalorder %s67, %s69
    %p73 = scmp.eq.s32.totalorder %s12, 0
    %p74 = por %p72, %p73
    %p75 = scmp.ne.s32.totalorder %s67, %s69
    %p76 = scmp.eq.s32.totalorder %s17, 1
    %p77 = por %p75, %p76
    %p78 = scmp.ne.s32.totalorder %s69, %s70
    %p79 = scmp.eq.s32.totalorder %s17, 0
    %p80 = por %p78, %p79
    %p81 = scmp.ne.s32.totalorder %s69, %s70
    %p82 = scmp.eq.s32.totalorder %s18, 1
    %p83 = por %p81, %p82
    %p85 = scmp.ne.s32.totalorder %s70, %s84
    %p86 = scmp.eq.s32.totalorder %s18, 0
    %p87 = por %p85, %p86
    %s89 = sadd.s32 %s88, 1
    %p92 = scmp.eq.s32.totalorder %s12, 1
    %p93 = scmp.ne.s32.totalorder %s88, %s90
    %p94 = scmp.eq.s32.totalorder %s12, 0
    %p95 = por %p93, %p94
    %p96 = scmp.ne.s32.totalorder %s88, %s90
    %p97 = scmp.eq.s32.totalorder %s17, 1
    %p98 = por %p96, %p97
    %p99 = scmp.ne.s32.totalorder %s90, %s91
    %p100 = scmp.eq.s32.totalorder %s17, 0
    %p101 = por %p99, %p100
    %p102 = scmp.ne.s32.totalorder %s90, %s91
    %p103 = scmp.eq.s32.totalorder %s18, 1
    %p104 = por %p102, %p103
    %p106 = scmp.ne.s32.totalorder %s91, %s105
    %p107 = scmp.eq.s32.totalorder %s18, 0
    %p108 = por %p106, %p107
    %s110 = sadd.s32 %s109, 1
    %p113 = scmp.eq.s32.totalorder %s12, 1
    %p114 = scmp.ne.s32.totalorder %s109, %s111
    %p115 = scmp.eq.s32.totalorder %s12, 0
    %p116 = por %p114, %p115
    %p117 = scmp.ne.s32.totalorder %s109, %s111
    %p118 = scmp.eq.s32.totalorder %s17, 1
    %p119 = por %p117, %p118
    %p120 = scmp.ne.s32.totalorder %s111, %s112
    %p121 = scmp.eq.s32.totalorder %s17, 0
    %p122 = por %p120, %p121
    %p123 = scmp.ne.s32.totalorder %s111, %s112
    %p124 = scmp.eq.s32.totalorder %s18, 1
    %p125 = por %p123, %p124
    %p127 = scmp.ne.s32.totalorder %s112, %s126
    %p128 = scmp.eq.s32.totalorder %s18, 0
    %p129 = por %p127, %p128
    %s131 = sadd.s32 %s130, 1
    %p134 = scmp.eq.s32.totalorder %s12, 1
    %p135 = scmp.ne.s32.totalorder %s130, %s132
    %p136 = scmp.eq.s32.totalorder %s12, 0
    %p137 = por %p135, %p136
    %p138 = scmp.ne.s32.totalorder %s130, %s132
    %p139 = scmp.eq.s32.totalorder %s17, 1
    %p140 = por %p138, %p139
    %p141 = scmp.ne.s32.totalorder %s132, %s133
    %p142 = scmp.eq.s32.totalorder %s17, 0
    %p143 = por %p141, %p142
    %p144 = scmp.ne.s32.totalorder %s132, %s133
    %p145 = scmp.eq.s32.totalorder %s18, 1
    %p146 = por %p144, %p145
    %p148 = scmp.ne.s32.totalorder %s133, %s147
    %p149 = scmp.eq.s32.totalorder %s18, 0
    %p150 = por %p148, %p149
    %s151 = ssub.s32 %s12, %s19
    %p152 = scmp.eq.s32.totalorder %s151, 0
    %s154 = sadd.s32 %s153, 1
    %s155 = scalar_select %p152, %s153, %s154
    %p158 = pneg %p152
    %p159 = scmp.eq.s32.totalorder %s12, 1
    %p160 = por %p158, %p159
    %p161 = scmp.ne.s32.totalorder %s153, %s156
    %p162 = scmp.eq.s32.totalorder %s12, 0
    %p163 = por %p161, %p162
    %p164 = scmp.ne.s32.totalorder %s153, %s156
    %p165 = scmp.eq.s32.totalorder %s17, 1
    %p166 = por %p164, %p165
    %p167 = scmp.ne.s32.totalorder %s156, %s157
    %p168 = scmp.eq.s32.totalorder %s17, 0
    %p169 = por %p167, %p168
    %p170 = scmp.ne.s32.totalorder %s156, %s157
    %p171 = scmp.eq.s32.totalorder %s18, 1
    %p172 = por %p170, %p171
    %p174 = scmp.ne.s32.totalorder %s157, %s173
    %p175 = scmp.eq.s32.totalorder %s18, 0
    %p176 = por %p174, %p175
    %p177 = scmp.le.s32.totalorder 1, %s12
    %p178 = scmp.lt.s32.totalorder %s12, 3
    %p179 = pnand %p177, %p178
    %p180 = pneg %p179
    // Predicated region
    $region9: #{backbone_base_forward.7} parent=5 // pred_check
      _
    $region10: #{backbone_base_forward.7} parent=5 // pred_check_branch
      %182 = sbr.rel (%p179) target = $region12
    $region11: #{backbone_base_forward.7} parent=5 // pred_region
      %s183 = ssub.s32 %s12, 1
      // Predicated region
      $region13: #{backbone_base_forward.7} parent=11 // pred_check
        %p184 = pneg %p59
      $region14: #{backbone_base_forward.7} parent=11 // pred_check_branch
        %186 = sbr.rel (%p184) target = $region16
      $region15: #{backbone_base_forward.7} parent=11 // pred_region
        _
      $region16: #{backbone_base_forward.7} parent=11 // pred_fallthru
        _
      // Predicated region
      $region17: #{backbone_base_forward.7} parent=11 // pred_check
        %p187 = pneg %p80
      $region18: #{backbone_base_forward.7} parent=11 // pred_check_branch
        %189 = sbr.rel (%p187) target = $region20
      $region19: #{backbone_base_forward.7} parent=11 // pred_region
        _
      $region20: #{backbone_base_forward.7} parent=11 // pred_fallthru
        _
      // Predicated region
      $region21: #{backbone_base_forward.7} parent=11 // pred_check
        %p190 = pneg %p101
      $region22: #{backbone_base_forward.7} parent=11 // pred_check_branch
        %192 = sbr.rel (%p190) target = $region24
      $region23: #{backbone_base_forward.7} parent=11 // pred_region
        _
      $region24: #{backbone_base_forward.7} parent=11 // pred_fallthru
        _
      // Predicated region
      $region25: #{backbone_base_forward.7} parent=11 // pred_check
        %p193 = pneg %p122
      $region26: #{backbone_base_forward.7} parent=11 // pred_check_branch
        %195 = sbr.rel (%p193) target = $region28
      $region27: #{backbone_base_forward.7} parent=11 // pred_region
        _
      $region28: #{backbone_base_forward.7} parent=11 // pred_fallthru
        _
      // Predicated region
      $region29: #{backbone_base_forward.7} parent=11 // pred_check
        %p196 = pneg %p143
      $region30: #{backbone_base_forward.7} parent=11 // pred_check_branch
        %198 = sbr.rel (%p196) target = $region32
      $region31: #{backbone_base_forward.7} parent=11 // pred_region
        _
      $region32: #{backbone_base_forward.7} parent=11 // pred_fallthru
        _
    $region12: #{backbone_base_forward.7} parent=5 // pred_fallthru
      _
    %p199 = scmp.lt.s32.totalorder %s12, 2
    // Predicated region
    $region33: #{backbone_base_forward.7} parent=5 // pred_check
      %p200 = pneg %p199
    $region34: #{backbone_base_forward.7} parent=5 // pred_check_branch
      %202 = sbr.rel (%p200) target = $region36
    $region35: #{backbone_base_forward.7} parent=5 // pred_region
      // Predicated region
      $region37: #{backbone_base_forward.7} parent=35 // pred_check
        %p203 = pneg %p32
      $region38: #{backbone_base_forward.7} parent=35 // pred_check_branch
        %205 = sbr.rel (%p203) target = $region40
      $region39: #{backbone_base_forward.7} parent=35 // pred_region
        %p206 = scmp.lt.s32.totalorder %s12, 1
        %s207 = scalar_select %p206, %s12, 1
        %s208 = smul.addr %s207, 4
        %s209 = smul.addr %s208, 4
        %s210 = scalar_lea.vmem %s0, %s209
      $region40: #{backbone_base_forward.7} parent=35 // pred_fallthru
        _
    $region36: #{backbone_base_forward.7} parent=5 // pred_fallthru
      _
    %p211 = scmp.le.s32.totalorder 1, %s12
    %p212 = scmp.lt.s32.totalorder %s12, 3
    %p213 = pnand %p211, %p212
    %p214 = pneg %p213
    // Predicated region
    $region41: #{backbone_base_forward.7} parent=5 // pred_check
      _
    $region42: #{backbone_base_forward.7} parent=5 // pred_check_branch
      %216 = sbr.rel (%p213) target = $region44
    $region43: #{backbone_base_forward.7} parent=5 // pred_region
      %s217 = ssub.s32 %s12, 1
      %p218 = scmp.lt.s32.totalorder %s17, 1
      %s219 = scalar_select %p218, %s17, 1
      %s220 = smul.addr %s219, 4
      %s221 = smul.addr %s220, 4
      %s222 = scalar_lea.vmem %s0, %s221
      %p223 = pneg %p38
      %p224 = pneg %p35
      %p225 = pneg %p59
      %p226 = pneg %p56
      %p227 = pneg %p80
      %p228 = pneg %p77
      %p229 = pneg %p101
      %p230 = pneg %p98
      %p231 = pneg %p122
      %p232 = pneg %p119
      %p233 = pneg %p143
      %p234 = pneg %p140
      %p235 = pneg %p169
      %p236 = pneg %p166
      %p237 = scmp.lt.s32.totalorder %s17, 1
      %s238 = scalar_select %p237, %s17, 1
      %s239 = smul.addr %s238, 2
      %s240 = smul.addr %s239, 4
      %s241 = scalar_lea.vmem %s6, %s240
      %p242 = scmp.lt.s32.totalorder %s17, 1
      %s243 = scalar_select %p242, %s17, 1
      %s244 = smul.addr %s243, 4
      %s245 = smul.addr %s244, 4
      %s246 = scalar_lea.vmem %s0, %s245
      %p247 = scmp.lt.s32.totalorder %s17, 1
      %s248 = scalar_select %p247, %s17, 1
      %s249 = smul.addr %s248, 2
      %s250 = smul.addr %s249, 4
      %s251 = scalar_lea.vmem %s6, %s250
      %v253 = vld [vmem:[%s246] sm:$0xff]
      %v254 = vld [vmem:[%s246 + $0x8] sm:$0xff]
      %v255 = vld [vmem:[%s1] sm:$0xff]
      %v256 = vld [vmem:[%s1 + $0x8] sm:$0xff]
      %v257 = vld [vmem:[%s1 + $0x10] sm:$0xff]
      %v258 = vld [vmem:[%s1 + $0x18] sm:$0xff]
      %v259 = vld [vmem:[%s1 + $0x20] sm:$0xff]
      %v260 = vld [vmem:[%s1 + $0x28] sm:$0xff]
      %v261 = vld [vmem:[%s1 + $0x30] sm:$0xff]
      %v262 = vld [vmem:[%s1 + $0x38] sm:$0xff]
      %v263 = vld [vmem:[%s1 + $0x40] sm:$0xff]
      %v264 = vld [vmem:[%s1 + $0x48] sm:$0xff]
      %v265 = vld [vmem:[%s1 + $0x50] sm:$0xff]
      %v266 = vld [vmem:[%s1 + $0x58] sm:$0xff]
      %v267 = vld [vmem:[%s1 + $0x60] sm:$0xff]
      %v268 = vld [vmem:[%s1 + $0x68] sm:$0xff]
      %v269 = vld [vmem:[%s1 + $0x70] sm:$0xff]
      %v270 = vld [vmem:[%s1 + $0x78] sm:$0xff]
      %v271 = vld [vmem:[%s1 + $0x80] sm:$0xff]
      %v272 = vld [vmem:[%s1 + $0x88] sm:$0xff]
      %v273 = vld [vmem:[%s2] sm:$0x3]
      %v275 = vperm.slane %v273, 0
      %v276 = vperm.slane %v273, 1
      %v281 = vunpack.c.l.b16 %v253
      %v282 = vunpack.c.h.b16 %v253
      %v283 = vunpack.c.l.b16 %v254
      %v284 = vunpack.c.h.b16 %v254
      %v285 = vpack.c.b16 %v283, %v281
      %v286 = vpack.c.b16 %v284, %v282
      %v306 = vunpack.c.l.b16 %v255
      %v307 = vunpack.c.h.b16 %v255
      %v308 = vunpack.c.l.b16 %v256
      %v309 = vunpack.c.h.b16 %v256
      %v310 = vunpack.c.l.b16 %v257
      %v311 = vunpack.c.h.b16 %v257
      %v312 = vunpack.c.l.b16 %v258
      %v313 = vunpack.c.h.b16 %v258
      %v314 = vunpack.c.l.b16 %v259
      %v315 = vunpack.c.h.b16 %v259
      %v316 = vunpack.c.l.b16 %v260
      %v317 = vunpack.c.h.b16 %v260
      %v318 = vunpack.c.l.b16 %v261
      %v319 = vunpack.c.h.b16 %v261
      %v320 = vunpack.c.l.b16 %v262
      %v321 = vunpack.c.h.b16 %v262
      %v322 = vunpack.c.l.b16 %v263
      %v323 = vunpack.c.h.b16 %v263
      %v324 = vunpack.c.l.b16 %v264
      %v325 = vunpack.c.h.b16 %v264
      %v326 = vunpack.c.l.b16 %v265
      %v327 = vunpack.c.h.b16 %v265
      %v328 = vunpack.c.l.b16 %v266
      %v329 = vunpack.c.h.b16 %v266
      %v330 = vunpack.c.l.b16 %v267
      %v331 = vunpack.c.h.b16 %v267
      %v332 = vunpack.c.l.b16 %v268
      %v333 = vunpack.c.h.b16 %v268
      %v334 = vunpack.c.l.b16 %v269
      %v335 = vunpack.c.h.b16 %v269
      %v336 = vunpack.c.l.b16 %v270
      %v337 = vunpack.c.h.b16 %v270
      %v338 = vunpack.c.l.b16 %v271
      %v339 = vunpack.c.h.b16 %v271
      %v340 = vunpack.c.l.b16 %v272
      %v341 = vunpack.c.h.b16 %v272
      %v342 = vpack.c.b16 %v308, %v306
      %v343 = vpack.c.b16 %v309, %v307
      %v344 = vpack.c.b16 %v312, %v310
      %v345 = vpack.c.b16 %v313, %v311
      %v346 = vpack.c.b16 %v316, %v314
      %v347 = vpack.c.b16 %v317, %v315
      %v348 = vpack.c.b16 %v320, %v318
      %v349 = vpack.c.b16 %v321, %v319
      %v350 = vpack.c.b16 %v324, %v322
      %v351 = vpack.c.b16 %v325, %v323
      %v352 = vpack.c.b16 %v328, %v326
      %v353 = vpack.c.b16 %v329, %v327
      %v354 = vpack.c.b16 %v332, %v330
      %v355 = vpack.c.b16 %v333, %v331
      %v356 = vpack.c.b16 %v336, %v334
      %v357 = vpack.c.b16 %v337, %v335
      %v358 = vpack.c.b16 %v340, %v338
      %v359 = vpack.c.b16 %v341, %v339
      %vm378 = vcmask 130048
      %v380 = vsel %vm378, %v286, 0
      %382 = vmatpush.bf16.msra.mxu0 %v356
      %383 = vmatpush.bf16.msra.mxu0 %v354
      %384 = vmatpush.bf16.msra.mxu0 %v352
      %385 = vmatpush.bf16.msra.mxu0 %v350
      %386 = vmatpush.bf16.msra.mxu0 %v348
      %387 = vmatpush.bf16.msra.mxu0 %v346
      %388 = vmatpush.bf16.msra.mxu0 %v344
      %389 = vmatpush.bf16.msra.mxu0 %v342
      %390 = vmatmul.bf16.gmra.mxu0 %v285
      %v391 = vpop.f32.mrf.mxu0
      %v392 = vadd.f32 %v275, %v391
      %v393 = vpop.f32.mrf.mxu0
      %v394 = vadd.f32 %v275, %v393
      %395 = vdwg.mxu0
      %396 = vmatpush.bf16.msra.mxu0 0
      %397 = vmatpush.bf16.msra.mxu0 0
      %398 = vmatpush.bf16.msra.mxu0 0
      %399 = vmatpush.bf16.msra.mxu0 0
      %400 = vmatpush.bf16.msra.mxu0 0
      %401 = vmatpush.bf16.msra.mxu0 0
      %402 = vmatpush.bf16.msra.mxu0 0
      %403 = vmatpush.bf16.msra.mxu0 %v358
      %404 = vmatmul.bf16.gmra.mxu0 %v380
      %v405 = vpop.f32.mrf.mxu0
      %v406 = vadd.f32 %v392, %v405
      %v407 = vpop.f32.mrf.mxu0
      %v408 = vadd.f32 %v394, %v407
      %409 = vdwg.mxu0
      %410 = vmatpush.bf16.msra.mxu0 %v357
      %411 = vmatpush.bf16.msra.mxu0 %v355
      %412 = vmatpush.bf16.msra.mxu0 %v353
      %413 = vmatpush.bf16.msra.mxu0 %v351
      %414 = vmatpush.bf16.msra.mxu0 %v349
      %415 = vmatpush.bf16.msra.mxu0 %v347
      %416 = vmatpush.bf16.msra.mxu0 %v345
      %417 = vmatpush.bf16.msra.mxu0 %v343
      %418 = vmatmul.bf16.gmra.mxu0 %v285
      %v419 = vpop.f32.mrf.mxu0
      %v420 = vadd.f32 %v276, %v419
      %v421 = vpop.f32.mrf.mxu0
      %v422 = vadd.f32 %v276, %v421
      %423 = vdwg.mxu0
      %424 = vmatpush.bf16.msra.mxu0 0
      %425 = vmatpush.bf16.msra.mxu0 0
      %426 = vmatpush.bf16.msra.mxu0 0
      %427 = vmatpush.bf16.msra.mxu0 0
      %428 = vmatpush.bf16.msra.mxu0 0
      %429 = vmatpush.bf16.msra.mxu0 0
      %430 = vmatpush.bf16.msra.mxu0 0
      %431 = vmatpush.bf16.msra.mxu0 %v359
      %432 = vmatmul.bf16.gmra.mxu0 %v380
      %v433 = vpop.f32.mrf.mxu0
      %v434 = vadd.f32 %v420, %v433
      %v435 = vpop.f32.mrf.mxu0
      %v436 = vadd.f32 %v422, %v435
      %437 = vdwg.mxu0
      %v438 = vmax.f32 %v406, 0.0
      %v439 = vmax.f32 %v408, 0.0
      %v440 = vpack.c.bf16 %v439, %v438
      %v441 = vld [vmem:[%s4] sm:$0x1]
      %v443 = vperm.slane %v441, 0
      %v445 = vadd.f32 %v434, %v443
      %v446 = vadd.f32 %v436, %v443
      %v447 = vld [vmem:[%s5] sm:$0xf]
      %v448 = vld [vmem:[%s5 + $0x4] sm:$0xf]
      %v451 = vunpack.c.l.b16 %v447
      %v452 = vunpack.c.l.b16 %v448
      %v453 = vpack.c.b16 %v452, %v451
      %v455 = vsel %vm378, %v453, 0
      %457 = vmatpush.bf16.msra.mxu0 0
      %458 = vmatpush.bf16.msra.mxu0 0
      %459 = vmatpush.bf16.msra.mxu0 0
      %460 = vmatpush.bf16.msra.mxu0 0
      %461 = vmatpush.bf16.msra.mxu0 0
      %462 = vmatpush.bf16.msra.mxu0 0
      %463 = vmatpush.bf16.msra.mxu0 0
      %464 = vmatpush.bf16.msra.mxu0 %v440
      %465 = vmatmul.bf16.gmra.mxu0 %v455
      %v466 = vpop.f32.mrf.mxu0
      %v467 = vadd.f32 0.0, %v466
      %v468 = vpop.f32.mrf.mxu0
      %v469 = vadd.f32 0.0, %v468
      %470 = vdwg.mxu0
      %v471 = vpack.c.bf16 %v469, %v467
      %v472 = vld [vmem:[%s3] sm:$0xf]
      %v473 = vld [vmem:[%s3 + $0x4] sm:$0xf]
      %v474 = vld [vmem:[%s3 + $0x8] sm:$0xf]
      %v475 = vld [vmem:[%s3 + $0xc] sm:$0xf]
      %v476 = vld [vmem:[%s3 + $0x10] sm:$0xf]
      %v477 = vld [vmem:[%s3 + $0x14] sm:$0xf]
      %v478 = vld [vmem:[%s3 + $0x18] sm:$0xf]
      %v479 = vld [vmem:[%s3 + $0x1c] sm:$0xf]
      %v480 = vld [vmem:[%s3 + $0x20] sm:$0xf]
      %v481 = vld [vmem:[%s3 + $0x24] sm:$0xf]
      %v482 = vld [vmem:[%s3 + $0x28] sm:$0xf]
      %v483 = vld [vmem:[%s3 + $0x2c] sm:$0xf]
      %v484 = vld [vmem:[%s3 + $0x30] sm:$0xf]
      %v485 = vld [vmem:[%s3 + $0x34] sm:$0xf]
      %v486 = vld [vmem:[%s3 + $0x38] sm:$0xf]
      %v487 = vld [vmem:[%s3 + $0x3c] sm:$0xf]
      %v504 = vunpack.c.l.b16 %v472
      %v505 = vunpack.c.l.b16 %v473
      %v506 = vunpack.c.l.b16 %v474
      %v507 = vunpack.c.l.b16 %v475
      %v508 = vunpack.c.l.b16 %v476
      %v509 = vunpack.c.l.b16 %v477
      %v510 = vunpack.c.l.b16 %v478
      %v511 = vunpack.c.l.b16 %v479
      %v512 = vunpack.c.l.b16 %v480
      %v513 = vunpack.c.l.b16 %v481
      %v514 = vunpack.c.l.b16 %v482
      %v515 = vunpack.c.l.b16 %v483
      %v516 = vunpack.c.l.b16 %v484
      %v517 = vunpack.c.l.b16 %v485
      %v518 = vunpack.c.l.b16 %v486
      %v519 = vunpack.c.l.b16 %v487
      %v520 = vpack.c.b16 %v505, %v504
      %v521 = vpack.c.b16 %v507, %v506
      %v522 = vpack.c.b16 %v509, %v508
      %v523 = vpack.c.b16 %v511, %v510
      %v524 = vpack.c.b16 %v513, %v512
      %v525 = vpack.c.b16 %v515, %v514
      %v526 = vpack.c.b16 %v517, %v516
      %v527 = vpack.c.b16 %v519, %v518
      %536 = vmatpush.bf16.msra.mxu0 %v527
      %537 = vmatpush.bf16.msra.mxu0 %v526
      %538 = vmatpush.bf16.msra.mxu0 %v525
      %539 = vmatpush.bf16.msra.mxu0 %v524
      %540 = vmatpush.bf16.msra.mxu0 %v523
      %541 = vmatpush.bf16.msra.mxu0 %v522
      %542 = vmatpush.bf16.msra.mxu0 %v521
      %543 = vmatpush.bf16.msra.mxu0 %v520
      %544 = vmatmul.bf16.gmra.mxu0 %v471
      %v545 = vpop.f32.mrf.mxu0
      %v546 = vadd.f32 0.0, %v545
      %v547 = vpop.f32.mrf.mxu0
      %v548 = vadd.f32 0.0, %v547
      %549 = vdwg.mxu0
      %v550 = vadd.f32 %v445, %v546
      %v551 = vadd.f32 %v446, %v548
      %s552 = scalar_lea.vmem %s5, 8
      %v553 = vld [vmem:[%s552] sm:$0xf]
      %v554 = vld [vmem:[%s552 + $0x4] sm:$0xf]
      %v557 = vunpack.c.l.b16 %v553
      %v558 = vunpack.c.l.b16 %v554
      %v559 = vpack.c.b16 %v558, %v557
      %v561 = vsel %vm378, %v559, 0
      %563 = vmatpush.bf16.msra.mxu0 0
      %564 = vmatpush.bf16.msra.mxu0 0
      %565 = vmatpush.bf16.msra.mxu0 0
      %566 = vmatpush.bf16.msra.mxu0 0
      %567 = vmatpush.bf16.msra.mxu0 0
      %568 = vmatpush.bf16.msra.mxu0 0
      %569 = vmatpush.bf16.msra.mxu0 0
      %570 = vmatpush.bf16.msra.mxu0 %v440
      %571 = vmatmul.bf16.gmra.mxu0 %v561
      %v572 = vpop.f32.mrf.mxu0
      %v573 = vadd.f32 0.0, %v572
      %v574 = vpop.f32.mrf.mxu0
      %v575 = vadd.f32 0.0, %v574
      %576 = vdwg.mxu0
      %v577 = vpack.c.bf16 %v575, %v573
      %s578 = scalar_lea.vmem %s3, 64
      %v579 = vld [vmem:[%s578] sm:$0xf]
      %v580 = vld [vmem:[%s578 + $0x4] sm:$0xf]
      %v581 = vld [vmem:[%s578 + $0x8] sm:$0xf]
      %v582 = vld [vmem:[%s578 + $0xc] sm:$0xf]
      %v583 = vld [vmem:[%s578 + $0x10] sm:$0xf]
      %v584 = vld [vmem:[%s578 + $0x14] sm:$0xf]
      %v585 = vld [vmem:[%s578 + $0x18] sm:$0xf]
      %v586 = vld [vmem:[%s578 + $0x1c] sm:$0xf]
      %v587 = vld [vmem:[%s578 + $0x20] sm:$0xf]
      %v588 = vld [vmem:[%s578 + $0x24] sm:$0xf]
      %v589 = vld [vmem:[%s578 + $0x28] sm:$0xf]
      %v590 = vld [vmem:[%s578 + $0x2c] sm:$0xf]
      %v591 = vld [vmem:[%s578 + $0x30] sm:$0xf]
      %v592 = vld [vmem:[%s578 + $0x34] sm:$0xf]
      %v593 = vld [vmem:[%s578 + $0x38] sm:$0xf]
      %v594 = vld [vmem:[%s578 + $0x3c] sm:$0xf]
      %v611 = vunpack.c.l.b16 %v579
      %v612 = vunpack.c.l.b16 %v580
      %v613 = vunpack.c.l.b16 %v581
      %v614 = vunpack.c.l.b16 %v582
      %v615 = vunpack.c.l.b16 %v583
      %v616 = vunpack.c.l.b16 %v584
      %v617 = vunpack.c.l.b16 %v585
      %v618 = vunpack.c.l.b16 %v586
      %v619 = vunpack.c.l.b16 %v587
      %v620 = vunpack.c.l.b16 %v588
      %v621 = vunpack.c.l.b16 %v589
      %v622 = vunpack.c.l.b16 %v590
      %v623 = vunpack.c.l.b16 %v591
      %v624 = vunpack.c.l.b16 %v592
      %v625 = vunpack.c.l.b16 %v593
      %v626 = vunpack.c.l.b16 %v594
      %v627 = vpack.c.b16 %v612, %v611
      %v628 = vpack.c.b16 %v614, %v613
      %v629 = vpack.c.b16 %v616, %v615
      %v630 = vpack.c.b16 %v618, %v617
      %v631 = vpack.c.b16 %v620, %v619
      %v632 = vpack.c.b16 %v622, %v621
      %v633 = vpack.c.b16 %v624, %v623
      %v634 = vpack.c.b16 %v626, %v625
      %643 = vmatpush.bf16.msra.mxu0 %v634
      %644 = vmatpush.bf16.msra.mxu0 %v633
      %645 = vmatpush.bf16.msra.mxu0 %v632
      %646 = vmatpush.bf16.msra.mxu0 %v631
      %647 = vmatpush.bf16.msra.mxu0 %v630
      %648 = vmatpush.bf16.msra.mxu0 %v629
      %649 = vmatpush.bf16.msra.mxu0 %v628
      %650 = vmatpush.bf16.msra.mxu0 %v627
      %651 = vmatmul.bf16.gmra.mxu0 %v577
      %v652 = vpop.f32.mrf.mxu0
      %v653 = vadd.f32 0.0, %v652
      %v654 = vpop.f32.mrf.mxu0
      %v655 = vadd.f32 0.0, %v654
      %656 = vdwg.mxu0
      %v657 = vadd.f32 %v550, %v653
      %v658 = vadd.f32 %v551, %v655
      %s659 = scalar_lea.vmem %s5, 16
      %v660 = vld [vmem:[%s659] sm:$0xf]
      %v661 = vld [vmem:[%s659 + $0x4] sm:$0xf]
      %v664 = vunpack.c.l.b16 %v660
      %v665 = vunpack.c.l.b16 %v661
      %v666 = vpack.c.b16 %v665, %v664
      %v668 = vsel %vm378, %v666, 0
      %670 = vmatpush.bf16.msra.mxu0 0
      %671 = vmatpush.bf16.msra.mxu0 0
      %672 = vmatpush.bf16.msra.mxu0 0
      %673 = vmatpush.bf16.msra.mxu0 0
      %674 = vmatpush.bf16.msra.mxu0 0
      %675 = vmatpush.bf16.msra.mxu0 0
      %676 = vmatpush.bf16.msra.mxu0 0
      %677 = vmatpush.bf16.msra.mxu0 %v440
      %678 = vmatmul.bf16.gmra.mxu0 %v668
      %v679 = vpop.f32.mrf.mxu0
      %v680 = vadd.f32 0.0, %v679
      %v681 = vpop.f32.mrf.mxu0
      %v682 = vadd.f32 0.0, %v681
      %683 = vdwg.mxu0
      %v684 = vpack.c.bf16 %v682, %v680
      %s685 = scalar_lea.vmem %s3, 128
      %v686 = vld [vmem:[%s685] sm:$0xf]
      %v687 = vld [vmem:[%s685 + $0x4] sm:$0xf]
      %v688 = vld [vmem:[%s685 + $0x8] sm:$0xf]
      %v689 = vld [vmem:[%s685 + $0xc] sm:$0xf]
      %v690 = vld [vmem:[%s685 + $0x10] sm:$0xf]
      %v691 = vld [vmem:[%s685 + $0x14] sm:$0xf]
      %v692 = vld [vmem:[%s685 + $0x18] sm:$0xf]
      %v693 = vld [vmem:[%s685 + $0x1c] sm:$0xf]
      %v694 = vld [vmem:[%s685 + $0x20] sm:$0xf]
      %v695 = vld [vmem:[%s685 + $0x24] sm:$0xf]
      %v696 = vld [vmem:[%s685 + $0x28] sm:$0xf]
      %v697 = vld [vmem:[%s685 + $0x2c] sm:$0xf]
      %v698 = vld [vmem:[%s685 + $0x30] sm:$0xf]
      %v699 = vld [vmem:[%s685 + $0x34] sm:$0xf]
      %v700 = vld [vmem:[%s685 + $0x38] sm:$0xf]
      %v701 = vld [vmem:[%s685 + $0x3c] sm:$0xf]
      %v718 = vunpack.c.l.b16 %v686
      %v719 = vunpack.c.l.b16 %v687
      %v720 = vunpack.c.l.b16 %v688
      %v721 = vunpack.c.l.b16 %v689
      %v722 = vunpack.c.l.b16 %v690
      %v723 = vunpack.c.l.b16 %v691
      %v724 = vunpack.c.l.b16 %v692
      %v725 = vunpack.c.l.b16 %v693
      %v726 = vunpack.c.l.b16 %v694
      %v727 = vunpack.c.l.b16 %v695
      %v728 = vunpack.c.l.b16 %v696
      %v729 = vunpack.c.l.b16 %v697
      %v730 = vunpack.c.l.b16 %v698
      %v731 = vunpack.c.l.b16 %v699
      %v732 = vunpack.c.l.b16 %v700
      %v733 = vunpack.c.l.b16 %v701
      %v734 = vpack.c.b16 %v719, %v718
      %v735 = vpack.c.b16 %v721, %v720
      %v736 = vpack.c.b16 %v723, %v722
      %v737 = vpack.c.b16 %v725, %v724
      %v738 = vpack.c.b16 %v727, %v726
      %v739 = vpack.c.b16 %v729, %v728
      %v740 = vpack.c.b16 %v731, %v730
      %v741 = vpack.c.b16 %v733, %v732
      %750 = vmatpush.bf16.msra.mxu0 %v741
      %751 = vmatpush.bf16.msra.mxu0 %v740
      %752 = vmatpush.bf16.msra.mxu0 %v739
      %753 = vmatpush.bf16.msra.mxu0 %v738
      %754 = vmatpush.bf16.msra.mxu0 %v737
      %755 = vmatpush.bf16.msra.mxu0 %v736
      %756 = vmatpush.bf16.msra.mxu0 %v735
      %757 = vmatpush.bf16.msra.mxu0 %v734
      %758 = vmatmul.bf16.gmra.mxu0 %v684
      %v759 = vpop.f32.mrf.mxu0
      %v760 = vadd.f32 0.0, %v759
      %v761 = vpop.f32.mrf.mxu0
      %v762 = vadd.f32 0.0, %v761
      %763 = vdwg.mxu0
      %v764 = vadd.f32 %v657, %v760
      %v765 = vadd.f32 %v658, %v762
      %s766 = scalar_lea.vmem %s5, 24
      %v767 = vld [vmem:[%s766] sm:$0xf]
      %v768 = vld [vmem:[%s766 + $0x4] sm:$0xf]
      %v771 = vunpack.c.l.b16 %v767
      %v772 = vunpack.c.l.b16 %v768
      %v773 = vpack.c.b16 %v772, %v771
      %v775 = vsel %vm378, %v773, 0
      %777 = vmatpush.bf16.msra.mxu0 0
      %778 = vmatpush.bf16.msra.mxu0 0
      %779 = vmatpush.bf16.msra.mxu0 0
      %780 = vmatpush.bf16.msra.mxu0 0
      %781 = vmatpush.bf16.msra.mxu0 0
      %782 = vmatpush.bf16.msra.mxu0 0
      %783 = vmatpush.bf16.msra.mxu0 0
      %784 = vmatpush.bf16.msra.mxu0 %v440
      %785 = vmatmul.bf16.gmra.mxu0 %v775
      %v786 = vpop.f32.mrf.mxu0
      %v787 = vadd.f32 0.0, %v786
      %v788 = vpop.f32.mrf.mxu0
      %v789 = vadd.f32 0.0, %v788
      %790 = vdwg.mxu0
      %v791 = vpack.c.bf16 %v789, %v787
      %s792 = scalar_lea.vmem %s3, 192
      %v793 = vld [vmem:[%s792] sm:$0xf]
      %v794 = vld [vmem:[%s792 + $0x4] sm:$0xf]
      %v795 = vld [vmem:[%s792 + $0x8] sm:$0xf]
      %v796 = vld [vmem:[%s792 + $0xc] sm:$0xf]
      %v797 = vld [vmem:[%s792 + $0x10] sm:$0xf]
      %v798 = vld [vmem:[%s792 + $0x14] sm:$0xf]
      %v799 = vld [vmem:[%s792 + $0x18] sm:$0xf]
      %v800 = vld [vmem:[%s792 + $0x1c] sm:$0xf]
      %v801 = vld [vmem:[%s792 + $0x20] sm:$0xf]
      %v802 = vld [vmem:[%s792 + $0x24] sm:$0xf]
      %v803 = vld [vmem:[%s792 + $0x28] sm:$0xf]
      %v804 = vld [vmem:[%s792 + $0x2c] sm:$0xf]
      %v805 = vld [vmem:[%s792 + $0x30] sm:$0xf]
      %v806 = vld [vmem:[%s792 + $0x34] sm:$0xf]
      %v807 = vld [vmem:[%s792 + $0x38] sm:$0xf]
      %v808 = vld [vmem:[%s792 + $0x3c] sm:$0xf]
      %v825 = vunpack.c.l.b16 %v793
      %v826 = vunpack.c.l.b16 %v794
      %v827 = vunpack.c.l.b16 %v795
      %v828 = vunpack.c.l.b16 %v796
      %v829 = vunpack.c.l.b16 %v797
      %v830 = vunpack.c.l.b16 %v798
      %v831 = vunpack.c.l.b16 %v799
      %v832 = vunpack.c.l.b16 %v800
      %v833 = vunpack.c.l.b16 %v801
      %v834 = vunpack.c.l.b16 %v802
      %v835 = vunpack.c.l.b16 %v803
      %v836 = vunpack.c.l.b16 %v804
      %v837 = vunpack.c.l.b16 %v805
      %v838 = vunpack.c.l.b16 %v806
      %v839 = vunpack.c.l.b16 %v807
      %v840 = vunpack.c.l.b16 %v808
      %v841 = vpack.c.b16 %v826, %v825
      %v842 = vpack.c.b16 %v828, %v827
      %v843 = vpack.c.b16 %v830, %v829
      %v844 = vpack.c.b16 %v832, %v831
      %v845 = vpack.c.b16 %v834, %v833
      %v846 = vpack.c.b16 %v836, %v835
      %v847 = vpack.c.b16 %v838, %v837
      %v848 = vpack.c.b16 %v840, %v839
      %857 = vmatpush.bf16.msra.mxu0 %v848
      %858 = vmatpush.bf16.msra.mxu0 %v847
      %859 = vmatpush.bf16.msra.mxu0 %v846
      %860 = vmatpush.bf16.msra.mxu0 %v845
      %861 = vmatpush.bf16.msra.mxu0 %v844
      %862 = vmatpush.bf16.msra.mxu0 %v843
      %863 = vmatpush.bf16.msra.mxu0 %v842
      %864 = vmatpush.bf16.msra.mxu0 %v841
      %865 = vmatmul.bf16.gmra.mxu0 %v791
      %v866 = vpop.f32.mrf.mxu0
      %v867 = vadd.f32 0.0, %v866
      %v868 = vpop.f32.mrf.mxu0
      %v869 = vadd.f32 0.0, %v868
      %870 = vdwg.mxu0
      %v871 = vadd.f32 %v764, %v867
      %v872 = vadd.f32 %v765, %v869
      %s873 = scalar_lea.vmem %s5, 32
      %v874 = vld [vmem:[%s873] sm:$0xf]
      %v875 = vld [vmem:[%s873 + $0x4] sm:$0xf]
      %v878 = vunpack.c.l.b16 %v874
      %v879 = vunpack.c.l.b16 %v875
      %v880 = vpack.c.b16 %v879, %v878
      %v882 = vsel %vm378, %v880, 0
      %884 = vmatpush.bf16.msra.mxu0 0
      %885 = vmatpush.bf16.msra.mxu0 0
      %886 = vmatpush.bf16.msra.mxu0 0
      %887 = vmatpush.bf16.msra.mxu0 0
      %888 = vmatpush.bf16.msra.mxu0 0
      %889 = vmatpush.bf16.msra.mxu0 0
      %890 = vmatpush.bf16.msra.mxu0 0
      %891 = vmatpush.bf16.msra.mxu0 %v440
      %892 = vmatmul.bf16.gmra.mxu0 %v882
      %v893 = vpop.f32.mrf.mxu0
      %v894 = vadd.f32 0.0, %v893
      %v895 = vpop.f32.mrf.mxu0
      %v896 = vadd.f32 0.0, %v895
      %897 = vdwg.mxu0
      %v898 = vpack.c.bf16 %v896, %v894
      %s899 = scalar_lea.vmem %s3, 256
      %v900 = vld [vmem:[%s899] sm:$0xf]
      %v901 = vld [vmem:[%s899 + $0x4] sm:$0xf]
      %v902 = vld [vmem:[%s899 + $0x8] sm:$0xf]
      %v903 = vld [vmem:[%s899 + $0xc] sm:$0xf]
      %v904 = vld [vmem:[%s899 + $0x10] sm:$0xf]
      %v905 = vld [vmem:[%s899 + $0x14] sm:$0xf]
      %v906 = vld [vmem:[%s899 + $0x18] sm:$0xf]
      %v907 = vld [vmem:[%s899 + $0x1c] sm:$0xf]
      %v908 = vld [vmem:[%s899 + $0x20] sm:$0xf]
      %v909 = vld [vmem:[%s899 + $0x24] sm:$0xf]
      %v910 = vld [vmem:[%s899 + $0x28] sm:$0xf]
      %v911 = vld [vmem:[%s899 + $0x2c] sm:$0xf]
      %v912 = vld [vmem:[%s899 + $0x30] sm:$0xf]
      %v913 = vld [vmem:[%s899 + $0x34] sm:$0xf]
      %v914 = vld [vmem:[%s899 + $0x38] sm:$0xf]
      %v915 = vld [vmem:[%s899 + $0x3c] sm:$0xf]
      %v932 = vunpack.c.l.b16 %v900
      %v933 = vunpack.c.l.b16 %v901
      %v934 = vunpack.c.l.b16 %v902
      %v935 = vunpack.c.l.b16 %v903
      %v936 = vunpack.c.l.b16 %v904
      %v937 = vunpack.c.l.b16 %v905
      %v938 = vunpack.c.l.b16 %v906
      %v939 = vunpack.c.l.b16 %v907
      %v940 = vunpack.c.l.b16 %v908
      %v941 = vunpack.c.l.b16 %v909
      %v942 = vunpack.c.l.b16 %v910
      %v943 = vunpack.c.l.b16 %v911
      %v944 = vunpack.c.l.b16 %v912
      %v945 = vunpack.c.l.b16 %v913
      %v946 = vunpack.c.l.b16 %v914
      %v947 = vunpack.c.l.b16 %v915
      %v948 = vpack.c.b16 %v933, %v932
      %v949 = vpack.c.b16 %v935, %v934
      %v950 = vpack.c.b16 %v937, %v936
      %v951 = vpack.c.b16 %v939, %v938
      %v952 = vpack.c.b16 %v941, %v940
      %v953 = vpack.c.b16 %v943, %v942
      %v954 = vpack.c.b16 %v945, %v944
      %v955 = vpack.c.b16 %v947, %v946
      %964 = vmatpush.bf16.msra.mxu0 %v955
      %965 = vmatpush.bf16.msra.mxu0 %v954
      %966 = vmatpush.bf16.msra.mxu0 %v953
      %967 = vmatpush.bf16.msra.mxu0 %v952
      %968 = vmatpush.bf16.msra.mxu0 %v951
      %969 = vmatpush.bf16.msra.mxu0 %v950
      %970 = vmatpush.bf16.msra.mxu0 %v949
      %971 = vmatpush.bf16.msra.mxu0 %v948
      %972 = vmatmul.bf16.gmra.mxu0 %v898
      %v973 = vpop.f32.mrf.mxu0
      %v974 = vadd.f32 0.0, %v973
      %v975 = vpop.f32.mrf.mxu0
      %v976 = vadd.f32 0.0, %v975
      %977 = vdwg.mxu0
      %v978 = vadd.f32 %v871, %v974
      %v979 = vadd.f32 %v872, %v976
      %s980 = scalar_lea.vmem %s5, 40
      %v981 = vld [vmem:[%s980] sm:$0xf]
      %v982 = vld [vmem:[%s980 + $0x4] sm:$0xf]
      %v985 = vunpack.c.l.b16 %v981
      %v986 = vunpack.c.l.b16 %v982
      %v987 = vpack.c.b16 %v986, %v985
      %v989 = vsel %vm378, %v987, 0
      %991 = vmatpush.bf16.msra.mxu0 0
      %992 = vmatpush.bf16.msra.mxu0 0
      %993 = vmatpush.bf16.msra.mxu0 0
      %994 = vmatpush.bf16.msra.mxu0 0
      %995 = vmatpush.bf16.msra.mxu0 0
      %996 = vmatpush.bf16.msra.mxu0 0
      %997 = vmatpush.bf16.msra.mxu0 0
      %998 = vmatpush.bf16.msra.mxu0 %v440
      %999 = vmatmul.bf16.gmra.mxu0 %v989
      %v1000 = vpop.f32.mrf.mxu0
      %v1001 = vadd.f32 0.0, %v1000
      %v1002 = vpop.f32.mrf.mxu0
      %v1003 = vadd.f32 0.0, %v1002
      %1004 = vdwg.mxu0
      %v1005 = vpack.c.bf16 %v1003, %v1001
      %s1006 = scalar_lea.vmem %s3, 320
      %v1007 = vld [vmem:[%s1006] sm:$0xf]
      %v1008 = vld [vmem:[%s1006 + $0x4] sm:$0xf]
      %v1009 = vld [vmem:[%s1006 + $0x8] sm:$0xf]
      %v1010 = vld [vmem:[%s1006 + $0xc] sm:$0xf]
      %v1011 = vld [vmem:[%s1006 + $0x10] sm:$0xf]
      %v1012 = vld [vmem:[%s1006 + $0x14] sm:$0xf]
      %v1013 = vld [vmem:[%s1006 + $0x18] sm:$0xf]
      %v1014 = vld [vmem:[%s1006 + $0x1c] sm:$0xf]
      %v1015 = vld [vmem:[%s1006 + $0x20] sm:$0xf]
      %v1016 = vld [vmem:[%s1006 + $0x24] sm:$0xf]
      %v1017 = vld [vmem:[%s1006 + $0x28] sm:$0xf]
      %v1018 = vld [vmem:[%s1006 + $0x2c] sm:$0xf]
      %v1019 = vld [vmem:[%s1006 + $0x30] sm:$0xf]
      %v1020 = vld [vmem:[%s1006 + $0x34] sm:$0xf]
      %v1021 = vld [vmem:[%s1006 + $0x38] sm:$0xf]
      %v1022 = vld [vmem:[%s1006 + $0x3c] sm:$0xf]
      %v1039 = vunpack.c.l.b16 %v1007
      %v1040 = vunpack.c.l.b16 %v1008
      %v1041 = vunpack.c.l.b16 %v1009
      %v1042 = vunpack.c.l.b16 %v1010
      %v1043 = vunpack.c.l.b16 %v1011
      %v1044 = vunpack.c.l.b16 %v1012
      %v1045 = vunpack.c.l.b16 %v1013
      %v1046 = vunpack.c.l.b16 %v1014
      %v1047 = vunpack.c.l.b16 %v1015
      %v1048 = vunpack.c.l.b16 %v1016
      %v1049 = vunpack.c.l.b16 %v1017
      %v1050 = vunpack.c.l.b16 %v1018
      %v1051 = vunpack.c.l.b16 %v1019
      %v1052 = vunpack.c.l.b16 %v1020
      %v1053 = vunpack.c.l.b16 %v1021
      %v1054 = vunpack.c.l.b16 %v1022
      %v1055 = vpack.c.b16 %v1040, %v1039
      %v1056 = vpack.c.b16 %v1042, %v1041
      %v1057 = vpack.c.b16 %v1044, %v1043
      %v1058 = vpack.c.b16 %v1046, %v1045
      %v1059 = vpack.c.b16 %v1048, %v1047
      %v1060 = vpack.c.b16 %v1050, %v1049
      %v1061 = vpack.c.b16 %v1052, %v1051
      %v1062 = vpack.c.b16 %v1054, %v1053
      %1071 = vmatpush.bf16.msra.mxu0 %v1062
      %1072 = vmatpush.bf16.msra.mxu0 %v1061
      %1073 = vmatpush.bf16.msra.mxu0 %v1060
      %1074 = vmatpush.bf16.msra.mxu0 %v1059
      %1075 = vmatpush.bf16.msra.mxu0 %v1058
      %1076 = vmatpush.bf16.msra.mxu0 %v1057
      %1077 = vmatpush.bf16.msra.mxu0 %v1056
      %1078 = vmatpush.bf16.msra.mxu0 %v1055
      %1079 = vmatmul.bf16.gmra.mxu0 %v1005
      %v1080 = vpop.f32.mrf.mxu0
      %v1081 = vadd.f32 0.0, %v1080
      %v1082 = vpop.f32.mrf.mxu0
      %v1083 = vadd.f32 0.0, %v1082
      %1084 = vdwg.mxu0
      %v1085 = vadd.f32 %v978, %v1081
      %v1086 = vadd.f32 %v979, %v1083
      %s1087 = scalar_lea.vmem %s5, 48
      %v1088 = vld [vmem:[%s1087] sm:$0xf]
      %v1089 = vld [vmem:[%s1087 + $0x4] sm:$0xf]
      %v1092 = vunpack.c.l.b16 %v1088
      %v1093 = vunpack.c.l.b16 %v1089
      %v1094 = vpack.c.b16 %v1093, %v1092
      %v1096 = vsel %vm378, %v1094, 0
      %1098 = vmatpush.bf16.msra.mxu0 0
      %1099 = vmatpush.bf16.msra.mxu0 0
      %1100 = vmatpush.bf16.msra.mxu0 0
      %1101 = vmatpush.bf16.msra.mxu0 0
      %1102 = vmatpush.bf16.msra.mxu0 0
      %1103 = vmatpush.bf16.msra.mxu0 0
      %1104 = vmatpush.bf16.msra.mxu0 0
      %1105 = vmatpush.bf16.msra.mxu0 %v440
      %1106 = vmatmul.bf16.gmra.mxu0 %v1096
      %v1107 = vpop.f32.mrf.mxu0
      %v1108 = vadd.f32 0.0, %v1107
      %v1109 = vpop.f32.mrf.mxu0
      %v1110 = vadd.f32 0.0, %v1109
      %1111 = vdwg.mxu0
      %v1112 = vpack.c.bf16 %v1110, %v1108
      %s1113 = scalar_lea.vmem %s3, 384
      %v1114 = vld [vmem:[%s1113] sm:$0xf]
      %v1115 = vld [vmem:[%s1113 + $0x4] sm:$0xf]
      %v1116 = vld [vmem:[%s1113 + $0x8] sm:$0xf]
      %v1117 = vld [vmem:[%s1113 + $0xc] sm:$0xf]
      %v1118 = vld [vmem:[%s1113 + $0x10] sm:$0xf]
      %v1119 = vld [vmem:[%s1113 + $0x14] sm:$0xf]
      %v1120 = vld [vmem:[%s1113 + $0x18] sm:$0xf]
      %v1121 = vld [vmem:[%s1113 + $0x1c] sm:$0xf]
      %v1122 = vld [vmem:[%s1113 + $0x20] sm:$0xf]
      %v1123 = vld [vmem:[%s1113 + $0x24] sm:$0xf]
      %v1124 = vld [vmem:[%s1113 + $0x28] sm:$0xf]
      %v1125 = vld [vmem:[%s1113 + $0x2c] sm:$0xf]
      %v1126 = vld [vmem:[%s1113 + $0x30] sm:$0xf]
      %v1127 = vld [vmem:[%s1113 + $0x34] sm:$0xf]
      %v1128 = vld [vmem:[%s1113 + $0x38] sm:$0xf]
      %v1129 = vld [vmem:[%s1113 + $0x3c] sm:$0xf]
      %v1146 = vunpack.c.l.b16 %v1114
      %v1147 = vunpack.c.l.b16 %v1115
      %v1148 = vunpack.c.l.b16 %v1116
      %v1149 = vunpack.c.l.b16 %v1117
      %v1150 = vunpack.c.l.b16 %v1118
      %v1151 = vunpack.c.l.b16 %v1119
      %v1152 = vunpack.c.l.b16 %v1120
      %v1153 = vunpack.c.l.b16 %v1121
      %v1154 = vunpack.c.l.b16 %v1122
      %v1155 = vunpack.c.l.b16 %v1123
      %v1156 = vunpack.c.l.b16 %v1124
      %v1157 = vunpack.c.l.b16 %v1125
      %v1158 = vunpack.c.l.b16 %v1126
      %v1159 = vunpack.c.l.b16 %v1127
      %v1160 = vunpack.c.l.b16 %v1128
      %v1161 = vunpack.c.l.b16 %v1129
      %v1162 = vpack.c.b16 %v1147, %v1146
      %v1163 = vpack.c.b16 %v1149, %v1148
      %v1164 = vpack.c.b16 %v1151, %v1150
      %v1165 = vpack.c.b16 %v1153, %v1152
      %v1166 = vpack.c.b16 %v1155, %v1154
      %v1167 = vpack.c.b16 %v1157, %v1156
      %v1168 = vpack.c.b16 %v1159, %v1158
      %v1169 = vpack.c.b16 %v1161, %v1160
      %1178 = vmatpush.bf16.msra.mxu0 %v1169
      %1179 = vmatpush.bf16.msra.mxu0 %v1168
      %1180 = vmatpush.bf16.msra.mxu0 %v1167
      %1181 = vmatpush.bf16.msra.mxu0 %v1166
      %1182 = vmatpush.bf16.msra.mxu0 %v1165
      %1183 = vmatpush.bf16.msra.mxu0 %v1164
      %1184 = vmatpush.bf16.msra.mxu0 %v1163
      %1185 = vmatpush.bf16.msra.mxu0 %v1162
      %1186 = vmatmul.bf16.gmra.mxu0 %v1112
      %v1187 = vpop.f32.mrf.mxu0
      %v1188 = vadd.f32 0.0, %v1187
      %v1189 = vpop.f32.mrf.mxu0
      %v1190 = vadd.f32 0.0, %v1189
      %1191 = vdwg.mxu0
      %v1192 = vadd.f32 %v1085, %v1188
      %v1193 = vadd.f32 %v1086, %v1190
      %s1194 = scalar_lea.vmem %s5, 56
      %v1195 = vld [vmem:[%s1194] sm:$0xf]
      %v1196 = vld [vmem:[%s1194 + $0x4] sm:$0xf]
      %v1199 = vunpack.c.l.b16 %v1195
      %v1200 = vunpack.c.l.b16 %v1196
      %v1201 = vpack.c.b16 %v1200, %v1199
      %v1203 = vsel %vm378, %v1201, 0
      %1205 = vmatpush.bf16.msra.mxu0 0
      %1206 = vmatpush.bf16.msra.mxu0 0
      %1207 = vmatpush.bf16.msra.mxu0 0
      %1208 = vmatpush.bf16.msra.mxu0 0
      %1209 = vmatpush.bf16.msra.mxu0 0
      %1210 = vmatpush.bf16.msra.mxu0 0
      %1211 = vmatpush.bf16.msra.mxu0 0
      %1212 = vmatpush.bf16.msra.mxu0 %v440
      %1213 = vmatmul.bf16.gmra.mxu0 %v1203
      %v1214 = vpop.f32.mrf.mxu0
      %v1215 = vadd.f32 0.0, %v1214
      %v1216 = vpop.f32.mrf.mxu0
      %v1217 = vadd.f32 0.0, %v1216
      %1218 = vdwg.mxu0
      %v1219 = vpack.c.bf16 %v1217, %v1215
      %s1220 = scalar_lea.vmem %s3, 448
      %v1221 = vld [vmem:[%s1220] sm:$0xf]
      %v1222 = vld [vmem:[%s1220 + $0x4] sm:$0xf]
      %v1223 = vld [vmem:[%s1220 + $0x8] sm:$0xf]
      %v1224 = vld [vmem:[%s1220 + $0xc] sm:$0xf]
      %v1225 = vld [vmem:[%s1220 + $0x10] sm:$0xf]
      %v1226 = vld [vmem:[%s1220 + $0x14] sm:$0xf]
      %v1227 = vld [vmem:[%s1220 + $0x18] sm:$0xf]
      %v1228 = vld [vmem:[%s1220 + $0x1c] sm:$0xf]
      %v1229 = vld [vmem:[%s1220 + $0x20] sm:$0xf]
      %v1230 = vld [vmem:[%s1220 + $0x24] sm:$0xf]
      %v1231 = vld [vmem:[%s1220 + $0x28] sm:$0xf]
      %v1232 = vld [vmem:[%s1220 + $0x2c] sm:$0xf]
      %v1233 = vld [vmem:[%s1220 + $0x30] sm:$0xf]
      %v1234 = vld [vmem:[%s1220 + $0x34] sm:$0xf]
      %v1235 = vld [vmem:[%s1220 + $0x38] sm:$0xf]
      %v1236 = vld [vmem:[%s1220 + $0x3c] sm:$0xf]
      %v1253 = vunpack.c.l.b16 %v1221
      %v1254 = vunpack.c.l.b16 %v1222
      %v1255 = vunpack.c.l.b16 %v1223
      %v1256 = vunpack.c.l.b16 %v1224
      %v1257 = vunpack.c.l.b16 %v1225
      %v1258 = vunpack.c.l.b16 %v1226
      %v1259 = vunpack.c.l.b16 %v1227
      %v1260 = vunpack.c.l.b16 %v1228
      %v1261 = vunpack.c.l.b16 %v1229
      %v1262 = vunpack.c.l.b16 %v1230
      %v1263 = vunpack.c.l.b16 %v1231
      %v1264 = vunpack.c.l.b16 %v1232
      %v1265 = vunpack.c.l.b16 %v1233
      %v1266 = vunpack.c.l.b16 %v1234
      %v1267 = vunpack.c.l.b16 %v1235
      %v1268 = vunpack.c.l.b16 %v1236
      %v1269 = vpack.c.b16 %v1254, %v1253
      %v1270 = vpack.c.b16 %v1256, %v1255
      %v1271 = vpack.c.b16 %v1258, %v1257
      %v1272 = vpack.c.b16 %v1260, %v1259
      %v1273 = vpack.c.b16 %v1262, %v1261
      %v1274 = vpack.c.b16 %v1264, %v1263
      %v1275 = vpack.c.b16 %v1266, %v1265
      %v1276 = vpack.c.b16 %v1268, %v1267
      %1285 = vmatpush.bf16.msra.mxu0 %v1276
      %1286 = vmatpush.bf16.msra.mxu0 %v1275
      %1287 = vmatpush.bf16.msra.mxu0 %v1274
      %1288 = vmatpush.bf16.msra.mxu0 %v1273
      %1289 = vmatpush.bf16.msra.mxu0 %v1272
      %1290 = vmatpush.bf16.msra.mxu0 %v1271
      %1291 = vmatpush.bf16.msra.mxu0 %v1270
      %1292 = vmatpush.bf16.msra.mxu0 %v1269
      %1293 = vmatmul.bf16.gmra.mxu0 %v1219
      %v1294 = vpop.f32.mrf.mxu0
      %v1295 = vadd.f32 0.0, %v1294
      %v1296 = vpop.f32.mrf.mxu0
      %v1297 = vadd.f32 0.0, %v1296
      %1298 = vdwg.mxu0
      %v1299 = vadd.f32 %v1192, %v1295
      %v1300 = vadd.f32 %v1193, %v1297
      %s1301 = scalar_lea.vmem %s5, 64
      %v1302 = vld [vmem:[%s1301] sm:$0xf]
      %v1303 = vld [vmem:[%s1301 + $0x4] sm:$0xf]
      %v1306 = vunpack.c.l.b16 %v1302
      %v1307 = vunpack.c.l.b16 %v1303
      %v1308 = vpack.c.b16 %v1307, %v1306
      %v1310 = vsel %vm378, %v1308, 0
      %1312 = vmatpush.bf16.msra.mxu0 0
      %1313 = vmatpush.bf16.msra.mxu0 0
      %1314 = vmatpush.bf16.msra.mxu0 0
      %1315 = vmatpush.bf16.msra.mxu0 0
      %1316 = vmatpush.bf16.msra.mxu0 0
      %1317 = vmatpush.bf16.msra.mxu0 0
      %1318 = vmatpush.bf16.msra.mxu0 0
      %1319 = vmatpush.bf16.msra.mxu0 %v440
      %1320 = vmatmul.bf16.gmra.mxu0 %v1310
      %v1321 = vpop.f32.mrf.mxu0
      %v1322 = vadd.f32 0.0, %v1321
      %v1323 = vpop.f32.mrf.mxu0
      %v1324 = vadd.f32 0.0, %v1323
      %1325 = vdwg.mxu0
      %v1326 = vpack.c.bf16 %v1324, %v1322
      %s1327 = scalar_lea.vmem %s3, 512
      %v1328 = vld [vmem:[%s1327] sm:$0xf]
      %v1329 = vld [vmem:[%s1327 + $0x4] sm:$0xf]
      %v1330 = vld [vmem:[%s1327 + $0x8] sm:$0xf]
      %v1331 = vld [vmem:[%s1327 + $0xc] sm:$0xf]
      %v1332 = vld [vmem:[%s1327 + $0x10] sm:$0xf]
      %v1333 = vld [vmem:[%s1327 + $0x14] sm:$0xf]
      %v1334 = vld [vmem:[%s1327 + $0x18] sm:$0xf]
      %v1335 = vld [vmem:[%s1327 + $0x1c] sm:$0xf]
      %v1336 = vld [vmem:[%s1327 + $0x20] sm:$0xf]
      %v1337 = vld [vmem:[%s1327 + $0x24] sm:$0xf]
      %v1338 = vld [vmem:[%s1327 + $0x28] sm:$0xf]
      %v1339 = vld [vmem:[%s1327 + $0x2c] sm:$0xf]
      %v1340 = vld [vmem:[%s1327 + $0x30] sm:$0xf]
      %v1341 = vld [vmem:[%s1327 + $0x34] sm:$0xf]
      %v1342 = vld [vmem:[%s1327 + $0x38] sm:$0xf]
      %v1343 = vld [vmem:[%s1327 + $0x3c] sm:$0xf]
      %v1360 = vunpack.c.l.b16 %v1328
      %v1361 = vunpack.c.l.b16 %v1329
      %v1362 = vunpack.c.l.b16 %v1330
      %v1363 = vunpack.c.l.b16 %v1331
      %v1364 = vunpack.c.l.b16 %v1332
      %v1365 = vunpack.c.l.b16 %v1333
      %v1366 = vunpack.c.l.b16 %v1334
      %v1367 = vunpack.c.l.b16 %v1335
      %v1368 = vunpack.c.l.b16 %v1336
      %v1369 = vunpack.c.l.b16 %v1337
      %v1370 = vunpack.c.l.b16 %v1338
      %v1371 = vunpack.c.l.b16 %v1339
      %v1372 = vunpack.c.l.b16 %v1340
      %v1373 = vunpack.c.l.b16 %v1341
      %v1374 = vunpack.c.l.b16 %v1342
      %v1375 = vunpack.c.l.b16 %v1343
      %v1376 = vpack.c.b16 %v1361, %v1360
      %v1377 = vpack.c.b16 %v1363, %v1362
      %v1378 = vpack.c.b16 %v1365, %v1364
      %v1379 = vpack.c.b16 %v1367, %v1366
      %v1380 = vpack.c.b16 %v1369, %v1368
      %v1381 = vpack.c.b16 %v1371, %v1370
      %v1382 = vpack.c.b16 %v1373, %v1372
      %v1383 = vpack.c.b16 %v1375, %v1374
      %1392 = vmatpush.bf16.msra.mxu0 %v1383
      %1393 = vmatpush.bf16.msra.mxu0 %v1382
      %1394 = vmatpush.bf16.msra.mxu0 %v1381
      %1395 = vmatpush.bf16.msra.mxu0 %v1380
      %1396 = vmatpush.bf16.msra.mxu0 %v1379
      %1397 = vmatpush.bf16.msra.mxu0 %v1378
      %1398 = vmatpush.bf16.msra.mxu0 %v1377
      %1399 = vmatpush.bf16.msra.mxu0 %v1376
      %1400 = vmatmul.bf16.gmra.mxu0 %v1326
      %v1401 = vpop.f32.mrf.mxu0
      %v1402 = vadd.f32 0.0, %v1401
      %v1403 = vpop.f32.mrf.mxu0
      %v1404 = vadd.f32 0.0, %v1403
      %1405 = vdwg.mxu0
      %v1406 = vadd.f32 %v1299, %v1402
      %v1407 = vadd.f32 %v1300, %v1404
      %v1408 = vmax.f32 %v1406, 0.0
      %v1409 = vmax.f32 %v1407, 0.0
      %v1410 = vpack.c.bf16 %v1408, %v1408
      %v1411 = vpack.c.bf16 %v1409, %v1409
      %1412 = vst [vmem:[%s251] sm:$0xf] %v1410
      %1413 = vst [vmem:[%s251 + $0x4] sm:$0xf] %v1411
      %p1414 = scmp.lt.s32.totalorder %s17, 1
      %s1415 = scalar_select %p1414, %s17, 1
      %s1416 = smul.addr %s1415, 2
      %s1417 = smul.addr %s1416, 4
      %s1418 = scalar_lea.vmem %s6, %s1417
      // Predicated region
      $region45: #{backbone_base_forward.7} parent=43 // pred_check
        %p1419 = pneg %p166
      $region46: #{backbone_base_forward.7} parent=43 // pred_check_branch
        %1421 = sbr.rel (%p1419) target = $region48
      $region47: #{backbone_base_forward.7} parent=43 // pred_region
        _
      $region48: #{backbone_base_forward.7} parent=43 // pred_fallthru
        _
    $region44: #{backbone_base_forward.7} parent=5 // pred_fallthru
      _
    %p1422 = scmp.le.s32.totalorder 2, %s12
    // Predicated region
    $region49: #{backbone_base_forward.7} parent=5 // pred_check
      %p1423 = pneg %p1422
    $region50: #{backbone_base_forward.7} parent=5 // pred_check_branch
      %1425 = sbr.rel (%p1423) target = $region52
    $region51: #{backbone_base_forward.7} parent=5 // pred_region
      %s1426 = ssub.s32 %s12, 2
      // Predicated region
      $region53: #{backbone_base_forward.7} parent=51 // pred_check
        %p1427 = pneg %p172
      $region54: #{backbone_base_forward.7} parent=51 // pred_check_branch
        %1429 = sbr.rel (%p1427) target = $region56
      $region55: #{backbone_base_forward.7} parent=51 // pred_region
        %p1430 = scmp.lt.s32.totalorder %s18, 1
        %s1431 = scalar_select %p1430, %s18, 1
        %s1432 = smul.addr %s1431, 2
        %s1433 = smul.addr %s1432, 4
        %s1434 = scalar_lea.vmem %s6, %s1433
      $region56: #{backbone_base_forward.7} parent=51 // pred_fallthru
        _
    $region52: #{backbone_base_forward.7} parent=5 // pred_fallthru
      _
  $region6: #{backbone_base_forward.7} parent=0 // loop_footer
    %s16 = sadd.s32 1, %s12
  $region7: #{backbone_base_forward.7} parent=0 // loop_footer_branch
    %11 = sbr.rel target = $region3
  $region8: #{backbone_base_forward.7} parent=0 // loop_exit
    _

// kernel: backbone_base_forward.9
$region0: #{backbone_base_forward.9}
  #allocation0 [shape = 'u32[]', space=smem, size = 0x4, offset = 0x4, fixed_abs, tag = 'smem constant byte address 0x4 - core index']
  #allocation1 [shape = 'u32[72,128]{1,0:T(1,128)}', space=vmem, size = 0x9000, scoped, tag = 'internal scratch']
  %s0 = inlined_call_operand.vmem [shape: bf16[2,1,576], index: 0, kind: input, shape index: {}]
  %s1 = inlined_call_operand.vmem [shape: bf16[576,256], index: 1, kind: input, shape index: {}]
  %s2 = inlined_call_operand.vmem [shape: f32[1,256], index: 2, kind: input, shape index: {}]
  %s3 = inlined_call_operand.vmem [shape: bf16[9,128,128], index: 3, kind: input, shape index: {}]
  %s4 = inlined_call_operand.vmem [shape: f32[1,128], index: 4, kind: input, shape index: {}]
  %s5 = inlined_call_operand.vmem [shape: bf16[9,1,1], index: 5, kind: input, shape index: {}]
  %s6 = inlined_call_operand.vmem [shape: bf16[2,1,128], index: 6, kind: output, shape index: {}]
  %s7 = sld [smem:[#allocation0]]
  $region57: #{backbone_base_forward.9} parent=0
    _
  %s9 = ssub.s32 1, %s7
  %s10 = scalar_select 0, %s9, %s7
  loop: start=0, step=1, limit=4
  $region2: #{backbone_base_forward.9} parent=0 // loop_pre_header
    _
  $region3: #{backbone_base_forward.9} parent=0 // loop_header
    %s12 = sphi 0, %s16
    %p13 = scmp.ge.s32.totalorder %s12, 4
    %s22 = sphi 0, %s24
    %s25 = sphi 0, %s22
    %s26 = sphi 0, %s25
    %s42 = sphi 0, %s26
    %s46 = sphi 0, %s46
    %s48 = sphi 0, %s46
    %s49 = sphi 0, %s48
    %s63 = sphi 0, %s49
    %s67 = sphi 0, %s67
    %s69 = sphi 0, %s67
    %s70 = sphi 0, %s69
    %s84 = sphi 0, %s70
    %s88 = sphi 0, %s88
    %s90 = sphi 0, %s88
    %s91 = sphi 0, %s90
    %s105 = sphi 0, %s91
    %s109 = sphi 0, %s109
    %s111 = sphi 0, %s109
    %s112 = sphi 0, %s111
    %s126 = sphi 0, %s112
    %s130 = sphi 0, %s130
    %s132 = sphi 0, %s130
    %s133 = sphi 0, %s132
    %s147 = sphi 0, %s133
    %s153 = sphi 0, %s155
    %s156 = sphi 0, %s153
    %s157 = sphi 0, %s156
    %s173 = sphi 0, %s157
  $region4: #{backbone_base_forward.9} parent=0 // loop_header_branch
    %15 = sbr.rel (%p13) target = $region8
  $region5: #{backbone_base_forward.9} parent=0 // loop_body
    %s17 = ssub.s32 %s12, 1
    %s18 = ssub.s32 %s12, 2
    %s19 = sadd.s32 %s12, 1
    %s20 = ssub.s32 %s12, %s19
    %p21 = scmp.eq.s32.totalorder %s20, 0
    %s23 = sadd.s32 %s22, 1
    %s24 = scalar_select %p21, %s22, %s23
    %p27 = pneg %p21
    %p28 = scmp.eq.s32.totalorder %s12, 1
    %p29 = por %p27, %p28
    %p30 = scmp.ne.s32.totalorder %s22, %s25
    %p31 = scmp.eq.s32.totalorder %s12, 0
    %p32 = por %p30, %p31
    %p33 = scmp.ne.s32.totalorder %s22, %s25
    %p34 = scmp.eq.s32.totalorder %s17, 1
    %p35 = por %p33, %p34
    %p36 = scmp.ne.s32.totalorder %s25, %s26
    %p37 = scmp.eq.s32.totalorder %s17, 0
    %p38 = por %p36, %p37
    %p39 = scmp.ne.s32.totalorder %s25, %s26
    %p40 = scmp.eq.s32.totalorder %s18, 1
    %p41 = por %p39, %p40
    %p43 = scmp.ne.s32.totalorder %s26, %s42
    %p44 = scmp.eq.s32.totalorder %s18, 0
    %p45 = por %p43, %p44
    %s47 = sadd.s32 %s46, 1
    %p50 = scmp.eq.s32.totalorder %s12, 1
    %p51 = scmp.ne.s32.totalorder %s46, %s48
    %p52 = scmp.eq.s32.totalorder %s12, 0
    %p53 = por %p51, %p52
    %p54 = scmp.ne.s32.totalorder %s46, %s48
    %p55 = scmp.eq.s32.totalorder %s17, 1
    %p56 = por %p54, %p55
    %p57 = scmp.ne.s32.totalorder %s48, %s49
    %p58 = scmp.eq.s32.totalorder %s17, 0
    %p59 = por %p57, %p58
    %p60 = scmp.ne.s32.totalorder %s48, %s49
    %p61 = scmp.eq.s32.totalorder %s18, 1
    %p62 = por %p60, %p61
    %p64 = scmp.ne.s32.totalorder %s49, %s63
    %p65 = scmp.eq.s32.totalorder %s18, 0
    %p66 = por %p64, %p65
    %s68 = sadd.s32 %s67, 1
    %p71 = scmp.eq.s32.totalorder %s12, 1
    %p72 = scmp.ne.s32.totalorder %s67, %s69
    %p73 = scmp.eq.s32.totalorder %s12, 0
    %p74 = por %p72, %p73
    %p75 = scmp.ne.s32.totalorder %s67, %s69
    %p76 = scmp.eq.s32.totalorder %s17, 1
    %p77 = por %p75, %p76
    %p78 = scmp.ne.s32.totalorder %s69, %s70
    %p79 = scmp.eq.s32.totalorder %s17, 0
    %p80 = por %p78, %p79
    %p81 = scmp.ne.s32.totalorder %s69, %s70
    %p82 = scmp.eq.s32.totalorder %s18, 1
    %p83 = por %p81, %p82
    %p85 = scmp.ne.s32.totalorder %s70, %s84
    %p86 = scmp.eq.s32.totalorder %s18, 0
    %p87 = por %p85, %p86
    %s89 = sadd.s32 %s88, 1
    %p92 = scmp.eq.s32.totalorder %s12, 1
    %p93 = scmp.ne.s32.totalorder %s88, %s90
    %p94 = scmp.eq.s32.totalorder %s12, 0
    %p95 = por %p93, %p94
    %p96 = scmp.ne.s32.totalorder %s88, %s90
    %p97 = scmp.eq.s32.totalorder %s17, 1
    %p98 = por %p96, %p97
    %p99 = scmp.ne.s32.totalorder %s90, %s91
    %p100 = scmp.eq.s32.totalorder %s17, 0
    %p101 = por %p99, %p100
    %p102 = scmp.ne.s32.totalorder %s90, %s91
    %p103 = scmp.eq.s32.totalorder %s18, 1
    %p104 = por %p102, %p103
    %p106 = scmp.ne.s32.totalorder %s91, %s105
    %p107 = scmp.eq.s32.totalorder %s18, 0
    %p108 = por %p106, %p107
    %s110 = sadd.s32 %s109, 1
    %p113 = scmp.eq.s32.totalorder %s12, 1
    %p114 = scmp.ne.s32.totalorder %s109, %s111
    %p115 = scmp.eq.s32.totalorder %s12, 0
    %p116 = por %p114, %p115
    %p117 = scmp.ne.s32.totalorder %s109, %s111
    %p118 = scmp.eq.s32.totalorder %s17, 1
    %p119 = por %p117, %p118
    %p120 = scmp.ne.s32.totalorder %s111, %s112
    %p121 = scmp.eq.s32.totalorder %s17, 0
    %p122 = por %p120, %p121
    %p123 = scmp.ne.s32.totalorder %s111, %s112
    %p124 = scmp.eq.s32.totalorder %s18, 1
    %p125 = por %p123, %p124
    %p127 = scmp.ne.s32.totalorder %s112, %s126
    %p128 = scmp.eq.s32.totalorder %s18, 0
    %p129 = por %p127, %p128
    %s131 = sadd.s32 %s130, 1
    %p134 = scmp.eq.s32.totalorder %s12, 1
    %p135 = scmp.ne.s32.totalorder %s130, %s132
    %p136 = scmp.eq.s32.totalorder %s12, 0
    %p137 = por %p135, %p136
    %p138 = scmp.ne.s32.totalorder %s130, %s132
    %p139 = scmp.eq.s32.totalorder %s17, 1
    %p140 = por %p138, %p139
    %p141 = scmp.ne.s32.totalorder %s132, %s133
    %p142 = scmp.eq.s32.totalorder %s17, 0
    %p143 = por %p141, %p142
    %p144 = scmp.ne.s32.totalorder %s132, %s133
    %p145 = scmp.eq.s32.totalorder %s18, 1
    %p146 = por %p144, %p145
    %p148 = scmp.ne.s32.totalorder %s133, %s147
    %p149 = scmp.eq.s32.totalorder %s18, 0
    %p150 = por %p148, %p149
    %s151 = ssub.s32 %s12, %s19
    %p152 = scmp.eq.s32.totalorder %s151, 0
    %s154 = sadd.s32 %s153, 1
    %s155 = scalar_select %p152, %s153, %s154
    %p158 = pneg %p152
    %p159 = scmp.eq.s32.totalorder %s12, 1
    %p160 = por %p158, %p159
    %p161 = scmp.ne.s32.totalorder %s153, %s156
    %p162 = scmp.eq.s32.totalorder %s12, 0
    %p163 = por %p161, %p162
    %p164 = scmp.ne.s32.totalorder %s153, %s156
    %p165 = scmp.eq.s32.totalorder %s17, 1
    %p166 = por %p164, %p165
    %p167 = scmp.ne.s32.totalorder %s156, %s157
    %p168 = scmp.eq.s32.totalorder %s17, 0
    %p169 = por %p167, %p168
    %p170 = scmp.ne.s32.totalorder %s156, %s157
    %p171 = scmp.eq.s32.totalorder %s18, 1
    %p172 = por %p170, %p171
    %p174 = scmp.ne.s32.totalorder %s157, %s173
    %p175 = scmp.eq.s32.totalorder %s18, 0
    %p176 = por %p174, %p175
    %p177 = scmp.le.s32.totalorder 1, %s12
    %p178 = scmp.lt.s32.totalorder %s12, 3
    %p179 = pnand %p177, %p178
    %p180 = pneg %p179
    // Predicated region
    $region9: #{backbone_base_forward.9} parent=5 // pred_check
      _
    $region10: #{backbone_base_forward.9} parent=5 // pred_check_branch
      %182 = sbr.rel (%p179) target = $region12
    $region11: #{backbone_base_forward.9} parent=5 // pred_region
      %s183 = ssub.s32 %s12, 1
      // Predicated region
      $region13: #{backbone_base_forward.9} parent=11 // pred_check
        %p184 = pneg %p59
      $region14: #{backbone_base_forward.9} parent=11 // pred_check_branch
        %186 = sbr.rel (%p184) target = $region16
      $region15: #{backbone_base_forward.9} parent=11 // pred_region
        _
      $region16: #{backbone_base_forward.9} parent=11 // pred_fallthru
        _
      // Predicated region
      $region17: #{backbone_base_forward.9} parent=11 // pred_check
        %p187 = pneg %p80
      $region18: #{backbone_base_forward.9} parent=11 // pred_check_branch
        %189 = sbr.rel (%p187) target = $region20
      $region19: #{backbone_base_forward.9} parent=11 // pred_region
        _
      $region20: #{backbone_base_forward.9} parent=11 // pred_fallthru
        _
      // Predicated region
      $region21: #{backbone_base_forward.9} parent=11 // pred_check
        %p190 = pneg %p101
      $region22: #{backbone_base_forward.9} parent=11 // pred_check_branch
        %192 = sbr.rel (%p190) target = $region24
      $region23: #{backbone_base_forward.9} parent=11 // pred_region
        _
      $region24: #{backbone_base_forward.9} parent=11 // pred_fallthru
        _
      // Predicated region
      $region25: #{backbone_base_forward.9} parent=11 // pred_check
        %p193 = pneg %p122
      $region26: #{backbone_base_forward.9} parent=11 // pred_check_branch
        %195 = sbr.rel (%p193) target = $region28
      $region27: #{backbone_base_forward.9} parent=11 // pred_region
        _
      $region28: #{backbone_base_forward.9} parent=11 // pred_fallthru
        _
      // Predicated region
      $region29: #{backbone_base_forward.9} parent=11 // pred_check
        %p196 = pneg %p143
      $region30: #{backbone_base_forward.9} parent=11 // pred_check_branch
        %198 = sbr.rel (%p196) target = $region32
      $region31: #{backbone_base_forward.9} parent=11 // pred_region
        _
      $region32: #{backbone_base_forward.9} parent=11 // pred_fallthru
        _
    $region12: #{backbone_base_forward.9} parent=5 // pred_fallthru
      _
    %p199 = scmp.lt.s32.totalorder %s12, 2
    // Predicated region
    $region33: #{backbone_base_forward.9} parent=5 // pred_check
      %p200 = pneg %p199
    $region34: #{backbone_base_forward.9} parent=5 // pred_check_branch
      %202 = sbr.rel (%p200) target = $region36
    $region35: #{backbone_base_forward.9} parent=5 // pred_region
      // Predicated region
      $region37: #{backbone_base_forward.9} parent=35 // pred_check
        %p203 = pneg %p32
      $region38: #{backbone_base_forward.9} parent=35 // pred_check_branch
        %205 = sbr.rel (%p203) target = $region40
      $region39: #{backbone_base_forward.9} parent=35 // pred_region
        %p206 = scmp.lt.s32.totalorder %s12, 1
        %s207 = scalar_select %p206, %s12, 1
        %s208 = smul.addr %s207, 5
        %s209 = scalar_lea.vmem %s0, %s208
      $region40: #{backbone_base_forward.9} parent=35 // pred_fallthru
        _
    $region36: #{backbone_base_forward.9} parent=5 // pred_fallthru
      _
    %p210 = scmp.le.s32.totalorder 1, %s12
    %p211 = scmp.lt.s32.totalorder %s12, 3
    %p212 = pnand %p210, %p211
    %p213 = pneg %p212
    // Predicated region
    $region41: #{backbone_base_forward.9} parent=5 // pred_check
      _
    $region42: #{backbone_base_forward.9} parent=5 // pred_check_branch
      %215 = sbr.rel (%p212) target = $region44
    $region43: #{backbone_base_forward.9} parent=5 // pred_region
      %s216 = ssub.s32 %s12, 1
      %p217 = scmp.lt.s32.totalorder %s17, 1
      %s218 = scalar_select %p217, %s17, 1
      %s219 = smul.addr %s218, 5
      %s220 = scalar_lea.vmem %s0, %s219
      %p221 = pneg %p38
      %p222 = pneg %p35
      %p223 = pneg %p59
      %p224 = pneg %p56
      %p225 = pneg %p80
      %p226 = pneg %p77
      %p227 = pneg %p101
      %p228 = pneg %p98
      %p229 = pneg %p122
      %p230 = pneg %p119
      %p231 = pneg %p143
      %p232 = pneg %p140
      %p233 = pneg %p169
      %p234 = pneg %p166
      %p235 = scmp.lt.s32.totalorder %s17, 1
      %s236 = scalar_select %p235, %s17, 1
      %s237 = scalar_lea.vmem %s6, %s236
      %p238 = scmp.lt.s32.totalorder %s17, 1
      %s239 = scalar_select %p238, %s17, 1
      %s240 = smul.addr %s239, 5
      %s241 = scalar_lea.vmem %s0, %s240
      %p242 = scmp.lt.s32.totalorder %s17, 1
      %s243 = scalar_select %p242, %s17, 1
      %s244 = scalar_lea.vmem %s6, %s243
      %v246 = vld [vmem:[%s241] sm:$0x1f]
      %v247 = vld [vmem:[%s1] sm:$0xff]
      %v248 = vld [vmem:[%s1 + $0x8] sm:$0xff]
      %v249 = vld [vmem:[%s1 + $0x10] sm:$0xff]
      %v250 = vld [vmem:[%s1 + $0x18] sm:$0xff]
      %v251 = vld [vmem:[%s1 + $0x20] sm:$0xff]
      %v252 = vld [vmem:[%s1 + $0x28] sm:$0xff]
      %v253 = vld [vmem:[%s1 + $0x30] sm:$0xff]
      %v254 = vld [vmem:[%s1 + $0x38] sm:$0xff]
      %v255 = vld [vmem:[%s1 + $0x40] sm:$0xff]
      %v256 = vld [vmem:[%s1 + $0x48] sm:$0xff]
      %v257 = vld [vmem:[%s1 + $0x50] sm:$0xff]
      %v258 = vld [vmem:[%s1 + $0x58] sm:$0xff]
      %v259 = vld [vmem:[%s1 + $0x60] sm:$0xff]
      %v260 = vld [vmem:[%s1 + $0x68] sm:$0xff]
      %v261 = vld [vmem:[%s1 + $0x70] sm:$0xff]
      %v262 = vld [vmem:[%s1 + $0x78] sm:$0xff]
      %v263 = vld [vmem:[%s1 + $0x80] sm:$0xff]
      %v264 = vld [vmem:[%s1 + $0x88] sm:$0xff]
      %v265 = vld [vmem:[%s1 + $0x90] sm:$0xff]
      %v266 = vld [vmem:[%s1 + $0x98] sm:$0xff]
      %v267 = vld [vmem:[%s1 + $0xa0] sm:$0xff]
      %v268 = vld [vmem:[%s1 + $0xa8] sm:$0xff]
      %v269 = vld [vmem:[%s1 + $0xb0] sm:$0xff]
      %v270 = vld [vmem:[%s1 + $0xb8] sm:$0xff]
      %v271 = vld [vmem:[%s1 + $0xc0] sm:$0xff]
      %v272 = vld [vmem:[%s1 + $0xc8] sm:$0xff]
      %v273 = vld [vmem:[%s1 + $0xd0] sm:$0xff]
      %v274 = vld [vmem:[%s1 + $0xd8] sm:$0xff]
      %v275 = vld [vmem:[%s1 + $0xe0] sm:$0xff]
      %v276 = vld [vmem:[%s1 + $0xe8] sm:$0xff]
      %v277 = vld [vmem:[%s1 + $0xf0] sm:$0xff]
      %v278 = vld [vmem:[%s1 + $0xf8] sm:$0xff]
      %v279 = vld [vmem:[%s1 + $0x100] sm:$0xff]
      %v280 = vld [vmem:[%s1 + $0x108] sm:$0xff]
      %v281 = vld [vmem:[%s1 + $0x110] sm:$0xff]
      %v282 = vld [vmem:[%s1 + $0x118] sm:$0xff]
      %v283 = vld [vmem:[%s1 + $0x120] sm:$0xff]
      %v284 = vld [vmem:[%s1 + $0x128] sm:$0xff]
      %v285 = vld [vmem:[%s1 + $0x130] sm:$0xff]
      %v286 = vld [vmem:[%s1 + $0x138] sm:$0xff]
      %v287 = vld [vmem:[%s1 + $0x140] sm:$0xff]
      %v288 = vld [vmem:[%s1 + $0x148] sm:$0xff]
      %v289 = vld [vmem:[%s1 + $0x150] sm:$0xff]
      %v290 = vld [vmem:[%s1 + $0x158] sm:$0xff]
      %v291 = vld [vmem:[%s1 + $0x160] sm:$0xff]
      %v292 = vld [vmem:[%s1 + $0x168] sm:$0xff]
      %v293 = vld [vmem:[%s1 + $0x170] sm:$0xff]
      %v294 = vld [vmem:[%s1 + $0x178] sm:$0xff]
      %v295 = vld [vmem:[%s1 + $0x180] sm:$0xff]
      %v296 = vld [vmem:[%s1 + $0x188] sm:$0xff]
      %v297 = vld [vmem:[%s1 + $0x190] sm:$0xff]
      %v298 = vld [vmem:[%s1 + $0x198] sm:$0xff]
      %v299 = vld [vmem:[%s1 + $0x1a0] sm:$0xff]
      %v300 = vld [vmem:[%s1 + $0x1a8] sm:$0xff]
      %v301 = vld [vmem:[%s1 + $0x1b0] sm:$0xff]
      %v302 = vld [vmem:[%s1 + $0x1b8] sm:$0xff]
      %v303 = vld [vmem:[%s1 + $0x1c0] sm:$0xff]
      %v304 = vld [vmem:[%s1 + $0x1c8] sm:$0xff]
      %v305 = vld [vmem:[%s1 + $0x1d0] sm:$0xff]
      %v306 = vld [vmem:[%s1 + $0x1d8] sm:$0xff]
      %v307 = vld [vmem:[%s1 + $0x1e0] sm:$0xff]
      %v308 = vld [vmem:[%s1 + $0x1e8] sm:$0xff]
      %v309 = vld [vmem:[%s1 + $0x1f0] sm:$0xff]
      %v310 = vld [vmem:[%s1 + $0x1f8] sm:$0xff]
      %v311 = vld [vmem:[%s1 + $0x200] sm:$0xff]
      %v312 = vld [vmem:[%s1 + $0x208] sm:$0xff]
      %v313 = vld [vmem:[%s1 + $0x210] sm:$0xff]
      %v314 = vld [vmem:[%s1 + $0x218] sm:$0xff]
      %v315 = vld [vmem:[%s1 + $0x220] sm:$0xff]
      %v316 = vld [vmem:[%s1 + $0x228] sm:$0xff]
      %v317 = vld [vmem:[%s1 + $0x230] sm:$0xff]
      %v318 = vld [vmem:[%s1 + $0x238] sm:$0xff]
      %v319 = vld [vmem:[%s2] sm:$0x3]
      %321 = vst [vmem:[#allocation1] ss:$9 sm:$0xff] %v246
      %v322 = vld [vmem:[#allocation1] sm:$0xff]
      %v323 = vld [vmem:[#allocation1 + $0x9] sm:$0xff]
      %v324 = vld [vmem:[#allocation1 + $0x12] sm:$0xff]
      %v325 = vld [vmem:[#allocation1 + $0x1b] sm:$0xff]
      %v326 = vld [vmem:[#allocation1 + $0x24] sm:$0xff]
      %v403 = vunpack.c.l.b16 %v247
      %v404 = vunpack.c.h.b16 %v247
      %v405 = vunpack.c.l.b16 %v248
      %v406 = vunpack.c.h.b16 %v248
      %v407 = vunpack.c.l.b16 %v249
      %v408 = vunpack.c.h.b16 %v249
      %v409 = vunpack.c.l.b16 %v250
      %v410 = vunpack.c.h.b16 %v250
      %v411 = vunpack.c.l.b16 %v251
      %v412 = vunpack.c.h.b16 %v251
      %v413 = vunpack.c.l.b16 %v252
      %v414 = vunpack.c.h.b16 %v252
      %v415 = vunpack.c.l.b16 %v253
      %v416 = vunpack.c.h.b16 %v253
      %v417 = vunpack.c.l.b16 %v254
      %v418 = vunpack.c.h.b16 %v254
      %v419 = vunpack.c.l.b16 %v255
      %v420 = vunpack.c.h.b16 %v255
      %v421 = vunpack.c.l.b16 %v256
      %v422 = vunpack.c.h.b16 %v256
      %v423 = vunpack.c.l.b16 %v257
      %v424 = vunpack.c.h.b16 %v257
      %v425 = vunpack.c.l.b16 %v258
      %v426 = vunpack.c.h.b16 %v258
      %v427 = vunpack.c.l.b16 %v259
      %v428 = vunpack.c.h.b16 %v259
      %v429 = vunpack.c.l.b16 %v260
      %v430 = vunpack.c.h.b16 %v260
      %v431 = vunpack.c.l.b16 %v261
      %v432 = vunpack.c.h.b16 %v261
      %v433 = vunpack.c.l.b16 %v262
      %v434 = vunpack.c.h.b16 %v262
      %v435 = vunpack.c.l.b16 %v263
      %v436 = vunpack.c.h.b16 %v263
      %v437 = vunpack.c.l.b16 %v264
      %v438 = vunpack.c.h.b16 %v264
      %v439 = vunpack.c.l.b16 %v265
      %v440 = vunpack.c.h.b16 %v265
      %v441 = vunpack.c.l.b16 %v266
      %v442 = vunpack.c.h.b16 %v266
      %v443 = vunpack.c.l.b16 %v267
      %v444 = vunpack.c.h.b16 %v267
      %v445 = vunpack.c.l.b16 %v268
      %v446 = vunpack.c.h.b16 %v268
      %v447 = vunpack.c.l.b16 %v269
      %v448 = vunpack.c.h.b16 %v269
      %v449 = vunpack.c.l.b16 %v270
      %v450 = vunpack.c.h.b16 %v270
      %v451 = vunpack.c.l.b16 %v271
      %v452 = vunpack.c.h.b16 %v271
      %v453 = vunpack.c.l.b16 %v272
      %v454 = vunpack.c.h.b16 %v272
      %v455 = vunpack.c.l.b16 %v273
      %v456 = vunpack.c.h.b16 %v273
      %v457 = vunpack.c.l.b16 %v274
      %v458 = vunpack.c.h.b16 %v274
      %v459 = vunpack.c.l.b16 %v275
      %v460 = vunpack.c.h.b16 %v275
      %v461 = vunpack.c.l.b16 %v276
      %v462 = vunpack.c.h.b16 %v276
      %v463 = vunpack.c.l.b16 %v277
      %v464 = vunpack.c.h.b16 %v277
      %v465 = vunpack.c.l.b16 %v278
      %v466 = vunpack.c.h.b16 %v278
      %v467 = vunpack.c.l.b16 %v279
      %v468 = vunpack.c.h.b16 %v279
      %v469 = vunpack.c.l.b16 %v280
      %v470 = vunpack.c.h.b16 %v280
      %v471 = vunpack.c.l.b16 %v281
      %v472 = vunpack.c.h.b16 %v281
      %v473 = vunpack.c.l.b16 %v282
      %v474 = vunpack.c.h.b16 %v282
      %v475 = vunpack.c.l.b16 %v283
      %v476 = vunpack.c.h.b16 %v283
      %v477 = vunpack.c.l.b16 %v284
      %v478 = vunpack.c.h.b16 %v284
      %v479 = vunpack.c.l.b16 %v285
      %v480 = vunpack.c.h.b16 %v285
      %v481 = vunpack.c.l.b16 %v286
      %v482 = vunpack.c.h.b16 %v286
      %v483 = vunpack.c.l.b16 %v287
      %v484 = vunpack.c.h.b16 %v287
      %v485 = vunpack.c.l.b16 %v288
      %v486 = vunpack.c.h.b16 %v288
      %v487 = vunpack.c.l.b16 %v289
      %v488 = vunpack.c.h.b16 %v289
      %v489 = vunpack.c.l.b16 %v290
      %v490 = vunpack.c.h.b16 %v290
      %v491 = vunpack.c.l.b16 %v291
      %v492 = vunpack.c.h.b16 %v291
      %v493 = vunpack.c.l.b16 %v292
      %v494 = vunpack.c.h.b16 %v292
      %v495 = vunpack.c.l.b16 %v293
      %v496 = vunpack.c.h.b16 %v293
      %v497 = vunpack.c.l.b16 %v294
      %v498 = vunpack.c.h.b16 %v294
      %v499 = vunpack.c.l.b16 %v295
      %v500 = vunpack.c.h.b16 %v295
      %v501 = vunpack.c.l.b16 %v296
      %v502 = vunpack.c.h.b16 %v296
      %v503 = vunpack.c.l.b16 %v297
      %v504 = vunpack.c.h.b16 %v297
      %v505 = vunpack.c.l.b16 %v298
      %v506 = vunpack.c.h.b16 %v298
      %v507 = vunpack.c.l.b16 %v299
      %v508 = vunpack.c.h.b16 %v299
      %v509 = vunpack.c.l.b16 %v300
      %v510 = vunpack.c.h.b16 %v300
      %v511 = vunpack.c.l.b16 %v301
      %v512 = vunpack.c.h.b16 %v301
      %v513 = vunpack.c.l.b16 %v302
      %v514 = vunpack.c.h.b16 %v302
      %v515 = vunpack.c.l.b16 %v303
      %v516 = vunpack.c.h.b16 %v303
      %v517 = vunpack.c.l.b16 %v304
      %v518 = vunpack.c.h.b16 %v304
      %v519 = vunpack.c.l.b16 %v305
      %v520 = vunpack.c.h.b16 %v305
      %v521 = vunpack.c.l.b16 %v306
      %v522 = vunpack.c.h.b16 %v306
      %v523 = vunpack.c.l.b16 %v307
      %v524 = vunpack.c.h.b16 %v307
      %v525 = vunpack.c.l.b16 %v308
      %v526 = vunpack.c.h.b16 %v308
      %v527 = vunpack.c.l.b16 %v309
      %v528 = vunpack.c.h.b16 %v309
      %v529 = vunpack.c.l.b16 %v310
      %v530 = vunpack.c.h.b16 %v310
      %v531 = vunpack.c.l.b16 %v311
      %v532 = vunpack.c.h.b16 %v311
      %v533 = vunpack.c.l.b16 %v312
      %v534 = vunpack.c.h.b16 %v312
      %v535 = vunpack.c.l.b16 %v313
      %v536 = vunpack.c.h.b16 %v313
      %v537 = vunpack.c.l.b16 %v314
      %v538 = vunpack.c.h.b16 %v314
      %v539 = vunpack.c.l.b16 %v315
      %v540 = vunpack.c.h.b16 %v315
      %v541 = vunpack.c.l.b16 %v316
      %v542 = vunpack.c.h.b16 %v316
      %v543 = vunpack.c.l.b16 %v317
      %v544 = vunpack.c.h.b16 %v317
      %v545 = vunpack.c.l.b16 %v318
      %v546 = vunpack.c.h.b16 %v318
      %v547 = vpack.c.b16 %v405, %v403
      %v548 = vpack.c.b16 %v406, %v404
      %v549 = vpack.c.b16 %v409, %v407
      %v550 = vpack.c.b16 %v410, %v408
      %v551 = vpack.c.b16 %v413, %v411
      %v552 = vpack.c.b16 %v414, %v412
      %v553 = vpack.c.b16 %v417, %v415
      %v554 = vpack.c.b16 %v418, %v416
      %v555 = vpack.c.b16 %v421, %v419
      %v556 = vpack.c.b16 %v422, %v420
      %v557 = vpack.c.b16 %v425, %v423
      %v558 = vpack.c.b16 %v426, %v424
      %v559 = vpack.c.b16 %v429, %v427
      %v560 = vpack.c.b16 %v430, %v428
      %v561 = vpack.c.b16 %v433, %v431
      %v562 = vpack.c.b16 %v434, %v432
      %v563 = vpack.c.b16 %v437, %v435
      %v564 = vpack.c.b16 %v438, %v436
      %v565 = vpack.c.b16 %v441, %v439
      %v566 = vpack.c.b16 %v442, %v440
      %v567 = vpack.c.b16 %v445, %v443
      %v568 = vpack.c.b16 %v446, %v444
      %v569 = vpack.c.b16 %v449, %v447
      %v570 = vpack.c.b16 %v450, %v448
      %v571 = vpack.c.b16 %v453, %v451
      %v572 = vpack.c.b16 %v454, %v452
      %v573 = vpack.c.b16 %v457, %v455
      %v574 = vpack.c.b16 %v458, %v456
      %v575 = vpack.c.b16 %v461, %v459
      %v576 = vpack.c.b16 %v462, %v460
      %v577 = vpack.c.b16 %v465, %v463
      %v578 = vpack.c.b16 %v466, %v464
      %v579 = vpack.c.b16 %v469, %v467
      %v580 = vpack.c.b16 %v470, %v468
      %v581 = vpack.c.b16 %v473, %v471
      %v582 = vpack.c.b16 %v474, %v472
      %v583 = vpack.c.b16 %v477, %v475
      %v584 = vpack.c.b16 %v478, %v476
      %v585 = vpack.c.b16 %v481, %v479
      %v586 = vpack.c.b16 %v482, %v480
      %v587 = vpack.c.b16 %v485, %v483
      %v588 = vpack.c.b16 %v486, %v484
      %v589 = vpack.c.b16 %v489, %v487
      %v590 = vpack.c.b16 %v490, %v488
      %v591 = vpack.c.b16 %v493, %v491
      %v592 = vpack.c.b16 %v494, %v492
      %v593 = vpack.c.b16 %v497, %v495
      %v594 = vpack.c.b16 %v498, %v496
      %v595 = vpack.c.b16 %v501, %v499
      %v596 = vpack.c.b16 %v502, %v500
      %v597 = vpack.c.b16 %v505, %v503
      %v598 = vpack.c.b16 %v506, %v504
      %v599 = vpack.c.b16 %v509, %v507
      %v600 = vpack.c.b16 %v510, %v508
      %v601 = vpack.c.b16 %v513, %v511
      %v602 = vpack.c.b16 %v514, %v512
      %v603 = vpack.c.b16 %v517, %v515
      %v604 = vpack.c.b16 %v518, %v516
      %v605 = vpack.c.b16 %v521, %v519
      %v606 = vpack.c.b16 %v522, %v520
      %v607 = vpack.c.b16 %v525, %v523
      %v608 = vpack.c.b16 %v526, %v524
      %v609 = vpack.c.b16 %v529, %v527
      %v610 = vpack.c.b16 %v530, %v528
      %v611 = vpack.c.b16 %v533, %v531
      %v612 = vpack.c.b16 %v534, %v532
      %v613 = vpack.c.b16 %v537, %v535
      %v614 = vpack.c.b16 %v538, %v536
      %v615 = vpack.c.b16 %v541, %v539
      %v616 = vpack.c.b16 %v542, %v540
      %v617 = vpack.c.b16 %v545, %v543
      %v618 = vpack.c.b16 %v546, %v544
      %v692 = vperm.slane %v319, 0
      %v693 = vperm.slane %v319, 1
      %vm696 = vcmask 523264
      %v697 = vsel %vm696, %v326, 0
      %699 = vmatpush.bf16.msra.mxu0 %v561
      %700 = vmatpush.bf16.msra.mxu0 %v559
      %701 = vmatpush.bf16.msra.mxu0 %v557
      %702 = vmatpush.bf16.msra.mxu0 %v555
      %703 = vmatpush.bf16.msra.mxu0 %v553
      %704 = vmatpush.bf16.msra.mxu0 %v551
      %705 = vmatpush.bf16.msra.mxu0 %v549
      %706 = vmatpush.bf16.msra.mxu0 %v547
      %707 = vmatmul.bf16.gmra.mxu0 %v322
      %v708 = vpop.f32.mrf.mxu0
      %v709 = vadd.f32 %v692, %v708
      %v710 = vpop.f32.mrf.mxu0
      %711 = vdwg.mxu0
      %712 = vmatpush.bf16.msra.mxu0 %v577
      %713 = vmatpush.bf16.msra.mxu0 %v575
      %714 = vmatpush.bf16.msra.mxu0 %v573
      %715 = vmatpush.bf16.msra.mxu0 %v571
      %716 = vmatpush.bf16.msra.mxu0 %v569
      %717 = vmatpush.bf16.msra.mxu0 %v567
      %718 = vmatpush.bf16.msra.mxu0 %v565
      %719 = vmatpush.bf16.msra.mxu0 %v563
      %720 = vmatmul.bf16.gmra.mxu0 %v323
      %v721 = vpop.f32.mrf.mxu0
      %v722 = vadd.f32 %v709, %v721
      %v723 = vpop.f32.mrf.mxu0
      %724 = vdwg.mxu0
      %725 = vmatpush.bf16.msra.mxu0 %v593
      %726 = vmatpush.bf16.msra.mxu0 %v591
      %727 = vmatpush.bf16.msra.mxu0 %v589
      %728 = vmatpush.bf16.msra.mxu0 %v587
      %729 = vmatpush.bf16.msra.mxu0 %v585
      %730 = vmatpush.bf16.msra.mxu0 %v583
      %731 = vmatpush.bf16.msra.mxu0 %v581
      %732 = vmatpush.bf16.msra.mxu0 %v579
      %733 = vmatmul.bf16.gmra.mxu0 %v324
      %v734 = vpop.f32.mrf.mxu0
      %v735 = vadd.f32 %v722, %v734
      %v736 = vpop.f32.mrf.mxu0
      %737 = vdwg.mxu0
      %738 = vmatpush.bf16.msra.mxu0 %v609
      %739 = vmatpush.bf16.msra.mxu0 %v607
      %740 = vmatpush.bf16.msra.mxu0 %v605
      %741 = vmatpush.bf16.msra.mxu0 %v603
      %742 = vmatpush.bf16.msra.mxu0 %v601
      %743 = vmatpush.bf16.msra.mxu0 %v599
      %744 = vmatpush.bf16.msra.mxu0 %v597
      %745 = vmatpush.bf16.msra.mxu0 %v595
      %746 = vmatmul.bf16.gmra.mxu0 %v325
      %v747 = vpop.f32.mrf.mxu0
      %v748 = vadd.f32 %v735, %v747
      %v749 = vpop.f32.mrf.mxu0
      %750 = vdwg.mxu0
      %751 = vmatpush.bf16.msra.mxu0 0
      %752 = vmatpush.bf16.msra.mxu0 0
      %753 = vmatpush.bf16.msra.mxu0 0
      %754 = vmatpush.bf16.msra.mxu0 0
      %755 = vmatpush.bf16.msra.mxu0 %v617
      %756 = vmatpush.bf16.msra.mxu0 %v615
      %757 = vmatpush.bf16.msra.mxu0 %v613
      %758 = vmatpush.bf16.msra.mxu0 %v611
      %759 = vmatmul.bf16.gmra.mxu0 %v697
      %v760 = vpop.f32.mrf.mxu0
      %v761 = vadd.f32 %v748, %v760
      %v762 = vpop.f32.mrf.mxu0
      %763 = vdwg.mxu0
      %764 = vmatpush.bf16.msra.mxu0 %v562
      %765 = vmatpush.bf16.msra.mxu0 %v560
      %766 = vmatpush.bf16.msra.mxu0 %v558
      %767 = vmatpush.bf16.msra.mxu0 %v556
      %768 = vmatpush.bf16.msra.mxu0 %v554
      %769 = vmatpush.bf16.msra.mxu0 %v552
      %770 = vmatpush.bf16.msra.mxu0 %v550
      %771 = vmatpush.bf16.msra.mxu0 %v548
      %772 = vmatmul.bf16.gmra.mxu0 %v322
      %v773 = vpop.f32.mrf.mxu0
      %v774 = vadd.f32 %v693, %v773
      %v775 = vpop.f32.mrf.mxu0
      %776 = vdwg.mxu0
      %777 = vmatpush.bf16.msra.mxu0 %v578
      %778 = vmatpush.bf16.msra.mxu0 %v576
      %779 = vmatpush.bf16.msra.mxu0 %v574
      %780 = vmatpush.bf16.msra.mxu0 %v572
      %781 = vmatpush.bf16.msra.mxu0 %v570
      %782 = vmatpush.bf16.msra.mxu0 %v568
      %783 = vmatpush.bf16.msra.mxu0 %v566
      %784 = vmatpush.bf16.msra.mxu0 %v564
      %785 = vmatmul.bf16.gmra.mxu0 %v323
      %v786 = vpop.f32.mrf.mxu0
      %v787 = vadd.f32 %v774, %v786
      %v788 = vpop.f32.mrf.mxu0
      %789 = vdwg.mxu0
      %790 = vmatpush.bf16.msra.mxu0 %v594
      %791 = vmatpush.bf16.msra.mxu0 %v592
      %792 = vmatpush.bf16.msra.mxu0 %v590
      %793 = vmatpush.bf16.msra.mxu0 %v588
      %794 = vmatpush.bf16.msra.mxu0 %v586
      %795 = vmatpush.bf16.msra.mxu0 %v584
      %796 = vmatpush.bf16.msra.mxu0 %v582
      %797 = vmatpush.bf16.msra.mxu0 %v580
      %798 = vmatmul.bf16.gmra.mxu0 %v324
      %v799 = vpop.f32.mrf.mxu0
      %v800 = vadd.f32 %v787, %v799
      %v801 = vpop.f32.mrf.mxu0
      %802 = vdwg.mxu0
      %803 = vmatpush.bf16.msra.mxu0 %v610
      %804 = vmatpush.bf16.msra.mxu0 %v608
      %805 = vmatpush.bf16.msra.mxu0 %v606
      %806 = vmatpush.bf16.msra.mxu0 %v604
      %807 = vmatpush.bf16.msra.mxu0 %v602
      %808 = vmatpush.bf16.msra.mxu0 %v600
      %809 = vmatpush.bf16.msra.mxu0 %v598
      %810 = vmatpush.bf16.msra.mxu0 %v596
      %811 = vmatmul.bf16.gmra.mxu0 %v325
      %v812 = vpop.f32.mrf.mxu0
      %v813 = vadd.f32 %v800, %v812
      %v814 = vpop.f32.mrf.mxu0
      %815 = vdwg.mxu0
      %816 = vmatpush.bf16.msra.mxu0 0
      %817 = vmatpush.bf16.msra.mxu0 0
      %818 = vmatpush.bf16.msra.mxu0 0
      %819 = vmatpush.bf16.msra.mxu0 0
      %820 = vmatpush.bf16.msra.mxu0 %v618
      %821 = vmatpush.bf16.msra.mxu0 %v616
      %822 = vmatpush.bf16.msra.mxu0 %v614
      %823 = vmatpush.bf16.msra.mxu0 %v612
      %824 = vmatmul.bf16.gmra.mxu0 %v697
      %v825 = vpop.f32.mrf.mxu0
      %v826 = vadd.f32 %v813, %v825
      %v827 = vpop.f32.mrf.mxu0
      %828 = vdwg.mxu0
      %v829 = vmax.f32 %v761, 0.0
      %v830 = vpack.c.bf16 %v829, %v829
      %v831 = vld [vmem:[%s4] sm:$0x1]
      %v832 = vadd.f32 %v826, %v831
      %s833 = scalar_lea.vmem %s3, 256
      %v834 = vld [vmem:[%s833] sm:$0xf]
      %v835 = vld [vmem:[%s833 + $0x4] sm:$0xf]
      %v836 = vld [vmem:[%s833 + $0x8] sm:$0xf]
      %v837 = vld [vmem:[%s833 + $0xc] sm:$0xf]
      %v838 = vld [vmem:[%s833 + $0x10] sm:$0xf]
      %v839 = vld [vmem:[%s833 + $0x14] sm:$0xf]
      %v840 = vld [vmem:[%s833 + $0x18] sm:$0xf]
      %v841 = vld [vmem:[%s833 + $0x1c] sm:$0xf]
      %v842 = vld [vmem:[%s833 + $0x20] sm:$0xf]
      %v843 = vld [vmem:[%s833 + $0x24] sm:$0xf]
      %v844 = vld [vmem:[%s833 + $0x28] sm:$0xf]
      %v845 = vld [vmem:[%s833 + $0x2c] sm:$0xf]
      %v846 = vld [vmem:[%s833 + $0x30] sm:$0xf]
      %v847 = vld [vmem:[%s833 + $0x34] sm:$0xf]
      %v848 = vld [vmem:[%s833 + $0x38] sm:$0xf]
      %v849 = vld [vmem:[%s833 + $0x3c] sm:$0xf]
      %v866 = vunpack.c.l.b16 %v834
      %v867 = vunpack.c.l.b16 %v835
      %v868 = vunpack.c.l.b16 %v836
      %v869 = vunpack.c.l.b16 %v837
      %v870 = vunpack.c.l.b16 %v838
      %v871 = vunpack.c.l.b16 %v839
      %v872 = vunpack.c.l.b16 %v840
      %v873 = vunpack.c.l.b16 %v841
      %v874 = vunpack.c.l.b16 %v842
      %v875 = vunpack.c.l.b16 %v843
      %v876 = vunpack.c.l.b16 %v844
      %v877 = vunpack.c.l.b16 %v845
      %v878 = vunpack.c.l.b16 %v846
      %v879 = vunpack.c.l.b16 %v847
      %v880 = vunpack.c.l.b16 %v848
      %v881 = vunpack.c.l.b16 %v849
      %v882 = vpack.c.b16 %v867, %v866
      %v883 = vpack.c.b16 %v869, %v868
      %v884 = vpack.c.b16 %v871, %v870
      %v885 = vpack.c.b16 %v873, %v872
      %v886 = vpack.c.b16 %v875, %v874
      %v887 = vpack.c.b16 %v877, %v876
      %v888 = vpack.c.b16 %v879, %v878
      %v889 = vpack.c.b16 %v881, %v880
      %898 = vmatpush.bf16.msra.mxu0 %v889
      %899 = vmatpush.bf16.msra.mxu0 %v888
      %900 = vmatpush.bf16.msra.mxu0 %v887
      %901 = vmatpush.bf16.msra.mxu0 %v886
      %902 = vmatpush.bf16.msra.mxu0 %v885
      %903 = vmatpush.bf16.msra.mxu0 %v884
      %904 = vmatpush.bf16.msra.mxu0 %v883
      %905 = vmatpush.bf16.msra.mxu0 %v882
      %906 = vmatmul.bf16.gmra.mxu0 %v830
      %v907 = vpop.f32.mrf.mxu0
      %v908 = vadd.f32 0.0, %v907
      %v909 = vpop.f32.mrf.mxu0
      %910 = vdwg.mxu0
      %v911 = vadd.f32 %v832, %v908
      %v912 = vmax.f32 %v911, 0.0
      %v913 = vpack.c.bf16 %v912, %v912
      %vm914 = vcmask 1040384
      %vm915 = vsmask.f32 256
      %vm916 = vmand %vm914, %vm915
      %v917 = vld [vmem:[%s244] sm:$0x1]
      %v918 = vsel %vm916, %v913, %v917
      %919 = vst [vmem:[%s244] sm:$0x1] %v918
      %p920 = scmp.lt.s32.totalorder %s17, 1
      %s921 = scalar_select %p920, %s17, 1
      %s922 = scalar_lea.vmem %s6, %s921
      // Predicated region
      $region45: #{backbone_base_forward.9} parent=43 // pred_check
        %p923 = pneg %p166
      $region46: #{backbone_base_forward.9} parent=43 // pred_check_branch
        %925 = sbr.rel (%p923) target = $region48
      $region47: #{backbone_base_forward.9} parent=43 // pred_region
        _
      $region48: #{backbone_base_forward.9} parent=43 // pred_fallthru
        _
    $region44: #{backbone_base_forward.9} parent=5 // pred_fallthru
      _
    %p926 = scmp.le.s32.totalorder 2, %s12
    // Predicated region
    $region49: #{backbone_base_forward.9} parent=5 // pred_check
      %p927 = pneg %p926
    $region50: #{backbone_base_forward.9} parent=5 // pred_check_branch
      %929 = sbr.rel (%p927) target = $region52
    $region51: #{backbone_base_forward.9} parent=5 // pred_region
      %s930 = ssub.s32 %s12, 2
      // Predicated region
      $region53: #{backbone_base_forward.9} parent=51 // pred_check
        %p931 = pneg %p172
      $region54: #{backbone_base_forward.9} parent=51 // pred_check_branch
        %933 = sbr.rel (%p931) target = $region56
      $region55: #{backbone_base_forward.9} parent=51 // pred_region
        %p934 = scmp.lt.s32.totalorder %s18, 1
        %s935 = scalar_select %p934, %s18, 1
        %s936 = scalar_lea.vmem %s6, %s935
      $region56: #{backbone_base_forward.9} parent=51 // pred_fallthru
        _
    $region52: #{backbone_base_forward.9} parent=5 // pred_fallthru
      _
  $region6: #{backbone_base_forward.9} parent=0 // loop_footer
    %s16 = sadd.s32 1, %s12
  $region7: #{backbone_base_forward.9} parent=0 // loop_footer_branch
    %11 = sbr.rel target = $region3
  $region8: #{backbone_base_forward.9} parent=0 // loop_exit
    _

// kernel: backbone_base_forward.8
$region0: #{backbone_base_forward.8}
  #allocation0 [shape = 'u32[]', space=smem, size = 0x4, offset = 0x4, fixed_abs, tag = 'smem constant byte address 0x4 - core index']
  #allocation1 [shape = 'u32[72,128]{1,0:T(1,128)}', space=vmem, size = 0x9000, scoped, tag = 'internal scratch']
  %s0 = inlined_call_operand.vmem [shape: bf16[2,4,288], index: 0, kind: input, shape index: {}]
  %s1 = inlined_call_operand.vmem [shape: bf16[288,256], index: 1, kind: input, shape index: {}]
  %s2 = inlined_call_operand.vmem [shape: f32[1,256], index: 2, kind: input, shape index: {}]
  %s3 = inlined_call_operand.vmem [shape: bf16[9,128,128], index: 3, kind: input, shape index: {}]
  %s4 = inlined_call_operand.vmem [shape: f32[1,128], index: 4, kind: input, shape index: {}]
  %s5 = inlined_call_operand.vmem [shape: bf16[9,4,4], index: 5, kind: input, shape index: {}]
  %s6 = inlined_call_operand.vmem [shape: bf16[2,4,128], index: 6, kind: output, shape index: {}]
  %s7 = sld [smem:[#allocation0]]
  $region57: #{backbone_base_forward.8} parent=0
    _
  %s9 = ssub.s32 1, %s7
  %s10 = scalar_select 0, %s9, %s7
  loop: start=0, step=1, limit=4
  $region2: #{backbone_base_forward.8} parent=0 // loop_pre_header
    _
  $region3: #{backbone_base_forward.8} parent=0 // loop_header
    %s12 = sphi 0, %s16
    %p13 = scmp.ge.s32.totalorder %s12, 4
    %s22 = sphi 0, %s24
    %s25 = sphi 0, %s22
    %s26 = sphi 0, %s25
    %s42 = sphi 0, %s26
    %s46 = sphi 0, %s46
    %s48 = sphi 0, %s46
    %s49 = sphi 0, %s48
    %s63 = sphi 0, %s49
    %s67 = sphi 0, %s67
    %s69 = sphi 0, %s67
    %s70 = sphi 0, %s69
    %s84 = sphi 0, %s70
    %s88 = sphi 0, %s88
    %s90 = sphi 0, %s88
    %s91 = sphi 0, %s90
    %s105 = sphi 0, %s91
    %s109 = sphi 0, %s109
    %s111 = sphi 0, %s109
    %s112 = sphi 0, %s111
    %s126 = sphi 0, %s112
    %s130 = sphi 0, %s130
    %s132 = sphi 0, %s130
    %s133 = sphi 0, %s132
    %s147 = sphi 0, %s133
    %s153 = sphi 0, %s155
    %s156 = sphi 0, %s153
    %s157 = sphi 0, %s156
    %s173 = sphi 0, %s157
  $region4: #{backbone_base_forward.8} parent=0 // loop_header_branch
    %15 = sbr.rel (%p13) target = $region8
  $region5: #{backbone_base_forward.8} parent=0 // loop_body
    %s17 = ssub.s32 %s12, 1
    %s18 = ssub.s32 %s12, 2
    %s19 = sadd.s32 %s12, 1
    %s20 = ssub.s32 %s12, %s19
    %p21 = scmp.eq.s32.totalorder %s20, 0
    %s23 = sadd.s32 %s22, 1
    %s24 = scalar_select %p21, %s22, %s23
    %p27 = pneg %p21
    %p28 = scmp.eq.s32.totalorder %s12, 1
    %p29 = por %p27, %p28
    %p30 = scmp.ne.s32.totalorder %s22, %s25
    %p31 = scmp.eq.s32.totalorder %s12, 0
    %p32 = por %p30, %p31
    %p33 = scmp.ne.s32.totalorder %s22, %s25
    %p34 = scmp.eq.s32.totalorder %s17, 1
    %p35 = por %p33, %p34
    %p36 = scmp.ne.s32.totalorder %s25, %s26
    %p37 = scmp.eq.s32.totalorder %s17, 0
    %p38 = por %p36, %p37
    %p39 = scmp.ne.s32.totalorder %s25, %s26
    %p40 = scmp.eq.s32.totalorder %s18, 1
    %p41 = por %p39, %p40
    %p43 = scmp.ne.s32.totalorder %s26, %s42
    %p44 = scmp.eq.s32.totalorder %s18, 0
    %p45 = por %p43, %p44
    %s47 = sadd.s32 %s46, 1
    %p50 = scmp.eq.s32.totalorder %s12, 1
    %p51 = scmp.ne.s32.totalorder %s46, %s48
    %p52 = scmp.eq.s32.totalorder %s12, 0
    %p53 = por %p51, %p52
    %p54 = scmp.ne.s32.totalorder %s46, %s48
    %p55 = scmp.eq.s32.totalorder %s17, 1
    %p56 = por %p54, %p55
    %p57 = scmp.ne.s32.totalorder %s48, %s49
    %p58 = scmp.eq.s32.totalorder %s17, 0
    %p59 = por %p57, %p58
    %p60 = scmp.ne.s32.totalorder %s48, %s49
    %p61 = scmp.eq.s32.totalorder %s18, 1
    %p62 = por %p60, %p61
    %p64 = scmp.ne.s32.totalorder %s49, %s63
    %p65 = scmp.eq.s32.totalorder %s18, 0
    %p66 = por %p64, %p65
    %s68 = sadd.s32 %s67, 1
    %p71 = scmp.eq.s32.totalorder %s12, 1
    %p72 = scmp.ne.s32.totalorder %s67, %s69
    %p73 = scmp.eq.s32.totalorder %s12, 0
    %p74 = por %p72, %p73
    %p75 = scmp.ne.s32.totalorder %s67, %s69
    %p76 = scmp.eq.s32.totalorder %s17, 1
    %p77 = por %p75, %p76
    %p78 = scmp.ne.s32.totalorder %s69, %s70
    %p79 = scmp.eq.s32.totalorder %s17, 0
    %p80 = por %p78, %p79
    %p81 = scmp.ne.s32.totalorder %s69, %s70
    %p82 = scmp.eq.s32.totalorder %s18, 1
    %p83 = por %p81, %p82
    %p85 = scmp.ne.s32.totalorder %s70, %s84
    %p86 = scmp.eq.s32.totalorder %s18, 0
    %p87 = por %p85, %p86
    %s89 = sadd.s32 %s88, 1
    %p92 = scmp.eq.s32.totalorder %s12, 1
    %p93 = scmp.ne.s32.totalorder %s88, %s90
    %p94 = scmp.eq.s32.totalorder %s12, 0
    %p95 = por %p93, %p94
    %p96 = scmp.ne.s32.totalorder %s88, %s90
    %p97 = scmp.eq.s32.totalorder %s17, 1
    %p98 = por %p96, %p97
    %p99 = scmp.ne.s32.totalorder %s90, %s91
    %p100 = scmp.eq.s32.totalorder %s17, 0
    %p101 = por %p99, %p100
    %p102 = scmp.ne.s32.totalorder %s90, %s91
    %p103 = scmp.eq.s32.totalorder %s18, 1
    %p104 = por %p102, %p103
    %p106 = scmp.ne.s32.totalorder %s91, %s105
    %p107 = scmp.eq.s32.totalorder %s18, 0
    %p108 = por %p106, %p107
    %s110 = sadd.s32 %s109, 1
    %p113 = scmp.eq.s32.totalorder %s12, 1
    %p114 = scmp.ne.s32.totalorder %s109, %s111
    %p115 = scmp.eq.s32.totalorder %s12, 0
    %p116 = por %p114, %p115
    %p117 = scmp.ne.s32.totalorder %s109, %s111
    %p118 = scmp.eq.s32.totalorder %s17, 1
    %p119 = por %p117, %p118
    %p120 = scmp.ne.s32.totalorder %s111, %s112
    %p121 = scmp.eq.s32.totalorder %s17, 0
    %p122 = por %p120, %p121
    %p123 = scmp.ne.s32.totalorder %s111, %s112
    %p124 = scmp.eq.s32.totalorder %s18, 1
    %p125 = por %p123, %p124
    %p127 = scmp.ne.s32.totalorder %s112, %s126
    %p128 = scmp.eq.s32.totalorder %s18, 0
    %p129 = por %p127, %p128
    %s131 = sadd.s32 %s130, 1
    %p134 = scmp.eq.s32.totalorder %s12, 1
    %p135 = scmp.ne.s32.totalorder %s130, %s132
    %p136 = scmp.eq.s32.totalorder %s12, 0
    %p137 = por %p135, %p136
    %p138 = scmp.ne.s32.totalorder %s130, %s132
    %p139 = scmp.eq.s32.totalorder %s17, 1
    %p140 = por %p138, %p139
    %p141 = scmp.ne.s32.totalorder %s132, %s133
    %p142 = scmp.eq.s32.totalorder %s17, 0
    %p143 = por %p141, %p142
    %p144 = scmp.ne.s32.totalorder %s132, %s133
    %p145 = scmp.eq.s32.totalorder %s18, 1
    %p146 = por %p144, %p145
    %p148 = scmp.ne.s32.totalorder %s133, %s147
    %p149 = scmp.eq.s32.totalorder %s18, 0
    %p150 = por %p148, %p149
    %s151 = ssub.s32 %s12, %s19
    %p152 = scmp.eq.s32.totalorder %s151, 0
    %s154 = sadd.s32 %s153, 1
    %s155 = scalar_select %p152, %s153, %s154
    %p158 = pneg %p152
    %p159 = scmp.eq.s32.totalorder %s12, 1
    %p160 = por %p158, %p159
    %p161 = scmp.ne.s32.totalorder %s153, %s156
    %p162 = scmp.eq.s32.totalorder %s12, 0
    %p163 = por %p161, %p162
    %p164 = scmp.ne.s32.totalorder %s153, %s156
    %p165 = scmp.eq.s32.totalorder %s17, 1
    %p166 = por %p164, %p165
    %p167 = scmp.ne.s32.totalorder %s156, %s157
    %p168 = scmp.eq.s32.totalorder %s17, 0
    %p169 = por %p167, %p168
    %p170 = scmp.ne.s32.totalorder %s156, %s157
    %p171 = scmp.eq.s32.totalorder %s18, 1
    %p172 = por %p170, %p171
    %p174 = scmp.ne.s32.totalorder %s157, %s173
    %p175 = scmp.eq.s32.totalorder %s18, 0
    %p176 = por %p174, %p175
    %p177 = scmp.le.s32.totalorder 1, %s12
    %p178 = scmp.lt.s32.totalorder %s12, 3
    %p179 = pnand %p177, %p178
    %p180 = pneg %p179
    // Predicated region
    $region9: #{backbone_base_forward.8} parent=5 // pred_check
      _
    $region10: #{backbone_base_forward.8} parent=5 // pred_check_branch
      %182 = sbr.rel (%p179) target = $region12
    $region11: #{backbone_base_forward.8} parent=5 // pred_region
      %s183 = ssub.s32 %s12, 1
      // Predicated region
      $region13: #{backbone_base_forward.8} parent=11 // pred_check
        %p184 = pneg %p59
      $region14: #{backbone_base_forward.8} parent=11 // pred_check_branch
        %186 = sbr.rel (%p184) target = $region16
      $region15: #{backbone_base_forward.8} parent=11 // pred_region
        _
      $region16: #{backbone_base_forward.8} parent=11 // pred_fallthru
        _
      // Predicated region
      $region17: #{backbone_base_forward.8} parent=11 // pred_check
        %p187 = pneg %p80
      $region18: #{backbone_base_forward.8} parent=11 // pred_check_branch
        %189 = sbr.rel (%p187) target = $region20
      $region19: #{backbone_base_forward.8} parent=11 // pred_region
        _
      $region20: #{backbone_base_forward.8} parent=11 // pred_fallthru
        _
      // Predicated region
      $region21: #{backbone_base_forward.8} parent=11 // pred_check
        %p190 = pneg %p101
      $region22: #{backbone_base_forward.8} parent=11 // pred_check_branch
        %192 = sbr.rel (%p190) target = $region24
      $region23: #{backbone_base_forward.8} parent=11 // pred_region
        _
      $region24: #{backbone_base_forward.8} parent=11 // pred_fallthru
        _
      // Predicated region
      $region25: #{backbone_base_forward.8} parent=11 // pred_check
        %p193 = pneg %p122
      $region26: #{backbone_base_forward.8} parent=11 // pred_check_branch
        %195 = sbr.rel (%p193) target = $region28
      $region27: #{backbone_base_forward.8} parent=11 // pred_region
        _
      $region28: #{backbone_base_forward.8} parent=11 // pred_fallthru
        _
      // Predicated region
      $region29: #{backbone_base_forward.8} parent=11 // pred_check
        %p196 = pneg %p143
      $region30: #{backbone_base_forward.8} parent=11 // pred_check_branch
        %198 = sbr.rel (%p196) target = $region32
      $region31: #{backbone_base_forward.8} parent=11 // pred_region
        _
      $region32: #{backbone_base_forward.8} parent=11 // pred_fallthru
        _
    $region12: #{backbone_base_forward.8} parent=5 // pred_fallthru
      _
    %p199 = scmp.lt.s32.totalorder %s12, 2
    // Predicated region
    $region33: #{backbone_base_forward.8} parent=5 // pred_check
      %p200 = pneg %p199
    $region34: #{backbone_base_forward.8} parent=5 // pred_check_branch
      %202 = sbr.rel (%p200) target = $region36
    $region35: #{backbone_base_forward.8} parent=5 // pred_region
      // Predicated region
      $region37: #{backbone_base_forward.8} parent=35 // pred_check
        %p203 = pneg %p32
      $region38: #{backbone_base_forward.8} parent=35 // pred_check_branch
        %205 = sbr.rel (%p203) target = $region40
      $region39: #{backbone_base_forward.8} parent=35 // pred_region
        %p206 = scmp.lt.s32.totalorder %s12, 1
        %s207 = scalar_select %p206, %s12, 1
        %s208 = smul.addr %s207, 3
        %s209 = smul.addr %s208, 2
        %s210 = scalar_lea.vmem %s0, %s209
      $region40: #{backbone_base_forward.8} parent=35 // pred_fallthru
        _
    $region36: #{backbone_base_forward.8} parent=5 // pred_fallthru
      _
    %p211 = scmp.le.s32.totalorder 1, %s12
    %p212 = scmp.lt.s32.totalorder %s12, 3
    %p213 = pnand %p211, %p212
    %p214 = pneg %p213
    // Predicated region
    $region41: #{backbone_base_forward.8} parent=5 // pred_check
      _
    $region42: #{backbone_base_forward.8} parent=5 // pred_check_branch
      %216 = sbr.rel (%p213) target = $region44
    $region43: #{backbone_base_forward.8} parent=5 // pred_region
      %s217 = ssub.s32 %s12, 1
      %p218 = scmp.lt.s32.totalorder %s17, 1
      %s219 = scalar_select %p218, %s17, 1
      %s220 = smul.addr %s219, 3
      %s221 = smul.addr %s220, 2
      %s222 = scalar_lea.vmem %s0, %s221
      %p223 = pneg %p38
      %p224 = pneg %p35
      %p225 = pneg %p59
      %p226 = pneg %p56
      %p227 = pneg %p80
      %p228 = pneg %p77
      %p229 = pneg %p101
      %p230 = pneg %p98
      %p231 = pneg %p122
      %p232 = pneg %p119
      %p233 = pneg %p143
      %p234 = pneg %p140
      %p235 = pneg %p169
      %p236 = pneg %p166
      %p237 = scmp.lt.s32.totalorder %s17, 1
      %s238 = scalar_select %p237, %s17, 1
      %s239 = smul.addr %s238, 2
      %s240 = scalar_lea.vmem %s6, %s239
      %p241 = scmp.lt.s32.totalorder %s17, 1
      %s242 = scalar_select %p241, %s17, 1
      %s243 = smul.addr %s242, 3
      %s244 = smul.addr %s243, 2
      %s245 = scalar_lea.vmem %s0, %s244
      %p246 = scmp.lt.s32.totalorder %s17, 1
      %s247 = scalar_select %p246, %s17, 1
      %s248 = smul.addr %s247, 2
      %s249 = scalar_lea.vmem %s6, %s248
      %v251 = vld [vmem:[%s245] sm:$0x3f]
      %v252 = vld [vmem:[%s1] sm:$0xff]
      %v253 = vld [vmem:[%s1 + $0x8] sm:$0xff]
      %v254 = vld [vmem:[%s1 + $0x10] sm:$0xff]
      %v255 = vld [vmem:[%s1 + $0x18] sm:$0xff]
      %v256 = vld [vmem:[%s1 + $0x20] sm:$0xff]
      %v257 = vld [vmem:[%s1 + $0x28] sm:$0xff]
      %v258 = vld [vmem:[%s1 + $0x30] sm:$0xff]
      %v259 = vld [vmem:[%s1 + $0x38] sm:$0xff]
      %v260 = vld [vmem:[%s1 + $0x40] sm:$0xff]
      %v261 = vld [vmem:[%s1 + $0x48] sm:$0xff]
      %v262 = vld [vmem:[%s1 + $0x50] sm:$0xff]
      %v263 = vld [vmem:[%s1 + $0x58] sm:$0xff]
      %v264 = vld [vmem:[%s1 + $0x60] sm:$0xff]
      %v265 = vld [vmem:[%s1 + $0x68] sm:$0xff]
      %v266 = vld [vmem:[%s1 + $0x70] sm:$0xff]
      %v267 = vld [vmem:[%s1 + $0x78] sm:$0xff]
      %v268 = vld [vmem:[%s1 + $0x80] sm:$0xff]
      %v269 = vld [vmem:[%s1 + $0x88] sm:$0xff]
      %v270 = vld [vmem:[%s1 + $0x90] sm:$0xff]
      %v271 = vld [vmem:[%s1 + $0x98] sm:$0xff]
      %v272 = vld [vmem:[%s1 + $0xa0] sm:$0xff]
      %v273 = vld [vmem:[%s1 + $0xa8] sm:$0xff]
      %v274 = vld [vmem:[%s1 + $0xb0] sm:$0xff]
      %v275 = vld [vmem:[%s1 + $0xb8] sm:$0xff]
      %v276 = vld [vmem:[%s1 + $0xc0] sm:$0xff]
      %v277 = vld [vmem:[%s1 + $0xc8] sm:$0xff]
      %v278 = vld [vmem:[%s1 + $0xd0] sm:$0xff]
      %v279 = vld [vmem:[%s1 + $0xd8] sm:$0xff]
      %v280 = vld [vmem:[%s1 + $0xe0] sm:$0xff]
      %v281 = vld [vmem:[%s1 + $0xe8] sm:$0xff]
      %v282 = vld [vmem:[%s1 + $0xf0] sm:$0xff]
      %v283 = vld [vmem:[%s1 + $0xf8] sm:$0xff]
      %v284 = vld [vmem:[%s1 + $0x100] sm:$0xff]
      %v285 = vld [vmem:[%s1 + $0x108] sm:$0xff]
      %v286 = vld [vmem:[%s1 + $0x110] sm:$0xff]
      %v287 = vld [vmem:[%s1 + $0x118] sm:$0xff]
      %v288 = vld [vmem:[%s2] sm:$0x3]
      %v290 = vperm.slane %v288, 0
      %v291 = vperm.slane %v288, 1
      %295 = vst [vmem:[#allocation1] ss:$4 sm:$0xff] %v251
      %v296 = vld.sshfl [vmem:[#allocation1] sm:$0xff pattern:$0x73625140]
      %v297 = vld.sshfl [vmem:[#allocation1 + $0x8] sm:$0xff pattern:$0x73625140]
      %v298 = vld.sshfl [vmem:[#allocation1 + $0x10] sm:$0xff pattern:$0x73625140]
      %v337 = vunpack.c.l.b16 %v252
      %v338 = vunpack.c.h.b16 %v252
      %v339 = vunpack.c.l.b16 %v253
      %v340 = vunpack.c.h.b16 %v253
      %v341 = vunpack.c.l.b16 %v254
      %v342 = vunpack.c.h.b16 %v254
      %v343 = vunpack.c.l.b16 %v255
      %v344 = vunpack.c.h.b16 %v255
      %v345 = vunpack.c.l.b16 %v256
      %v346 = vunpack.c.h.b16 %v256
      %v347 = vunpack.c.l.b16 %v257
      %v348 = vunpack.c.h.b16 %v257
      %v349 = vunpack.c.l.b16 %v258
      %v350 = vunpack.c.h.b16 %v258
      %v351 = vunpack.c.l.b16 %v259
      %v352 = vunpack.c.h.b16 %v259
      %v353 = vunpack.c.l.b16 %v260
      %v354 = vunpack.c.h.b16 %v260
      %v355 = vunpack.c.l.b16 %v261
      %v356 = vunpack.c.h.b16 %v261
      %v357 = vunpack.c.l.b16 %v262
      %v358 = vunpack.c.h.b16 %v262
      %v359 = vunpack.c.l.b16 %v263
      %v360 = vunpack.c.h.b16 %v263
      %v361 = vunpack.c.l.b16 %v264
      %v362 = vunpack.c.h.b16 %v264
      %v363 = vunpack.c.l.b16 %v265
      %v364 = vunpack.c.h.b16 %v265
      %v365 = vunpack.c.l.b16 %v266
      %v366 = vunpack.c.h.b16 %v266
      %v367 = vunpack.c.l.b16 %v267
      %v368 = vunpack.c.h.b16 %v267
      %v369 = vunpack.c.l.b16 %v268
      %v370 = vunpack.c.h.b16 %v268
      %v371 = vunpack.c.l.b16 %v269
      %v372 = vunpack.c.h.b16 %v269
      %v373 = vunpack.c.l.b16 %v270
      %v374 = vunpack.c.h.b16 %v270
      %v375 = vunpack.c.l.b16 %v271
      %v376 = vunpack.c.h.b16 %v271
      %v377 = vunpack.c.l.b16 %v272
      %v378 = vunpack.c.h.b16 %v272
      %v379 = vunpack.c.l.b16 %v273
      %v380 = vunpack.c.h.b16 %v273
      %v381 = vunpack.c.l.b16 %v274
      %v382 = vunpack.c.h.b16 %v274
      %v383 = vunpack.c.l.b16 %v275
      %v384 = vunpack.c.h.b16 %v275
      %v385 = vunpack.c.l.b16 %v276
      %v386 = vunpack.c.h.b16 %v276
      %v387 = vunpack.c.l.b16 %v277
      %v388 = vunpack.c.h.b16 %v277
      %v389 = vunpack.c.l.b16 %v278
      %v390 = vunpack.c.h.b16 %v278
      %v391 = vunpack.c.l.b16 %v279
      %v392 = vunpack.c.h.b16 %v279
      %v393 = vunpack.c.l.b16 %v280
      %v394 = vunpack.c.h.b16 %v280
      %v395 = vunpack.c.l.b16 %v281
      %v396 = vunpack.c.h.b16 %v281
      %v397 = vunpack.c.l.b16 %v282
      %v398 = vunpack.c.h.b16 %v282
      %v399 = vunpack.c.l.b16 %v283
      %v400 = vunpack.c.h.b16 %v283
      %v401 = vunpack.c.l.b16 %v284
      %v402 = vunpack.c.h.b16 %v284
      %v403 = vunpack.c.l.b16 %v285
      %v404 = vunpack.c.h.b16 %v285
      %v405 = vunpack.c.l.b16 %v286
      %v406 = vunpack.c.h.b16 %v286
      %v407 = vunpack.c.l.b16 %v287
      %v408 = vunpack.c.h.b16 %v287
      %v409 = vpack.c.b16 %v339, %v337
      %v410 = vpack.c.b16 %v340, %v338
      %v411 = vpack.c.b16 %v343, %v341
      %v412 = vpack.c.b16 %v344, %v342
      %v413 = vpack.c.b16 %v347, %v345
      %v414 = vpack.c.b16 %v348, %v346
      %v415 = vpack.c.b16 %v351, %v349
      %v416 = vpack.c.b16 %v352, %v350
      %v417 = vpack.c.b16 %v355, %v353
      %v418 = vpack.c.b16 %v356, %v354
      %v419 = vpack.c.b16 %v359, %v357
      %v420 = vpack.c.b16 %v360, %v358
      %v421 = vpack.c.b16 %v363, %v361
      %v422 = vpack.c.b16 %v364, %v362
      %v423 = vpack.c.b16 %v367, %v365
      %v424 = vpack.c.b16 %v368, %v366
      %v425 = vpack.c.b16 %v371, %v369
      %v426 = vpack.c.b16 %v372, %v370
      %v427 = vpack.c.b16 %v375, %v373
      %v428 = vpack.c.b16 %v376, %v374
      %v429 = vpack.c.b16 %v379, %v377
      %v430 = vpack.c.b16 %v380, %v378
      %v431 = vpack.c.b16 %v383, %v381
      %v432 = vpack.c.b16 %v384, %v382
      %v433 = vpack.c.b16 %v387, %v385
      %v434 = vpack.c.b16 %v388, %v386
      %v435 = vpack.c.b16 %v391, %v389
      %v436 = vpack.c.b16 %v392, %v390
      %v437 = vpack.c.b16 %v395, %v393
      %v438 = vpack.c.b16 %v396, %v394
      %v439 = vpack.c.b16 %v399, %v397
      %v440 = vpack.c.b16 %v400, %v398
      %v441 = vpack.c.b16 %v403, %v401
      %v442 = vpack.c.b16 %v404, %v402
      %v443 = vpack.c.b16 %v407, %v405
      %v444 = vpack.c.b16 %v408, %v406
      %vm481 = vcmask 261120
      %v482 = vsel %vm481, %v298, 0
      %484 = vmatpush.bf16.msra.mxu0 %v423
      %485 = vmatpush.bf16.msra.mxu0 %v421
      %486 = vmatpush.bf16.msra.mxu0 %v419
      %487 = vmatpush.bf16.msra.mxu0 %v417
      %488 = vmatpush.bf16.msra.mxu0 %v415
      %489 = vmatpush.bf16.msra.mxu0 %v413
      %490 = vmatpush.bf16.msra.mxu0 %v411
      %491 = vmatpush.bf16.msra.mxu0 %v409
      %492 = vmatmul.bf16.gmra.mxu0 %v296
      %v493 = vpop.f32.mrf.mxu0
      %v494 = vadd.f32 %v290, %v493
      %v495 = vpop.f32.mrf.mxu0
      %496 = vdwg.mxu0
      %497 = vmatpush.bf16.msra.mxu0 %v439
      %498 = vmatpush.bf16.msra.mxu0 %v437
      %499 = vmatpush.bf16.msra.mxu0 %v435
      %500 = vmatpush.bf16.msra.mxu0 %v433
      %501 = vmatpush.bf16.msra.mxu0 %v431
      %502 = vmatpush.bf16.msra.mxu0 %v429
      %503 = vmatpush.bf16.msra.mxu0 %v427
      %504 = vmatpush.bf16.msra.mxu0 %v425
      %505 = vmatmul.bf16.gmra.mxu0 %v297
      %v506 = vpop.f32.mrf.mxu0
      %v507 = vadd.f32 %v494, %v506
      %v508 = vpop.f32.mrf.mxu0
      %509 = vdwg.mxu0
      %510 = vmatpush.bf16.msra.mxu0 0
      %511 = vmatpush.bf16.msra.mxu0 0
      %512 = vmatpush.bf16.msra.mxu0 0
      %513 = vmatpush.bf16.msra.mxu0 0
      %514 = vmatpush.bf16.msra.mxu0 0
      %515 = vmatpush.bf16.msra.mxu0 0
      %516 = vmatpush.bf16.msra.mxu0 %v443
      %517 = vmatpush.bf16.msra.mxu0 %v441
      %518 = vmatmul.bf16.gmra.mxu0 %v482
      %v519 = vpop.f32.mrf.mxu0
      %v520 = vadd.f32 %v507, %v519
      %v521 = vpop.f32.mrf.mxu0
      %522 = vdwg.mxu0
      %523 = vmatpush.bf16.msra.mxu0 %v424
      %524 = vmatpush.bf16.msra.mxu0 %v422
      %525 = vmatpush.bf16.msra.mxu0 %v420
      %526 = vmatpush.bf16.msra.mxu0 %v418
      %527 = vmatpush.bf16.msra.mxu0 %v416
      %528 = vmatpush.bf16.msra.mxu0 %v414
      %529 = vmatpush.bf16.msra.mxu0 %v412
      %530 = vmatpush.bf16.msra.mxu0 %v410
      %531 = vmatmul.bf16.gmra.mxu0 %v296
      %v532 = vpop.f32.mrf.mxu0
      %v533 = vadd.f32 %v291, %v532
      %v534 = vpop.f32.mrf.mxu0
      %535 = vdwg.mxu0
      %536 = vmatpush.bf16.msra.mxu0 %v440
      %537 = vmatpush.bf16.msra.mxu0 %v438
      %538 = vmatpush.bf16.msra.mxu0 %v436
      %539 = vmatpush.bf16.msra.mxu0 %v434
      %540 = vmatpush.bf16.msra.mxu0 %v432
      %541 = vmatpush.bf16.msra.mxu0 %v430
      %542 = vmatpush.bf16.msra.mxu0 %v428
      %543 = vmatpush.bf16.msra.mxu0 %v426
      %544 = vmatmul.bf16.gmra.mxu0 %v297
      %v545 = vpop.f32.mrf.mxu0
      %v546 = vadd.f32 %v533, %v545
      %v547 = vpop.f32.mrf.mxu0
      %548 = vdwg.mxu0
      %549 = vmatpush.bf16.msra.mxu0 0
      %550 = vmatpush.bf16.msra.mxu0 0
      %551 = vmatpush.bf16.msra.mxu0 0
      %552 = vmatpush.bf16.msra.mxu0 0
      %553 = vmatpush.bf16.msra.mxu0 0
      %554 = vmatpush.bf16.msra.mxu0 0
      %555 = vmatpush.bf16.msra.mxu0 %v444
      %556 = vmatpush.bf16.msra.mxu0 %v442
      %557 = vmatmul.bf16.gmra.mxu0 %v482
      %v558 = vpop.f32.mrf.mxu0
      %v559 = vadd.f32 %v546, %v558
      %v560 = vpop.f32.mrf.mxu0
      %561 = vdwg.mxu0
      %v562 = vmax.f32 %v520, 0.0
      %v563 = vpack.c.bf16 %v562, %v562
      %v564 = vld [vmem:[%s4] sm:$0x1]
      %v566 = vperm.slane %v564, 0
      %v568 = vadd.f32 %v559, %v566
      %v569 = vld [vmem:[%s5] sm:$0x3]
      %vm570 = vcmask 31744
      %v572 = vsel %vm570, %v569, 0
      %vm574 = vcmask 1041408
      %v576 = vsel %vm574, %v563, 0
      %578 = vmatpush.bf16.msra.mxu0 0
      %579 = vmatpush.bf16.msra.mxu0 0
      %580 = vmatpush.bf16.msra.mxu0 0
      %581 = vmatpush.bf16.msra.mxu0 0
      %582 = vmatpush.bf16.msra.mxu0 0
      %583 = vmatpush.bf16.msra.mxu0 0
      %584 = vmatpush.bf16.msra.mxu0 0
      %585 = vmatpush.bf16.msra.mxu0 %v576
      %586 = vmatmul.bf16.gmra.mxu0 %v572
      %v587 = vpop.f32.mrf.mxu0
      %v588 = vadd.f32 0.0, %v587
      %v589 = vpop.f32.mrf.mxu0
      %590 = vdwg.mxu0
      %v591 = vpack.c.bf16 %v588, %v588
      %v592 = vld [vmem:[%s3] sm:$0xf]
      %v593 = vld [vmem:[%s3 + $0x4] sm:$0xf]
      %v594 = vld [vmem:[%s3 + $0x8] sm:$0xf]
      %v595 = vld [vmem:[%s3 + $0xc] sm:$0xf]
      %v596 = vld [vmem:[%s3 + $0x10] sm:$0xf]
      %v597 = vld [vmem:[%s3 + $0x14] sm:$0xf]
      %v598 = vld [vmem:[%s3 + $0x18] sm:$0xf]
      %v599 = vld [vmem:[%s3 + $0x1c] sm:$0xf]
      %v600 = vld [vmem:[%s3 + $0x20] sm:$0xf]
      %v601 = vld [vmem:[%s3 + $0x24] sm:$0xf]
      %v602 = vld [vmem:[%s3 + $0x28] sm:$0xf]
      %v603 = vld [vmem:[%s3 + $0x2c] sm:$0xf]
      %v604 = vld [vmem:[%s3 + $0x30] sm:$0xf]
      %v605 = vld [vmem:[%s3 + $0x34] sm:$0xf]
      %v606 = vld [vmem:[%s3 + $0x38] sm:$0xf]
      %v607 = vld [vmem:[%s3 + $0x3c] sm:$0xf]
      %v624 = vunpack.c.l.b16 %v592
      %v625 = vunpack.c.l.b16 %v593
      %v626 = vunpack.c.l.b16 %v594
      %v627 = vunpack.c.l.b16 %v595
      %v628 = vunpack.c.l.b16 %v596
      %v629 = vunpack.c.l.b16 %v597
      %v630 = vunpack.c.l.b16 %v598
      %v631 = vunpack.c.l.b16 %v599
      %v632 = vunpack.c.l.b16 %v600
      %v633 = vunpack.c.l.b16 %v601
      %v634 = vunpack.c.l.b16 %v602
      %v635 = vunpack.c.l.b16 %v603
      %v636 = vunpack.c.l.b16 %v604
      %v637 = vunpack.c.l.b16 %v605
      %v638 = vunpack.c.l.b16 %v606
      %v639 = vunpack.c.l.b16 %v607
      %v640 = vpack.c.b16 %v625, %v624
      %v641 = vpack.c.b16 %v627, %v626
      %v642 = vpack.c.b16 %v629, %v628
      %v643 = vpack.c.b16 %v631, %v630
      %v644 = vpack.c.b16 %v633, %v632
      %v645 = vpack.c.b16 %v635, %v634
      %v646 = vpack.c.b16 %v637, %v636
      %v647 = vpack.c.b16 %v639, %v638
      %656 = vmatpush.bf16.msra.mxu0 %v647
      %657 = vmatpush.bf16.msra.mxu0 %v646
      %658 = vmatpush.bf16.msra.mxu0 %v645
      %659 = vmatpush.bf16.msra.mxu0 %v644
      %660 = vmatpush.bf16.msra.mxu0 %v643
      %661 = vmatpush.bf16.msra.mxu0 %v642
      %662 = vmatpush.bf16.msra.mxu0 %v641
      %663 = vmatpush.bf16.msra.mxu0 %v640
      %664 = vmatmul.bf16.gmra.mxu0 %v591
      %v665 = vpop.f32.mrf.mxu0
      %v666 = vadd.f32 0.0, %v665
      %v667 = vpop.f32.mrf.mxu0
      %668 = vdwg.mxu0
      %v669 = vadd.f32 %v568, %v666
      %s670 = scalar_lea.vmem %s5, 2
      %v671 = vld [vmem:[%s670] sm:$0x3]
      %v673 = vsel %vm570, %v671, 0
      %675 = vmatpush.bf16.msra.mxu0 0
      %676 = vmatpush.bf16.msra.mxu0 0
      %677 = vmatpush.bf16.msra.mxu0 0
      %678 = vmatpush.bf16.msra.mxu0 0
      %679 = vmatpush.bf16.msra.mxu0 0
      %680 = vmatpush.bf16.msra.mxu0 0
      %681 = vmatpush.bf16.msra.mxu0 0
      %682 = vmatpush.bf16.msra.mxu0 %v576
      %683 = vmatmul.bf16.gmra.mxu0 %v673
      %v684 = vpop.f32.mrf.mxu0
      %v685 = vadd.f32 0.0, %v684
      %v686 = vpop.f32.mrf.mxu0
      %687 = vdwg.mxu0
      %v688 = vpack.c.bf16 %v685, %v685
      %s689 = scalar_lea.vmem %s3, 64
      %v690 = vld [vmem:[%s689] sm:$0xf]
      %v691 = vld [vmem:[%s689 + $0x4] sm:$0xf]
      %v692 = vld [vmem:[%s689 + $0x8] sm:$0xf]
      %v693 = vld [vmem:[%s689 + $0xc] sm:$0xf]
      %v694 = vld [vmem:[%s689 + $0x10] sm:$0xf]
      %v695 = vld [vmem:[%s689 + $0x14] sm:$0xf]
      %v696 = vld [vmem:[%s689 + $0x18] sm:$0xf]
      %v697 = vld [vmem:[%s689 + $0x1c] sm:$0xf]
      %v698 = vld [vmem:[%s689 + $0x20] sm:$0xf]
      %v699 = vld [vmem:[%s689 + $0x24] sm:$0xf]
      %v700 = vld [vmem:[%s689 + $0x28] sm:$0xf]
      %v701 = vld [vmem:[%s689 + $0x2c] sm:$0xf]
      %v702 = vld [vmem:[%s689 + $0x30] sm:$0xf]
      %v703 = vld [vmem:[%s689 + $0x34] sm:$0xf]
      %v704 = vld [vmem:[%s689 + $0x38] sm:$0xf]
      %v705 = vld [vmem:[%s689 + $0x3c] sm:$0xf]
      %v722 = vunpack.c.l.b16 %v690
      %v723 = vunpack.c.l.b16 %v691
      %v724 = vunpack.c.l.b16 %v692
      %v725 = vunpack.c.l.b16 %v693
      %v726 = vunpack.c.l.b16 %v694
      %v727 = vunpack.c.l.b16 %v695
      %v728 = vunpack.c.l.b16 %v696
      %v729 = vunpack.c.l.b16 %v697
      %v730 = vunpack.c.l.b16 %v698
      %v731 = vunpack.c.l.b16 %v699
      %v732 = vunpack.c.l.b16 %v700
      %v733 = vunpack.c.l.b16 %v701
      %v734 = vunpack.c.l.b16 %v702
      %v735 = vunpack.c.l.b16 %v703
      %v736 = vunpack.c.l.b16 %v704
      %v737 = vunpack.c.l.b16 %v705
      %v738 = vpack.c.b16 %v723, %v722
      %v739 = vpack.c.b16 %v725, %v724
      %v740 = vpack.c.b16 %v727, %v726
      %v741 = vpack.c.b16 %v729, %v728
      %v742 = vpack.c.b16 %v731, %v730
      %v743 = vpack.c.b16 %v733, %v732
      %v744 = vpack.c.b16 %v735, %v734
      %v745 = vpack.c.b16 %v737, %v736
      %754 = vmatpush.bf16.msra.mxu0 %v745
      %755 = vmatpush.bf16.msra.mxu0 %v744
      %756 = vmatpush.bf16.msra.mxu0 %v743
      %757 = vmatpush.bf16.msra.mxu0 %v742
      %758 = vmatpush.bf16.msra.mxu0 %v741
      %759 = vmatpush.bf16.msra.mxu0 %v740
      %760 = vmatpush.bf16.msra.mxu0 %v739
      %761 = vmatpush.bf16.msra.mxu0 %v738
      %762 = vmatmul.bf16.gmra.mxu0 %v688
      %v763 = vpop.f32.mrf.mxu0
      %v764 = vadd.f32 0.0, %v763
      %v765 = vpop.f32.mrf.mxu0
      %766 = vdwg.mxu0
      %v767 = vadd.f32 %v669, %v764
      %s768 = scalar_lea.vmem %s5, 4
      %v769 = vld [vmem:[%s768] sm:$0x3]
      %v771 = vsel %vm570, %v769, 0
      %773 = vmatpush.bf16.msra.mxu0 0
      %774 = vmatpush.bf16.msra.mxu0 0
      %775 = vmatpush.bf16.msra.mxu0 0
      %776 = vmatpush.bf16.msra.mxu0 0
      %777 = vmatpush.bf16.msra.mxu0 0
      %778 = vmatpush.bf16.msra.mxu0 0
      %779 = vmatpush.bf16.msra.mxu0 0
      %780 = vmatpush.bf16.msra.mxu0 %v576
      %781 = vmatmul.bf16.gmra.mxu0 %v771
      %v782 = vpop.f32.mrf.mxu0
      %v783 = vadd.f32 0.0, %v782
      %v784 = vpop.f32.mrf.mxu0
      %785 = vdwg.mxu0
      %v786 = vpack.c.bf16 %v783, %v783
      %s787 = scalar_lea.vmem %s3, 128
      %v788 = vld [vmem:[%s787] sm:$0xf]
      %v789 = vld [vmem:[%s787 + $0x4] sm:$0xf]
      %v790 = vld [vmem:[%s787 + $0x8] sm:$0xf]
      %v791 = vld [vmem:[%s787 + $0xc] sm:$0xf]
      %v792 = vld [vmem:[%s787 + $0x10] sm:$0xf]
      %v793 = vld [vmem:[%s787 + $0x14] sm:$0xf]
      %v794 = vld [vmem:[%s787 + $0x18] sm:$0xf]
      %v795 = vld [vmem:[%s787 + $0x1c] sm:$0xf]
      %v796 = vld [vmem:[%s787 + $0x20] sm:$0xf]
      %v797 = vld [vmem:[%s787 + $0x24] sm:$0xf]
      %v798 = vld [vmem:[%s787 + $0x28] sm:$0xf]
      %v799 = vld [vmem:[%s787 + $0x2c] sm:$0xf]
      %v800 = vld [vmem:[%s787 + $0x30] sm:$0xf]
      %v801 = vld [vmem:[%s787 + $0x34] sm:$0xf]
      %v802 = vld [vmem:[%s787 + $0x38] sm:$0xf]
      %v803 = vld [vmem:[%s787 + $0x3c] sm:$0xf]
      %v820 = vunpack.c.l.b16 %v788
      %v821 = vunpack.c.l.b16 %v789
      %v822 = vunpack.c.l.b16 %v790
      %v823 = vunpack.c.l.b16 %v791
      %v824 = vunpack.c.l.b16 %v792
      %v825 = vunpack.c.l.b16 %v793
      %v826 = vunpack.c.l.b16 %v794
      %v827 = vunpack.c.l.b16 %v795
      %v828 = vunpack.c.l.b16 %v796
      %v829 = vunpack.c.l.b16 %v797
      %v830 = vunpack.c.l.b16 %v798
      %v831 = vunpack.c.l.b16 %v799
      %v832 = vunpack.c.l.b16 %v800
      %v833 = vunpack.c.l.b16 %v801
      %v834 = vunpack.c.l.b16 %v802
      %v835 = vunpack.c.l.b16 %v803
      %v836 = vpack.c.b16 %v821, %v820
      %v837 = vpack.c.b16 %v823, %v822
      %v838 = vpack.c.b16 %v825, %v824
      %v839 = vpack.c.b16 %v827, %v826
      %v840 = vpack.c.b16 %v829, %v828
      %v841 = vpack.c.b16 %v831, %v830
      %v842 = vpack.c.b16 %v833, %v832
      %v843 = vpack.c.b16 %v835, %v834
      %852 = vmatpush.bf16.msra.mxu0 %v843
      %853 = vmatpush.bf16.msra.mxu0 %v842
      %854 = vmatpush.bf16.msra.mxu0 %v841
      %855 = vmatpush.bf16.msra.mxu0 %v840
      %856 = vmatpush.bf16.msra.mxu0 %v839
      %857 = vmatpush.bf16.msra.mxu0 %v838
      %858 = vmatpush.bf16.msra.mxu0 %v837
      %859 = vmatpush.bf16.msra.mxu0 %v836
      %860 = vmatmul.bf16.gmra.mxu0 %v786
      %v861 = vpop.f32.mrf.mxu0
      %v862 = vadd.f32 0.0, %v861
      %v863 = vpop.f32.mrf.mxu0
      %864 = vdwg.mxu0
      %v865 = vadd.f32 %v767, %v862
      %s866 = scalar_lea.vmem %s5, 6
      %v867 = vld [vmem:[%s866] sm:$0x3]
      %v869 = vsel %vm570, %v867, 0
      %871 = vmatpush.bf16.msra.mxu0 0
      %872 = vmatpush.bf16.msra.mxu0 0
      %873 = vmatpush.bf16.msra.mxu0 0
      %874 = vmatpush.bf16.msra.mxu0 0
      %875 = vmatpush.bf16.msra.mxu0 0
      %876 = vmatpush.bf16.msra.mxu0 0
      %877 = vmatpush.bf16.msra.mxu0 0
      %878 = vmatpush.bf16.msra.mxu0 %v576
      %879 = vmatmul.bf16.gmra.mxu0 %v869
      %v880 = vpop.f32.mrf.mxu0
      %v881 = vadd.f32 0.0, %v880
      %v882 = vpop.f32.mrf.mxu0
      %883 = vdwg.mxu0
      %v884 = vpack.c.bf16 %v881, %v881
      %s885 = scalar_lea.vmem %s3, 192
      %v886 = vld [vmem:[%s885] sm:$0xf]
      %v887 = vld [vmem:[%s885 + $0x4] sm:$0xf]
      %v888 = vld [vmem:[%s885 + $0x8] sm:$0xf]
      %v889 = vld [vmem:[%s885 + $0xc] sm:$0xf]
      %v890 = vld [vmem:[%s885 + $0x10] sm:$0xf]
      %v891 = vld [vmem:[%s885 + $0x14] sm:$0xf]
      %v892 = vld [vmem:[%s885 + $0x18] sm:$0xf]
      %v893 = vld [vmem:[%s885 + $0x1c] sm:$0xf]
      %v894 = vld [vmem:[%s885 + $0x20] sm:$0xf]
      %v895 = vld [vmem:[%s885 + $0x24] sm:$0xf]
      %v896 = vld [vmem:[%s885 + $0x28] sm:$0xf]
      %v897 = vld [vmem:[%s885 + $0x2c] sm:$0xf]
      %v898 = vld [vmem:[%s885 + $0x30] sm:$0xf]
      %v899 = vld [vmem:[%s885 + $0x34] sm:$0xf]
      %v900 = vld [vmem:[%s885 + $0x38] sm:$0xf]
      %v901 = vld [vmem:[%s885 + $0x3c] sm:$0xf]
      %v918 = vunpack.c.l.b16 %v886
      %v919 = vunpack.c.l.b16 %v887
      %v920 = vunpack.c.l.b16 %v888
      %v921 = vunpack.c.l.b16 %v889
      %v922 = vunpack.c.l.b16 %v890
      %v923 = vunpack.c.l.b16 %v891
      %v924 = vunpack.c.l.b16 %v892
      %v925 = vunpack.c.l.b16 %v893
      %v926 = vunpack.c.l.b16 %v894
      %v927 = vunpack.c.l.b16 %v895
      %v928 = vunpack.c.l.b16 %v896
      %v929 = vunpack.c.l.b16 %v897
      %v930 = vunpack.c.l.b16 %v898
      %v931 = vunpack.c.l.b16 %v899
      %v932 = vunpack.c.l.b16 %v900
      %v933 = vunpack.c.l.b16 %v901
      %v934 = vpack.c.b16 %v919, %v918
      %v935 = vpack.c.b16 %v921, %v920
      %v936 = vpack.c.b16 %v923, %v922
      %v937 = vpack.c.b16 %v925, %v924
      %v938 = vpack.c.b16 %v927, %v926
      %v939 = vpack.c.b16 %v929, %v928
      %v940 = vpack.c.b16 %v931, %v930
      %v941 = vpack.c.b16 %v933, %v932
      %950 = vmatpush.bf16.msra.mxu0 %v941
      %951 = vmatpush.bf16.msra.mxu0 %v940
      %952 = vmatpush.bf16.msra.mxu0 %v939
      %953 = vmatpush.bf16.msra.mxu0 %v938
      %954 = vmatpush.bf16.msra.mxu0 %v937
      %955 = vmatpush.bf16.msra.mxu0 %v936
      %956 = vmatpush.bf16.msra.mxu0 %v935
      %957 = vmatpush.bf16.msra.mxu0 %v934
      %958 = vmatmul.bf16.gmra.mxu0 %v884
      %v959 = vpop.f32.mrf.mxu0
      %v960 = vadd.f32 0.0, %v959
      %v961 = vpop.f32.mrf.mxu0
      %962 = vdwg.mxu0
      %v963 = vadd.f32 %v865, %v960
      %s964 = scalar_lea.vmem %s5, 8
      %v965 = vld [vmem:[%s964] sm:$0x3]
      %v967 = vsel %vm570, %v965, 0
      %969 = vmatpush.bf16.msra.mxu0 0
      %970 = vmatpush.bf16.msra.mxu0 0
      %971 = vmatpush.bf16.msra.mxu0 0
      %972 = vmatpush.bf16.msra.mxu0 0
      %973 = vmatpush.bf16.msra.mxu0 0
      %974 = vmatpush.bf16.msra.mxu0 0
      %975 = vmatpush.bf16.msra.mxu0 0
      %976 = vmatpush.bf16.msra.mxu0 %v576
      %977 = vmatmul.bf16.gmra.mxu0 %v967
      %v978 = vpop.f32.mrf.mxu0
      %v979 = vadd.f32 0.0, %v978
      %v980 = vpop.f32.mrf.mxu0
      %981 = vdwg.mxu0
      %v982 = vpack.c.bf16 %v979, %v979
      %s983 = scalar_lea.vmem %s3, 256
      %v984 = vld [vmem:[%s983] sm:$0xf]
      %v985 = vld [vmem:[%s983 + $0x4] sm:$0xf]
      %v986 = vld [vmem:[%s983 + $0x8] sm:$0xf]
      %v987 = vld [vmem:[%s983 + $0xc] sm:$0xf]
      %v988 = vld [vmem:[%s983 + $0x10] sm:$0xf]
      %v989 = vld [vmem:[%s983 + $0x14] sm:$0xf]
      %v990 = vld [vmem:[%s983 + $0x18] sm:$0xf]
      %v991 = vld [vmem:[%s983 + $0x1c] sm:$0xf]
      %v992 = vld [vmem:[%s983 + $0x20] sm:$0xf]
      %v993 = vld [vmem:[%s983 + $0x24] sm:$0xf]
      %v994 = vld [vmem:[%s983 + $0x28] sm:$0xf]
      %v995 = vld [vmem:[%s983 + $0x2c] sm:$0xf]
      %v996 = vld [vmem:[%s983 + $0x30] sm:$0xf]
      %v997 = vld [vmem:[%s983 + $0x34] sm:$0xf]
      %v998 = vld [vmem:[%s983 + $0x38] sm:$0xf]
      %v999 = vld [vmem:[%s983 + $0x3c] sm:$0xf]
      %v1016 = vunpack.c.l.b16 %v984
      %v1017 = vunpack.c.l.b16 %v985
      %v1018 = vunpack.c.l.b16 %v986
      %v1019 = vunpack.c.l.b16 %v987
      %v1020 = vunpack.c.l.b16 %v988
      %v1021 = vunpack.c.l.b16 %v989
      %v1022 = vunpack.c.l.b16 %v990
      %v1023 = vunpack.c.l.b16 %v991
      %v1024 = vunpack.c.l.b16 %v992
      %v1025 = vunpack.c.l.b16 %v993
      %v1026 = vunpack.c.l.b16 %v994
      %v1027 = vunpack.c.l.b16 %v995
      %v1028 = vunpack.c.l.b16 %v996
      %v1029 = vunpack.c.l.b16 %v997
      %v1030 = vunpack.c.l.b16 %v998
      %v1031 = vunpack.c.l.b16 %v999
      %v1032 = vpack.c.b16 %v1017, %v1016
      %v1033 = vpack.c.b16 %v1019, %v1018
      %v1034 = vpack.c.b16 %v1021, %v1020
      %v1035 = vpack.c.b16 %v1023, %v1022
      %v1036 = vpack.c.b16 %v1025, %v1024
      %v1037 = vpack.c.b16 %v1027, %v1026
      %v1038 = vpack.c.b16 %v1029, %v1028
      %v1039 = vpack.c.b16 %v1031, %v1030
      %1048 = vmatpush.bf16.msra.mxu0 %v1039
      %1049 = vmatpush.bf16.msra.mxu0 %v1038
      %1050 = vmatpush.bf16.msra.mxu0 %v1037
      %1051 = vmatpush.bf16.msra.mxu0 %v1036
      %1052 = vmatpush.bf16.msra.mxu0 %v1035
      %1053 = vmatpush.bf16.msra.mxu0 %v1034
      %1054 = vmatpush.bf16.msra.mxu0 %v1033
      %1055 = vmatpush.bf16.msra.mxu0 %v1032
      %1056 = vmatmul.bf16.gmra.mxu0 %v982
      %v1057 = vpop.f32.mrf.mxu0
      %v1058 = vadd.f32 0.0, %v1057
      %v1059 = vpop.f32.mrf.mxu0
      %1060 = vdwg.mxu0
      %v1061 = vadd.f32 %v963, %v1058
      %s1062 = scalar_lea.vmem %s5, 10
      %v1063 = vld [vmem:[%s1062] sm:$0x3]
      %v1065 = vsel %vm570, %v1063, 0
      %1067 = vmatpush.bf16.msra.mxu0 0
      %1068 = vmatpush.bf16.msra.mxu0 0
      %1069 = vmatpush.bf16.msra.mxu0 0
      %1070 = vmatpush.bf16.msra.mxu0 0
      %1071 = vmatpush.bf16.msra.mxu0 0
      %1072 = vmatpush.bf16.msra.mxu0 0
      %1073 = vmatpush.bf16.msra.mxu0 0
      %1074 = vmatpush.bf16.msra.mxu0 %v576
      %1075 = vmatmul.bf16.gmra.mxu0 %v1065
      %v1076 = vpop.f32.mrf.mxu0
      %v1077 = vadd.f32 0.0, %v1076
      %v1078 = vpop.f32.mrf.mxu0
      %1079 = vdwg.mxu0
      %v1080 = vpack.c.bf16 %v1077, %v1077
      %s1081 = scalar_lea.vmem %s3, 320
      %v1082 = vld [vmem:[%s1081] sm:$0xf]
      %v1083 = vld [vmem:[%s1081 + $0x4] sm:$0xf]
      %v1084 = vld [vmem:[%s1081 + $0x8] sm:$0xf]
      %v1085 = vld [vmem:[%s1081 + $0xc] sm:$0xf]
      %v1086 = vld [vmem:[%s1081 + $0x10] sm:$0xf]
      %v1087 = vld [vmem:[%s1081 + $0x14] sm:$0xf]
      %v1088 = vld [vmem:[%s1081 + $0x18] sm:$0xf]
      %v1089 = vld [vmem:[%s1081 + $0x1c] sm:$0xf]
      %v1090 = vld [vmem:[%s1081 + $0x20] sm:$0xf]
      %v1091 = vld [vmem:[%s1081 + $0x24] sm:$0xf]
      %v1092 = vld [vmem:[%s1081 + $0x28] sm:$0xf]
      %v1093 = vld [vmem:[%s1081 + $0x2c] sm:$0xf]
      %v1094 = vld [vmem:[%s1081 + $0x30] sm:$0xf]
      %v1095 = vld [vmem:[%s1081 + $0x34] sm:$0xf]
      %v1096 = vld [vmem:[%s1081 + $0x38] sm:$0xf]
      %v1097 = vld [vmem:[%s1081 + $0x3c] sm:$0xf]
      %v1114 = vunpack.c.l.b16 %v1082
      %v1115 = vunpack.c.l.b16 %v1083
      %v1116 = vunpack.c.l.b16 %v1084
      %v1117 = vunpack.c.l.b16 %v1085
      %v1118 = vunpack.c.l.b16 %v1086
      %v1119 = vunpack.c.l.b16 %v1087
      %v1120 = vunpack.c.l.b16 %v1088
      %v1121 = vunpack.c.l.b16 %v1089
      %v1122 = vunpack.c.l.b16 %v1090
      %v1123 = vunpack.c.l.b16 %v1091
      %v1124 = vunpack.c.l.b16 %v1092
      %v1125 = vunpack.c.l.b16 %v1093
      %v1126 = vunpack.c.l.b16 %v1094
      %v1127 = vunpack.c.l.b16 %v1095
      %v1128 = vunpack.c.l.b16 %v1096
      %v1129 = vunpack.c.l.b16 %v1097
      %v1130 = vpack.c.b16 %v1115, %v1114
      %v1131 = vpack.c.b16 %v1117, %v1116
      %v1132 = vpack.c.b16 %v1119, %v1118
      %v1133 = vpack.c.b16 %v1121, %v1120
      %v1134 = vpack.c.b16 %v1123, %v1122
      %v1135 = vpack.c.b16 %v1125, %v1124
      %v1136 = vpack.c.b16 %v1127, %v1126
      %v1137 = vpack.c.b16 %v1129, %v1128
      %1146 = vmatpush.bf16.msra.mxu0 %v1137
      %1147 = vmatpush.bf16.msra.mxu0 %v1136
      %1148 = vmatpush.bf16.msra.mxu0 %v1135
      %1149 = vmatpush.bf16.msra.mxu0 %v1134
      %1150 = vmatpush.bf16.msra.mxu0 %v1133
      %1151 = vmatpush.bf16.msra.mxu0 %v1132
      %1152 = vmatpush.bf16.msra.mxu0 %v1131
      %1153 = vmatpush.bf16.msra.mxu0 %v1130
      %1154 = vmatmul.bf16.gmra.mxu0 %v1080
      %v1155 = vpop.f32.mrf.mxu0
      %v1156 = vadd.f32 0.0, %v1155
      %v1157 = vpop.f32.mrf.mxu0
      %1158 = vdwg.mxu0
      %v1159 = vadd.f32 %v1061, %v1156
      %s1160 = scalar_lea.vmem %s5, 12
      %v1161 = vld [vmem:[%s1160] sm:$0x3]
      %v1163 = vsel %vm570, %v1161, 0
      %1165 = vmatpush.bf16.msra.mxu0 0
      %1166 = vmatpush.bf16.msra.mxu0 0
      %1167 = vmatpush.bf16.msra.mxu0 0
      %1168 = vmatpush.bf16.msra.mxu0 0
      %1169 = vmatpush.bf16.msra.mxu0 0
      %1170 = vmatpush.bf16.msra.mxu0 0
      %1171 = vmatpush.bf16.msra.mxu0 0
      %1172 = vmatpush.bf16.msra.mxu0 %v576
      %1173 = vmatmul.bf16.gmra.mxu0 %v1163
      %v1174 = vpop.f32.mrf.mxu0
      %v1175 = vadd.f32 0.0, %v1174
      %v1176 = vpop.f32.mrf.mxu0
      %1177 = vdwg.mxu0
      %v1178 = vpack.c.bf16 %v1175, %v1175
      %s1179 = scalar_lea.vmem %s3, 384
      %v1180 = vld [vmem:[%s1179] sm:$0xf]
      %v1181 = vld [vmem:[%s1179 + $0x4] sm:$0xf]
      %v1182 = vld [vmem:[%s1179 + $0x8] sm:$0xf]
      %v1183 = vld [vmem:[%s1179 + $0xc] sm:$0xf]
      %v1184 = vld [vmem:[%s1179 + $0x10] sm:$0xf]
      %v1185 = vld [vmem:[%s1179 + $0x14] sm:$0xf]
      %v1186 = vld [vmem:[%s1179 + $0x18] sm:$0xf]
      %v1187 = vld [vmem:[%s1179 + $0x1c] sm:$0xf]
      %v1188 = vld [vmem:[%s1179 + $0x20] sm:$0xf]
      %v1189 = vld [vmem:[%s1179 + $0x24] sm:$0xf]
      %v1190 = vld [vmem:[%s1179 + $0x28] sm:$0xf]
      %v1191 = vld [vmem:[%s1179 + $0x2c] sm:$0xf]
      %v1192 = vld [vmem:[%s1179 + $0x30] sm:$0xf]
      %v1193 = vld [vmem:[%s1179 + $0x34] sm:$0xf]
      %v1194 = vld [vmem:[%s1179 + $0x38] sm:$0xf]
      %v1195 = vld [vmem:[%s1179 + $0x3c] sm:$0xf]
      %v1212 = vunpack.c.l.b16 %v1180
      %v1213 = vunpack.c.l.b16 %v1181
      %v1214 = vunpack.c.l.b16 %v1182
      %v1215 = vunpack.c.l.b16 %v1183
      %v1216 = vunpack.c.l.b16 %v1184
      %v1217 = vunpack.c.l.b16 %v1185
      %v1218 = vunpack.c.l.b16 %v1186
      %v1219 = vunpack.c.l.b16 %v1187
      %v1220 = vunpack.c.l.b16 %v1188
      %v1221 = vunpack.c.l.b16 %v1189
      %v1222 = vunpack.c.l.b16 %v1190
      %v1223 = vunpack.c.l.b16 %v1191
      %v1224 = vunpack.c.l.b16 %v1192
      %v1225 = vunpack.c.l.b16 %v1193
      %v1226 = vunpack.c.l.b16 %v1194
      %v1227 = vunpack.c.l.b16 %v1195
      %v1228 = vpack.c.b16 %v1213, %v1212
      %v1229 = vpack.c.b16 %v1215, %v1214
      %v1230 = vpack.c.b16 %v1217, %v1216
      %v1231 = vpack.c.b16 %v1219, %v1218
      %v1232 = vpack.c.b16 %v1221, %v1220
      %v1233 = vpack.c.b16 %v1223, %v1222
      %v1234 = vpack.c.b16 %v1225, %v1224
      %v1235 = vpack.c.b16 %v1227, %v1226
      %1244 = vmatpush.bf16.msra.mxu0 %v1235
      %1245 = vmatpush.bf16.msra.mxu0 %v1234
      %1246 = vmatpush.bf16.msra.mxu0 %v1233
      %1247 = vmatpush.bf16.msra.mxu0 %v1232
      %1248 = vmatpush.bf16.msra.mxu0 %v1231
      %1249 = vmatpush.bf16.msra.mxu0 %v1230
      %1250 = vmatpush.bf16.msra.mxu0 %v1229
      %1251 = vmatpush.bf16.msra.mxu0 %v1228
      %1252 = vmatmul.bf16.gmra.mxu0 %v1178
      %v1253 = vpop.f32.mrf.mxu0
      %v1254 = vadd.f32 0.0, %v1253
      %v1255 = vpop.f32.mrf.mxu0
      %1256 = vdwg.mxu0
      %v1257 = vadd.f32 %v1159, %v1254
      %s1258 = scalar_lea.vmem %s5, 14
      %v1259 = vld [vmem:[%s1258] sm:$0x3]
      %v1261 = vsel %vm570, %v1259, 0
      %1263 = vmatpush.bf16.msra.mxu0 0
      %1264 = vmatpush.bf16.msra.mxu0 0
      %1265 = vmatpush.bf16.msra.mxu0 0
      %1266 = vmatpush.bf16.msra.mxu0 0
      %1267 = vmatpush.bf16.msra.mxu0 0
      %1268 = vmatpush.bf16.msra.mxu0 0
      %1269 = vmatpush.bf16.msra.mxu0 0
      %1270 = vmatpush.bf16.msra.mxu0 %v576
      %1271 = vmatmul.bf16.gmra.mxu0 %v1261
      %v1272 = vpop.f32.mrf.mxu0
      %v1273 = vadd.f32 0.0, %v1272
      %v1274 = vpop.f32.mrf.mxu0
      %1275 = vdwg.mxu0
      %v1276 = vpack.c.bf16 %v1273, %v1273
      %s1277 = scalar_lea.vmem %s3, 448
      %v1278 = vld [vmem:[%s1277] sm:$0xf]
      %v1279 = vld [vmem:[%s1277 + $0x4] sm:$0xf]
      %v1280 = vld [vmem:[%s1277 + $0x8] sm:$0xf]
      %v1281 = vld [vmem:[%s1277 + $0xc] sm:$0xf]
      %v1282 = vld [vmem:[%s1277 + $0x10] sm:$0xf]
      %v1283 = vld [vmem:[%s1277 + $0x14] sm:$0xf]
      %v1284 = vld [vmem:[%s1277 + $0x18] sm:$0xf]
      %v1285 = vld [vmem:[%s1277 + $0x1c] sm:$0xf]
      %v1286 = vld [vmem:[%s1277 + $0x20] sm:$0xf]
      %v1287 = vld [vmem:[%s1277 + $0x24] sm:$0xf]
      %v1288 = vld [vmem:[%s1277 + $0x28] sm:$0xf]
      %v1289 = vld [vmem:[%s1277 + $0x2c] sm:$0xf]
      %v1290 = vld [vmem:[%s1277 + $0x30] sm:$0xf]
      %v1291 = vld [vmem:[%s1277 + $0x34] sm:$0xf]
      %v1292 = vld [vmem:[%s1277 + $0x38] sm:$0xf]
      %v1293 = vld [vmem:[%s1277 + $0x3c] sm:$0xf]
      %v1310 = vunpack.c.l.b16 %v1278
      %v1311 = vunpack.c.l.b16 %v1279
      %v1312 = vunpack.c.l.b16 %v1280
      %v1313 = vunpack.c.l.b16 %v1281
      %v1314 = vunpack.c.l.b16 %v1282
      %v1315 = vunpack.c.l.b16 %v1283
      %v1316 = vunpack.c.l.b16 %v1284
      %v1317 = vunpack.c.l.b16 %v1285
      %v1318 = vunpack.c.l.b16 %v1286
      %v1319 = vunpack.c.l.b16 %v1287
      %v1320 = vunpack.c.l.b16 %v1288
      %v1321 = vunpack.c.l.b16 %v1289
      %v1322 = vunpack.c.l.b16 %v1290
      %v1323 = vunpack.c.l.b16 %v1291
      %v1324 = vunpack.c.l.b16 %v1292
      %v1325 = vunpack.c.l.b16 %v1293
      %v1326 = vpack.c.b16 %v1311, %v1310
      %v1327 = vpack.c.b16 %v1313, %v1312
      %v1328 = vpack.c.b16 %v1315, %v1314
      %v1329 = vpack.c.b16 %v1317, %v1316
      %v1330 = vpack.c.b16 %v1319, %v1318
      %v1331 = vpack.c.b16 %v1321, %v1320
      %v1332 = vpack.c.b16 %v1323, %v1322
      %v1333 = vpack.c.b16 %v1325, %v1324
      %1342 = vmatpush.bf16.msra.mxu0 %v1333
      %1343 = vmatpush.bf16.msra.mxu0 %v1332
      %1344 = vmatpush.bf16.msra.mxu0 %v1331
      %1345 = vmatpush.bf16.msra.mxu0 %v1330
      %1346 = vmatpush.bf16.msra.mxu0 %v1329
      %1347 = vmatpush.bf16.msra.mxu0 %v1328
      %1348 = vmatpush.bf16.msra.mxu0 %v1327
      %1349 = vmatpush.bf16.msra.mxu0 %v1326
      %1350 = vmatmul.bf16.gmra.mxu0 %v1276
      %v1351 = vpop.f32.mrf.mxu0
      %v1352 = vadd.f32 0.0, %v1351
      %v1353 = vpop.f32.mrf.mxu0
      %1354 = vdwg.mxu0
      %v1355 = vadd.f32 %v1257, %v1352
      %s1356 = scalar_lea.vmem %s5, 16
      %v1357 = vld [vmem:[%s1356] sm:$0x3]
      %v1359 = vsel %vm570, %v1357, 0
      %1361 = vmatpush.bf16.msra.mxu0 0
      %1362 = vmatpush.bf16.msra.mxu0 0
      %1363 = vmatpush.bf16.msra.mxu0 0
      %1364 = vmatpush.bf16.msra.mxu0 0
      %1365 = vmatpush.bf16.msra.mxu0 0
      %1366 = vmatpush.bf16.msra.mxu0 0
      %1367 = vmatpush.bf16.msra.mxu0 0
      %1368 = vmatpush.bf16.msra.mxu0 %v576
      %1369 = vmatmul.bf16.gmra.mxu0 %v1359
      %v1370 = vpop.f32.mrf.mxu0
      %v1371 = vadd.f32 0.0, %v1370
      %v1372 = vpop.f32.mrf.mxu0
      %1373 = vdwg.mxu0
      %v1374 = vpack.c.bf16 %v1371, %v1371
      %s1375 = scalar_lea.vmem %s3, 512
      %v1376 = vld [vmem:[%s1375] sm:$0xf]
      %v1377 = vld [vmem:[%s1375 + $0x4] sm:$0xf]
      %v1378 = vld [vmem:[%s1375 + $0x8] sm:$0xf]
      %v1379 = vld [vmem:[%s1375 + $0xc] sm:$0xf]
      %v1380 = vld [vmem:[%s1375 + $0x10] sm:$0xf]
      %v1381 = vld [vmem:[%s1375 + $0x14] sm:$0xf]
      %v1382 = vld [vmem:[%s1375 + $0x18] sm:$0xf]
      %v1383 = vld [vmem:[%s1375 + $0x1c] sm:$0xf]
      %v1384 = vld [vmem:[%s1375 + $0x20] sm:$0xf]
      %v1385 = vld [vmem:[%s1375 + $0x24] sm:$0xf]
      %v1386 = vld [vmem:[%s1375 + $0x28] sm:$0xf]
      %v1387 = vld [vmem:[%s1375 + $0x2c] sm:$0xf]
      %v1388 = vld [vmem:[%s1375 + $0x30] sm:$0xf]
      %v1389 = vld [vmem:[%s1375 + $0x34] sm:$0xf]
      %v1390 = vld [vmem:[%s1375 + $0x38] sm:$0xf]
      %v1391 = vld [vmem:[%s1375 + $0x3c] sm:$0xf]
      %v1408 = vunpack.c.l.b16 %v1376
      %v1409 = vunpack.c.l.b16 %v1377
      %v1410 = vunpack.c.l.b16 %v1378
      %v1411 = vunpack.c.l.b16 %v1379
      %v1412 = vunpack.c.l.b16 %v1380
      %v1413 = vunpack.c.l.b16 %v1381
      %v1414 = vunpack.c.l.b16 %v1382
      %v1415 = vunpack.c.l.b16 %v1383
      %v1416 = vunpack.c.l.b16 %v1384
      %v1417 = vunpack.c.l.b16 %v1385
      %v1418 = vunpack.c.l.b16 %v1386
      %v1419 = vunpack.c.l.b16 %v1387
      %v1420 = vunpack.c.l.b16 %v1388
      %v1421 = vunpack.c.l.b16 %v1389
      %v1422 = vunpack.c.l.b16 %v1390
      %v1423 = vunpack.c.l.b16 %v1391
      %v1424 = vpack.c.b16 %v1409, %v1408
      %v1425 = vpack.c.b16 %v1411, %v1410
      %v1426 = vpack.c.b16 %v1413, %v1412
      %v1427 = vpack.c.b16 %v1415, %v1414
      %v1428 = vpack.c.b16 %v1417, %v1416
      %v1429 = vpack.c.b16 %v1419, %v1418
      %v1430 = vpack.c.b16 %v1421, %v1420
      %v1431 = vpack.c.b16 %v1423, %v1422
      %1440 = vmatpush.bf16.msra.mxu0 %v1431
      %1441 = vmatpush.bf16.msra.mxu0 %v1430
      %1442 = vmatpush.bf16.msra.mxu0 %v1429
      %1443 = vmatpush.bf16.msra.mxu0 %v1428
      %1444 = vmatpush.bf16.msra.mxu0 %v1427
      %1445 = vmatpush.bf16.msra.mxu0 %v1426
      %1446 = vmatpush.bf16.msra.mxu0 %v1425
      %1447 = vmatpush.bf16.msra.mxu0 %v1424
      %1448 = vmatmul.bf16.gmra.mxu0 %v1374
      %v1449 = vpop.f32.mrf.mxu0
      %v1450 = vadd.f32 0.0, %v1449
      %v1451 = vpop.f32.mrf.mxu0
      %1452 = vdwg.mxu0
      %v1453 = vadd.f32 %v1355, %v1450
      %v1454 = vmax.f32 %v1453, 0.0
      %v1455 = vpack.c.bf16 %v1454, %v1454
      %1456 = vst [vmem:[%s249] sm:$0x3] %v1455
      %p1457 = scmp.lt.s32.totalorder %s17, 1
      %s1458 = scalar_select %p1457, %s17, 1
      %s1459 = smul.addr %s1458, 2
      %s1460 = scalar_lea.vmem %s6, %s1459
      // Predicated region
      $region45: #{backbone_base_forward.8} parent=43 // pred_check
        %p1461 = pneg %p166
      $region46: #{backbone_base_forward.8} parent=43 // pred_check_branch
        %1463 = sbr.rel (%p1461) target = $region48
      $region47: #{backbone_base_forward.8} parent=43 // pred_region
        _
      $region48: #{backbone_base_forward.8} parent=43 // pred_fallthru
        _
    $region44: #{backbone_base_forward.8} parent=5 // pred_fallthru
      _
    %p1464 = scmp.le.s32.totalorder 2, %s12
    // Predicated region
    $region49: #{backbone_base_forward.8} parent=5 // pred_check
      %p1465 = pneg %p1464
    $region50: #{backbone_base_forward.8} parent=5 // pred_check_branch
      %1467 = sbr.rel (%p1465) target = $region52
    $region51: #{backbone_base_forward.8} parent=5 // pred_region
      %s1468 = ssub.s32 %s12, 2
      // Predicated region
      $region53: #{backbone_base_forward.8} parent=51 // pred_check
        %p1469 = pneg %p172
      $region54: #{backbone_base_forward.8} parent=51 // pred_check_branch
        %1471 = sbr.rel (%p1469) target = $region56
      $region55: #{backbone_base_forward.8} parent=51 // pred_region
        %p1472 = scmp.lt.s32.totalorder %s18, 1
        %s1473 = scalar_select %p1472, %s18, 1
        %s1474 = smul.addr %s1473, 2
        %s1475 = scalar_lea.vmem %s6, %s1474
      $region56: #{backbone_base_forward.8} parent=51 // pred_fallthru
        _
    $region52: #{backbone_base_forward.8} parent=5 // pred_fallthru
      _
  $region6: #{backbone_base_forward.8} parent=0 // loop_footer
    %s16 = sadd.s32 1, %s12
  $region7: #{backbone_base_forward.8} parent=0 // loop_footer_branch
    %11 = sbr.rel target = $region3
  $region8: #{backbone_base_forward.8} parent=0 // loop_exit
    _

</llo_original>
